<compile_context>
chip_gen: v5e
topology: v5e:2x2
jax: 0.10.0
libtpu: 0.0.40
codegen_flags: <defaults>
</compile_context>

<pallas_src>
import functools
import math

import jax
import jax.numpy as jnp
from jax.experimental import pallas as pl
from jax.experimental.pallas import tpu as pltpu


# ------------------------------ in-kernel math ------------------------------

def _erf(z):
    # Abramowitz & Stegun 7.1.26 polynomial (|err| <= 1.5e-7). Uses only
    # exp/mul/add/select so it lowers on every TPU generation in f32.
    a1, a2, a3, a4, a5 = (0.254829592, -0.284496736, 1.421413741,
                          -1.453152027, 1.061405429)
    p = 0.3275911
    za = jnp.abs(z)
    t = 1.0 / (1.0 + p * za)
    poly = ((((a5 * t + a4) * t + a3) * t + a2) * t + a1) * t
    y = 1.0 - poly * jnp.exp(-za * za)
    return jnp.where(z < 0.0, -y, y)


def _gelu_exact(x):
    # TODO(synk): exact erf-based nn.GELU is approximated by the polynomial
    # above (<= 1.5e-7 abs error) since lax.erf lowering is not guaranteed.
    return 0.5 * x * (1.0 + _erf(x * (1.0 / math.sqrt(2.0))))


def _layer_norm(x, gamma, beta, eps):
    mu = jnp.mean(x, axis=-1, keepdims=True)
    xc = x - mu
    var = jnp.mean(xc * xc, axis=-1, keepdims=True)
    return xc * jax.lax.rsqrt(var + eps) * gamma + beta


# --------------------------------- kernel -----------------------------------

def _self_attention_kernel(x_ref, g1_ref, be1_ref, wqkv_ref, bqkv_ref,
                           wo_ref, bo_ref, mblk_ref,
                           g2_ref, be2_ref, w1_ref, bb1_ref, w2_ref, bb2_ref,
                           o_ref, *, num_heads, eps):
    B, tS, C = x_ref.shape           # B = attention axis (MHA sequence axis)
    Dh = C // num_heads
    scale = 1.0 / math.sqrt(Dh)

    g1, be1 = g1_ref[...], be1_ref[...]
    g2, be2 = g2_ref[...], be2_ref[...]
    wqkv = wqkv_ref[...]             # (C, 3C) bf16
    bqkv = bqkv_ref[...]             # (1, 3C) f32
    mblk = mblk_ref[...]             # (C, C) f32 block-diagonal head mask

    # ---- LayerNorm(ln) + fused QKV projection (bf16 MXU, f32 accumulate) ----
    xs, qs, ks, vs = [], [], [], []
    for b in range(B):               # B is small & static -> unrolled
        xb = x_ref[b]                                        # (tS, C) f32
        xs.append(xb)
        ln = _layer_norm(xb, g1, be1, eps)
        qkv = jnp.dot(ln.astype(jnp.bfloat16), wqkv,
                      preferred_element_type=jnp.float32) + bqkv
        qs.append(qkv[:, :C] * scale)          # PyTorch scales q by 1/sqrt(Dh)
        ks.append(qkv[:, C:2 * C])
        vs.append(qkv[:, 2 * C:])

    # ---- per-(position, head) softmax attention over the B axis, then
    #      out-projection + residual + fused LN/Linear/GELU/Linear + residual.
    # mblk sums q*k over the lanes of each head and broadcasts the per-head
    # score back across that head's lanes, so everything stays 128-lane dense.
    for b1 in range(B):
        s_list = [jnp.dot(qs[b1] * ks[b2], mblk,
                          preferred_element_type=jnp.float32)   # (tS, C)
                  for b2 in range(B)]
        m = s_list[0]
        for sc in s_list[1:]:
            m = jnp.maximum(m, sc)
        e_list = [jnp.exp(sc - m) for sc in s_list]
        den = e_list[0]
        for e in e_list[1:]:
            den = den + e
        inv = 1.0 / den

        ctx = None
        for b2 in range(B):
            term = (e_list[b2] * inv) * vs[b2]
            ctx = term if ctx is None else ctx + term            # (tS, C)

        # out-projection + first residual
        y = (jnp.dot(ctx.astype(jnp.bfloat16), wo_ref[...],
                     preferred_element_type=jnp.float32)
             + bo_ref[...] + xs[b1])

        # ff_self: LayerNorm -> Linear -> GELU -> Linear, + second residual
        h = _layer_norm(y, g2, be2, eps)
        h = jnp.dot(h.astype(jnp.bfloat16), w1_ref[...],
                    preferred_element_type=jnp.float32) + bb1_ref[...]
        h = _gelu_exact(h)
        h = jnp.dot(h.astype(jnp.bfloat16), w2_ref[...],
                    preferred_element_type=jnp.float32) + bb2_ref[...]
        o_ref[b1, :, :] = h + y


# --------------------------------- wrapper -----------------------------------

def _pick_ts(S, cap=1024):
    """Largest power-of-two divisor of S that is >=8 and <= cap, else S."""
    best, t = None, 8
    while t <= min(S, cap):
        if S % t == 0:
            best = t
        t *= 2
    return best if best is not None else S


@functools.partial(jax.jit, static_argnames=("num_heads", "eps"))
def self_attention_forward(x_nchw, params, num_heads=4, eps=1e-5):
    B, C, Hh, Ww = x_nchw.shape
    S = Hh * Ww
    assert C % num_heads == 0
    Dh = C // num_heads

    # NCHW -> (B, S, C)  (layout glue stays in XLA outside the kernel)
    x3 = jnp.transpose(x_nchw.reshape(B, C, S), (0, 2, 1)).astype(jnp.float32)

    # block-diagonal head-membership matrix: mblk[c1,c2] = (head(c1)==head(c2))
    head_id = jnp.arange(C, dtype=jnp.int32) // Dh
    mblk = (head_id[:, None] == head_id[None, :]).astype(jnp.float32)

    f32, bf16 = jnp.float32, jnp.bfloat16
    g1 = params["ln_gamma"].reshape(1, C).astype(f32)
    be1 = params["ln_beta"].reshape(1, C).astype(f32)
    wqkv = jnp.transpose(params["in_proj_w"]).astype(bf16)       # (C, 3C)
    bqkv = params["in_proj_b"].reshape(1, 3 * C).astype(f32)
    wo = jnp.transpose(params["out_proj_w"]).astype(bf16)        # (C, C)
    bo = params["out_proj_b"].reshape(1, C).astype(f32)
    g2 = params["ff_ln_gamma"].reshape(1, C).astype(f32)
    be2 = params["ff_ln_beta"].reshape(1, C).astype(f32)
    w1 = jnp.transpose(params["ff_w1"]).astype(bf16)             # (C, C)
    bb1 = params["ff_b1"].reshape(1, C).astype(f32)
    w2 = jnp.transpose(params["ff_w2"]).astype(bf16)             # (C, C)
    bb2 = params["ff_b2"].reshape(1, C).astype(f32)

    tS = _pick_ts(S)
    grid = (S // tS,)

    act_spec = pl.BlockSpec((B, tS, C), lambda i: (0, i, 0))
    full = lambda i: (0, 0)

    flops = 2 * B * S * C * (6 * C) + 2 * B * B * S * C * (C + 1)
    bytes_accessed = (2 * B * S * C * 4                       # x in, out
                      + (3 * C * C + 3 * C * C) * 2           # bf16 weights
                      + C * C * 4 + 12 * C * 4)               # mblk + vectors
    cost = pl.CostEstimate(flops=int(flops),
                           transcendentals=int(B * S * (C + B * C)),
                           bytes_accessed=int(bytes_accessed))

    kernel = functools.partial(_self_attention_kernel,
                               num_heads=num_heads, eps=eps)

    out3 = pl.pallas_call(
        kernel,
        out_shape=jax.ShapeDtypeStruct((B, S, C), jnp.float32),
        grid=grid,
        in_specs=[
            act_spec,                                  # x (B, tS, C)
            pl.BlockSpec((1, C), full),                # ln gamma
            pl.BlockSpec((1, C), full),                # ln beta
            pl.BlockSpec((C, 3 * C), full),            # Wqkv (bf16)
            pl.BlockSpec((1, 3 * C), full),            # bqkv
            pl.BlockSpec((C, C), full),                # Wo (bf16)
            pl.BlockSpec((1, C), full),                # bo
            pl.BlockSpec((C, C), full),                # head block mask
            pl.BlockSpec((1, C), full),                # ff ln gamma
            pl.BlockSpec((1, C), full),                # ff ln beta
            pl.BlockSpec((C, C), full),                # W1 (bf16)
            pl.BlockSpec((1, C), full),                # b1
            pl.BlockSpec((C, C), full),                # W2 (bf16)
            pl.BlockSpec((1, C), full),                # b2
        ],
        out_specs=act_spec,
        compiler_params=pltpu.CompilerParams(
            dimension_semantics=("parallel",),
            vmem_limit_bytes=48 * 1024 * 1024),
        cost_estimate=cost,
    )(x3, g1, be1, wqkv, bqkv, wo, bo, mblk, g2, be2, w1, bb1, w2, bb2)

    # (B, S, C) -> NCHW
    return jnp.transpose(out3, (0, 2, 1)).reshape(B, C, Hh, Ww)


# ------------------------------- parameters ----------------------------------

def init_self_attention_params(key, channels):
    C = channels
    ks = jax.random.split(key, 8)
    w_scale = 1.0 / math.sqrt(C)
    return {
        "ln_gamma": jnp.ones((C,), jnp.float32),
        "ln_beta": jnp.zeros((C,), jnp.float32),
        # nn.MultiheadAttention packed in-projection, PyTorch layout (3C, C)
        "in_proj_w": jax.random.normal(ks[0], (3 * C, C), jnp.float32) * w_scale,
        "in_proj_b": jax.random.normal(ks[1], (3 * C,), jnp.float32) * 0.02,
        "out_proj_w": jax.random.normal(ks[2], (C, C), jnp.float32) * w_scale,
        "out_proj_b": jax.random.normal(ks[3], (C,), jnp.float32) * 0.02,
        "ff_ln_gamma": jnp.ones((C,), jnp.float32),
        "ff_ln_beta": jnp.zeros((C,), jnp.float32),
        "ff_w1": jax.random.normal(ks[4], (C, C), jnp.float32) * w_scale,
        "ff_b1": jax.random.normal(ks[5], (C,), jnp.float32) * 0.02,
        "ff_w2": jax.random.normal(ks[6], (C, C), jnp.float32) * w_scale,
        "ff_b2": jax.random.normal(ks[7], (C,), jnp.float32) * 0.02,
    }


# ----------------------------------- main -------------------------------------

if __name__ == "__main__":
    # channels=128 (divisible by num_heads=4 -> head_dim=32, lane-dense C=128),
    # spatial 16x16 -> S=256, batch=2.
    batch, channels, height, width = 2, 128, 16, 16
    num_heads = 4

    key = jax.random.PRNGKey(0)
    k_params, k_input = jax.random.split(key)
    params = init_self_attention_params(k_params, channels)
    x = jax.random.normal(k_input, (batch, channels, height, width), jnp.float32)

    out = self_attention_forward(x, params, num_heads=num_heads)
    out = jax.block_until_ready(out)

    assert out.shape == (batch, channels, height, width), out.shape
    assert bool(jnp.all(jnp.isfinite(out)))
    print("KERNEL_OK")
</pallas_src>

<mosaic_0001>
module attributes {stable_mosaic.version = 11 : i64} {
  func.func @_self_attention_kernel(%arg0: i32, %arg1: memref<2x256x128xf32, #tpu.memory_space<vmem>>, %arg2: memref<1x128xf32, #tpu.memory_space<vmem>>, %arg3: memref<1x128xf32, #tpu.memory_space<vmem>>, %arg4: memref<128x384xbf16, #tpu.memory_space<vmem>>, %arg5: memref<1x384xf32, #tpu.memory_space<vmem>>, %arg6: memref<128x128xbf16, #tpu.memory_space<vmem>>, %arg7: memref<1x128xf32, #tpu.memory_space<vmem>>, %arg8: memref<128x128xf32, #tpu.memory_space<vmem>>, %arg9: memref<1x128xf32, #tpu.memory_space<vmem>>, %arg10: memref<1x128xf32, #tpu.memory_space<vmem>>, %arg11: memref<128x128xbf16, #tpu.memory_space<vmem>>, %arg12: memref<1x128xf32, #tpu.memory_space<vmem>>, %arg13: memref<128x128xbf16, #tpu.memory_space<vmem>>, %arg14: memref<1x128xf32, #tpu.memory_space<vmem>>, %arg15: memref<2x256x128xf32, #tpu.memory_space<vmem>>) attributes {dimension_semantics = [#tpu.dimension_semantics<parallel>], iteration_bounds = array<i64: 1>, scalar_prefetch = 0 : i64, scratch_operands = 0 : i64, tpu.core_type = #tpu.core_type<tc>, window_params = [{transform_indices = @transform_0, window_bounds = array<i64: 2, 256, 128>}, {pipeline_mode = #tpu.pipeline_mode<synchronous>, transform_indices = @transform_1, window_bounds = array<i64: 1, 128>}, {pipeline_mode = #tpu.pipeline_mode<synchronous>, transform_indices = @transform_2, window_bounds = array<i64: 1, 128>}, {pipeline_mode = #tpu.pipeline_mode<synchronous>, transform_indices = @transform_3, window_bounds = array<i64: 128, 384>}, {pipeline_mode = #tpu.pipeline_mode<synchronous>, transform_indices = @transform_4, window_bounds = array<i64: 1, 384>}, {pipeline_mode = #tpu.pipeline_mode<synchronous>, transform_indices = @transform_5, window_bounds = array<i64: 128, 128>}, {pipeline_mode = #tpu.pipeline_mode<synchronous>, transform_indices = @transform_6, window_bounds = array<i64: 1, 128>}, {pipeline_mode = #tpu.pipeline_mode<synchronous>, transform_indices = @transform_7, window_bounds = array<i64: 128, 128>}, {pipeline_mode = #tpu.pipeline_mode<synchronous>, transform_indices = @transform_8, window_bounds = array<i64: 1, 128>}, {pipeline_mode = #tpu.pipeline_mode<synchronous>, transform_indices = @transform_9, window_bounds = array<i64: 1, 128>}, {pipeline_mode = #tpu.pipeline_mode<synchronous>, transform_indices = @transform_10, window_bounds = array<i64: 128, 128>}, {pipeline_mode = #tpu.pipeline_mode<synchronous>, transform_indices = @transform_11, window_bounds = array<i64: 1, 128>}, {pipeline_mode = #tpu.pipeline_mode<synchronous>, transform_indices = @transform_12, window_bounds = array<i64: 128, 128>}, {pipeline_mode = #tpu.pipeline_mode<synchronous>, transform_indices = @transform_13, window_bounds = array<i64: 1, 128>}, {transform_indices = @transform_14, window_bounds = array<i64: 2, 256, 128>}]} {
    %c0 = arith.constant 0 : index
    %c0_0 = arith.constant 0 : index
    %0 = vector.load %arg2[%c0, %c0_0] : memref<1x128xf32, #tpu.memory_space<vmem>>, vector<1x128xf32>
    %c0_1 = arith.constant 0 : index
    %c0_2 = arith.constant 0 : index
    %1 = vector.load %arg3[%c0_1, %c0_2] : memref<1x128xf32, #tpu.memory_space<vmem>>, vector<1x128xf32>
    %c0_3 = arith.constant 0 : index
    %c0_4 = arith.constant 0 : index
    %2 = vector.load %arg9[%c0_3, %c0_4] : memref<1x128xf32, #tpu.memory_space<vmem>>, vector<1x128xf32>
    %c0_5 = arith.constant 0 : index
    %c0_6 = arith.constant 0 : index
    %3 = vector.load %arg10[%c0_5, %c0_6] : memref<1x128xf32, #tpu.memory_space<vmem>>, vector<1x128xf32>
    %c0_7 = arith.constant 0 : index
    %c0_8 = arith.constant 0 : index
    %4 = vector.load %arg4[%c0_7, %c0_8] : memref<128x384xbf16, #tpu.memory_space<vmem>>, vector<128x384xbf16>
    %c0_9 = arith.constant 0 : index
    %c0_10 = arith.constant 0 : index
    %5 = vector.load %arg5[%c0_9, %c0_10] : memref<1x384xf32, #tpu.memory_space<vmem>>, vector<1x384xf32>
    %c0_11 = arith.constant 0 : index
    %c0_12 = arith.constant 0 : index
    %6 = vector.load %arg8[%c0_11, %c0_12] : memref<128x128xf32, #tpu.memory_space<vmem>>, vector<128x128xf32>
    %c0_13 = arith.constant 0 : index
    %c0_14 = arith.constant 0 : index
    %c0_15 = arith.constant 0 : index
    %7 = vector.load %arg1[%c0_13, %c0_14, %c0_15] : memref<2x256x128xf32, #tpu.memory_space<vmem>>, vector<1x256x128xf32>
    %8 = vector.shape_cast %7 : vector<1x256x128xf32> to vector<256x128xf32>
    %cst = arith.constant dense<0.000000e+00> : vector<256xf32>
    %9 = vector.multi_reduction <add>, %8, %cst [1] : vector<256x128xf32> to vector<256xf32>
    %10 = vector.shape_cast %9 : vector<256xf32> to vector<256x1xf32>
    %cst_16 = arith.constant 1.280000e+02 : f32
    %11 = vector.broadcast %cst_16 : f32 to vector<256x1xf32>
    %12 = arith.divf %10, %11 : vector<256x1xf32>
    %13 = vector.broadcast %12 : vector<256x1xf32> to vector<256x128xf32>
    %14 = arith.subf %8, %13 : vector<256x128xf32>
    %15 = arith.mulf %14, %14 : vector<256x128xf32>
    %cst_17 = arith.constant dense<0.000000e+00> : vector<256xf32>
    %16 = vector.multi_reduction <add>, %15, %cst_17 [1] : vector<256x128xf32> to vector<256xf32>
    %17 = vector.shape_cast %16 : vector<256xf32> to vector<256x1xf32>
    %cst_18 = arith.constant 1.280000e+02 : f32
    %18 = vector.broadcast %cst_18 : f32 to vector<256x1xf32>
    %19 = arith.divf %17, %18 : vector<256x1xf32>
    %cst_19 = arith.constant 9.99999974E-6 : f32
    %20 = vector.broadcast %cst_19 : f32 to vector<256x1xf32>
    %21 = arith.addf %19, %20 : vector<256x1xf32>
    %22 = math.rsqrt %21 : vector<256x1xf32>
    %23 = vector.broadcast %22 : vector<256x1xf32> to vector<256x128xf32>
    %24 = arith.mulf %14, %23 : vector<256x128xf32>
    %25 = vector.broadcast %0 : vector<1x128xf32> to vector<256x128xf32>
    %26 = arith.mulf %24, %25 : vector<256x128xf32>
    %27 = vector.broadcast %1 : vector<1x128xf32> to vector<256x128xf32>
    %28 = arith.addf %26, %27 : vector<256x128xf32>
    %29 = arith.truncf %28 : vector<256x128xf32> to vector<256x128xbf16>
    %cst_20 = arith.constant dense<0.000000e+00> : vector<256x384xf32>
    %30 = tpu.matmul %29, %4, %cst_20 {dimension_numbers = #tpu.dot_dimension_numbers<[1], [0], [0], [1], [0, 0, 1, 1], [], []>} : vector<256x128xbf16>, vector<128x384xbf16>, vector<256x384xf32> -> vector<256x384xf32>
    %31 = vector.broadcast %5 : vector<1x384xf32> to vector<256x384xf32>
    %32 = arith.addf %30, %31 : vector<256x384xf32>
    %33 = vector.extract_strided_slice %32 {offsets = [0, 0], sizes = [256, 128], strides = [1, 1]} : vector<256x384xf32> to vector<256x128xf32>
    %cst_21 = arith.constant 0.176776692 : f32
    %34 = vector.broadcast %cst_21 : f32 to vector<256x128xf32>
    %35 = arith.mulf %33, %34 : vector<256x128xf32>
    %36 = vector.extract_strided_slice %32 {offsets = [0, 128], sizes = [256, 128], strides = [1, 1]} : vector<256x384xf32> to vector<256x128xf32>
    %37 = vector.extract_strided_slice %32 {offsets = [0, 256], sizes = [256, 128], strides = [1, 1]} : vector<256x384xf32> to vector<256x128xf32>
    %c1 = arith.constant 1 : index
    %c0_22 = arith.constant 0 : index
    %c0_23 = arith.constant 0 : index
    %38 = vector.load %arg1[%c1, %c0_22, %c0_23] : memref<2x256x128xf32, #tpu.memory_space<vmem>>, vector<1x256x128xf32>
    %39 = vector.shape_cast %38 : vector<1x256x128xf32> to vector<256x128xf32>
    %cst_24 = arith.constant dense<0.000000e+00> : vector<256xf32>
    %40 = vector.multi_reduction <add>, %39, %cst_24 [1] : vector<256x128xf32> to vector<256xf32>
    %41 = vector.shape_cast %40 : vector<256xf32> to vector<256x1xf32>
    %cst_25 = arith.constant 1.280000e+02 : f32
    %42 = vector.broadcast %cst_25 : f32 to vector<256x1xf32>
    %43 = arith.divf %41, %42 : vector<256x1xf32>
    %44 = vector.broadcast %43 : vector<256x1xf32> to vector<256x128xf32>
    %45 = arith.subf %39, %44 : vector<256x128xf32>
    %46 = arith.mulf %45, %45 : vector<256x128xf32>
    %cst_26 = arith.constant dense<0.000000e+00> : vector<256xf32>
    %47 = vector.multi_reduction <add>, %46, %cst_26 [1] : vector<256x128xf32> to vector<256xf32>
    %48 = vector.shape_cast %47 : vector<256xf32> to vector<256x1xf32>
    %cst_27 = arith.constant 1.280000e+02 : f32
    %49 = vector.broadcast %cst_27 : f32 to vector<256x1xf32>
    %50 = arith.divf %48, %49 : vector<256x1xf32>
    %cst_28 = arith.constant 9.99999974E-6 : f32
    %51 = vector.broadcast %cst_28 : f32 to vector<256x1xf32>
    %52 = arith.addf %50, %51 : vector<256x1xf32>
    %53 = math.rsqrt %52 : vector<256x1xf32>
    %54 = vector.broadcast %53 : vector<256x1xf32> to vector<256x128xf32>
    %55 = arith.mulf %45, %54 : vector<256x128xf32>
    %56 = vector.broadcast %0 : vector<1x128xf32> to vector<256x128xf32>
    %57 = arith.mulf %55, %56 : vector<256x128xf32>
    %58 = vector.broadcast %1 : vector<1x128xf32> to vector<256x128xf32>
    %59 = arith.addf %57, %58 : vector<256x128xf32>
    %60 = arith.truncf %59 : vector<256x128xf32> to vector<256x128xbf16>
    %cst_29 = arith.constant dense<0.000000e+00> : vector<256x384xf32>
    %61 = tpu.matmul %60, %4, %cst_29 {dimension_numbers = #tpu.dot_dimension_numbers<[1], [0], [0], [1], [0, 0, 1, 1], [], []>} : vector<256x128xbf16>, vector<128x384xbf16>, vector<256x384xf32> -> vector<256x384xf32>
    %62 = vector.broadcast %5 : vector<1x384xf32> to vector<256x384xf32>
    %63 = arith.addf %61, %62 : vector<256x384xf32>
    %64 = vector.extract_strided_slice %63 {offsets = [0, 0], sizes = [256, 128], strides = [1, 1]} : vector<256x384xf32> to vector<256x128xf32>
    %cst_30 = arith.constant 0.176776692 : f32
    %65 = vector.broadcast %cst_30 : f32 to vector<256x128xf32>
    %66 = arith.mulf %64, %65 : vector<256x128xf32>
    %67 = vector.extract_strided_slice %63 {offsets = [0, 128], sizes = [256, 128], strides = [1, 1]} : vector<256x384xf32> to vector<256x128xf32>
    %68 = vector.extract_strided_slice %63 {offsets = [0, 256], sizes = [256, 128], strides = [1, 1]} : vector<256x384xf32> to vector<256x128xf32>
    %69 = arith.mulf %35, %36 : vector<256x128xf32>
    %cst_31 = arith.constant dense<0.000000e+00> : vector<256x128xf32>
    %70 = tpu.matmul %69, %6, %cst_31 {dimension_numbers = #tpu.dot_dimension_numbers<[1], [0], [0], [1], [0, 0, 1, 1], [], []>} : vector<256x128xf32>, vector<128x128xf32>, vector<256x128xf32> -> vector<256x128xf32>
    %71 = arith.mulf %35, %67 : vector<256x128xf32>
    %cst_32 = arith.constant dense<0.000000e+00> : vector<256x128xf32>
    %72 = tpu.matmul %71, %6, %cst_32 {dimension_numbers = #tpu.dot_dimension_numbers<[1], [0], [0], [1], [0, 0, 1, 1], [], []>} : vector<256x128xf32>, vector<128x128xf32>, vector<256x128xf32> -> vector<256x128xf32>
    %73 = arith.maximumf %70, %72 : vector<256x128xf32>
    %74 = arith.subf %70, %73 : vector<256x128xf32>
    %75 = math.exp %74 : vector<256x128xf32>
    %76 = arith.subf %72, %73 : vector<256x128xf32>
    %77 = math.exp %76 : vector<256x128xf32>
    %78 = arith.addf %75, %77 : vector<256x128xf32>
    %cst_33 = arith.constant 1.000000e+00 : f32
    %79 = vector.broadcast %cst_33 : f32 to vector<256x128xf32>
    %80 = arith.divf %79, %78 : vector<256x128xf32>
    %81 = arith.mulf %75, %80 : vector<256x128xf32>
    %82 = arith.mulf %81, %37 : vector<256x128xf32>
    %83 = arith.mulf %77, %80 : vector<256x128xf32>
    %84 = arith.mulf %83, %68 : vector<256x128xf32>
    %85 = arith.addf %82, %84 : vector<256x128xf32>
    %86 = arith.truncf %85 : vector<256x128xf32> to vector<256x128xbf16>
    %c0_34 = arith.constant 0 : index
    %c0_35 = arith.constant 0 : index
    %87 = vector.load %arg6[%c0_34, %c0_35] : memref<128x128xbf16, #tpu.memory_space<vmem>>, vector<128x128xbf16>
    %cst_36 = arith.constant dense<0.000000e+00> : vector<256x128xf32>
    %88 = tpu.matmul %86, %87, %cst_36 {dimension_numbers = #tpu.dot_dimension_numbers<[1], [0], [0], [1], [0, 0, 1, 1], [], []>} : vector<256x128xbf16>, vector<128x128xbf16>, vector<256x128xf32> -> vector<256x128xf32>
    %c0_37 = arith.constant 0 : index
    %c0_38 = arith.constant 0 : index
    %89 = vector.load %arg7[%c0_37, %c0_38] : memref<1x128xf32, #tpu.memory_space<vmem>>, vector<1x128xf32>
    %90 = vector.broadcast %89 : vector<1x128xf32> to vector<256x128xf32>
    %91 = arith.addf %88, %90 : vector<256x128xf32>
    %92 = arith.addf %91, %8 : vector<256x128xf32>
    %cst_39 = arith.constant dense<0.000000e+00> : vector<256xf32>
    %93 = vector.multi_reduction <add>, %92, %cst_39 [1] : vector<256x128xf32> to vector<256xf32>
    %94 = vector.shape_cast %93 : vector<256xf32> to vector<256x1xf32>
    %cst_40 = arith.constant 1.280000e+02 : f32
    %95 = vector.broadcast %cst_40 : f32 to vector<256x1xf32>
    %96 = arith.divf %94, %95 : vector<256x1xf32>
    %97 = vector.broadcast %96 : vector<256x1xf32> to vector<256x128xf32>
    %98 = arith.subf %92, %97 : vector<256x128xf32>
    %99 = arith.mulf %98, %98 : vector<256x128xf32>
    %cst_41 = arith.constant dense<0.000000e+00> : vector<256xf32>
    %100 = vector.multi_reduction <add>, %99, %cst_41 [1] : vector<256x128xf32> to vector<256xf32>
    %101 = vector.shape_cast %100 : vector<256xf32> to vector<256x1xf32>
    %cst_42 = arith.constant 1.280000e+02 : f32
    %102 = vector.broadcast %cst_42 : f32 to vector<256x1xf32>
    %103 = arith.divf %101, %102 : vector<256x1xf32>
    %cst_43 = arith.constant 9.99999974E-6 : f32
    %104 = vector.broadcast %cst_43 : f32 to vector<256x1xf32>
    %105 = arith.addf %103, %104 : vector<256x1xf32>
    %106 = math.rsqrt %105 : vector<256x1xf32>
    %107 = vector.broadcast %106 : vector<256x1xf32> to vector<256x128xf32>
    %108 = arith.mulf %98, %107 : vector<256x128xf32>
    %109 = vector.broadcast %2 : vector<1x128xf32> to vector<256x128xf32>
    %110 = arith.mulf %108, %109 : vector<256x128xf32>
    %111 = vector.broadcast %3 : vector<1x128xf32> to vector<256x128xf32>
    %112 = arith.addf %110, %111 : vector<256x128xf32>
    %113 = arith.truncf %112 : vector<256x128xf32> to vector<256x128xbf16>
    %c0_44 = arith.constant 0 : index
    %c0_45 = arith.constant 0 : index
    %114 = vector.load %arg11[%c0_44, %c0_45] : memref<128x128xbf16, #tpu.memory_space<vmem>>, vector<128x128xbf16>
    %cst_46 = arith.constant dense<0.000000e+00> : vector<256x128xf32>
    %115 = tpu.matmul %113, %114, %cst_46 {dimension_numbers = #tpu.dot_dimension_numbers<[1], [0], [0], [1], [0, 0, 1, 1], [], []>} : vector<256x128xbf16>, vector<128x128xbf16>, vector<256x128xf32> -> vector<256x128xf32>
    %c0_47 = arith.constant 0 : index
    %c0_48 = arith.constant 0 : index
    %116 = vector.load %arg12[%c0_47, %c0_48] : memref<1x128xf32, #tpu.memory_space<vmem>>, vector<1x128xf32>
    %117 = vector.broadcast %116 : vector<1x128xf32> to vector<256x128xf32>
    %118 = arith.addf %115, %117 : vector<256x128xf32>
    %cst_49 = arith.constant 5.000000e-01 : f32
    %119 = vector.broadcast %cst_49 : f32 to vector<256x128xf32>
    %120 = arith.mulf %119, %118 : vector<256x128xf32>
    %cst_50 = arith.constant 0.707106769 : f32
    %121 = vector.broadcast %cst_50 : f32 to vector<256x128xf32>
    %122 = arith.mulf %118, %121 : vector<256x128xf32>
    %123 = math.absf %122 : vector<256x128xf32>
    %cst_51 = arith.constant 0.327591091 : f32
    %124 = vector.broadcast %cst_51 : f32 to vector<256x128xf32>
    %125 = arith.mulf %124, %123 : vector<256x128xf32>
    %cst_52 = arith.constant 1.000000e+00 : f32
    %126 = vector.broadcast %cst_52 : f32 to vector<256x128xf32>
    %127 = arith.addf %126, %125 : vector<256x128xf32>
    %cst_53 = arith.constant 1.000000e+00 : f32
    %128 = vector.broadcast %cst_53 : f32 to vector<256x128xf32>
    %129 = arith.divf %128, %127 : vector<256x128xf32>
    %cst_54 = arith.constant 1.06140542 : f32
    %130 = vector.broadcast %cst_54 : f32 to vector<256x128xf32>
    %131 = arith.mulf %130, %129 : vector<256x128xf32>
    %cst_55 = arith.constant -1.45315206 : f32
    %132 = vector.broadcast %cst_55 : f32 to vector<256x128xf32>
    %133 = arith.addf %131, %132 : vector<256x128xf32>
    %134 = arith.mulf %133, %129 : vector<256x128xf32>
    %cst_56 = arith.constant 1.42141378 : f32
    %135 = vector.broadcast %cst_56 : f32 to vector<256x128xf32>
    %136 = arith.addf %134, %135 : vector<256x128xf32>
    %137 = arith.mulf %136, %129 : vector<256x128xf32>
    %cst_57 = arith.constant -0.284496725 : f32
    %138 = vector.broadcast %cst_57 : f32 to vector<256x128xf32>
    %139 = arith.addf %137, %138 : vector<256x128xf32>
    %140 = arith.mulf %139, %129 : vector<256x128xf32>
    %cst_58 = arith.constant 0.254829586 : f32
    %141 = vector.broadcast %cst_58 : f32 to vector<256x128xf32>
    %142 = arith.addf %140, %141 : vector<256x128xf32>
    %143 = arith.mulf %142, %129 : vector<256x128xf32>
    %cst_59 = arith.constant 0.000000e+00 : f32
    %144 = vector.broadcast %cst_59 : f32 to vector<256x128xf32>
    %145 = arith.subf %144, %123 : vector<256x128xf32>
    %146 = arith.mulf %145, %123 : vector<256x128xf32>
    %147 = math.exp %146 : vector<256x128xf32>
    %148 = arith.mulf %143, %147 : vector<256x128xf32>
    %cst_60 = arith.constant 1.000000e+00 : f32
    %149 = vector.broadcast %cst_60 : f32 to vector<256x128xf32>
    %150 = arith.subf %149, %148 : vector<256x128xf32>
    %cst_61 = arith.constant 0.000000e+00 : f32
    %151 = vector.broadcast %cst_61 : f32 to vector<256x128xf32>
    %152 = arith.cmpf olt, %122, %151 : vector<256x128xf32>
    %cst_62 = arith.constant 0.000000e+00 : f32
    %153 = vector.broadcast %cst_62 : f32 to vector<256x128xf32>
    %154 = arith.subf %153, %150 : vector<256x128xf32>
    %155 = arith.select %152, %154, %150 : vector<256x128xi1>, vector<256x128xf32>
    %cst_63 = arith.constant 1.000000e+00 : f32
    %156 = vector.broadcast %cst_63 : f32 to vector<256x128xf32>
    %157 = arith.addf %156, %155 : vector<256x128xf32>
    %158 = arith.mulf %120, %157 : vector<256x128xf32>
    %159 = arith.truncf %158 : vector<256x128xf32> to vector<256x128xbf16>
    %c0_64 = arith.constant 0 : index
    %c0_65 = arith.constant 0 : index
    %160 = vector.load %arg13[%c0_64, %c0_65] : memref<128x128xbf16, #tpu.memory_space<vmem>>, vector<128x128xbf16>
    %cst_66 = arith.constant dense<0.000000e+00> : vector<256x128xf32>
    %161 = tpu.matmul %159, %160, %cst_66 {dimension_numbers = #tpu.dot_dimension_numbers<[1], [0], [0], [1], [0, 0, 1, 1], [], []>} : vector<256x128xbf16>, vector<128x128xbf16>, vector<256x128xf32> -> vector<256x128xf32>
    %c0_67 = arith.constant 0 : index
    %c0_68 = arith.constant 0 : index
    %162 = vector.load %arg14[%c0_67, %c0_68] : memref<1x128xf32, #tpu.memory_space<vmem>>, vector<1x128xf32>
    %163 = vector.broadcast %162 : vector<1x128xf32> to vector<256x128xf32>
    %164 = arith.addf %161, %163 : vector<256x128xf32>
    %165 = arith.addf %164, %92 : vector<256x128xf32>
    %c0_69 = arith.constant 0 : index
    %c0_70 = arith.constant 0 : index
    %c0_71 = arith.constant 0 : index
    %166 = vector.load %arg15[%c0_69, %c0_70, %c0_71] : memref<2x256x128xf32, #tpu.memory_space<vmem>>, vector<1x256x128xf32>
    %167 = vector.shape_cast %166 : vector<1x256x128xf32> to vector<256x128xf32>
    %168 = vector.shape_cast %165 : vector<256x128xf32> to vector<1x256x128xf32>
    tpu.vector_store %arg15[%c0_69, %c0_70, %c0_71], %168 {strides = array<i32>} : memref<2x256x128xf32, #tpu.memory_space<vmem>>, vector<1x256x128xf32>,
    %169 = arith.mulf %66, %36 : vector<256x128xf32>
    %cst_72 = arith.constant dense<0.000000e+00> : vector<256x128xf32>
    %170 = tpu.matmul %169, %6, %cst_72 {dimension_numbers = #tpu.dot_dimension_numbers<[1], [0], [0], [1], [0, 0, 1, 1], [], []>} : vector<256x128xf32>, vector<128x128xf32>, vector<256x128xf32> -> vector<256x128xf32>
    %171 = arith.mulf %66, %67 : vector<256x128xf32>
    %cst_73 = arith.constant dense<0.000000e+00> : vector<256x128xf32>
    %172 = tpu.matmul %171, %6, %cst_73 {dimension_numbers = #tpu.dot_dimension_numbers<[1], [0], [0], [1], [0, 0, 1, 1], [], []>} : vector<256x128xf32>, vector<128x128xf32>, vector<256x128xf32> -> vector<256x128xf32>
    %173 = arith.maximumf %170, %172 : vector<256x128xf32>
    %174 = arith.subf %170, %173 : vector<256x128xf32>
    %175 = math.exp %174 : vector<256x128xf32>
    %176 = arith.subf %172, %173 : vector<256x128xf32>
    %177 = math.exp %176 : vector<256x128xf32>
    %178 = arith.addf %175, %177 : vector<256x128xf32>
    %cst_74 = arith.constant 1.000000e+00 : f32
    %179 = vector.broadcast %cst_74 : f32 to vector<256x128xf32>
    %180 = arith.divf %179, %178 : vector<256x128xf32>
    %181 = arith.mulf %175, %180 : vector<256x128xf32>
    %182 = arith.mulf %181, %37 : vector<256x128xf32>
    %183 = arith.mulf %177, %180 : vector<256x128xf32>
    %184 = arith.mulf %183, %68 : vector<256x128xf32>
    %185 = arith.addf %182, %184 : vector<256x128xf32>
    %186 = arith.truncf %185 : vector<256x128xf32> to vector<256x128xbf16>
    %c0_75 = arith.constant 0 : index
    %c0_76 = arith.constant 0 : index
    %187 = vector.load %arg6[%c0_75, %c0_76] : memref<128x128xbf16, #tpu.memory_space<vmem>>, vector<128x128xbf16>
    %cst_77 = arith.constant dense<0.000000e+00> : vector<256x128xf32>
    %188 = tpu.matmul %186, %187, %cst_77 {dimension_numbers = #tpu.dot_dimension_numbers<[1], [0], [0], [1], [0, 0, 1, 1], [], []>} : vector<256x128xbf16>, vector<128x128xbf16>, vector<256x128xf32> -> vector<256x128xf32>
    %c0_78 = arith.constant 0 : index
    %c0_79 = arith.constant 0 : index
    %189 = vector.load %arg7[%c0_78, %c0_79] : memref<1x128xf32, #tpu.memory_space<vmem>>, vector<1x128xf32>
    %190 = vector.broadcast %189 : vector<1x128xf32> to vector<256x128xf32>
    %191 = arith.addf %188, %190 : vector<256x128xf32>
    %192 = arith.addf %191, %39 : vector<256x128xf32>
    %cst_80 = arith.constant dense<0.000000e+00> : vector<256xf32>
    %193 = vector.multi_reduction <add>, %192, %cst_80 [1] : vector<256x128xf32> to vector<256xf32>
    %194 = vector.shape_cast %193 : vector<256xf32> to vector<256x1xf32>
    %cst_81 = arith.constant 1.280000e+02 : f32
    %195 = vector.broadcast %cst_81 : f32 to vector<256x1xf32>
    %196 = arith.divf %194, %195 : vector<256x1xf32>
    %197 = vector.broadcast %196 : vector<256x1xf32> to vector<256x128xf32>
    %198 = arith.subf %192, %197 : vector<256x128xf32>
    %199 = arith.mulf %198, %198 : vector<256x128xf32>
    %cst_82 = arith.constant dense<0.000000e+00> : vector<256xf32>
    %200 = vector.multi_reduction <add>, %199, %cst_82 [1] : vector<256x128xf32> to vector<256xf32>
    %201 = vector.shape_cast %200 : vector<256xf32> to vector<256x1xf32>
    %cst_83 = arith.constant 1.280000e+02 : f32
    %202 = vector.broadcast %cst_83 : f32 to vector<256x1xf32>
    %203 = arith.divf %201, %202 : vector<256x1xf32>
    %cst_84 = arith.constant 9.99999974E-6 : f32
    %204 = vector.broadcast %cst_84 : f32 to vector<256x1xf32>
    %205 = arith.addf %203, %204 : vector<256x1xf32>
    %206 = math.rsqrt %205 : vector<256x1xf32>
    %207 = vector.broadcast %206 : vector<256x1xf32> to vector<256x128xf32>
    %208 = arith.mulf %198, %207 : vector<256x128xf32>
    %209 = vector.broadcast %2 : vector<1x128xf32> to vector<256x128xf32>
    %210 = arith.mulf %208, %209 : vector<256x128xf32>
    %211 = vector.broadcast %3 : vector<1x128xf32> to vector<256x128xf32>
    %212 = arith.addf %210, %211 : vector<256x128xf32>
    %213 = arith.truncf %212 : vector<256x128xf32> to vector<256x128xbf16>
    %c0_85 = arith.constant 0 : index
    %c0_86 = arith.constant 0 : index
    %214 = vector.load %arg11[%c0_85, %c0_86] : memref<128x128xbf16, #tpu.memory_space<vmem>>, vector<128x128xbf16>
    %cst_87 = arith.constant dense<0.000000e+00> : vector<256x128xf32>
    %215 = tpu.matmul %213, %214, %cst_87 {dimension_numbers = #tpu.dot_dimension_numbers<[1], [0], [0], [1], [0, 0, 1, 1], [], []>} : vector<256x128xbf16>, vector<128x128xbf16>, vector<256x128xf32> -> vector<256x128xf32>
    %c0_88 = arith.constant 0 : index
    %c0_89 = arith.constant 0 : index
    %216 = vector.load %arg12[%c0_88, %c0_89] : memref<1x128xf32, #tpu.memory_space<vmem>>, vector<1x128xf32>
    %217 = vector.broadcast %216 : vector<1x128xf32> to vector<256x128xf32>
    %218 = arith.addf %215, %217 : vector<256x128xf32>
    %cst_90 = arith.constant 5.000000e-01 : f32
    %219 = vector.broadcast %cst_90 : f32 to vector<256x128xf32>
    %220 = arith.mulf %219, %218 : vector<256x128xf32>
    %cst_91 = arith.constant 0.707106769 : f32
    %221 = vector.broadcast %cst_91 : f32 to vector<256x128xf32>
    %222 = arith.mulf %218, %221 : vector<256x128xf32>
    %223 = math.absf %222 : vector<256x128xf32>
    %cst_92 = arith.constant 0.327591091 : f32
    %224 = vector.broadcast %cst_92 : f32 to vector<256x128xf32>
    %225 = arith.mulf %224, %223 : vector<256x128xf32>
    %cst_93 = arith.constant 1.000000e+00 : f32
    %226 = vector.broadcast %cst_93 : f32 to vector<256x128xf32>
    %227 = arith.addf %226, %225 : vector<256x128xf32>
    %cst_94 = arith.constant 1.000000e+00 : f32
    %228 = vector.broadcast %cst_94 : f32 to vector<256x128xf32>
    %229 = arith.divf %228, %227 : vector<256x128xf32>
    %cst_95 = arith.constant 1.06140542 : f32
    %230 = vector.broadcast %cst_95 : f32 to vector<256x128xf32>
    %231 = arith.mulf %230, %229 : vector<256x128xf32>
    %cst_96 = arith.constant -1.45315206 : f32
    %232 = vector.broadcast %cst_96 : f32 to vector<256x128xf32>
    %233 = arith.addf %231, %232 : vector<256x128xf32>
    %234 = arith.mulf %233, %229 : vector<256x128xf32>
    %cst_97 = arith.constant 1.42141378 : f32
    %235 = vector.broadcast %cst_97 : f32 to vector<256x128xf32>
    %236 = arith.addf %234, %235 : vector<256x128xf32>
    %237 = arith.mulf %236, %229 : vector<256x128xf32>
    %cst_98 = arith.constant -0.284496725 : f32
    %238 = vector.broadcast %cst_98 : f32 to vector<256x128xf32>
    %239 = arith.addf %237, %238 : vector<256x128xf32>
    %240 = arith.mulf %239, %229 : vector<256x128xf32>
    %cst_99 = arith.constant 0.254829586 : f32
    %241 = vector.broadcast %cst_99 : f32 to vector<256x128xf32>
    %242 = arith.addf %240, %241 : vector<256x128xf32>
    %243 = arith.mulf %242, %229 : vector<256x128xf32>
    %cst_100 = arith.constant 0.000000e+00 : f32
    %244 = vector.broadcast %cst_100 : f32 to vector<256x128xf32>
    %245 = arith.subf %244, %223 : vector<256x128xf32>
    %246 = arith.mulf %245, %223 : vector<256x128xf32>
    %247 = math.exp %246 : vector<256x128xf32>
    %248 = arith.mulf %243, %247 : vector<256x128xf32>
    %cst_101 = arith.constant 1.000000e+00 : f32
    %249 = vector.broadcast %cst_101 : f32 to vector<256x128xf32>
    %250 = arith.subf %249, %248 : vector<256x128xf32>
    %cst_102 = arith.constant 0.000000e+00 : f32
    %251 = vector.broadcast %cst_102 : f32 to vector<256x128xf32>
    %252 = arith.cmpf olt, %222, %251 : vector<256x128xf32>
    %cst_103 = arith.constant 0.000000e+00 : f32
    %253 = vector.broadcast %cst_103 : f32 to vector<256x128xf32>
    %254 = arith.subf %253, %250 : vector<256x128xf32>
    %255 = arith.select %252, %254, %250 : vector<256x128xi1>, vector<256x128xf32>
    %cst_104 = arith.constant 1.000000e+00 : f32
    %256 = vector.broadcast %cst_104 : f32 to vector<256x128xf32>
    %257 = arith.addf %256, %255 : vector<256x128xf32>
    %258 = arith.mulf %220, %257 : vector<256x128xf32>
    %259 = arith.truncf %258 : vector<256x128xf32> to vector<256x128xbf16>
    %c0_105 = arith.constant 0 : index
    %c0_106 = arith.constant 0 : index
    %260 = vector.load %arg13[%c0_105, %c0_106] : memref<128x128xbf16, #tpu.memory_space<vmem>>, vector<128x128xbf16>
    %cst_107 = arith.constant dense<0.000000e+00> : vector<256x128xf32>
    %261 = tpu.matmul %259, %260, %cst_107 {dimension_numbers = #tpu.dot_dimension_numbers<[1], [0], [0], [1], [0, 0, 1, 1], [], []>} : vector<256x128xbf16>, vector<128x128xbf16>, vector<256x128xf32> -> vector<256x128xf32>
    %c0_108 = arith.constant 0 : index
    %c0_109 = arith.constant 0 : index
    %262 = vector.load %arg14[%c0_108, %c0_109] : memref<1x128xf32, #tpu.memory_space<vmem>>, vector<1x128xf32>
    %263 = vector.broadcast %262 : vector<1x128xf32> to vector<256x128xf32>
    %264 = arith.addf %261, %263 : vector<256x128xf32>
    %265 = arith.addf %264, %192 : vector<256x128xf32>
    %c1_110 = arith.constant 1 : index
    %c0_111 = arith.constant 0 : index
    %c0_112 = arith.constant 0 : index
    %266 = vector.load %arg15[%c1_110, %c0_111, %c0_112] : memref<2x256x128xf32, #tpu.memory_space<vmem>>, vector<1x256x128xf32>
    %267 = vector.shape_cast %266 : vector<1x256x128xf32> to vector<256x128xf32>
    %268 = vector.shape_cast %265 : vector<256x128xf32> to vector<1x256x128xf32>
    tpu.vector_store %arg15[%c1_110, %c0_111, %c0_112], %268 {strides = array<i32>} : memref<2x256x128xf32, #tpu.memory_space<vmem>>, vector<1x256x128xf32>,
    return
  }
  func.func @transform_0(%arg0: i32) -> (i32, i32, i32) {
    %c0_i32 = arith.constant 0 : i32
    %c0_i32_0 = arith.constant 0 : i32
    %c0_i32_1 = arith.constant 0 : i32
    return %c0_i32, %arg0, %c0_i32_0 : i32, i32, i32
  }
  func.func @transform_1(%arg0: i32) -> (i32, i32) {
    %c0_i32 = arith.constant 0 : i32
    %c0_i32_0 = arith.constant 0 : i32
    %c0_i32_1 = arith.constant 0 : i32
    return %c0_i32, %c0_i32_0 : i32, i32
  }
  func.func @transform_2(%arg0: i32) -> (i32, i32) {
    %c0_i32 = arith.constant 0 : i32
    %c0_i32_0 = arith.constant 0 : i32
    %c0_i32_1 = arith.constant 0 : i32
    return %c0_i32, %c0_i32_0 : i32, i32
  }
  func.func @transform_3(%arg0: i32) -> (i32, i32) {
    %c0_i32 = arith.constant 0 : i32
    %c0_i32_0 = arith.constant 0 : i32
    %c0_i32_1 = arith.constant 0 : i32
    return %c0_i32, %c0_i32_0 : i32, i32
  }
  func.func @transform_4(%arg0: i32) -> (i32, i32) {
    %c0_i32 = arith.constant 0 : i32
    %c0_i32_0 = arith.constant 0 : i32
    %c0_i32_1 = arith.constant 0 : i32
    return %c0_i32, %c0_i32_0 : i32, i32
  }
  func.func @transform_5(%arg0: i32) -> (i32, i32) {
    %c0_i32 = arith.constant 0 : i32
    %c0_i32_0 = arith.constant 0 : i32
    %c0_i32_1 = arith.constant 0 : i32
    return %c0_i32, %c0_i32_0 : i32, i32
  }
  func.func @transform_6(%arg0: i32) -> (i32, i32) {
    %c0_i32 = arith.constant 0 : i32
    %c0_i32_0 = arith.constant 0 : i32
    %c0_i32_1 = arith.constant 0 : i32
    return %c0_i32, %c0_i32_0 : i32, i32
  }
  func.func @transform_7(%arg0: i32) -> (i32, i32) {
    %c0_i32 = arith.constant 0 : i32
    %c0_i32_0 = arith.constant 0 : i32
    %c0_i32_1 = arith.constant 0 : i32
    return %c0_i32, %c0_i32_0 : i32, i32
  }
  func.func @transform_8(%arg0: i32) -> (i32, i32) {
    %c0_i32 = arith.constant 0 : i32
    %c0_i32_0 = arith.constant 0 : i32
    %c0_i32_1 = arith.constant 0 : i32
    return %c0_i32, %c0_i32_0 : i32, i32
  }
  func.func @transform_9(%arg0: i32) -> (i32, i32) {
    %c0_i32 = arith.constant 0 : i32
    %c0_i32_0 = arith.constant 0 : i32
    %c0_i32_1 = arith.constant 0 : i32
    return %c0_i32, %c0_i32_0 : i32, i32
  }
  func.func @transform_10(%arg0: i32) -> (i32, i32) {
    %c0_i32 = arith.constant 0 : i32
    %c0_i32_0 = arith.constant 0 : i32
    %c0_i32_1 = arith.constant 0 : i32
    return %c0_i32, %c0_i32_0 : i32, i32
  }
  func.func @transform_11(%arg0: i32) -> (i32, i32) {
    %c0_i32 = arith.constant 0 : i32
    %c0_i32_0 = arith.constant 0 : i32
    %c0_i32_1 = arith.constant 0 : i32
    return %c0_i32, %c0_i32_0 : i32, i32
  }
  func.func @transform_12(%arg0: i32) -> (i32, i32) {
    %c0_i32 = arith.constant 0 : i32
    %c0_i32_0 = arith.constant 0 : i32
    %c0_i32_1 = arith.constant 0 : i32
    return %c0_i32, %c0_i32_0 : i32, i32
  }
  func.func @transform_13(%arg0: i32) -> (i32, i32) {
    %c0_i32 = arith.constant 0 : i32
    %c0_i32_0 = arith.constant 0 : i32
    %c0_i32_1 = arith.constant 0 : i32
    return %c0_i32, %c0_i32_0 : i32, i32
  }
  func.func @transform_14(%arg0: i32) -> (i32, i32, i32) {
    %c0_i32 = arith.constant 0 : i32
    %c0_i32_0 = arith.constant 0 : i32
    %c0_i32_1 = arith.constant 0 : i32
    return %c0_i32, %arg0, %c0_i32_0 : i32, i32, i32
  }
}

</mosaic_0001>

<llo_original>
// kernel: self_attention_forward.1
$region0: #{self_attention_forward.1}
  #allocation0 [shape = 'u32[]', space=smem, size = 0x4, offset = 0x4, fixed_abs, tag = 'smem constant byte address 0x4 - core index']
  #allocation1 [shape = 'u32[72,128]{1,0:T(1,128)}', space=vmem, size = 0x9000, scoped, tag = 'internal scratch']
  %s0 = inlined_call_operand.vmem [shape: f32[2,256,128], index: 0, kind: input, shape index: {}]
  %s1 = inlined_call_operand.vmem [shape: f32[1,128], index: 1, kind: input, shape index: {}]
  %s2 = inlined_call_operand.vmem [shape: f32[1,128], index: 2, kind: input, shape index: {}]
  %s3 = inlined_call_operand.vmem [shape: bf16[128,384], index: 3, kind: input, shape index: {}]
  %s4 = inlined_call_operand.vmem [shape: f32[1,384], index: 4, kind: input, shape index: {}]
  %s5 = inlined_call_operand.vmem [shape: bf16[128,128], index: 5, kind: input, shape index: {}]
  %s6 = inlined_call_operand.vmem [shape: f32[1,128], index: 6, kind: input, shape index: {}]
  %s7 = inlined_call_operand.vmem [shape: f32[128,128], index: 7, kind: input, shape index: {}]
  %s8 = inlined_call_operand.vmem [shape: f32[1,128], index: 8, kind: input, shape index: {}]
  %s9 = inlined_call_operand.vmem [shape: f32[1,128], index: 9, kind: input, shape index: {}]
  %s10 = inlined_call_operand.vmem [shape: bf16[128,128], index: 10, kind: input, shape index: {}]
  %s11 = inlined_call_operand.vmem [shape: f32[1,128], index: 11, kind: input, shape index: {}]
  %s12 = inlined_call_operand.vmem [shape: bf16[128,128], index: 12, kind: input, shape index: {}]
  %s13 = inlined_call_operand.vmem [shape: f32[1,128], index: 13, kind: input, shape index: {}]
  %s14 = inlined_call_operand.hbm [shape: f32[2,256,128], index: 14, kind: output, shape index: {}]
  %s15 = sld [smem:[#allocation0]]
  $region66: #{self_attention_forward.1} parent=0
    _
  %s17 = ssub.s32 1, %s15
  %s18 = scalar_select 0, %s17, %s15
  $region1: #{self_attention_forward.1} parent=0
    #allocation2 [shape = 'u8[262144]{0}', space=vmem, size = 0x40000, scoped, tag = 'output window, operand 0, single buffered']
    #allocation3 [shape = 's32[1]{0}', space=sflag, size = 0x4, scoped, tag = 'scoped memory for self_attention_forward.1']
    %19 = vsyncpa [#allocation3], 0
    // Predicated region
    $region2: #{self_attention_forward.1} parent=1 // pred_check
      _
    $region3: #{self_attention_forward.1} parent=1 // pred_check_branch
      %21 = sbr.rel (0) target = $region5
    $region4: #{self_attention_forward.1} parent=1 // pred_region
      _
    $region5: #{self_attention_forward.1} parent=1 // pred_fallthru
      _
    // Predicated region
    $region6: #{self_attention_forward.1} parent=1 // pred_check
      _
    $region7: #{self_attention_forward.1} parent=1 // pred_check_branch
      %23 = sbr.rel (0) target = $region9
    $region8: #{self_attention_forward.1} parent=1 // pred_region
      _
    $region9: #{self_attention_forward.1} parent=1 // pred_fallthru
      _
    // Predicated region
    $region10: #{self_attention_forward.1} parent=1 // pred_check
      _
    $region11: #{self_attention_forward.1} parent=1 // pred_check_branch
      %25 = sbr.rel (0) target = $region13
    $region12: #{self_attention_forward.1} parent=1 // pred_region
      _
    $region13: #{self_attention_forward.1} parent=1 // pred_fallthru
      _
    // Predicated region
    $region14: #{self_attention_forward.1} parent=1 // pred_check
      _
    $region15: #{self_attention_forward.1} parent=1 // pred_check_branch
      %27 = sbr.rel (0) target = $region17
    $region16: #{self_attention_forward.1} parent=1 // pred_region
      _
    $region17: #{self_attention_forward.1} parent=1 // pred_fallthru
      _
    // Predicated region
    $region18: #{self_attention_forward.1} parent=1 // pred_check
      _
    $region19: #{self_attention_forward.1} parent=1 // pred_check_branch
      %29 = sbr.rel (0) target = $region21
    $region20: #{self_attention_forward.1} parent=1 // pred_region
      _
    $region21: #{self_attention_forward.1} parent=1 // pred_fallthru
      _
    // Predicated region
    $region22: #{self_attention_forward.1} parent=1 // pred_check
      _
    $region23: #{self_attention_forward.1} parent=1 // pred_check_branch
      %31 = sbr.rel (0) target = $region25
    $region24: #{self_attention_forward.1} parent=1 // pred_region
      _
    $region25: #{self_attention_forward.1} parent=1 // pred_fallthru
      _
    // Predicated region
    $region26: #{self_attention_forward.1} parent=1 // pred_check
      _
    $region27: #{self_attention_forward.1} parent=1 // pred_check_branch
      %33 = sbr.rel (0) target = $region29
    $region28: #{self_attention_forward.1} parent=1 // pred_region
      _
    $region29: #{self_attention_forward.1} parent=1 // pred_fallthru
      _
    // Predicated region
    $region30: #{self_attention_forward.1} parent=1 // pred_check
      _
    $region31: #{self_attention_forward.1} parent=1 // pred_check_branch
      %35 = sbr.rel (0) target = $region33
    $region32: #{self_attention_forward.1} parent=1 // pred_region
      _
    $region33: #{self_attention_forward.1} parent=1 // pred_fallthru
      _
    // Predicated region
    $region34: #{self_attention_forward.1} parent=1 // pred_check
      _
    $region35: #{self_attention_forward.1} parent=1 // pred_check_branch
      %37 = sbr.rel (0) target = $region37
    $region36: #{self_attention_forward.1} parent=1 // pred_region
      _
    $region37: #{self_attention_forward.1} parent=1 // pred_fallthru
      _
    // Predicated region
    $region38: #{self_attention_forward.1} parent=1 // pred_check
      _
    $region39: #{self_attention_forward.1} parent=1 // pred_check_branch
      %39 = sbr.rel (0) target = $region41
    $region40: #{self_attention_forward.1} parent=1 // pred_region
      _
    $region41: #{self_attention_forward.1} parent=1 // pred_fallthru
      _
    // Predicated region
    $region42: #{self_attention_forward.1} parent=1 // pred_check
      _
    $region43: #{self_attention_forward.1} parent=1 // pred_check_branch
      %41 = sbr.rel (0) target = $region45
    $region44: #{self_attention_forward.1} parent=1 // pred_region
      _
    $region45: #{self_attention_forward.1} parent=1 // pred_fallthru
      _
    // Predicated region
    $region46: #{self_attention_forward.1} parent=1 // pred_check
      _
    $region47: #{self_attention_forward.1} parent=1 // pred_check_branch
      %43 = sbr.rel (0) target = $region49
    $region48: #{self_attention_forward.1} parent=1 // pred_region
      _
    $region49: #{self_attention_forward.1} parent=1 // pred_fallthru
      _
    // Predicated region
    $region50: #{self_attention_forward.1} parent=1 // pred_check
      _
    $region51: #{self_attention_forward.1} parent=1 // pred_check_branch
      %45 = sbr.rel (0) target = $region53
    $region52: #{self_attention_forward.1} parent=1 // pred_region
      _
    $region53: #{self_attention_forward.1} parent=1 // pred_fallthru
      _
    // Predicated region
    $region54: #{self_attention_forward.1} parent=1 // pred_check
      _
    $region55: #{self_attention_forward.1} parent=1 // pred_check_branch
      %47 = sbr.rel (0) target = $region57
    $region56: #{self_attention_forward.1} parent=1 // pred_region
      _
    $region57: #{self_attention_forward.1} parent=1 // pred_fallthru
      _
    %v48 = vld [vmem:[%s1] sm:$0x1]
    %v49 = vld [vmem:[%s2] sm:$0x1]
    %v50 = vld [vmem:[%s8] sm:$0x1]
    %v51 = vld [vmem:[%s9] sm:$0x1]
    %v52 = vld [vmem:[%s3] sm:$0xff]
    %v53 = vld [vmem:[%s3 + $0x8] sm:$0xf]
    %v54 = vld [vmem:[%s3 + $0xc] sm:$0xff]
    %v55 = vld [vmem:[%s3 + $0x14] sm:$0xf]
    %v56 = vld [vmem:[%s3 + $0x18] sm:$0xff]
    %v57 = vld [vmem:[%s3 + $0x20] sm:$0xf]
    %v58 = vld [vmem:[%s3 + $0x24] sm:$0xff]
    %v59 = vld [vmem:[%s3 + $0x2c] sm:$0xf]
    %v60 = vld [vmem:[%s3 + $0x30] sm:$0xff]
    %v61 = vld [vmem:[%s3 + $0x38] sm:$0xf]
    %v62 = vld [vmem:[%s3 + $0x3c] sm:$0xff]
    %v63 = vld [vmem:[%s3 + $0x44] sm:$0xf]
    %v64 = vld [vmem:[%s3 + $0x48] sm:$0xff]
    %v65 = vld [vmem:[%s3 + $0x50] sm:$0xf]
    %v66 = vld [vmem:[%s3 + $0x54] sm:$0xff]
    %v67 = vld [vmem:[%s3 + $0x5c] sm:$0xf]
    %v68 = vld [vmem:[%s3 + $0x60] sm:$0xff]
    %v69 = vld [vmem:[%s3 + $0x68] sm:$0xf]
    %v70 = vld [vmem:[%s3 + $0x6c] sm:$0xff]
    %v71 = vld [vmem:[%s3 + $0x74] sm:$0xf]
    %v72 = vld [vmem:[%s3 + $0x78] sm:$0xff]
    %v73 = vld [vmem:[%s3 + $0x80] sm:$0xf]
    %v74 = vld [vmem:[%s3 + $0x84] sm:$0xff]
    %v75 = vld [vmem:[%s3 + $0x8c] sm:$0xf]
    %v76 = vld [vmem:[%s3 + $0x90] sm:$0xff]
    %v77 = vld [vmem:[%s3 + $0x98] sm:$0xf]
    %v78 = vld [vmem:[%s3 + $0x9c] sm:$0xff]
    %v79 = vld [vmem:[%s3 + $0xa4] sm:$0xf]
    %v80 = vld [vmem:[%s3 + $0xa8] sm:$0xff]
    %v81 = vld [vmem:[%s3 + $0xb0] sm:$0xf]
    %v82 = vld [vmem:[%s3 + $0xb4] sm:$0xff]
    %v83 = vld [vmem:[%s3 + $0xbc] sm:$0xf]
    %v84 = vld [vmem:[%s4] sm:$0x7]
    %v85 = vld [vmem:[%s7] sm:$0xff]
    %v86 = vld [vmem:[%s7 + $0x8] sm:$0xff]
    %v87 = vld [vmem:[%s7 + $0x10] sm:$0xff]
    %v88 = vld [vmem:[%s7 + $0x18] sm:$0xff]
    %v89 = vld [vmem:[%s7 + $0x20] sm:$0xff]
    %v90 = vld [vmem:[%s7 + $0x28] sm:$0xff]
    %v91 = vld [vmem:[%s7 + $0x30] sm:$0xff]
    %v92 = vld [vmem:[%s7 + $0x38] sm:$0xff]
    %v93 = vld [vmem:[%s7 + $0x40] sm:$0xff]
    %v94 = vld [vmem:[%s7 + $0x48] sm:$0xff]
    %v95 = vld [vmem:[%s7 + $0x50] sm:$0xff]
    %v96 = vld [vmem:[%s7 + $0x58] sm:$0xff]
    %v97 = vld [vmem:[%s7 + $0x60] sm:$0xff]
    %v98 = vld [vmem:[%s7 + $0x68] sm:$0xff]
    %v99 = vld [vmem:[%s7 + $0x70] sm:$0xff]
    %v100 = vld [vmem:[%s7 + $0x78] sm:$0xff]
    %v101 = vld [vmem:[%s0] sm:$0xff]
    %v102 = vld [vmem:[%s0 + $0x8] sm:$0xff]
    %v103 = vld [vmem:[%s0 + $0x10] sm:$0xff]
    %v104 = vld [vmem:[%s0 + $0x18] sm:$0xff]
    %v105 = vld [vmem:[%s0 + $0x20] sm:$0xff]
    %v106 = vld [vmem:[%s0 + $0x28] sm:$0xff]
    %v107 = vld [vmem:[%s0 + $0x30] sm:$0xff]
    %v108 = vld [vmem:[%s0 + $0x38] sm:$0xff]
    %v109 = vld [vmem:[%s0 + $0x40] sm:$0xff]
    %v110 = vld [vmem:[%s0 + $0x48] sm:$0xff]
    %v111 = vld [vmem:[%s0 + $0x50] sm:$0xff]
    %v112 = vld [vmem:[%s0 + $0x58] sm:$0xff]
    %v113 = vld [vmem:[%s0 + $0x60] sm:$0xff]
    %v114 = vld [vmem:[%s0 + $0x68] sm:$0xff]
    %v115 = vld [vmem:[%s0 + $0x70] sm:$0xff]
    %v116 = vld [vmem:[%s0 + $0x78] sm:$0xff]
    %v117 = vld [vmem:[%s0 + $0x80] sm:$0xff]
    %v118 = vld [vmem:[%s0 + $0x88] sm:$0xff]
    %v119 = vld [vmem:[%s0 + $0x90] sm:$0xff]
    %v120 = vld [vmem:[%s0 + $0x98] sm:$0xff]
    %v121 = vld [vmem:[%s0 + $0xa0] sm:$0xff]
    %v122 = vld [vmem:[%s0 + $0xa8] sm:$0xff]
    %v123 = vld [vmem:[%s0 + $0xb0] sm:$0xff]
    %v124 = vld [vmem:[%s0 + $0xb8] sm:$0xff]
    %v125 = vld [vmem:[%s0 + $0xc0] sm:$0xff]
    %v126 = vld [vmem:[%s0 + $0xc8] sm:$0xff]
    %v127 = vld [vmem:[%s0 + $0xd0] sm:$0xff]
    %v128 = vld [vmem:[%s0 + $0xd8] sm:$0xff]
    %v129 = vld [vmem:[%s0 + $0xe0] sm:$0xff]
    %v130 = vld [vmem:[%s0 + $0xe8] sm:$0xff]
    %v131 = vld [vmem:[%s0 + $0xf0] sm:$0xff]
    %v132 = vld [vmem:[%s0 + $0xf8] sm:$0xff]
    %133 = vadd.xlane.f32.xlu0 %v101
    %v134 = vpop.xlane.xlu0 %133
    %135 = vadd.xlane.f32.xlu0 %v102
    %v136 = vpop.xlane.xlu0 %135
    %137 = vadd.xlane.f32.xlu0 %v103
    %v138 = vpop.xlane.xlu0 %137
    %139 = vadd.xlane.f32.xlu0 %v104
    %v140 = vpop.xlane.xlu0 %139
    %141 = vadd.xlane.f32.xlu0 %v105
    %v142 = vpop.xlane.xlu0 %141
    %143 = vadd.xlane.f32.xlu0 %v106
    %v144 = vpop.xlane.xlu0 %143
    %145 = vadd.xlane.f32.xlu0 %v107
    %v146 = vpop.xlane.xlu0 %145
    %147 = vadd.xlane.f32.xlu0 %v108
    %v148 = vpop.xlane.xlu0 %147
    %149 = vadd.xlane.f32.xlu0 %v109
    %v150 = vpop.xlane.xlu0 %149
    %151 = vadd.xlane.f32.xlu0 %v110
    %v152 = vpop.xlane.xlu0 %151
    %153 = vadd.xlane.f32.xlu0 %v111
    %v154 = vpop.xlane.xlu0 %153
    %155 = vadd.xlane.f32.xlu0 %v112
    %v156 = vpop.xlane.xlu0 %155
    %157 = vadd.xlane.f32.xlu0 %v113
    %v158 = vpop.xlane.xlu0 %157
    %159 = vadd.xlane.f32.xlu0 %v114
    %v160 = vpop.xlane.xlu0 %159
    %161 = vadd.xlane.f32.xlu0 %v115
    %v162 = vpop.xlane.xlu0 %161
    %163 = vadd.xlane.f32.xlu0 %v116
    %v164 = vpop.xlane.xlu0 %163
    %165 = vadd.xlane.f32.xlu0 %v117
    %v166 = vpop.xlane.xlu0 %165
    %167 = vadd.xlane.f32.xlu0 %v118
    %v168 = vpop.xlane.xlu0 %167
    %169 = vadd.xlane.f32.xlu0 %v119
    %v170 = vpop.xlane.xlu0 %169
    %171 = vadd.xlane.f32.xlu0 %v120
    %v172 = vpop.xlane.xlu0 %171
    %173 = vadd.xlane.f32.xlu0 %v121
    %v174 = vpop.xlane.xlu0 %173
    %175 = vadd.xlane.f32.xlu0 %v122
    %v176 = vpop.xlane.xlu0 %175
    %177 = vadd.xlane.f32.xlu0 %v123
    %v178 = vpop.xlane.xlu0 %177
    %179 = vadd.xlane.f32.xlu0 %v124
    %v180 = vpop.xlane.xlu0 %179
    %181 = vadd.xlane.f32.xlu0 %v125
    %v182 = vpop.xlane.xlu0 %181
    %183 = vadd.xlane.f32.xlu0 %v126
    %v184 = vpop.xlane.xlu0 %183
    %185 = vadd.xlane.f32.xlu0 %v127
    %v186 = vpop.xlane.xlu0 %185
    %187 = vadd.xlane.f32.xlu0 %v128
    %v188 = vpop.xlane.xlu0 %187
    %189 = vadd.xlane.f32.xlu0 %v129
    %v190 = vpop.xlane.xlu0 %189
    %191 = vadd.xlane.f32.xlu0 %v130
    %v192 = vpop.xlane.xlu0 %191
    %193 = vadd.xlane.f32.xlu0 %v131
    %v194 = vpop.xlane.xlu0 %193
    %195 = vadd.xlane.f32.xlu0 %v132
    %v196 = vpop.xlane.xlu0 %195
    %v197 = vrcp.pop 128.0
    %v198 = vmul.f32 128.0, %v197
    %v199 = vsub.f32 1.0, %v198
    %v200 = vmul.f32 %v197, %v199
    %v201 = vadd.f32 %v197, %v200
    %vm202 = vweird.f32 %v197
    %v203 = vsel %vm202, %v197, %v201
    %v204 = vmul.f32 %v134, %v203
    %v205 = vmul.f32 %v136, %v203
    %v206 = vmul.f32 %v138, %v203
    %v207 = vmul.f32 %v140, %v203
    %v208 = vmul.f32 %v142, %v203
    %v209 = vmul.f32 %v144, %v203
    %v210 = vmul.f32 %v146, %v203
    %v211 = vmul.f32 %v148, %v203
    %v212 = vmul.f32 %v150, %v203
    %v213 = vmul.f32 %v152, %v203
    %v214 = vmul.f32 %v154, %v203
    %v215 = vmul.f32 %v156, %v203
    %v216 = vmul.f32 %v158, %v203
    %v217 = vmul.f32 %v160, %v203
    %v218 = vmul.f32 %v162, %v203
    %v219 = vmul.f32 %v164, %v203
    %v220 = vmul.f32 %v166, %v203
    %v221 = vmul.f32 %v168, %v203
    %v222 = vmul.f32 %v170, %v203
    %v223 = vmul.f32 %v172, %v203
    %v224 = vmul.f32 %v174, %v203
    %v225 = vmul.f32 %v176, %v203
    %v226 = vmul.f32 %v178, %v203
    %v227 = vmul.f32 %v180, %v203
    %v228 = vmul.f32 %v182, %v203
    %v229 = vmul.f32 %v184, %v203
    %v230 = vmul.f32 %v186, %v203
    %v231 = vmul.f32 %v188, %v203
    %v232 = vmul.f32 %v190, %v203
    %v233 = vmul.f32 %v192, %v203
    %v234 = vmul.f32 %v194, %v203
    %v235 = vmul.f32 %v196, %v203
    %v236 = vsub.f32 %v101, %v204
    %v237 = vsub.f32 %v102, %v205
    %v238 = vsub.f32 %v103, %v206
    %v239 = vsub.f32 %v104, %v207
    %v240 = vsub.f32 %v105, %v208
    %v241 = vsub.f32 %v106, %v209
    %v242 = vsub.f32 %v107, %v210
    %v243 = vsub.f32 %v108, %v211
    %v244 = vsub.f32 %v109, %v212
    %v245 = vsub.f32 %v110, %v213
    %v246 = vsub.f32 %v111, %v214
    %v247 = vsub.f32 %v112, %v215
    %v248 = vsub.f32 %v113, %v216
    %v249 = vsub.f32 %v114, %v217
    %v250 = vsub.f32 %v115, %v218
    %v251 = vsub.f32 %v116, %v219
    %v252 = vsub.f32 %v117, %v220
    %v253 = vsub.f32 %v118, %v221
    %v254 = vsub.f32 %v119, %v222
    %v255 = vsub.f32 %v120, %v223
    %v256 = vsub.f32 %v121, %v224
    %v257 = vsub.f32 %v122, %v225
    %v258 = vsub.f32 %v123, %v226
    %v259 = vsub.f32 %v124, %v227
    %v260 = vsub.f32 %v125, %v228
    %v261 = vsub.f32 %v126, %v229
    %v262 = vsub.f32 %v127, %v230
    %v263 = vsub.f32 %v128, %v231
    %v264 = vsub.f32 %v129, %v232
    %v265 = vsub.f32 %v130, %v233
    %v266 = vsub.f32 %v131, %v234
    %v267 = vsub.f32 %v132, %v235
    %v268 = vmul.f32 %v236, %v236
    %v269 = vmul.f32 %v237, %v237
    %v270 = vmul.f32 %v238, %v238
    %v271 = vmul.f32 %v239, %v239
    %v272 = vmul.f32 %v240, %v240
    %v273 = vmul.f32 %v241, %v241
    %v274 = vmul.f32 %v242, %v242
    %v275 = vmul.f32 %v243, %v243
    %v276 = vmul.f32 %v244, %v244
    %v277 = vmul.f32 %v245, %v245
    %v278 = vmul.f32 %v246, %v246
    %v279 = vmul.f32 %v247, %v247
    %v280 = vmul.f32 %v248, %v248
    %v281 = vmul.f32 %v249, %v249
    %v282 = vmul.f32 %v250, %v250
    %v283 = vmul.f32 %v251, %v251
    %v284 = vmul.f32 %v252, %v252
    %v285 = vmul.f32 %v253, %v253
    %v286 = vmul.f32 %v254, %v254
    %v287 = vmul.f32 %v255, %v255
    %v288 = vmul.f32 %v256, %v256
    %v289 = vmul.f32 %v257, %v257
    %v290 = vmul.f32 %v258, %v258
    %v291 = vmul.f32 %v259, %v259
    %v292 = vmul.f32 %v260, %v260
    %v293 = vmul.f32 %v261, %v261
    %v294 = vmul.f32 %v262, %v262
    %v295 = vmul.f32 %v263, %v263
    %v296 = vmul.f32 %v264, %v264
    %v297 = vmul.f32 %v265, %v265
    %v298 = vmul.f32 %v266, %v266
    %v299 = vmul.f32 %v267, %v267
    %300 = vadd.xlane.f32.xlu0 %v268
    %v301 = vpop.xlane.xlu0 %300
    %302 = vadd.xlane.f32.xlu0 %v269
    %v303 = vpop.xlane.xlu0 %302
    %304 = vadd.xlane.f32.xlu0 %v270
    %v305 = vpop.xlane.xlu0 %304
    %306 = vadd.xlane.f32.xlu0 %v271
    %v307 = vpop.xlane.xlu0 %306
    %308 = vadd.xlane.f32.xlu0 %v272
    %v309 = vpop.xlane.xlu0 %308
    %310 = vadd.xlane.f32.xlu0 %v273
    %v311 = vpop.xlane.xlu0 %310
    %312 = vadd.xlane.f32.xlu0 %v274
    %v313 = vpop.xlane.xlu0 %312
    %314 = vadd.xlane.f32.xlu0 %v275
    %v315 = vpop.xlane.xlu0 %314
    %316 = vadd.xlane.f32.xlu0 %v276
    %v317 = vpop.xlane.xlu0 %316
    %318 = vadd.xlane.f32.xlu0 %v277
    %v319 = vpop.xlane.xlu0 %318
    %320 = vadd.xlane.f32.xlu0 %v278
    %v321 = vpop.xlane.xlu0 %320
    %322 = vadd.xlane.f32.xlu0 %v279
    %v323 = vpop.xlane.xlu0 %322
    %324 = vadd.xlane.f32.xlu0 %v280
    %v325 = vpop.xlane.xlu0 %324
    %326 = vadd.xlane.f32.xlu0 %v281
    %v327 = vpop.xlane.xlu0 %326
    %328 = vadd.xlane.f32.xlu0 %v282
    %v329 = vpop.xlane.xlu0 %328
    %330 = vadd.xlane.f32.xlu0 %v283
    %v331 = vpop.xlane.xlu0 %330
    %332 = vadd.xlane.f32.xlu0 %v284
    %v333 = vpop.xlane.xlu0 %332
    %334 = vadd.xlane.f32.xlu0 %v285
    %v335 = vpop.xlane.xlu0 %334
    %336 = vadd.xlane.f32.xlu0 %v286
    %v337 = vpop.xlane.xlu0 %336
    %338 = vadd.xlane.f32.xlu0 %v287
    %v339 = vpop.xlane.xlu0 %338
    %340 = vadd.xlane.f32.xlu0 %v288
    %v341 = vpop.xlane.xlu0 %340
    %342 = vadd.xlane.f32.xlu0 %v289
    %v343 = vpop.xlane.xlu0 %342
    %344 = vadd.xlane.f32.xlu0 %v290
    %v345 = vpop.xlane.xlu0 %344
    %346 = vadd.xlane.f32.xlu0 %v291
    %v347 = vpop.xlane.xlu0 %346
    %348 = vadd.xlane.f32.xlu0 %v292
    %v349 = vpop.xlane.xlu0 %348
    %350 = vadd.xlane.f32.xlu0 %v293
    %v351 = vpop.xlane.xlu0 %350
    %352 = vadd.xlane.f32.xlu0 %v294
    %v353 = vpop.xlane.xlu0 %352
    %354 = vadd.xlane.f32.xlu0 %v295
    %v355 = vpop.xlane.xlu0 %354
    %356 = vadd.xlane.f32.xlu0 %v296
    %v357 = vpop.xlane.xlu0 %356
    %358 = vadd.xlane.f32.xlu0 %v297
    %v359 = vpop.xlane.xlu0 %358
    %360 = vadd.xlane.f32.xlu0 %v298
    %v361 = vpop.xlane.xlu0 %360
    %362 = vadd.xlane.f32.xlu0 %v299
    %v363 = vpop.xlane.xlu0 %362
    %v364 = vmul.f32 %v301, %v203
    %v365 = vmul.f32 %v303, %v203
    %v366 = vmul.f32 %v305, %v203
    %v367 = vmul.f32 %v307, %v203
    %v368 = vmul.f32 %v309, %v203
    %v369 = vmul.f32 %v311, %v203
    %v370 = vmul.f32 %v313, %v203
    %v371 = vmul.f32 %v315, %v203
    %v372 = vmul.f32 %v317, %v203
    %v373 = vmul.f32 %v319, %v203
    %v374 = vmul.f32 %v321, %v203
    %v375 = vmul.f32 %v323, %v203
    %v376 = vmul.f32 %v325, %v203
    %v377 = vmul.f32 %v327, %v203
    %v378 = vmul.f32 %v329, %v203
    %v379 = vmul.f32 %v331, %v203
    %v380 = vmul.f32 %v333, %v203
    %v381 = vmul.f32 %v335, %v203
    %v382 = vmul.f32 %v337, %v203
    %v383 = vmul.f32 %v339, %v203
    %v384 = vmul.f32 %v341, %v203
    %v385 = vmul.f32 %v343, %v203
    %v386 = vmul.f32 %v345, %v203
    %v387 = vmul.f32 %v347, %v203
    %v388 = vmul.f32 %v349, %v203
    %v389 = vmul.f32 %v351, %v203
    %v390 = vmul.f32 %v353, %v203
    %v391 = vmul.f32 %v355, %v203
    %v392 = vmul.f32 %v357, %v203
    %v393 = vmul.f32 %v359, %v203
    %v394 = vmul.f32 %v361, %v203
    %v395 = vmul.f32 %v363, %v203
    %v396 = vadd.f32 %v364, 1e-05
    %v397 = vadd.f32 %v365, 1e-05
    %v398 = vadd.f32 %v366, 1e-05
    %v399 = vadd.f32 %v367, 1e-05
    %v400 = vadd.f32 %v368, 1e-05
    %v401 = vadd.f32 %v369, 1e-05
    %v402 = vadd.f32 %v370, 1e-05
    %v403 = vadd.f32 %v371, 1e-05
    %v404 = vadd.f32 %v372, 1e-05
    %v405 = vadd.f32 %v373, 1e-05
    %v406 = vadd.f32 %v374, 1e-05
    %v407 = vadd.f32 %v375, 1e-05
    %v408 = vadd.f32 %v376, 1e-05
    %v409 = vadd.f32 %v377, 1e-05
    %v410 = vadd.f32 %v378, 1e-05
    %v411 = vadd.f32 %v379, 1e-05
    %v412 = vadd.f32 %v380, 1e-05
    %v413 = vadd.f32 %v381, 1e-05
    %v414 = vadd.f32 %v382, 1e-05
    %v415 = vadd.f32 %v383, 1e-05
    %v416 = vadd.f32 %v384, 1e-05
    %v417 = vadd.f32 %v385, 1e-05
    %v418 = vadd.f32 %v386, 1e-05
    %v419 = vadd.f32 %v387, 1e-05
    %v420 = vadd.f32 %v388, 1e-05
    %v421 = vadd.f32 %v389, 1e-05
    %v422 = vadd.f32 %v390, 1e-05
    %v423 = vadd.f32 %v391, 1e-05
    %v424 = vadd.f32 %v392, 1e-05
    %v425 = vadd.f32 %v393, 1e-05
    %v426 = vadd.f32 %v394, 1e-05
    %v427 = vadd.f32 %v395, 1e-05
    %v428 = vrsqrt.pop %v396
    %v429 = vmul.f32 %v428, %v396
    %v430 = vmul.f32 %v429, %v428
    %v431 = vmul.f32 0.5, %v430
    %v432 = vsub.f32 1.5, %v431
    %v433 = vmul.f32 %v428, %v432
    %vm434 = vweird.f32 %v396
    %vm435 = vweird.f32 %v428
    %vm436 = vmor %vm434, %vm435
    %v437 = vsel %vm436, %v428, %v433
    %v438 = vrsqrt.pop %v397
    %v439 = vmul.f32 %v438, %v397
    %v440 = vmul.f32 %v439, %v438
    %v441 = vmul.f32 0.5, %v440
    %v442 = vsub.f32 1.5, %v441
    %v443 = vmul.f32 %v438, %v442
    %vm444 = vweird.f32 %v397
    %vm445 = vweird.f32 %v438
    %vm446 = vmor %vm444, %vm445
    %v447 = vsel %vm446, %v438, %v443
    %v448 = vrsqrt.pop %v398
    %v449 = vmul.f32 %v448, %v398
    %v450 = vmul.f32 %v449, %v448
    %v451 = vmul.f32 0.5, %v450
    %v452 = vsub.f32 1.5, %v451
    %v453 = vmul.f32 %v448, %v452
    %vm454 = vweird.f32 %v398
    %vm455 = vweird.f32 %v448
    %vm456 = vmor %vm454, %vm455
    %v457 = vsel %vm456, %v448, %v453
    %v458 = vrsqrt.pop %v399
    %v459 = vmul.f32 %v458, %v399
    %v460 = vmul.f32 %v459, %v458
    %v461 = vmul.f32 0.5, %v460
    %v462 = vsub.f32 1.5, %v461
    %v463 = vmul.f32 %v458, %v462
    %vm464 = vweird.f32 %v399
    %vm465 = vweird.f32 %v458
    %vm466 = vmor %vm464, %vm465
    %v467 = vsel %vm466, %v458, %v463
    %v468 = vrsqrt.pop %v400
    %v469 = vmul.f32 %v468, %v400
    %v470 = vmul.f32 %v469, %v468
    %v471 = vmul.f32 0.5, %v470
    %v472 = vsub.f32 1.5, %v471
    %v473 = vmul.f32 %v468, %v472
    %vm474 = vweird.f32 %v400
    %vm475 = vweird.f32 %v468
    %vm476 = vmor %vm474, %vm475
    %v477 = vsel %vm476, %v468, %v473
    %v478 = vrsqrt.pop %v401
    %v479 = vmul.f32 %v478, %v401
    %v480 = vmul.f32 %v479, %v478
    %v481 = vmul.f32 0.5, %v480
    %v482 = vsub.f32 1.5, %v481
    %v483 = vmul.f32 %v478, %v482
    %vm484 = vweird.f32 %v401
    %vm485 = vweird.f32 %v478
    %vm486 = vmor %vm484, %vm485
    %v487 = vsel %vm486, %v478, %v483
    %v488 = vrsqrt.pop %v402
    %v489 = vmul.f32 %v488, %v402
    %v490 = vmul.f32 %v489, %v488
    %v491 = vmul.f32 0.5, %v490
    %v492 = vsub.f32 1.5, %v491
    %v493 = vmul.f32 %v488, %v492
    %vm494 = vweird.f32 %v402
    %vm495 = vweird.f32 %v488
    %vm496 = vmor %vm494, %vm495
    %v497 = vsel %vm496, %v488, %v493
    %v498 = vrsqrt.pop %v403
    %v499 = vmul.f32 %v498, %v403
    %v500 = vmul.f32 %v499, %v498
    %v501 = vmul.f32 0.5, %v500
    %v502 = vsub.f32 1.5, %v501
    %v503 = vmul.f32 %v498, %v502
    %vm504 = vweird.f32 %v403
    %vm505 = vweird.f32 %v498
    %vm506 = vmor %vm504, %vm505
    %v507 = vsel %vm506, %v498, %v503
    %v508 = vrsqrt.pop %v404
    %v509 = vmul.f32 %v508, %v404
    %v510 = vmul.f32 %v509, %v508
    %v511 = vmul.f32 0.5, %v510
    %v512 = vsub.f32 1.5, %v511
    %v513 = vmul.f32 %v508, %v512
    %vm514 = vweird.f32 %v404
    %vm515 = vweird.f32 %v508
    %vm516 = vmor %vm514, %vm515
    %v517 = vsel %vm516, %v508, %v513
    %v518 = vrsqrt.pop %v405
    %v519 = vmul.f32 %v518, %v405
    %v520 = vmul.f32 %v519, %v518
    %v521 = vmul.f32 0.5, %v520
    %v522 = vsub.f32 1.5, %v521
    %v523 = vmul.f32 %v518, %v522
    %vm524 = vweird.f32 %v405
    %vm525 = vweird.f32 %v518
    %vm526 = vmor %vm524, %vm525
    %v527 = vsel %vm526, %v518, %v523
    %v528 = vrsqrt.pop %v406
    %v529 = vmul.f32 %v528, %v406
    %v530 = vmul.f32 %v529, %v528
    %v531 = vmul.f32 0.5, %v530
    %v532 = vsub.f32 1.5, %v531
    %v533 = vmul.f32 %v528, %v532
    %vm534 = vweird.f32 %v406
    %vm535 = vweird.f32 %v528
    %vm536 = vmor %vm534, %vm535
    %v537 = vsel %vm536, %v528, %v533
    %v538 = vrsqrt.pop %v407
    %v539 = vmul.f32 %v538, %v407
    %v540 = vmul.f32 %v539, %v538
    %v541 = vmul.f32 0.5, %v540
    %v542 = vsub.f32 1.5, %v541
    %v543 = vmul.f32 %v538, %v542
    %vm544 = vweird.f32 %v407
    %vm545 = vweird.f32 %v538
    %vm546 = vmor %vm544, %vm545
    %v547 = vsel %vm546, %v538, %v543
    %v548 = vrsqrt.pop %v408
    %v549 = vmul.f32 %v548, %v408
    %v550 = vmul.f32 %v549, %v548
    %v551 = vmul.f32 0.5, %v550
    %v552 = vsub.f32 1.5, %v551
    %v553 = vmul.f32 %v548, %v552
    %vm554 = vweird.f32 %v408
    %vm555 = vweird.f32 %v548
    %vm556 = vmor %vm554, %vm555
    %v557 = vsel %vm556, %v548, %v553
    %v558 = vrsqrt.pop %v409
    %v559 = vmul.f32 %v558, %v409
    %v560 = vmul.f32 %v559, %v558
    %v561 = vmul.f32 0.5, %v560
    %v562 = vsub.f32 1.5, %v561
    %v563 = vmul.f32 %v558, %v562
    %vm564 = vweird.f32 %v409
    %vm565 = vweird.f32 %v558
    %vm566 = vmor %vm564, %vm565
    %v567 = vsel %vm566, %v558, %v563
    %v568 = vrsqrt.pop %v410
    %v569 = vmul.f32 %v568, %v410
    %v570 = vmul.f32 %v569, %v568
    %v571 = vmul.f32 0.5, %v570
    %v572 = vsub.f32 1.5, %v571
    %v573 = vmul.f32 %v568, %v572
    %vm574 = vweird.f32 %v410
    %vm575 = vweird.f32 %v568
    %vm576 = vmor %vm574, %vm575
    %v577 = vsel %vm576, %v568, %v573
    %v578 = vrsqrt.pop %v411
    %v579 = vmul.f32 %v578, %v411
    %v580 = vmul.f32 %v579, %v578
    %v581 = vmul.f32 0.5, %v580
    %v582 = vsub.f32 1.5, %v581
    %v583 = vmul.f32 %v578, %v582
    %vm584 = vweird.f32 %v411
    %vm585 = vweird.f32 %v578
    %vm586 = vmor %vm584, %vm585
    %v587 = vsel %vm586, %v578, %v583
    %v588 = vrsqrt.pop %v412
    %v589 = vmul.f32 %v588, %v412
    %v590 = vmul.f32 %v589, %v588
    %v591 = vmul.f32 0.5, %v590
    %v592 = vsub.f32 1.5, %v591
    %v593 = vmul.f32 %v588, %v592
    %vm594 = vweird.f32 %v412
    %vm595 = vweird.f32 %v588
    %vm596 = vmor %vm594, %vm595
    %v597 = vsel %vm596, %v588, %v593
    %v598 = vrsqrt.pop %v413
    %v599 = vmul.f32 %v598, %v413
    %v600 = vmul.f32 %v599, %v598
    %v601 = vmul.f32 0.5, %v600
    %v602 = vsub.f32 1.5, %v601
    %v603 = vmul.f32 %v598, %v602
    %vm604 = vweird.f32 %v413
    %vm605 = vweird.f32 %v598
    %vm606 = vmor %vm604, %vm605
    %v607 = vsel %vm606, %v598, %v603
    %v608 = vrsqrt.pop %v414
    %v609 = vmul.f32 %v608, %v414
    %v610 = vmul.f32 %v609, %v608
    %v611 = vmul.f32 0.5, %v610
    %v612 = vsub.f32 1.5, %v611
    %v613 = vmul.f32 %v608, %v612
    %vm614 = vweird.f32 %v414
    %vm615 = vweird.f32 %v608
    %vm616 = vmor %vm614, %vm615
    %v617 = vsel %vm616, %v608, %v613
    %v618 = vrsqrt.pop %v415
    %v619 = vmul.f32 %v618, %v415
    %v620 = vmul.f32 %v619, %v618
    %v621 = vmul.f32 0.5, %v620
    %v622 = vsub.f32 1.5, %v621
    %v623 = vmul.f32 %v618, %v622
    %vm624 = vweird.f32 %v415
    %vm625 = vweird.f32 %v618
    %vm626 = vmor %vm624, %vm625
    %v627 = vsel %vm626, %v618, %v623
    %v628 = vrsqrt.pop %v416
    %v629 = vmul.f32 %v628, %v416
    %v630 = vmul.f32 %v629, %v628
    %v631 = vmul.f32 0.5, %v630
    %v632 = vsub.f32 1.5, %v631
    %v633 = vmul.f32 %v628, %v632
    %vm634 = vweird.f32 %v416
    %vm635 = vweird.f32 %v628
    %vm636 = vmor %vm634, %vm635
    %v637 = vsel %vm636, %v628, %v633
    %v638 = vrsqrt.pop %v417
    %v639 = vmul.f32 %v638, %v417
    %v640 = vmul.f32 %v639, %v638
    %v641 = vmul.f32 0.5, %v640
    %v642 = vsub.f32 1.5, %v641
    %v643 = vmul.f32 %v638, %v642
    %vm644 = vweird.f32 %v417
    %vm645 = vweird.f32 %v638
    %vm646 = vmor %vm644, %vm645
    %v647 = vsel %vm646, %v638, %v643
    %v648 = vrsqrt.pop %v418
    %v649 = vmul.f32 %v648, %v418
    %v650 = vmul.f32 %v649, %v648
    %v651 = vmul.f32 0.5, %v650
    %v652 = vsub.f32 1.5, %v651
    %v653 = vmul.f32 %v648, %v652
    %vm654 = vweird.f32 %v418
    %vm655 = vweird.f32 %v648
    %vm656 = vmor %vm654, %vm655
    %v657 = vsel %vm656, %v648, %v653
    %v658 = vrsqrt.pop %v419
    %v659 = vmul.f32 %v658, %v419
    %v660 = vmul.f32 %v659, %v658
    %v661 = vmul.f32 0.5, %v660
    %v662 = vsub.f32 1.5, %v661
    %v663 = vmul.f32 %v658, %v662
    %vm664 = vweird.f32 %v419
    %vm665 = vweird.f32 %v658
    %vm666 = vmor %vm664, %vm665
    %v667 = vsel %vm666, %v658, %v663
    %v668 = vrsqrt.pop %v420
    %v669 = vmul.f32 %v668, %v420
    %v670 = vmul.f32 %v669, %v668
    %v671 = vmul.f32 0.5, %v670
    %v672 = vsub.f32 1.5, %v671
    %v673 = vmul.f32 %v668, %v672
    %vm674 = vweird.f32 %v420
    %vm675 = vweird.f32 %v668
    %vm676 = vmor %vm674, %vm675
    %v677 = vsel %vm676, %v668, %v673
    %v678 = vrsqrt.pop %v421
    %v679 = vmul.f32 %v678, %v421
    %v680 = vmul.f32 %v679, %v678
    %v681 = vmul.f32 0.5, %v680
    %v682 = vsub.f32 1.5, %v681
    %v683 = vmul.f32 %v678, %v682
    %vm684 = vweird.f32 %v421
    %vm685 = vweird.f32 %v678
    %vm686 = vmor %vm684, %vm685
    %v687 = vsel %vm686, %v678, %v683
    %v688 = vrsqrt.pop %v422
    %v689 = vmul.f32 %v688, %v422
    %v690 = vmul.f32 %v689, %v688
    %v691 = vmul.f32 0.5, %v690
    %v692 = vsub.f32 1.5, %v691
    %v693 = vmul.f32 %v688, %v692
    %vm694 = vweird.f32 %v422
    %vm695 = vweird.f32 %v688
    %vm696 = vmor %vm694, %vm695
    %v697 = vsel %vm696, %v688, %v693
    %v698 = vrsqrt.pop %v423
    %v699 = vmul.f32 %v698, %v423
    %v700 = vmul.f32 %v699, %v698
    %v701 = vmul.f32 0.5, %v700
    %v702 = vsub.f32 1.5, %v701
    %v703 = vmul.f32 %v698, %v702
    %vm704 = vweird.f32 %v423
    %vm705 = vweird.f32 %v698
    %vm706 = vmor %vm704, %vm705
    %v707 = vsel %vm706, %v698, %v703
    %v708 = vrsqrt.pop %v424
    %v709 = vmul.f32 %v708, %v424
    %v710 = vmul.f32 %v709, %v708
    %v711 = vmul.f32 0.5, %v710
    %v712 = vsub.f32 1.5, %v711
    %v713 = vmul.f32 %v708, %v712
    %vm714 = vweird.f32 %v424
    %vm715 = vweird.f32 %v708
    %vm716 = vmor %vm714, %vm715
    %v717 = vsel %vm716, %v708, %v713
    %v718 = vrsqrt.pop %v425
    %v719 = vmul.f32 %v718, %v425
    %v720 = vmul.f32 %v719, %v718
    %v721 = vmul.f32 0.5, %v720
    %v722 = vsub.f32 1.5, %v721
    %v723 = vmul.f32 %v718, %v722
    %vm724 = vweird.f32 %v425
    %vm725 = vweird.f32 %v718
    %vm726 = vmor %vm724, %vm725
    %v727 = vsel %vm726, %v718, %v723
    %v728 = vrsqrt.pop %v426
    %v729 = vmul.f32 %v728, %v426
    %v730 = vmul.f32 %v729, %v728
    %v731 = vmul.f32 0.5, %v730
    %v732 = vsub.f32 1.5, %v731
    %v733 = vmul.f32 %v728, %v732
    %vm734 = vweird.f32 %v426
    %vm735 = vweird.f32 %v728
    %vm736 = vmor %vm734, %vm735
    %v737 = vsel %vm736, %v728, %v733
    %v738 = vrsqrt.pop %v427
    %v739 = vmul.f32 %v738, %v427
    %v740 = vmul.f32 %v739, %v738
    %v741 = vmul.f32 0.5, %v740
    %v742 = vsub.f32 1.5, %v741
    %v743 = vmul.f32 %v738, %v742
    %vm744 = vweird.f32 %v427
    %vm745 = vweird.f32 %v738
    %vm746 = vmor %vm744, %vm745
    %v747 = vsel %vm746, %v738, %v743
    %v748 = vmul.f32 %v236, %v437
    %v749 = vmul.f32 %v237, %v447
    %v750 = vmul.f32 %v238, %v457
    %v751 = vmul.f32 %v239, %v467
    %v752 = vmul.f32 %v240, %v477
    %v753 = vmul.f32 %v241, %v487
    %v754 = vmul.f32 %v242, %v497
    %v755 = vmul.f32 %v243, %v507
    %v756 = vmul.f32 %v244, %v517
    %v757 = vmul.f32 %v245, %v527
    %v758 = vmul.f32 %v246, %v537
    %v759 = vmul.f32 %v247, %v547
    %v760 = vmul.f32 %v248, %v557
    %v761 = vmul.f32 %v249, %v567
    %v762 = vmul.f32 %v250, %v577
    %v763 = vmul.f32 %v251, %v587
    %v764 = vmul.f32 %v252, %v597
    %v765 = vmul.f32 %v253, %v607
    %v766 = vmul.f32 %v254, %v617
    %v767 = vmul.f32 %v255, %v627
    %v768 = vmul.f32 %v256, %v637
    %v769 = vmul.f32 %v257, %v647
    %v770 = vmul.f32 %v258, %v657
    %v771 = vmul.f32 %v259, %v667
    %v772 = vmul.f32 %v260, %v677
    %v773 = vmul.f32 %v261, %v687
    %v774 = vmul.f32 %v262, %v697
    %v775 = vmul.f32 %v263, %v707
    %v776 = vmul.f32 %v264, %v717
    %v777 = vmul.f32 %v265, %v727
    %v778 = vmul.f32 %v266, %v737
    %v779 = vmul.f32 %v267, %v747
    %v781 = vperm.slane %v48, 0
    %v783 = vmul.f32 %v748, %v781
    %v784 = vmul.f32 %v749, %v781
    %v785 = vmul.f32 %v750, %v781
    %v786 = vmul.f32 %v751, %v781
    %v787 = vmul.f32 %v752, %v781
    %v788 = vmul.f32 %v753, %v781
    %v789 = vmul.f32 %v754, %v781
    %v790 = vmul.f32 %v755, %v781
    %v791 = vmul.f32 %v756, %v781
    %v792 = vmul.f32 %v757, %v781
    %v793 = vmul.f32 %v758, %v781
    %v794 = vmul.f32 %v759, %v781
    %v795 = vmul.f32 %v760, %v781
    %v796 = vmul.f32 %v761, %v781
    %v797 = vmul.f32 %v762, %v781
    %v798 = vmul.f32 %v763, %v781
    %v799 = vmul.f32 %v764, %v781
    %v800 = vmul.f32 %v765, %v781
    %v801 = vmul.f32 %v766, %v781
    %v802 = vmul.f32 %v767, %v781
    %v803 = vmul.f32 %v768, %v781
    %v804 = vmul.f32 %v769, %v781
    %v805 = vmul.f32 %v770, %v781
    %v806 = vmul.f32 %v771, %v781
    %v807 = vmul.f32 %v772, %v781
    %v808 = vmul.f32 %v773, %v781
    %v809 = vmul.f32 %v774, %v781
    %v810 = vmul.f32 %v775, %v781
    %v811 = vmul.f32 %v776, %v781
    %v812 = vmul.f32 %v777, %v781
    %v813 = vmul.f32 %v778, %v781
    %v814 = vmul.f32 %v779, %v781
    %v816 = vperm.slane %v49, 0
    %v818 = vadd.f32 %v783, %v816
    %v819 = vadd.f32 %v784, %v816
    %v820 = vadd.f32 %v785, %v816
    %v821 = vadd.f32 %v786, %v816
    %v822 = vadd.f32 %v787, %v816
    %v823 = vadd.f32 %v788, %v816
    %v824 = vadd.f32 %v789, %v816
    %v825 = vadd.f32 %v790, %v816
    %v826 = vadd.f32 %v791, %v816
    %v827 = vadd.f32 %v792, %v816
    %v828 = vadd.f32 %v793, %v816
    %v829 = vadd.f32 %v794, %v816
    %v830 = vadd.f32 %v795, %v816
    %v831 = vadd.f32 %v796, %v816
    %v832 = vadd.f32 %v797, %v816
    %v833 = vadd.f32 %v798, %v816
    %v834 = vadd.f32 %v799, %v816
    %v835 = vadd.f32 %v800, %v816
    %v836 = vadd.f32 %v801, %v816
    %v837 = vadd.f32 %v802, %v816
    %v838 = vadd.f32 %v803, %v816
    %v839 = vadd.f32 %v804, %v816
    %v840 = vadd.f32 %v805, %v816
    %v841 = vadd.f32 %v806, %v816
    %v842 = vadd.f32 %v807, %v816
    %v843 = vadd.f32 %v808, %v816
    %v844 = vadd.f32 %v809, %v816
    %v845 = vadd.f32 %v810, %v816
    %v846 = vadd.f32 %v811, %v816
    %v847 = vadd.f32 %v812, %v816
    %v848 = vadd.f32 %v813, %v816
    %v849 = vadd.f32 %v814, %v816
    %v850 = vpack.c.bf16 %v819, %v818
    %v851 = vpack.c.bf16 %v821, %v820
    %v852 = vpack.c.bf16 %v823, %v822
    %v853 = vpack.c.bf16 %v825, %v824
    %v854 = vpack.c.bf16 %v827, %v826
    %v855 = vpack.c.bf16 %v829, %v828
    %v856 = vpack.c.bf16 %v831, %v830
    %v857 = vpack.c.bf16 %v833, %v832
    %v858 = vpack.c.bf16 %v835, %v834
    %v859 = vpack.c.bf16 %v837, %v836
    %v860 = vpack.c.bf16 %v839, %v838
    %v861 = vpack.c.bf16 %v841, %v840
    %v862 = vpack.c.bf16 %v843, %v842
    %v863 = vpack.c.bf16 %v845, %v844
    %v864 = vpack.c.bf16 %v847, %v846
    %v865 = vpack.c.bf16 %v849, %v848
    %v867 = vperm.slane %v84, 0
    %v868 = vperm.slane %v84, 1
    %v869 = vperm.slane %v84, 2
    %v905 = vunpack.c.l.b16 %v52
    %v906 = vunpack.c.h.b16 %v52
    %v907 = vunpack.c.l.b16 %v53
    %v908 = vunpack.c.l.b16 %v54
    %v909 = vunpack.c.h.b16 %v54
    %v910 = vunpack.c.l.b16 %v55
    %v911 = vunpack.c.l.b16 %v56
    %v912 = vunpack.c.h.b16 %v56
    %v913 = vunpack.c.l.b16 %v57
    %v914 = vunpack.c.l.b16 %v58
    %v915 = vunpack.c.h.b16 %v58
    %v916 = vunpack.c.l.b16 %v59
    %v917 = vunpack.c.l.b16 %v60
    %v918 = vunpack.c.h.b16 %v60
    %v919 = vunpack.c.l.b16 %v61
    %v920 = vunpack.c.l.b16 %v62
    %v921 = vunpack.c.h.b16 %v62
    %v922 = vunpack.c.l.b16 %v63
    %v923 = vunpack.c.l.b16 %v64
    %v924 = vunpack.c.h.b16 %v64
    %v925 = vunpack.c.l.b16 %v65
    %v926 = vunpack.c.l.b16 %v66
    %v927 = vunpack.c.h.b16 %v66
    %v928 = vunpack.c.l.b16 %v67
    %v929 = vunpack.c.l.b16 %v68
    %v930 = vunpack.c.h.b16 %v68
    %v931 = vunpack.c.l.b16 %v69
    %v932 = vunpack.c.l.b16 %v70
    %v933 = vunpack.c.h.b16 %v70
    %v934 = vunpack.c.l.b16 %v71
    %v935 = vunpack.c.l.b16 %v72
    %v936 = vunpack.c.h.b16 %v72
    %v937 = vunpack.c.l.b16 %v73
    %v938 = vunpack.c.l.b16 %v74
    %v939 = vunpack.c.h.b16 %v74
    %v940 = vunpack.c.l.b16 %v75
    %v941 = vunpack.c.l.b16 %v76
    %v942 = vunpack.c.h.b16 %v76
    %v943 = vunpack.c.l.b16 %v77
    %v944 = vunpack.c.l.b16 %v78
    %v945 = vunpack.c.h.b16 %v78
    %v946 = vunpack.c.l.b16 %v79
    %v947 = vunpack.c.l.b16 %v80
    %v948 = vunpack.c.h.b16 %v80
    %v949 = vunpack.c.l.b16 %v81
    %v950 = vunpack.c.l.b16 %v82
    %v951 = vunpack.c.h.b16 %v82
    %v952 = vunpack.c.l.b16 %v83
    %v953 = vpack.c.b16 %v908, %v905
    %v954 = vpack.c.b16 %v909, %v906
    %v955 = vpack.c.b16 %v910, %v907
    %v956 = vpack.c.b16 %v914, %v911
    %v957 = vpack.c.b16 %v915, %v912
    %v958 = vpack.c.b16 %v916, %v913
    %v959 = vpack.c.b16 %v920, %v917
    %v960 = vpack.c.b16 %v921, %v918
    %v961 = vpack.c.b16 %v922, %v919
    %v962 = vpack.c.b16 %v926, %v923
    %v963 = vpack.c.b16 %v927, %v924
    %v964 = vpack.c.b16 %v928, %v925
    %v965 = vpack.c.b16 %v932, %v929
    %v966 = vpack.c.b16 %v933, %v930
    %v967 = vpack.c.b16 %v934, %v931
    %v968 = vpack.c.b16 %v938, %v935
    %v969 = vpack.c.b16 %v939, %v936
    %v970 = vpack.c.b16 %v940, %v937
    %v971 = vpack.c.b16 %v944, %v941
    %v972 = vpack.c.b16 %v945, %v942
    %v973 = vpack.c.b16 %v946, %v943
    %v974 = vpack.c.b16 %v950, %v947
    %v975 = vpack.c.b16 %v951, %v948
    %v976 = vpack.c.b16 %v952, %v949
    %1001 = vmatpush.bf16.msra.mxu0 %v974
    %1002 = vmatpush.bf16.msra.mxu0 %v971
    %1003 = vmatpush.bf16.msra.mxu0 %v968
    %1004 = vmatpush.bf16.msra.mxu0 %v965
    %1005 = vmatpush.bf16.msra.mxu0 %v962
    %1006 = vmatpush.bf16.msra.mxu0 %v959
    %1007 = vmatpush.bf16.msra.mxu0 %v956
    %1008 = vmatpush.bf16.msra.mxu0 %v953
    %1009 = vmatmul.bf16.gmra.mxu0 %v850
    %v1010 = vpop.f32.mrf.mxu0
    %v1011 = vadd.f32 %v867, %v1010
    %v1012 = vpop.f32.mrf.mxu0
    %v1013 = vadd.f32 %v867, %v1012
    %1014 = vmatmul.bf16.gmra.mxu0 %v851
    %v1015 = vpop.f32.mrf.mxu0
    %v1016 = vadd.f32 %v867, %v1015
    %v1017 = vpop.f32.mrf.mxu0
    %v1018 = vadd.f32 %v867, %v1017
    %1019 = vmatmul.bf16.gmra.mxu0 %v852
    %v1020 = vpop.f32.mrf.mxu0
    %v1021 = vadd.f32 %v867, %v1020
    %v1022 = vpop.f32.mrf.mxu0
    %v1023 = vadd.f32 %v867, %v1022
    %1024 = vmatmul.bf16.gmra.mxu0 %v853
    %v1025 = vpop.f32.mrf.mxu0
    %v1026 = vadd.f32 %v867, %v1025
    %v1027 = vpop.f32.mrf.mxu0
    %v1028 = vadd.f32 %v867, %v1027
    %1029 = vmatmul.bf16.gmra.mxu0 %v854
    %v1030 = vpop.f32.mrf.mxu0
    %v1031 = vadd.f32 %v867, %v1030
    %v1032 = vpop.f32.mrf.mxu0
    %v1033 = vadd.f32 %v867, %v1032
    %1034 = vmatmul.bf16.gmra.mxu0 %v855
    %v1035 = vpop.f32.mrf.mxu0
    %v1036 = vadd.f32 %v867, %v1035
    %v1037 = vpop.f32.mrf.mxu0
    %v1038 = vadd.f32 %v867, %v1037
    %1039 = vmatmul.bf16.gmra.mxu0 %v856
    %v1040 = vpop.f32.mrf.mxu0
    %v1041 = vadd.f32 %v867, %v1040
    %v1042 = vpop.f32.mrf.mxu0
    %v1043 = vadd.f32 %v867, %v1042
    %1044 = vmatmul.bf16.gmra.mxu0 %v857
    %v1045 = vpop.f32.mrf.mxu0
    %v1046 = vadd.f32 %v867, %v1045
    %v1047 = vpop.f32.mrf.mxu0
    %v1048 = vadd.f32 %v867, %v1047
    %1049 = vmatmul.bf16.gmra.mxu0 %v858
    %v1050 = vpop.f32.mrf.mxu0
    %v1051 = vadd.f32 %v867, %v1050
    %v1052 = vpop.f32.mrf.mxu0
    %v1053 = vadd.f32 %v867, %v1052
    %1054 = vmatmul.bf16.gmra.mxu0 %v859
    %v1055 = vpop.f32.mrf.mxu0
    %v1056 = vadd.f32 %v867, %v1055
    %v1057 = vpop.f32.mrf.mxu0
    %v1058 = vadd.f32 %v867, %v1057
    %1059 = vmatmul.bf16.gmra.mxu0 %v860
    %v1060 = vpop.f32.mrf.mxu0
    %v1061 = vadd.f32 %v867, %v1060
    %v1062 = vpop.f32.mrf.mxu0
    %v1063 = vadd.f32 %v867, %v1062
    %1064 = vmatmul.bf16.gmra.mxu0 %v861
    %v1065 = vpop.f32.mrf.mxu0
    %v1066 = vadd.f32 %v867, %v1065
    %v1067 = vpop.f32.mrf.mxu0
    %v1068 = vadd.f32 %v867, %v1067
    %1069 = vmatmul.bf16.gmra.mxu0 %v862
    %v1070 = vpop.f32.mrf.mxu0
    %v1071 = vadd.f32 %v867, %v1070
    %v1072 = vpop.f32.mrf.mxu0
    %v1073 = vadd.f32 %v867, %v1072
    %1074 = vmatmul.bf16.gmra.mxu0 %v863
    %v1075 = vpop.f32.mrf.mxu0
    %v1076 = vadd.f32 %v867, %v1075
    %v1077 = vpop.f32.mrf.mxu0
    %v1078 = vadd.f32 %v867, %v1077
    %1079 = vmatmul.bf16.gmra.mxu0 %v864
    %v1080 = vpop.f32.mrf.mxu0
    %v1081 = vadd.f32 %v867, %v1080
    %v1082 = vpop.f32.mrf.mxu0
    %v1083 = vadd.f32 %v867, %v1082
    %1084 = vmatmul.bf16.gmra.mxu0 %v865
    %v1085 = vpop.f32.mrf.mxu0
    %v1086 = vadd.f32 %v867, %v1085
    %v1087 = vpop.f32.mrf.mxu0
    %v1088 = vadd.f32 %v867, %v1087
    %1089 = vdwg.mxu0
    %1090 = vmatpush.bf16.msra.mxu0 %v975
    %1091 = vmatpush.bf16.msra.mxu0 %v972
    %1092 = vmatpush.bf16.msra.mxu0 %v969
    %1093 = vmatpush.bf16.msra.mxu0 %v966
    %1094 = vmatpush.bf16.msra.mxu0 %v963
    %1095 = vmatpush.bf16.msra.mxu0 %v960
    %1096 = vmatpush.bf16.msra.mxu0 %v957
    %1097 = vmatpush.bf16.msra.mxu0 %v954
    %1098 = vmatmul.bf16.gmra.mxu0 %v850
    %v1099 = vpop.f32.mrf.mxu0
    %v1100 = vadd.f32 %v868, %v1099
    %v1101 = vpop.f32.mrf.mxu0
    %v1102 = vadd.f32 %v868, %v1101
    %1103 = vmatmul.bf16.gmra.mxu0 %v851
    %v1104 = vpop.f32.mrf.mxu0
    %v1105 = vadd.f32 %v868, %v1104
    %v1106 = vpop.f32.mrf.mxu0
    %v1107 = vadd.f32 %v868, %v1106
    %1108 = vmatmul.bf16.gmra.mxu0 %v852
    %v1109 = vpop.f32.mrf.mxu0
    %v1110 = vadd.f32 %v868, %v1109
    %v1111 = vpop.f32.mrf.mxu0
    %v1112 = vadd.f32 %v868, %v1111
    %1113 = vmatmul.bf16.gmra.mxu0 %v853
    %v1114 = vpop.f32.mrf.mxu0
    %v1115 = vadd.f32 %v868, %v1114
    %v1116 = vpop.f32.mrf.mxu0
    %v1117 = vadd.f32 %v868, %v1116
    %1118 = vmatmul.bf16.gmra.mxu0 %v854
    %v1119 = vpop.f32.mrf.mxu0
    %v1120 = vadd.f32 %v868, %v1119
    %v1121 = vpop.f32.mrf.mxu0
    %v1122 = vadd.f32 %v868, %v1121
    %1123 = vmatmul.bf16.gmra.mxu0 %v855
    %v1124 = vpop.f32.mrf.mxu0
    %v1125 = vadd.f32 %v868, %v1124
    %v1126 = vpop.f32.mrf.mxu0
    %v1127 = vadd.f32 %v868, %v1126
    %1128 = vmatmul.bf16.gmra.mxu0 %v856
    %v1129 = vpop.f32.mrf.mxu0
    %v1130 = vadd.f32 %v868, %v1129
    %v1131 = vpop.f32.mrf.mxu0
    %v1132 = vadd.f32 %v868, %v1131
    %1133 = vmatmul.bf16.gmra.mxu0 %v857
    %v1134 = vpop.f32.mrf.mxu0
    %v1135 = vadd.f32 %v868, %v1134
    %v1136 = vpop.f32.mrf.mxu0
    %v1137 = vadd.f32 %v868, %v1136
    %1138 = vmatmul.bf16.gmra.mxu0 %v858
    %v1139 = vpop.f32.mrf.mxu0
    %v1140 = vadd.f32 %v868, %v1139
    %v1141 = vpop.f32.mrf.mxu0
    %v1142 = vadd.f32 %v868, %v1141
    %1143 = vmatmul.bf16.gmra.mxu0 %v859
    %v1144 = vpop.f32.mrf.mxu0
    %v1145 = vadd.f32 %v868, %v1144
    %v1146 = vpop.f32.mrf.mxu0
    %v1147 = vadd.f32 %v868, %v1146
    %1148 = vmatmul.bf16.gmra.mxu0 %v860
    %v1149 = vpop.f32.mrf.mxu0
    %v1150 = vadd.f32 %v868, %v1149
    %v1151 = vpop.f32.mrf.mxu0
    %v1152 = vadd.f32 %v868, %v1151
    %1153 = vmatmul.bf16.gmra.mxu0 %v861
    %v1154 = vpop.f32.mrf.mxu0
    %v1155 = vadd.f32 %v868, %v1154
    %v1156 = vpop.f32.mrf.mxu0
    %v1157 = vadd.f32 %v868, %v1156
    %1158 = vmatmul.bf16.gmra.mxu0 %v862
    %v1159 = vpop.f32.mrf.mxu0
    %v1160 = vadd.f32 %v868, %v1159
    %v1161 = vpop.f32.mrf.mxu0
    %v1162 = vadd.f32 %v868, %v1161
    %1163 = vmatmul.bf16.gmra.mxu0 %v863
    %v1164 = vpop.f32.mrf.mxu0
    %v1165 = vadd.f32 %v868, %v1164
    %v1166 = vpop.f32.mrf.mxu0
    %v1167 = vadd.f32 %v868, %v1166
    %1168 = vmatmul.bf16.gmra.mxu0 %v864
    %v1169 = vpop.f32.mrf.mxu0
    %v1170 = vadd.f32 %v868, %v1169
    %v1171 = vpop.f32.mrf.mxu0
    %v1172 = vadd.f32 %v868, %v1171
    %1173 = vmatmul.bf16.gmra.mxu0 %v865
    %v1174 = vpop.f32.mrf.mxu0
    %v1175 = vadd.f32 %v868, %v1174
    %v1176 = vpop.f32.mrf.mxu0
    %v1177 = vadd.f32 %v868, %v1176
    %1178 = vdwg.mxu0
    %1179 = vmatpush.bf16.msra.mxu0 %v976
    %1180 = vmatpush.bf16.msra.mxu0 %v973
    %1181 = vmatpush.bf16.msra.mxu0 %v970
    %1182 = vmatpush.bf16.msra.mxu0 %v967
    %1183 = vmatpush.bf16.msra.mxu0 %v964
    %1184 = vmatpush.bf16.msra.mxu0 %v961
    %1185 = vmatpush.bf16.msra.mxu0 %v958
    %1186 = vmatpush.bf16.msra.mxu0 %v955
    %1187 = vmatmul.bf16.gmra.mxu0 %v850
    %v1188 = vpop.f32.mrf.mxu0
    %v1189 = vadd.f32 %v869, %v1188
    %v1190 = vpop.f32.mrf.mxu0
    %v1191 = vadd.f32 %v869, %v1190
    %1192 = vmatmul.bf16.gmra.mxu0 %v851
    %v1193 = vpop.f32.mrf.mxu0
    %v1194 = vadd.f32 %v869, %v1193
    %v1195 = vpop.f32.mrf.mxu0
    %v1196 = vadd.f32 %v869, %v1195
    %1197 = vmatmul.bf16.gmra.mxu0 %v852
    %v1198 = vpop.f32.mrf.mxu0
    %v1199 = vadd.f32 %v869, %v1198
    %v1200 = vpop.f32.mrf.mxu0
    %v1201 = vadd.f32 %v869, %v1200
    %1202 = vmatmul.bf16.gmra.mxu0 %v853
    %v1203 = vpop.f32.mrf.mxu0
    %v1204 = vadd.f32 %v869, %v1203
    %v1205 = vpop.f32.mrf.mxu0
    %v1206 = vadd.f32 %v869, %v1205
    %1207 = vmatmul.bf16.gmra.mxu0 %v854
    %v1208 = vpop.f32.mrf.mxu0
    %v1209 = vadd.f32 %v869, %v1208
    %v1210 = vpop.f32.mrf.mxu0
    %v1211 = vadd.f32 %v869, %v1210
    %1212 = vmatmul.bf16.gmra.mxu0 %v855
    %v1213 = vpop.f32.mrf.mxu0
    %v1214 = vadd.f32 %v869, %v1213
    %v1215 = vpop.f32.mrf.mxu0
    %v1216 = vadd.f32 %v869, %v1215
    %1217 = vmatmul.bf16.gmra.mxu0 %v856
    %v1218 = vpop.f32.mrf.mxu0
    %v1219 = vadd.f32 %v869, %v1218
    %v1220 = vpop.f32.mrf.mxu0
    %v1221 = vadd.f32 %v869, %v1220
    %1222 = vmatmul.bf16.gmra.mxu0 %v857
    %v1223 = vpop.f32.mrf.mxu0
    %v1224 = vadd.f32 %v869, %v1223
    %v1225 = vpop.f32.mrf.mxu0
    %v1226 = vadd.f32 %v869, %v1225
    %1227 = vmatmul.bf16.gmra.mxu0 %v858
    %v1228 = vpop.f32.mrf.mxu0
    %v1229 = vadd.f32 %v869, %v1228
    %v1230 = vpop.f32.mrf.mxu0
    %v1231 = vadd.f32 %v869, %v1230
    %1232 = vmatmul.bf16.gmra.mxu0 %v859
    %v1233 = vpop.f32.mrf.mxu0
    %v1234 = vadd.f32 %v869, %v1233
    %v1235 = vpop.f32.mrf.mxu0
    %v1236 = vadd.f32 %v869, %v1235
    %1237 = vmatmul.bf16.gmra.mxu0 %v860
    %v1238 = vpop.f32.mrf.mxu0
    %v1239 = vadd.f32 %v869, %v1238
    %v1240 = vpop.f32.mrf.mxu0
    %v1241 = vadd.f32 %v869, %v1240
    %1242 = vmatmul.bf16.gmra.mxu0 %v861
    %v1243 = vpop.f32.mrf.mxu0
    %v1244 = vadd.f32 %v869, %v1243
    %v1245 = vpop.f32.mrf.mxu0
    %v1246 = vadd.f32 %v869, %v1245
    %1247 = vmatmul.bf16.gmra.mxu0 %v862
    %v1248 = vpop.f32.mrf.mxu0
    %v1249 = vadd.f32 %v869, %v1248
    %v1250 = vpop.f32.mrf.mxu0
    %v1251 = vadd.f32 %v869, %v1250
    %1252 = vmatmul.bf16.gmra.mxu0 %v863
    %v1253 = vpop.f32.mrf.mxu0
    %v1254 = vadd.f32 %v869, %v1253
    %v1255 = vpop.f32.mrf.mxu0
    %v1256 = vadd.f32 %v869, %v1255
    %1257 = vmatmul.bf16.gmra.mxu0 %v864
    %v1258 = vpop.f32.mrf.mxu0
    %v1259 = vadd.f32 %v869, %v1258
    %v1260 = vpop.f32.mrf.mxu0
    %v1261 = vadd.f32 %v869, %v1260
    %1262 = vmatmul.bf16.gmra.mxu0 %v865
    %v1263 = vpop.f32.mrf.mxu0
    %v1264 = vadd.f32 %v869, %v1263
    %v1265 = vpop.f32.mrf.mxu0
    %v1266 = vadd.f32 %v869, %v1265
    %1267 = vdwg.mxu0
    %v1268 = vmul.f32 %v1011, 0.17677669
    %v1269 = vmul.f32 %v1013, 0.17677669
    %v1270 = vmul.f32 %v1016, 0.17677669
    %v1271 = vmul.f32 %v1018, 0.17677669
    %v1272 = vmul.f32 %v1021, 0.17677669
    %v1273 = vmul.f32 %v1023, 0.17677669
    %v1274 = vmul.f32 %v1026, 0.17677669
    %v1275 = vmul.f32 %v1028, 0.17677669
    %v1276 = vmul.f32 %v1031, 0.17677669
    %v1277 = vmul.f32 %v1033, 0.17677669
    %v1278 = vmul.f32 %v1036, 0.17677669
    %v1279 = vmul.f32 %v1038, 0.17677669
    %v1280 = vmul.f32 %v1041, 0.17677669
    %v1281 = vmul.f32 %v1043, 0.17677669
    %v1282 = vmul.f32 %v1046, 0.17677669
    %v1283 = vmul.f32 %v1048, 0.17677669
    %v1284 = vmul.f32 %v1051, 0.17677669
    %v1285 = vmul.f32 %v1053, 0.17677669
    %v1286 = vmul.f32 %v1056, 0.17677669
    %v1287 = vmul.f32 %v1058, 0.17677669
    %v1288 = vmul.f32 %v1061, 0.17677669
    %v1289 = vmul.f32 %v1063, 0.17677669
    %v1290 = vmul.f32 %v1066, 0.17677669
    %v1291 = vmul.f32 %v1068, 0.17677669
    %v1292 = vmul.f32 %v1071, 0.17677669
    %v1293 = vmul.f32 %v1073, 0.17677669
    %v1294 = vmul.f32 %v1076, 0.17677669
    %v1295 = vmul.f32 %v1078, 0.17677669
    %v1296 = vmul.f32 %v1081, 0.17677669
    %v1297 = vmul.f32 %v1083, 0.17677669
    %v1298 = vmul.f32 %v1086, 0.17677669
    %v1299 = vmul.f32 %v1088, 0.17677669
    %s1300 = scalar_lea.vmem %s0, 256
    %v1301 = vld [vmem:[%s1300] sm:$0xff]
    %v1302 = vld [vmem:[%s1300 + $0x8] sm:$0xff]
    %v1303 = vld [vmem:[%s1300 + $0x10] sm:$0xff]
    %v1304 = vld [vmem:[%s1300 + $0x18] sm:$0xff]
    %v1305 = vld [vmem:[%s1300 + $0x20] sm:$0xff]
    %v1306 = vld [vmem:[%s1300 + $0x28] sm:$0xff]
    %v1307 = vld [vmem:[%s1300 + $0x30] sm:$0xff]
    %v1308 = vld [vmem:[%s1300 + $0x38] sm:$0xff]
    %v1309 = vld [vmem:[%s1300 + $0x40] sm:$0xff]
    %v1310 = vld [vmem:[%s1300 + $0x48] sm:$0xff]
    %v1311 = vld [vmem:[%s1300 + $0x50] sm:$0xff]
    %v1312 = vld [vmem:[%s1300 + $0x58] sm:$0xff]
    %v1313 = vld [vmem:[%s1300 + $0x60] sm:$0xff]
    %v1314 = vld [vmem:[%s1300 + $0x68] sm:$0xff]
    %v1315 = vld [vmem:[%s1300 + $0x70] sm:$0xff]
    %v1316 = vld [vmem:[%s1300 + $0x78] sm:$0xff]
    %v1317 = vld [vmem:[%s1300 + $0x80] sm:$0xff]
    %v1318 = vld [vmem:[%s1300 + $0x88] sm:$0xff]
    %v1319 = vld [vmem:[%s1300 + $0x90] sm:$0xff]
    %v1320 = vld [vmem:[%s1300 + $0x98] sm:$0xff]
    %v1321 = vld [vmem:[%s1300 + $0xa0] sm:$0xff]
    %v1322 = vld [vmem:[%s1300 + $0xa8] sm:$0xff]
    %v1323 = vld [vmem:[%s1300 + $0xb0] sm:$0xff]
    %v1324 = vld [vmem:[%s1300 + $0xb8] sm:$0xff]
    %v1325 = vld [vmem:[%s1300 + $0xc0] sm:$0xff]
    %v1326 = vld [vmem:[%s1300 + $0xc8] sm:$0xff]
    %v1327 = vld [vmem:[%s1300 + $0xd0] sm:$0xff]
    %v1328 = vld [vmem:[%s1300 + $0xd8] sm:$0xff]
    %v1329 = vld [vmem:[%s1300 + $0xe0] sm:$0xff]
    %v1330 = vld [vmem:[%s1300 + $0xe8] sm:$0xff]
    %v1331 = vld [vmem:[%s1300 + $0xf0] sm:$0xff]
    %v1332 = vld [vmem:[%s1300 + $0xf8] sm:$0xff]
    %1333 = vadd.xlane.f32.xlu0 %v1301
    %v1334 = vpop.xlane.xlu0 %1333
    %1335 = vadd.xlane.f32.xlu0 %v1302
    %v1336 = vpop.xlane.xlu0 %1335
    %1337 = vadd.xlane.f32.xlu0 %v1303
    %v1338 = vpop.xlane.xlu0 %1337
    %1339 = vadd.xlane.f32.xlu0 %v1304
    %v1340 = vpop.xlane.xlu0 %1339
    %1341 = vadd.xlane.f32.xlu0 %v1305
    %v1342 = vpop.xlane.xlu0 %1341
    %1343 = vadd.xlane.f32.xlu0 %v1306
    %v1344 = vpop.xlane.xlu0 %1343
    %1345 = vadd.xlane.f32.xlu0 %v1307
    %v1346 = vpop.xlane.xlu0 %1345
    %1347 = vadd.xlane.f32.xlu0 %v1308
    %v1348 = vpop.xlane.xlu0 %1347
    %1349 = vadd.xlane.f32.xlu0 %v1309
    %v1350 = vpop.xlane.xlu0 %1349
    %1351 = vadd.xlane.f32.xlu0 %v1310
    %v1352 = vpop.xlane.xlu0 %1351
    %1353 = vadd.xlane.f32.xlu0 %v1311
    %v1354 = vpop.xlane.xlu0 %1353
    %1355 = vadd.xlane.f32.xlu0 %v1312
    %v1356 = vpop.xlane.xlu0 %1355
    %1357 = vadd.xlane.f32.xlu0 %v1313
    %v1358 = vpop.xlane.xlu0 %1357
    %1359 = vadd.xlane.f32.xlu0 %v1314
    %v1360 = vpop.xlane.xlu0 %1359
    %1361 = vadd.xlane.f32.xlu0 %v1315
    %v1362 = vpop.xlane.xlu0 %1361
    %1363 = vadd.xlane.f32.xlu0 %v1316
    %v1364 = vpop.xlane.xlu0 %1363
    %1365 = vadd.xlane.f32.xlu0 %v1317
    %v1366 = vpop.xlane.xlu0 %1365
    %1367 = vadd.xlane.f32.xlu0 %v1318
    %v1368 = vpop.xlane.xlu0 %1367
    %1369 = vadd.xlane.f32.xlu0 %v1319
    %v1370 = vpop.xlane.xlu0 %1369
    %1371 = vadd.xlane.f32.xlu0 %v1320
    %v1372 = vpop.xlane.xlu0 %1371
    %1373 = vadd.xlane.f32.xlu0 %v1321
    %v1374 = vpop.xlane.xlu0 %1373
    %1375 = vadd.xlane.f32.xlu0 %v1322
    %v1376 = vpop.xlane.xlu0 %1375
    %1377 = vadd.xlane.f32.xlu0 %v1323
    %v1378 = vpop.xlane.xlu0 %1377
    %1379 = vadd.xlane.f32.xlu0 %v1324
    %v1380 = vpop.xlane.xlu0 %1379
    %1381 = vadd.xlane.f32.xlu0 %v1325
    %v1382 = vpop.xlane.xlu0 %1381
    %1383 = vadd.xlane.f32.xlu0 %v1326
    %v1384 = vpop.xlane.xlu0 %1383
    %1385 = vadd.xlane.f32.xlu0 %v1327
    %v1386 = vpop.xlane.xlu0 %1385
    %1387 = vadd.xlane.f32.xlu0 %v1328
    %v1388 = vpop.xlane.xlu0 %1387
    %1389 = vadd.xlane.f32.xlu0 %v1329
    %v1390 = vpop.xlane.xlu0 %1389
    %1391 = vadd.xlane.f32.xlu0 %v1330
    %v1392 = vpop.xlane.xlu0 %1391
    %1393 = vadd.xlane.f32.xlu0 %v1331
    %v1394 = vpop.xlane.xlu0 %1393
    %1395 = vadd.xlane.f32.xlu0 %v1332
    %v1396 = vpop.xlane.xlu0 %1395
    %v1397 = vmul.f32 %v1334, %v203
    %v1398 = vmul.f32 %v1336, %v203
    %v1399 = vmul.f32 %v1338, %v203
    %v1400 = vmul.f32 %v1340, %v203
    %v1401 = vmul.f32 %v1342, %v203
    %v1402 = vmul.f32 %v1344, %v203
    %v1403 = vmul.f32 %v1346, %v203
    %v1404 = vmul.f32 %v1348, %v203
    %v1405 = vmul.f32 %v1350, %v203
    %v1406 = vmul.f32 %v1352, %v203
    %v1407 = vmul.f32 %v1354, %v203
    %v1408 = vmul.f32 %v1356, %v203
    %v1409 = vmul.f32 %v1358, %v203
    %v1410 = vmul.f32 %v1360, %v203
    %v1411 = vmul.f32 %v1362, %v203
    %v1412 = vmul.f32 %v1364, %v203
    %v1413 = vmul.f32 %v1366, %v203
    %v1414 = vmul.f32 %v1368, %v203
    %v1415 = vmul.f32 %v1370, %v203
    %v1416 = vmul.f32 %v1372, %v203
    %v1417 = vmul.f32 %v1374, %v203
    %v1418 = vmul.f32 %v1376, %v203
    %v1419 = vmul.f32 %v1378, %v203
    %v1420 = vmul.f32 %v1380, %v203
    %v1421 = vmul.f32 %v1382, %v203
    %v1422 = vmul.f32 %v1384, %v203
    %v1423 = vmul.f32 %v1386, %v203
    %v1424 = vmul.f32 %v1388, %v203
    %v1425 = vmul.f32 %v1390, %v203
    %v1426 = vmul.f32 %v1392, %v203
    %v1427 = vmul.f32 %v1394, %v203
    %v1428 = vmul.f32 %v1396, %v203
    %v1429 = vsub.f32 %v1301, %v1397
    %v1430 = vsub.f32 %v1302, %v1398
    %v1431 = vsub.f32 %v1303, %v1399
    %v1432 = vsub.f32 %v1304, %v1400
    %v1433 = vsub.f32 %v1305, %v1401
    %v1434 = vsub.f32 %v1306, %v1402
    %v1435 = vsub.f32 %v1307, %v1403
    %v1436 = vsub.f32 %v1308, %v1404
    %v1437 = vsub.f32 %v1309, %v1405
    %v1438 = vsub.f32 %v1310, %v1406
    %v1439 = vsub.f32 %v1311, %v1407
    %v1440 = vsub.f32 %v1312, %v1408
    %v1441 = vsub.f32 %v1313, %v1409
    %v1442 = vsub.f32 %v1314, %v1410
    %v1443 = vsub.f32 %v1315, %v1411
    %v1444 = vsub.f32 %v1316, %v1412
    %v1445 = vsub.f32 %v1317, %v1413
    %v1446 = vsub.f32 %v1318, %v1414
    %v1447 = vsub.f32 %v1319, %v1415
    %v1448 = vsub.f32 %v1320, %v1416
    %v1449 = vsub.f32 %v1321, %v1417
    %v1450 = vsub.f32 %v1322, %v1418
    %v1451 = vsub.f32 %v1323, %v1419
    %v1452 = vsub.f32 %v1324, %v1420
    %v1453 = vsub.f32 %v1325, %v1421
    %v1454 = vsub.f32 %v1326, %v1422
    %v1455 = vsub.f32 %v1327, %v1423
    %v1456 = vsub.f32 %v1328, %v1424
    %v1457 = vsub.f32 %v1329, %v1425
    %v1458 = vsub.f32 %v1330, %v1426
    %v1459 = vsub.f32 %v1331, %v1427
    %v1460 = vsub.f32 %v1332, %v1428
    %v1461 = vmul.f32 %v1429, %v1429
    %v1462 = vmul.f32 %v1430, %v1430
    %v1463 = vmul.f32 %v1431, %v1431
    %v1464 = vmul.f32 %v1432, %v1432
    %v1465 = vmul.f32 %v1433, %v1433
    %v1466 = vmul.f32 %v1434, %v1434
    %v1467 = vmul.f32 %v1435, %v1435
    %v1468 = vmul.f32 %v1436, %v1436
    %v1469 = vmul.f32 %v1437, %v1437
    %v1470 = vmul.f32 %v1438, %v1438
    %v1471 = vmul.f32 %v1439, %v1439
    %v1472 = vmul.f32 %v1440, %v1440
    %v1473 = vmul.f32 %v1441, %v1441
    %v1474 = vmul.f32 %v1442, %v1442
    %v1475 = vmul.f32 %v1443, %v1443
    %v1476 = vmul.f32 %v1444, %v1444
    %v1477 = vmul.f32 %v1445, %v1445
    %v1478 = vmul.f32 %v1446, %v1446
    %v1479 = vmul.f32 %v1447, %v1447
    %v1480 = vmul.f32 %v1448, %v1448
    %v1481 = vmul.f32 %v1449, %v1449
    %v1482 = vmul.f32 %v1450, %v1450
    %v1483 = vmul.f32 %v1451, %v1451
    %v1484 = vmul.f32 %v1452, %v1452
    %v1485 = vmul.f32 %v1453, %v1453
    %v1486 = vmul.f32 %v1454, %v1454
    %v1487 = vmul.f32 %v1455, %v1455
    %v1488 = vmul.f32 %v1456, %v1456
    %v1489 = vmul.f32 %v1457, %v1457
    %v1490 = vmul.f32 %v1458, %v1458
    %v1491 = vmul.f32 %v1459, %v1459
    %v1492 = vmul.f32 %v1460, %v1460
    %1493 = vadd.xlane.f32.xlu0 %v1461
    %v1494 = vpop.xlane.xlu0 %1493
    %1495 = vadd.xlane.f32.xlu0 %v1462
    %v1496 = vpop.xlane.xlu0 %1495
    %1497 = vadd.xlane.f32.xlu0 %v1463
    %v1498 = vpop.xlane.xlu0 %1497
    %1499 = vadd.xlane.f32.xlu0 %v1464
    %v1500 = vpop.xlane.xlu0 %1499
    %1501 = vadd.xlane.f32.xlu0 %v1465
    %v1502 = vpop.xlane.xlu0 %1501
    %1503 = vadd.xlane.f32.xlu0 %v1466
    %v1504 = vpop.xlane.xlu0 %1503
    %1505 = vadd.xlane.f32.xlu0 %v1467
    %v1506 = vpop.xlane.xlu0 %1505
    %1507 = vadd.xlane.f32.xlu0 %v1468
    %v1508 = vpop.xlane.xlu0 %1507
    %1509 = vadd.xlane.f32.xlu0 %v1469
    %v1510 = vpop.xlane.xlu0 %1509
    %1511 = vadd.xlane.f32.xlu0 %v1470
    %v1512 = vpop.xlane.xlu0 %1511
    %1513 = vadd.xlane.f32.xlu0 %v1471
    %v1514 = vpop.xlane.xlu0 %1513
    %1515 = vadd.xlane.f32.xlu0 %v1472
    %v1516 = vpop.xlane.xlu0 %1515
    %1517 = vadd.xlane.f32.xlu0 %v1473
    %v1518 = vpop.xlane.xlu0 %1517
    %1519 = vadd.xlane.f32.xlu0 %v1474
    %v1520 = vpop.xlane.xlu0 %1519
    %1521 = vadd.xlane.f32.xlu0 %v1475
    %v1522 = vpop.xlane.xlu0 %1521
    %1523 = vadd.xlane.f32.xlu0 %v1476
    %v1524 = vpop.xlane.xlu0 %1523
    %1525 = vadd.xlane.f32.xlu0 %v1477
    %v1526 = vpop.xlane.xlu0 %1525
    %1527 = vadd.xlane.f32.xlu0 %v1478
    %v1528 = vpop.xlane.xlu0 %1527
    %1529 = vadd.xlane.f32.xlu0 %v1479
    %v1530 = vpop.xlane.xlu0 %1529
    %1531 = vadd.xlane.f32.xlu0 %v1480
    %v1532 = vpop.xlane.xlu0 %1531
    %1533 = vadd.xlane.f32.xlu0 %v1481
    %v1534 = vpop.xlane.xlu0 %1533
    %1535 = vadd.xlane.f32.xlu0 %v1482
    %v1536 = vpop.xlane.xlu0 %1535
    %1537 = vadd.xlane.f32.xlu0 %v1483
    %v1538 = vpop.xlane.xlu0 %1537
    %1539 = vadd.xlane.f32.xlu0 %v1484
    %v1540 = vpop.xlane.xlu0 %1539
    %1541 = vadd.xlane.f32.xlu0 %v1485
    %v1542 = vpop.xlane.xlu0 %1541
    %1543 = vadd.xlane.f32.xlu0 %v1486
    %v1544 = vpop.xlane.xlu0 %1543
    %1545 = vadd.xlane.f32.xlu0 %v1487
    %v1546 = vpop.xlane.xlu0 %1545
    %1547 = vadd.xlane.f32.xlu0 %v1488
    %v1548 = vpop.xlane.xlu0 %1547
    %1549 = vadd.xlane.f32.xlu0 %v1489
    %v1550 = vpop.xlane.xlu0 %1549
    %1551 = vadd.xlane.f32.xlu0 %v1490
    %v1552 = vpop.xlane.xlu0 %1551
    %1553 = vadd.xlane.f32.xlu0 %v1491
    %v1554 = vpop.xlane.xlu0 %1553
    %1555 = vadd.xlane.f32.xlu0 %v1492
    %v1556 = vpop.xlane.xlu0 %1555
    %v1557 = vmul.f32 %v1494, %v203
    %v1558 = vmul.f32 %v1496, %v203
    %v1559 = vmul.f32 %v1498, %v203
    %v1560 = vmul.f32 %v1500, %v203
    %v1561 = vmul.f32 %v1502, %v203
    %v1562 = vmul.f32 %v1504, %v203
    %v1563 = vmul.f32 %v1506, %v203
    %v1564 = vmul.f32 %v1508, %v203
    %v1565 = vmul.f32 %v1510, %v203
    %v1566 = vmul.f32 %v1512, %v203
    %v1567 = vmul.f32 %v1514, %v203
    %v1568 = vmul.f32 %v1516, %v203
    %v1569 = vmul.f32 %v1518, %v203
    %v1570 = vmul.f32 %v1520, %v203
    %v1571 = vmul.f32 %v1522, %v203
    %v1572 = vmul.f32 %v1524, %v203
    %v1573 = vmul.f32 %v1526, %v203
    %v1574 = vmul.f32 %v1528, %v203
    %v1575 = vmul.f32 %v1530, %v203
    %v1576 = vmul.f32 %v1532, %v203
    %v1577 = vmul.f32 %v1534, %v203
    %v1578 = vmul.f32 %v1536, %v203
    %v1579 = vmul.f32 %v1538, %v203
    %v1580 = vmul.f32 %v1540, %v203
    %v1581 = vmul.f32 %v1542, %v203
    %v1582 = vmul.f32 %v1544, %v203
    %v1583 = vmul.f32 %v1546, %v203
    %v1584 = vmul.f32 %v1548, %v203
    %v1585 = vmul.f32 %v1550, %v203
    %v1586 = vmul.f32 %v1552, %v203
    %v1587 = vmul.f32 %v1554, %v203
    %v1588 = vmul.f32 %v1556, %v203
    %v1589 = vadd.f32 %v1557, 1e-05
    %v1590 = vadd.f32 %v1558, 1e-05
    %v1591 = vadd.f32 %v1559, 1e-05
    %v1592 = vadd.f32 %v1560, 1e-05
    %v1593 = vadd.f32 %v1561, 1e-05
    %v1594 = vadd.f32 %v1562, 1e-05
    %v1595 = vadd.f32 %v1563, 1e-05
    %v1596 = vadd.f32 %v1564, 1e-05
    %v1597 = vadd.f32 %v1565, 1e-05
    %v1598 = vadd.f32 %v1566, 1e-05
    %v1599 = vadd.f32 %v1567, 1e-05
    %v1600 = vadd.f32 %v1568, 1e-05
    %v1601 = vadd.f32 %v1569, 1e-05
    %v1602 = vadd.f32 %v1570, 1e-05
    %v1603 = vadd.f32 %v1571, 1e-05
    %v1604 = vadd.f32 %v1572, 1e-05
    %v1605 = vadd.f32 %v1573, 1e-05
    %v1606 = vadd.f32 %v1574, 1e-05
    %v1607 = vadd.f32 %v1575, 1e-05
    %v1608 = vadd.f32 %v1576, 1e-05
    %v1609 = vadd.f32 %v1577, 1e-05
    %v1610 = vadd.f32 %v1578, 1e-05
    %v1611 = vadd.f32 %v1579, 1e-05
    %v1612 = vadd.f32 %v1580, 1e-05
    %v1613 = vadd.f32 %v1581, 1e-05
    %v1614 = vadd.f32 %v1582, 1e-05
    %v1615 = vadd.f32 %v1583, 1e-05
    %v1616 = vadd.f32 %v1584, 1e-05
    %v1617 = vadd.f32 %v1585, 1e-05
    %v1618 = vadd.f32 %v1586, 1e-05
    %v1619 = vadd.f32 %v1587, 1e-05
    %v1620 = vadd.f32 %v1588, 1e-05
    %v1621 = vrsqrt.pop %v1589
    %v1622 = vmul.f32 %v1621, %v1589
    %v1623 = vmul.f32 %v1622, %v1621
    %v1624 = vmul.f32 0.5, %v1623
    %v1625 = vsub.f32 1.5, %v1624
    %v1626 = vmul.f32 %v1621, %v1625
    %vm1627 = vweird.f32 %v1589
    %vm1628 = vweird.f32 %v1621
    %vm1629 = vmor %vm1627, %vm1628
    %v1630 = vsel %vm1629, %v1621, %v1626
    %v1631 = vrsqrt.pop %v1590
    %v1632 = vmul.f32 %v1631, %v1590
    %v1633 = vmul.f32 %v1632, %v1631
    %v1634 = vmul.f32 0.5, %v1633
    %v1635 = vsub.f32 1.5, %v1634
    %v1636 = vmul.f32 %v1631, %v1635
    %vm1637 = vweird.f32 %v1590
    %vm1638 = vweird.f32 %v1631
    %vm1639 = vmor %vm1637, %vm1638
    %v1640 = vsel %vm1639, %v1631, %v1636
    %v1641 = vrsqrt.pop %v1591
    %v1642 = vmul.f32 %v1641, %v1591
    %v1643 = vmul.f32 %v1642, %v1641
    %v1644 = vmul.f32 0.5, %v1643
    %v1645 = vsub.f32 1.5, %v1644
    %v1646 = vmul.f32 %v1641, %v1645
    %vm1647 = vweird.f32 %v1591
    %vm1648 = vweird.f32 %v1641
    %vm1649 = vmor %vm1647, %vm1648
    %v1650 = vsel %vm1649, %v1641, %v1646
    %v1651 = vrsqrt.pop %v1592
    %v1652 = vmul.f32 %v1651, %v1592
    %v1653 = vmul.f32 %v1652, %v1651
    %v1654 = vmul.f32 0.5, %v1653
    %v1655 = vsub.f32 1.5, %v1654
    %v1656 = vmul.f32 %v1651, %v1655
    %vm1657 = vweird.f32 %v1592
    %vm1658 = vweird.f32 %v1651
    %vm1659 = vmor %vm1657, %vm1658
    %v1660 = vsel %vm1659, %v1651, %v1656
    %v1661 = vrsqrt.pop %v1593
    %v1662 = vmul.f32 %v1661, %v1593
    %v1663 = vmul.f32 %v1662, %v1661
    %v1664 = vmul.f32 0.5, %v1663
    %v1665 = vsub.f32 1.5, %v1664
    %v1666 = vmul.f32 %v1661, %v1665
    %vm1667 = vweird.f32 %v1593
    %vm1668 = vweird.f32 %v1661
    %vm1669 = vmor %vm1667, %vm1668
    %v1670 = vsel %vm1669, %v1661, %v1666
    %v1671 = vrsqrt.pop %v1594
    %v1672 = vmul.f32 %v1671, %v1594
    %v1673 = vmul.f32 %v1672, %v1671
    %v1674 = vmul.f32 0.5, %v1673
    %v1675 = vsub.f32 1.5, %v1674
    %v1676 = vmul.f32 %v1671, %v1675
    %vm1677 = vweird.f32 %v1594
    %vm1678 = vweird.f32 %v1671
    %vm1679 = vmor %vm1677, %vm1678
    %v1680 = vsel %vm1679, %v1671, %v1676
    %v1681 = vrsqrt.pop %v1595
    %v1682 = vmul.f32 %v1681, %v1595
    %v1683 = vmul.f32 %v1682, %v1681
    %v1684 = vmul.f32 0.5, %v1683
    %v1685 = vsub.f32 1.5, %v1684
    %v1686 = vmul.f32 %v1681, %v1685
    %vm1687 = vweird.f32 %v1595
    %vm1688 = vweird.f32 %v1681
    %vm1689 = vmor %vm1687, %vm1688
    %v1690 = vsel %vm1689, %v1681, %v1686
    %v1691 = vrsqrt.pop %v1596
    %v1692 = vmul.f32 %v1691, %v1596
    %v1693 = vmul.f32 %v1692, %v1691
    %v1694 = vmul.f32 0.5, %v1693
    %v1695 = vsub.f32 1.5, %v1694
    %v1696 = vmul.f32 %v1691, %v1695
    %vm1697 = vweird.f32 %v1596
    %vm1698 = vweird.f32 %v1691
    %vm1699 = vmor %vm1697, %vm1698
    %v1700 = vsel %vm1699, %v1691, %v1696
    %v1701 = vrsqrt.pop %v1597
    %v1702 = vmul.f32 %v1701, %v1597
    %v1703 = vmul.f32 %v1702, %v1701
    %v1704 = vmul.f32 0.5, %v1703
    %v1705 = vsub.f32 1.5, %v1704
    %v1706 = vmul.f32 %v1701, %v1705
    %vm1707 = vweird.f32 %v1597
    %vm1708 = vweird.f32 %v1701
    %vm1709 = vmor %vm1707, %vm1708
    %v1710 = vsel %vm1709, %v1701, %v1706
    %v1711 = vrsqrt.pop %v1598
    %v1712 = vmul.f32 %v1711, %v1598
    %v1713 = vmul.f32 %v1712, %v1711
    %v1714 = vmul.f32 0.5, %v1713
    %v1715 = vsub.f32 1.5, %v1714
    %v1716 = vmul.f32 %v1711, %v1715
    %vm1717 = vweird.f32 %v1598
    %vm1718 = vweird.f32 %v1711
    %vm1719 = vmor %vm1717, %vm1718
    %v1720 = vsel %vm1719, %v1711, %v1716
    %v1721 = vrsqrt.pop %v1599
    %v1722 = vmul.f32 %v1721, %v1599
    %v1723 = vmul.f32 %v1722, %v1721
    %v1724 = vmul.f32 0.5, %v1723
    %v1725 = vsub.f32 1.5, %v1724
    %v1726 = vmul.f32 %v1721, %v1725
    %vm1727 = vweird.f32 %v1599
    %vm1728 = vweird.f32 %v1721
    %vm1729 = vmor %vm1727, %vm1728
    %v1730 = vsel %vm1729, %v1721, %v1726
    %v1731 = vrsqrt.pop %v1600
    %v1732 = vmul.f32 %v1731, %v1600
    %v1733 = vmul.f32 %v1732, %v1731
    %v1734 = vmul.f32 0.5, %v1733
    %v1735 = vsub.f32 1.5, %v1734
    %v1736 = vmul.f32 %v1731, %v1735
    %vm1737 = vweird.f32 %v1600
    %vm1738 = vweird.f32 %v1731
    %vm1739 = vmor %vm1737, %vm1738
    %v1740 = vsel %vm1739, %v1731, %v1736
    %v1741 = vrsqrt.pop %v1601
    %v1742 = vmul.f32 %v1741, %v1601
    %v1743 = vmul.f32 %v1742, %v1741
    %v1744 = vmul.f32 0.5, %v1743
    %v1745 = vsub.f32 1.5, %v1744
    %v1746 = vmul.f32 %v1741, %v1745
    %vm1747 = vweird.f32 %v1601
    %vm1748 = vweird.f32 %v1741
    %vm1749 = vmor %vm1747, %vm1748
    %v1750 = vsel %vm1749, %v1741, %v1746
    %v1751 = vrsqrt.pop %v1602
    %v1752 = vmul.f32 %v1751, %v1602
    %v1753 = vmul.f32 %v1752, %v1751
    %v1754 = vmul.f32 0.5, %v1753
    %v1755 = vsub.f32 1.5, %v1754
    %v1756 = vmul.f32 %v1751, %v1755
    %vm1757 = vweird.f32 %v1602
    %vm1758 = vweird.f32 %v1751
    %vm1759 = vmor %vm1757, %vm1758
    %v1760 = vsel %vm1759, %v1751, %v1756
    %v1761 = vrsqrt.pop %v1603
    %v1762 = vmul.f32 %v1761, %v1603
    %v1763 = vmul.f32 %v1762, %v1761
    %v1764 = vmul.f32 0.5, %v1763
    %v1765 = vsub.f32 1.5, %v1764
    %v1766 = vmul.f32 %v1761, %v1765
    %vm1767 = vweird.f32 %v1603
    %vm1768 = vweird.f32 %v1761
    %vm1769 = vmor %vm1767, %vm1768
    %v1770 = vsel %vm1769, %v1761, %v1766
    %v1771 = vrsqrt.pop %v1604
    %v1772 = vmul.f32 %v1771, %v1604
    %v1773 = vmul.f32 %v1772, %v1771
    %v1774 = vmul.f32 0.5, %v1773
    %v1775 = vsub.f32 1.5, %v1774
    %v1776 = vmul.f32 %v1771, %v1775
    %vm1777 = vweird.f32 %v1604
    %vm1778 = vweird.f32 %v1771
    %vm1779 = vmor %vm1777, %vm1778
    %v1780 = vsel %vm1779, %v1771, %v1776
    %v1781 = vrsqrt.pop %v1605
    %v1782 = vmul.f32 %v1781, %v1605
    %v1783 = vmul.f32 %v1782, %v1781
    %v1784 = vmul.f32 0.5, %v1783
    %v1785 = vsub.f32 1.5, %v1784
    %v1786 = vmul.f32 %v1781, %v1785
    %vm1787 = vweird.f32 %v1605
    %vm1788 = vweird.f32 %v1781
    %vm1789 = vmor %vm1787, %vm1788
    %v1790 = vsel %vm1789, %v1781, %v1786
    %v1791 = vrsqrt.pop %v1606
    %v1792 = vmul.f32 %v1791, %v1606
    %v1793 = vmul.f32 %v1792, %v1791
    %v1794 = vmul.f32 0.5, %v1793
    %v1795 = vsub.f32 1.5, %v1794
    %v1796 = vmul.f32 %v1791, %v1795
    %vm1797 = vweird.f32 %v1606
    %vm1798 = vweird.f32 %v1791
    %vm1799 = vmor %vm1797, %vm1798
    %v1800 = vsel %vm1799, %v1791, %v1796
    %v1801 = vrsqrt.pop %v1607
    %v1802 = vmul.f32 %v1801, %v1607
    %v1803 = vmul.f32 %v1802, %v1801
    %v1804 = vmul.f32 0.5, %v1803
    %v1805 = vsub.f32 1.5, %v1804
    %v1806 = vmul.f32 %v1801, %v1805
    %vm1807 = vweird.f32 %v1607
    %vm1808 = vweird.f32 %v1801
    %vm1809 = vmor %vm1807, %vm1808
    %v1810 = vsel %vm1809, %v1801, %v1806
    %v1811 = vrsqrt.pop %v1608
    %v1812 = vmul.f32 %v1811, %v1608
    %v1813 = vmul.f32 %v1812, %v1811
    %v1814 = vmul.f32 0.5, %v1813
    %v1815 = vsub.f32 1.5, %v1814
    %v1816 = vmul.f32 %v1811, %v1815
    %vm1817 = vweird.f32 %v1608
    %vm1818 = vweird.f32 %v1811
    %vm1819 = vmor %vm1817, %vm1818
    %v1820 = vsel %vm1819, %v1811, %v1816
    %v1821 = vrsqrt.pop %v1609
    %v1822 = vmul.f32 %v1821, %v1609
    %v1823 = vmul.f32 %v1822, %v1821
    %v1824 = vmul.f32 0.5, %v1823
    %v1825 = vsub.f32 1.5, %v1824
    %v1826 = vmul.f32 %v1821, %v1825
    %vm1827 = vweird.f32 %v1609
    %vm1828 = vweird.f32 %v1821
    %vm1829 = vmor %vm1827, %vm1828
    %v1830 = vsel %vm1829, %v1821, %v1826
    %v1831 = vrsqrt.pop %v1610
    %v1832 = vmul.f32 %v1831, %v1610
    %v1833 = vmul.f32 %v1832, %v1831
    %v1834 = vmul.f32 0.5, %v1833
    %v1835 = vsub.f32 1.5, %v1834
    %v1836 = vmul.f32 %v1831, %v1835
    %vm1837 = vweird.f32 %v1610
    %vm1838 = vweird.f32 %v1831
    %vm1839 = vmor %vm1837, %vm1838
    %v1840 = vsel %vm1839, %v1831, %v1836
    %v1841 = vrsqrt.pop %v1611
    %v1842 = vmul.f32 %v1841, %v1611
    %v1843 = vmul.f32 %v1842, %v1841
    %v1844 = vmul.f32 0.5, %v1843
    %v1845 = vsub.f32 1.5, %v1844
    %v1846 = vmul.f32 %v1841, %v1845
    %vm1847 = vweird.f32 %v1611
    %vm1848 = vweird.f32 %v1841
    %vm1849 = vmor %vm1847, %vm1848
    %v1850 = vsel %vm1849, %v1841, %v1846
    %v1851 = vrsqrt.pop %v1612
    %v1852 = vmul.f32 %v1851, %v1612
    %v1853 = vmul.f32 %v1852, %v1851
    %v1854 = vmul.f32 0.5, %v1853
    %v1855 = vsub.f32 1.5, %v1854
    %v1856 = vmul.f32 %v1851, %v1855
    %vm1857 = vweird.f32 %v1612
    %vm1858 = vweird.f32 %v1851
    %vm1859 = vmor %vm1857, %vm1858
    %v1860 = vsel %vm1859, %v1851, %v1856
    %v1861 = vrsqrt.pop %v1613
    %v1862 = vmul.f32 %v1861, %v1613
    %v1863 = vmul.f32 %v1862, %v1861
    %v1864 = vmul.f32 0.5, %v1863
    %v1865 = vsub.f32 1.5, %v1864
    %v1866 = vmul.f32 %v1861, %v1865
    %vm1867 = vweird.f32 %v1613
    %vm1868 = vweird.f32 %v1861
    %vm1869 = vmor %vm1867, %vm1868
    %v1870 = vsel %vm1869, %v1861, %v1866
    %v1871 = vrsqrt.pop %v1614
    %v1872 = vmul.f32 %v1871, %v1614
    %v1873 = vmul.f32 %v1872, %v1871
    %v1874 = vmul.f32 0.5, %v1873
    %v1875 = vsub.f32 1.5, %v1874
    %v1876 = vmul.f32 %v1871, %v1875
    %vm1877 = vweird.f32 %v1614
    %vm1878 = vweird.f32 %v1871
    %vm1879 = vmor %vm1877, %vm1878
    %v1880 = vsel %vm1879, %v1871, %v1876
    %v1881 = vrsqrt.pop %v1615
    %v1882 = vmul.f32 %v1881, %v1615
    %v1883 = vmul.f32 %v1882, %v1881
    %v1884 = vmul.f32 0.5, %v1883
    %v1885 = vsub.f32 1.5, %v1884
    %v1886 = vmul.f32 %v1881, %v1885
    %vm1887 = vweird.f32 %v1615
    %vm1888 = vweird.f32 %v1881
    %vm1889 = vmor %vm1887, %vm1888
    %v1890 = vsel %vm1889, %v1881, %v1886
    %v1891 = vrsqrt.pop %v1616
    %v1892 = vmul.f32 %v1891, %v1616
    %v1893 = vmul.f32 %v1892, %v1891
    %v1894 = vmul.f32 0.5, %v1893
    %v1895 = vsub.f32 1.5, %v1894
    %v1896 = vmul.f32 %v1891, %v1895
    %vm1897 = vweird.f32 %v1616
    %vm1898 = vweird.f32 %v1891
    %vm1899 = vmor %vm1897, %vm1898
    %v1900 = vsel %vm1899, %v1891, %v1896
    %v1901 = vrsqrt.pop %v1617
    %v1902 = vmul.f32 %v1901, %v1617
    %v1903 = vmul.f32 %v1902, %v1901
    %v1904 = vmul.f32 0.5, %v1903
    %v1905 = vsub.f32 1.5, %v1904
    %v1906 = vmul.f32 %v1901, %v1905
    %vm1907 = vweird.f32 %v1617
    %vm1908 = vweird.f32 %v1901
    %vm1909 = vmor %vm1907, %vm1908
    %v1910 = vsel %vm1909, %v1901, %v1906
    %v1911 = vrsqrt.pop %v1618
    %v1912 = vmul.f32 %v1911, %v1618
    %v1913 = vmul.f32 %v1912, %v1911
    %v1914 = vmul.f32 0.5, %v1913
    %v1915 = vsub.f32 1.5, %v1914
    %v1916 = vmul.f32 %v1911, %v1915
    %vm1917 = vweird.f32 %v1618
    %vm1918 = vweird.f32 %v1911
    %vm1919 = vmor %vm1917, %vm1918
    %v1920 = vsel %vm1919, %v1911, %v1916
    %v1921 = vrsqrt.pop %v1619
    %v1922 = vmul.f32 %v1921, %v1619
    %v1923 = vmul.f32 %v1922, %v1921
    %v1924 = vmul.f32 0.5, %v1923
    %v1925 = vsub.f32 1.5, %v1924
    %v1926 = vmul.f32 %v1921, %v1925
    %vm1927 = vweird.f32 %v1619
    %vm1928 = vweird.f32 %v1921
    %vm1929 = vmor %vm1927, %vm1928
    %v1930 = vsel %vm1929, %v1921, %v1926
    %v1931 = vrsqrt.pop %v1620
    %v1932 = vmul.f32 %v1931, %v1620
    %v1933 = vmul.f32 %v1932, %v1931
    %v1934 = vmul.f32 0.5, %v1933
    %v1935 = vsub.f32 1.5, %v1934
    %v1936 = vmul.f32 %v1931, %v1935
    %vm1937 = vweird.f32 %v1620
    %vm1938 = vweird.f32 %v1931
    %vm1939 = vmor %vm1937, %vm1938
    %v1940 = vsel %vm1939, %v1931, %v1936
    %v1941 = vmul.f32 %v1429, %v1630
    %v1942 = vmul.f32 %v1430, %v1640
    %v1943 = vmul.f32 %v1431, %v1650
    %v1944 = vmul.f32 %v1432, %v1660
    %v1945 = vmul.f32 %v1433, %v1670
    %v1946 = vmul.f32 %v1434, %v1680
    %v1947 = vmul.f32 %v1435, %v1690
    %v1948 = vmul.f32 %v1436, %v1700
    %v1949 = vmul.f32 %v1437, %v1710
    %v1950 = vmul.f32 %v1438, %v1720
    %v1951 = vmul.f32 %v1439, %v1730
    %v1952 = vmul.f32 %v1440, %v1740
    %v1953 = vmul.f32 %v1441, %v1750
    %v1954 = vmul.f32 %v1442, %v1760
    %v1955 = vmul.f32 %v1443, %v1770
    %v1956 = vmul.f32 %v1444, %v1780
    %v1957 = vmul.f32 %v1445, %v1790
    %v1958 = vmul.f32 %v1446, %v1800
    %v1959 = vmul.f32 %v1447, %v1810
    %v1960 = vmul.f32 %v1448, %v1820
    %v1961 = vmul.f32 %v1449, %v1830
    %v1962 = vmul.f32 %v1450, %v1840
    %v1963 = vmul.f32 %v1451, %v1850
    %v1964 = vmul.f32 %v1452, %v1860
    %v1965 = vmul.f32 %v1453, %v1870
    %v1966 = vmul.f32 %v1454, %v1880
    %v1967 = vmul.f32 %v1455, %v1890
    %v1968 = vmul.f32 %v1456, %v1900
    %v1969 = vmul.f32 %v1457, %v1910
    %v1970 = vmul.f32 %v1458, %v1920
    %v1971 = vmul.f32 %v1459, %v1930
    %v1972 = vmul.f32 %v1460, %v1940
    %v1973 = vmul.f32 %v1941, %v781
    %v1974 = vmul.f32 %v1942, %v781
    %v1975 = vmul.f32 %v1943, %v781
    %v1976 = vmul.f32 %v1944, %v781
    %v1977 = vmul.f32 %v1945, %v781
    %v1978 = vmul.f32 %v1946, %v781
    %v1979 = vmul.f32 %v1947, %v781
    %v1980 = vmul.f32 %v1948, %v781
    %v1981 = vmul.f32 %v1949, %v781
    %v1982 = vmul.f32 %v1950, %v781
    %v1983 = vmul.f32 %v1951, %v781
    %v1984 = vmul.f32 %v1952, %v781
    %v1985 = vmul.f32 %v1953, %v781
    %v1986 = vmul.f32 %v1954, %v781
    %v1987 = vmul.f32 %v1955, %v781
    %v1988 = vmul.f32 %v1956, %v781
    %v1989 = vmul.f32 %v1957, %v781
    %v1990 = vmul.f32 %v1958, %v781
    %v1991 = vmul.f32 %v1959, %v781
    %v1992 = vmul.f32 %v1960, %v781
    %v1993 = vmul.f32 %v1961, %v781
    %v1994 = vmul.f32 %v1962, %v781
    %v1995 = vmul.f32 %v1963, %v781
    %v1996 = vmul.f32 %v1964, %v781
    %v1997 = vmul.f32 %v1965, %v781
    %v1998 = vmul.f32 %v1966, %v781
    %v1999 = vmul.f32 %v1967, %v781
    %v2000 = vmul.f32 %v1968, %v781
    %v2001 = vmul.f32 %v1969, %v781
    %v2002 = vmul.f32 %v1970, %v781
    %v2003 = vmul.f32 %v1971, %v781
    %v2004 = vmul.f32 %v1972, %v781
    %v2005 = vadd.f32 %v1973, %v816
    %v2006 = vadd.f32 %v1974, %v816
    %v2007 = vadd.f32 %v1975, %v816
    %v2008 = vadd.f32 %v1976, %v816
    %v2009 = vadd.f32 %v1977, %v816
    %v2010 = vadd.f32 %v1978, %v816
    %v2011 = vadd.f32 %v1979, %v816
    %v2012 = vadd.f32 %v1980, %v816
    %v2013 = vadd.f32 %v1981, %v816
    %v2014 = vadd.f32 %v1982, %v816
    %v2015 = vadd.f32 %v1983, %v816
    %v2016 = vadd.f32 %v1984, %v816
    %v2017 = vadd.f32 %v1985, %v816
    %v2018 = vadd.f32 %v1986, %v816
    %v2019 = vadd.f32 %v1987, %v816
    %v2020 = vadd.f32 %v1988, %v816
    %v2021 = vadd.f32 %v1989, %v816
    %v2022 = vadd.f32 %v1990, %v816
    %v2023 = vadd.f32 %v1991, %v816
    %v2024 = vadd.f32 %v1992, %v816
    %v2025 = vadd.f32 %v1993, %v816
    %v2026 = vadd.f32 %v1994, %v816
    %v2027 = vadd.f32 %v1995, %v816
    %v2028 = vadd.f32 %v1996, %v816
    %v2029 = vadd.f32 %v1997, %v816
    %v2030 = vadd.f32 %v1998, %v816
    %v2031 = vadd.f32 %v1999, %v816
    %v2032 = vadd.f32 %v2000, %v816
    %v2033 = vadd.f32 %v2001, %v816
    %v2034 = vadd.f32 %v2002, %v816
    %v2035 = vadd.f32 %v2003, %v816
    %v2036 = vadd.f32 %v2004, %v816
    %v2037 = vpack.c.bf16 %v2006, %v2005
    %v2038 = vpack.c.bf16 %v2008, %v2007
    %v2039 = vpack.c.bf16 %v2010, %v2009
    %v2040 = vpack.c.bf16 %v2012, %v2011
    %v2041 = vpack.c.bf16 %v2014, %v2013
    %v2042 = vpack.c.bf16 %v2016, %v2015
    %v2043 = vpack.c.bf16 %v2018, %v2017
    %v2044 = vpack.c.bf16 %v2020, %v2019
    %v2045 = vpack.c.bf16 %v2022, %v2021
    %v2046 = vpack.c.bf16 %v2024, %v2023
    %v2047 = vpack.c.bf16 %v2026, %v2025
    %v2048 = vpack.c.bf16 %v2028, %v2027
    %v2049 = vpack.c.bf16 %v2030, %v2029
    %v2050 = vpack.c.bf16 %v2032, %v2031
    %v2051 = vpack.c.bf16 %v2034, %v2033
    %v2052 = vpack.c.bf16 %v2036, %v2035
    %2053 = vmatpush.bf16.msra.mxu0 %v974
    %2054 = vmatpush.bf16.msra.mxu0 %v971
    %2055 = vmatpush.bf16.msra.mxu0 %v968
    %2056 = vmatpush.bf16.msra.mxu0 %v965
    %2057 = vmatpush.bf16.msra.mxu0 %v962
    %2058 = vmatpush.bf16.msra.mxu0 %v959
    %2059 = vmatpush.bf16.msra.mxu0 %v956
    %2060 = vmatpush.bf16.msra.mxu0 %v953
    %2061 = vmatmul.bf16.gmra.mxu0 %v2037
    %v2062 = vpop.f32.mrf.mxu0
    %v2063 = vadd.f32 %v867, %v2062
    %v2064 = vpop.f32.mrf.mxu0
    %v2065 = vadd.f32 %v867, %v2064
    %2066 = vmatmul.bf16.gmra.mxu0 %v2038
    %v2067 = vpop.f32.mrf.mxu0
    %v2068 = vadd.f32 %v867, %v2067
    %v2069 = vpop.f32.mrf.mxu0
    %v2070 = vadd.f32 %v867, %v2069
    %2071 = vmatmul.bf16.gmra.mxu0 %v2039
    %v2072 = vpop.f32.mrf.mxu0
    %v2073 = vadd.f32 %v867, %v2072
    %v2074 = vpop.f32.mrf.mxu0
    %v2075 = vadd.f32 %v867, %v2074
    %2076 = vmatmul.bf16.gmra.mxu0 %v2040
    %v2077 = vpop.f32.mrf.mxu0
    %v2078 = vadd.f32 %v867, %v2077
    %v2079 = vpop.f32.mrf.mxu0
    %v2080 = vadd.f32 %v867, %v2079
    %2081 = vmatmul.bf16.gmra.mxu0 %v2041
    %v2082 = vpop.f32.mrf.mxu0
    %v2083 = vadd.f32 %v867, %v2082
    %v2084 = vpop.f32.mrf.mxu0
    %v2085 = vadd.f32 %v867, %v2084
    %2086 = vmatmul.bf16.gmra.mxu0 %v2042
    %v2087 = vpop.f32.mrf.mxu0
    %v2088 = vadd.f32 %v867, %v2087
    %v2089 = vpop.f32.mrf.mxu0
    %v2090 = vadd.f32 %v867, %v2089
    %2091 = vmatmul.bf16.gmra.mxu0 %v2043
    %v2092 = vpop.f32.mrf.mxu0
    %v2093 = vadd.f32 %v867, %v2092
    %v2094 = vpop.f32.mrf.mxu0
    %v2095 = vadd.f32 %v867, %v2094
    %2096 = vmatmul.bf16.gmra.mxu0 %v2044
    %v2097 = vpop.f32.mrf.mxu0
    %v2098 = vadd.f32 %v867, %v2097
    %v2099 = vpop.f32.mrf.mxu0
    %v2100 = vadd.f32 %v867, %v2099
    %2101 = vmatmul.bf16.gmra.mxu0 %v2045
    %v2102 = vpop.f32.mrf.mxu0
    %v2103 = vadd.f32 %v867, %v2102
    %v2104 = vpop.f32.mrf.mxu0
    %v2105 = vadd.f32 %v867, %v2104
    %2106 = vmatmul.bf16.gmra.mxu0 %v2046
    %v2107 = vpop.f32.mrf.mxu0
    %v2108 = vadd.f32 %v867, %v2107
    %v2109 = vpop.f32.mrf.mxu0
    %v2110 = vadd.f32 %v867, %v2109
    %2111 = vmatmul.bf16.gmra.mxu0 %v2047
    %v2112 = vpop.f32.mrf.mxu0
    %v2113 = vadd.f32 %v867, %v2112
    %v2114 = vpop.f32.mrf.mxu0
    %v2115 = vadd.f32 %v867, %v2114
    %2116 = vmatmul.bf16.gmra.mxu0 %v2048
    %v2117 = vpop.f32.mrf.mxu0
    %v2118 = vadd.f32 %v867, %v2117
    %v2119 = vpop.f32.mrf.mxu0
    %v2120 = vadd.f32 %v867, %v2119
    %2121 = vmatmul.bf16.gmra.mxu0 %v2049
    %v2122 = vpop.f32.mrf.mxu0
    %v2123 = vadd.f32 %v867, %v2122
    %v2124 = vpop.f32.mrf.mxu0
    %v2125 = vadd.f32 %v867, %v2124
    %2126 = vmatmul.bf16.gmra.mxu0 %v2050
    %v2127 = vpop.f32.mrf.mxu0
    %v2128 = vadd.f32 %v867, %v2127
    %v2129 = vpop.f32.mrf.mxu0
    %v2130 = vadd.f32 %v867, %v2129
    %2131 = vmatmul.bf16.gmra.mxu0 %v2051
    %v2132 = vpop.f32.mrf.mxu0
    %v2133 = vadd.f32 %v867, %v2132
    %v2134 = vpop.f32.mrf.mxu0
    %v2135 = vadd.f32 %v867, %v2134
    %2136 = vmatmul.bf16.gmra.mxu0 %v2052
    %v2137 = vpop.f32.mrf.mxu0
    %v2138 = vadd.f32 %v867, %v2137
    %v2139 = vpop.f32.mrf.mxu0
    %v2140 = vadd.f32 %v867, %v2139
    %2141 = vdwg.mxu0
    %2142 = vmatpush.bf16.msra.mxu0 %v975
    %2143 = vmatpush.bf16.msra.mxu0 %v972
    %2144 = vmatpush.bf16.msra.mxu0 %v969
    %2145 = vmatpush.bf16.msra.mxu0 %v966
    %2146 = vmatpush.bf16.msra.mxu0 %v963
    %2147 = vmatpush.bf16.msra.mxu0 %v960
    %2148 = vmatpush.bf16.msra.mxu0 %v957
    %2149 = vmatpush.bf16.msra.mxu0 %v954
    %2150 = vmatmul.bf16.gmra.mxu0 %v2037
    %v2151 = vpop.f32.mrf.mxu0
    %v2152 = vadd.f32 %v868, %v2151
    %v2153 = vpop.f32.mrf.mxu0
    %v2154 = vadd.f32 %v868, %v2153
    %2155 = vmatmul.bf16.gmra.mxu0 %v2038
    %v2156 = vpop.f32.mrf.mxu0
    %v2157 = vadd.f32 %v868, %v2156
    %v2158 = vpop.f32.mrf.mxu0
    %v2159 = vadd.f32 %v868, %v2158
    %2160 = vmatmul.bf16.gmra.mxu0 %v2039
    %v2161 = vpop.f32.mrf.mxu0
    %v2162 = vadd.f32 %v868, %v2161
    %v2163 = vpop.f32.mrf.mxu0
    %v2164 = vadd.f32 %v868, %v2163
    %2165 = vmatmul.bf16.gmra.mxu0 %v2040
    %v2166 = vpop.f32.mrf.mxu0
    %v2167 = vadd.f32 %v868, %v2166
    %v2168 = vpop.f32.mrf.mxu0
    %v2169 = vadd.f32 %v868, %v2168
    %2170 = vmatmul.bf16.gmra.mxu0 %v2041
    %v2171 = vpop.f32.mrf.mxu0
    %v2172 = vadd.f32 %v868, %v2171
    %v2173 = vpop.f32.mrf.mxu0
    %v2174 = vadd.f32 %v868, %v2173
    %2175 = vmatmul.bf16.gmra.mxu0 %v2042
    %v2176 = vpop.f32.mrf.mxu0
    %v2177 = vadd.f32 %v868, %v2176
    %v2178 = vpop.f32.mrf.mxu0
    %v2179 = vadd.f32 %v868, %v2178
    %2180 = vmatmul.bf16.gmra.mxu0 %v2043
    %v2181 = vpop.f32.mrf.mxu0
    %v2182 = vadd.f32 %v868, %v2181
    %v2183 = vpop.f32.mrf.mxu0
    %v2184 = vadd.f32 %v868, %v2183
    %2185 = vmatmul.bf16.gmra.mxu0 %v2044
    %v2186 = vpop.f32.mrf.mxu0
    %v2187 = vadd.f32 %v868, %v2186
    %v2188 = vpop.f32.mrf.mxu0
    %v2189 = vadd.f32 %v868, %v2188
    %2190 = vmatmul.bf16.gmra.mxu0 %v2045
    %v2191 = vpop.f32.mrf.mxu0
    %v2192 = vadd.f32 %v868, %v2191
    %v2193 = vpop.f32.mrf.mxu0
    %v2194 = vadd.f32 %v868, %v2193
    %2195 = vmatmul.bf16.gmra.mxu0 %v2046
    %v2196 = vpop.f32.mrf.mxu0
    %v2197 = vadd.f32 %v868, %v2196
    %v2198 = vpop.f32.mrf.mxu0
    %v2199 = vadd.f32 %v868, %v2198
    %2200 = vmatmul.bf16.gmra.mxu0 %v2047
    %v2201 = vpop.f32.mrf.mxu0
    %v2202 = vadd.f32 %v868, %v2201
    %v2203 = vpop.f32.mrf.mxu0
    %v2204 = vadd.f32 %v868, %v2203
    %2205 = vmatmul.bf16.gmra.mxu0 %v2048
    %v2206 = vpop.f32.mrf.mxu0
    %v2207 = vadd.f32 %v868, %v2206
    %v2208 = vpop.f32.mrf.mxu0
    %v2209 = vadd.f32 %v868, %v2208
    %2210 = vmatmul.bf16.gmra.mxu0 %v2049
    %v2211 = vpop.f32.mrf.mxu0
    %v2212 = vadd.f32 %v868, %v2211
    %v2213 = vpop.f32.mrf.mxu0
    %v2214 = vadd.f32 %v868, %v2213
    %2215 = vmatmul.bf16.gmra.mxu0 %v2050
    %v2216 = vpop.f32.mrf.mxu0
    %v2217 = vadd.f32 %v868, %v2216
    %v2218 = vpop.f32.mrf.mxu0
    %v2219 = vadd.f32 %v868, %v2218
    %2220 = vmatmul.bf16.gmra.mxu0 %v2051
    %v2221 = vpop.f32.mrf.mxu0
    %v2222 = vadd.f32 %v868, %v2221
    %v2223 = vpop.f32.mrf.mxu0
    %v2224 = vadd.f32 %v868, %v2223
    %2225 = vmatmul.bf16.gmra.mxu0 %v2052
    %v2226 = vpop.f32.mrf.mxu0
    %v2227 = vadd.f32 %v868, %v2226
    %v2228 = vpop.f32.mrf.mxu0
    %v2229 = vadd.f32 %v868, %v2228
    %2230 = vdwg.mxu0
    %2231 = vmatpush.bf16.msra.mxu0 %v976
    %2232 = vmatpush.bf16.msra.mxu0 %v973
    %2233 = vmatpush.bf16.msra.mxu0 %v970
    %2234 = vmatpush.bf16.msra.mxu0 %v967
    %2235 = vmatpush.bf16.msra.mxu0 %v964
    %2236 = vmatpush.bf16.msra.mxu0 %v961
    %2237 = vmatpush.bf16.msra.mxu0 %v958
    %2238 = vmatpush.bf16.msra.mxu0 %v955
    %2239 = vmatmul.bf16.gmra.mxu0 %v2037
    %v2240 = vpop.f32.mrf.mxu0
    %v2241 = vadd.f32 %v869, %v2240
    %v2242 = vpop.f32.mrf.mxu0
    %v2243 = vadd.f32 %v869, %v2242
    %2244 = vmatmul.bf16.gmra.mxu0 %v2038
    %v2245 = vpop.f32.mrf.mxu0
    %v2246 = vadd.f32 %v869, %v2245
    %v2247 = vpop.f32.mrf.mxu0
    %v2248 = vadd.f32 %v869, %v2247
    %2249 = vmatmul.bf16.gmra.mxu0 %v2039
    %v2250 = vpop.f32.mrf.mxu0
    %v2251 = vadd.f32 %v869, %v2250
    %v2252 = vpop.f32.mrf.mxu0
    %v2253 = vadd.f32 %v869, %v2252
    %2254 = vmatmul.bf16.gmra.mxu0 %v2040
    %v2255 = vpop.f32.mrf.mxu0
    %v2256 = vadd.f32 %v869, %v2255
    %v2257 = vpop.f32.mrf.mxu0
    %v2258 = vadd.f32 %v869, %v2257
    %2259 = vmatmul.bf16.gmra.mxu0 %v2041
    %v2260 = vpop.f32.mrf.mxu0
    %v2261 = vadd.f32 %v869, %v2260
    %v2262 = vpop.f32.mrf.mxu0
    %v2263 = vadd.f32 %v869, %v2262
    %2264 = vmatmul.bf16.gmra.mxu0 %v2042
    %v2265 = vpop.f32.mrf.mxu0
    %v2266 = vadd.f32 %v869, %v2265
    %v2267 = vpop.f32.mrf.mxu0
    %v2268 = vadd.f32 %v869, %v2267
    %2269 = vmatmul.bf16.gmra.mxu0 %v2043
    %v2270 = vpop.f32.mrf.mxu0
    %v2271 = vadd.f32 %v869, %v2270
    %v2272 = vpop.f32.mrf.mxu0
    %v2273 = vadd.f32 %v869, %v2272
    %2274 = vmatmul.bf16.gmra.mxu0 %v2044
    %v2275 = vpop.f32.mrf.mxu0
    %v2276 = vadd.f32 %v869, %v2275
    %v2277 = vpop.f32.mrf.mxu0
    %v2278 = vadd.f32 %v869, %v2277
    %2279 = vmatmul.bf16.gmra.mxu0 %v2045
    %v2280 = vpop.f32.mrf.mxu0
    %v2281 = vadd.f32 %v869, %v2280
    %v2282 = vpop.f32.mrf.mxu0
    %v2283 = vadd.f32 %v869, %v2282
    %2284 = vmatmul.bf16.gmra.mxu0 %v2046
    %v2285 = vpop.f32.mrf.mxu0
    %v2286 = vadd.f32 %v869, %v2285
    %v2287 = vpop.f32.mrf.mxu0
    %v2288 = vadd.f32 %v869, %v2287
    %2289 = vmatmul.bf16.gmra.mxu0 %v2047
    %v2290 = vpop.f32.mrf.mxu0
    %v2291 = vadd.f32 %v869, %v2290
    %v2292 = vpop.f32.mrf.mxu0
    %v2293 = vadd.f32 %v869, %v2292
    %2294 = vmatmul.bf16.gmra.mxu0 %v2048
    %v2295 = vpop.f32.mrf.mxu0
    %v2296 = vadd.f32 %v869, %v2295
    %v2297 = vpop.f32.mrf.mxu0
    %v2298 = vadd.f32 %v869, %v2297
    %2299 = vmatmul.bf16.gmra.mxu0 %v2049
    %v2300 = vpop.f32.mrf.mxu0
    %v2301 = vadd.f32 %v869, %v2300
    %v2302 = vpop.f32.mrf.mxu0
    %v2303 = vadd.f32 %v869, %v2302
    %2304 = vmatmul.bf16.gmra.mxu0 %v2050
    %v2305 = vpop.f32.mrf.mxu0
    %v2306 = vadd.f32 %v869, %v2305
    %v2307 = vpop.f32.mrf.mxu0
    %v2308 = vadd.f32 %v869, %v2307
    %2309 = vmatmul.bf16.gmra.mxu0 %v2051
    %v2310 = vpop.f32.mrf.mxu0
    %v2311 = vadd.f32 %v869, %v2310
    %v2312 = vpop.f32.mrf.mxu0
    %v2313 = vadd.f32 %v869, %v2312
    %2314 = vmatmul.bf16.gmra.mxu0 %v2052
    %v2315 = vpop.f32.mrf.mxu0
    %v2316 = vadd.f32 %v869, %v2315
    %v2317 = vpop.f32.mrf.mxu0
    %v2318 = vadd.f32 %v869, %v2317
    %2319 = vdwg.mxu0
    %v2320 = vmul.f32 %v2063, 0.17677669
    %v2321 = vmul.f32 %v2065, 0.17677669
    %v2322 = vmul.f32 %v2068, 0.17677669
    %v2323 = vmul.f32 %v2070, 0.17677669
    %v2324 = vmul.f32 %v2073, 0.17677669
    %v2325 = vmul.f32 %v2075, 0.17677669
    %v2326 = vmul.f32 %v2078, 0.17677669
    %v2327 = vmul.f32 %v2080, 0.17677669
    %v2328 = vmul.f32 %v2083, 0.17677669
    %v2329 = vmul.f32 %v2085, 0.17677669
    %v2330 = vmul.f32 %v2088, 0.17677669
    %v2331 = vmul.f32 %v2090, 0.17677669
    %v2332 = vmul.f32 %v2093, 0.17677669
    %v2333 = vmul.f32 %v2095, 0.17677669
    %v2334 = vmul.f32 %v2098, 0.17677669
    %v2335 = vmul.f32 %v2100, 0.17677669
    %v2336 = vmul.f32 %v2103, 0.17677669
    %v2337 = vmul.f32 %v2105, 0.17677669
    %v2338 = vmul.f32 %v2108, 0.17677669
    %v2339 = vmul.f32 %v2110, 0.17677669
    %v2340 = vmul.f32 %v2113, 0.17677669
    %v2341 = vmul.f32 %v2115, 0.17677669
    %v2342 = vmul.f32 %v2118, 0.17677669
    %v2343 = vmul.f32 %v2120, 0.17677669
    %v2344 = vmul.f32 %v2123, 0.17677669
    %v2345 = vmul.f32 %v2125, 0.17677669
    %v2346 = vmul.f32 %v2128, 0.17677669
    %v2347 = vmul.f32 %v2130, 0.17677669
    %v2348 = vmul.f32 %v2133, 0.17677669
    %v2349 = vmul.f32 %v2135, 0.17677669
    %v2350 = vmul.f32 %v2138, 0.17677669
    %v2351 = vmul.f32 %v2140, 0.17677669
    %v2352 = vmul.f32 %v1268, %v1100
    %v2353 = vmul.f32 %v1269, %v1102
    %v2354 = vmul.f32 %v1270, %v1105
    %v2355 = vmul.f32 %v1271, %v1107
    %v2356 = vmul.f32 %v1272, %v1110
    %v2357 = vmul.f32 %v1273, %v1112
    %v2358 = vmul.f32 %v1274, %v1115
    %v2359 = vmul.f32 %v1275, %v1117
    %v2360 = vmul.f32 %v1276, %v1120
    %v2361 = vmul.f32 %v1277, %v1122
    %v2362 = vmul.f32 %v1278, %v1125
    %v2363 = vmul.f32 %v1279, %v1127
    %v2364 = vmul.f32 %v1280, %v1130
    %v2365 = vmul.f32 %v1281, %v1132
    %v2366 = vmul.f32 %v1282, %v1135
    %v2367 = vmul.f32 %v1283, %v1137
    %v2368 = vmul.f32 %v1284, %v1140
    %v2369 = vmul.f32 %v1285, %v1142
    %v2370 = vmul.f32 %v1286, %v1145
    %v2371 = vmul.f32 %v1287, %v1147
    %v2372 = vmul.f32 %v1288, %v1150
    %v2373 = vmul.f32 %v1289, %v1152
    %v2374 = vmul.f32 %v1290, %v1155
    %v2375 = vmul.f32 %v1291, %v1157
    %v2376 = vmul.f32 %v1292, %v1160
    %v2377 = vmul.f32 %v1293, %v1162
    %v2378 = vmul.f32 %v1294, %v1165
    %v2379 = vmul.f32 %v1295, %v1167
    %v2380 = vmul.f32 %v1296, %v1170
    %v2381 = vmul.f32 %v1297, %v1172
    %v2382 = vmul.f32 %v1298, %v1175
    %v2383 = vmul.f32 %v1299, %v1177
    %2384 = vmatpush.msra.mxu0 %v100
    %2385 = vmatpush.msra.mxu0 %v99
    %2386 = vmatpush.msra.mxu0 %v98
    %2387 = vmatpush.msra.mxu0 %v97
    %2388 = vmatpush.msra.mxu0 %v96
    %2389 = vmatpush.msra.mxu0 %v95
    %2390 = vmatpush.msra.mxu0 %v94
    %2391 = vmatpush.msra.mxu0 %v93
    %2392 = vmatpush.msra.mxu0 %v92
    %2393 = vmatpush.msra.mxu0 %v91
    %2394 = vmatpush.msra.mxu0 %v90
    %2395 = vmatpush.msra.mxu0 %v89
    %2396 = vmatpush.msra.mxu0 %v88
    %2397 = vmatpush.msra.mxu0 %v87
    %2398 = vmatpush.msra.mxu0 %v86
    %2399 = vmatpush.msra.mxu0 %v85
    %2400 = vmatmul.f32.gmra.mxu0 %v2352
    %v2401 = vpop.f32.mrf.mxu0
    %v2402 = vadd.f32 0.0, %v2401
    %2403 = vmatmul.f32.gmra.mxu0 %v2353
    %v2404 = vpop.f32.mrf.mxu0
    %v2405 = vadd.f32 0.0, %v2404
    %2406 = vmatmul.f32.gmra.mxu0 %v2354
    %v2407 = vpop.f32.mrf.mxu0
    %v2408 = vadd.f32 0.0, %v2407
    %2409 = vmatmul.f32.gmra.mxu0 %v2355
    %v2410 = vpop.f32.mrf.mxu0
    %v2411 = vadd.f32 0.0, %v2410
    %2412 = vmatmul.f32.gmra.mxu0 %v2356
    %v2413 = vpop.f32.mrf.mxu0
    %v2414 = vadd.f32 0.0, %v2413
    %2415 = vmatmul.f32.gmra.mxu0 %v2357
    %v2416 = vpop.f32.mrf.mxu0
    %v2417 = vadd.f32 0.0, %v2416
    %2418 = vmatmul.f32.gmra.mxu0 %v2358
    %v2419 = vpop.f32.mrf.mxu0
    %v2420 = vadd.f32 0.0, %v2419
    %2421 = vmatmul.f32.gmra.mxu0 %v2359
    %v2422 = vpop.f32.mrf.mxu0
    %v2423 = vadd.f32 0.0, %v2422
    %2424 = vmatmul.f32.gmra.mxu0 %v2360
    %v2425 = vpop.f32.mrf.mxu0
    %v2426 = vadd.f32 0.0, %v2425
    %2427 = vmatmul.f32.gmra.mxu0 %v2361
    %v2428 = vpop.f32.mrf.mxu0
    %v2429 = vadd.f32 0.0, %v2428
    %2430 = vmatmul.f32.gmra.mxu0 %v2362
    %v2431 = vpop.f32.mrf.mxu0
    %v2432 = vadd.f32 0.0, %v2431
    %2433 = vmatmul.f32.gmra.mxu0 %v2363
    %v2434 = vpop.f32.mrf.mxu0
    %v2435 = vadd.f32 0.0, %v2434
    %2436 = vmatmul.f32.gmra.mxu0 %v2364
    %v2437 = vpop.f32.mrf.mxu0
    %v2438 = vadd.f32 0.0, %v2437
    %2439 = vmatmul.f32.gmra.mxu0 %v2365
    %v2440 = vpop.f32.mrf.mxu0
    %v2441 = vadd.f32 0.0, %v2440
    %2442 = vmatmul.f32.gmra.mxu0 %v2366
    %v2443 = vpop.f32.mrf.mxu0
    %v2444 = vadd.f32 0.0, %v2443
    %2445 = vmatmul.f32.gmra.mxu0 %v2367
    %v2446 = vpop.f32.mrf.mxu0
    %v2447 = vadd.f32 0.0, %v2446
    %2448 = vmatmul.f32.gmra.mxu0 %v2368
    %v2449 = vpop.f32.mrf.mxu0
    %v2450 = vadd.f32 0.0, %v2449
    %2451 = vmatmul.f32.gmra.mxu0 %v2369
    %v2452 = vpop.f32.mrf.mxu0
    %v2453 = vadd.f32 0.0, %v2452
    %2454 = vmatmul.f32.gmra.mxu0 %v2370
    %v2455 = vpop.f32.mrf.mxu0
    %v2456 = vadd.f32 0.0, %v2455
    %2457 = vmatmul.f32.gmra.mxu0 %v2371
    %v2458 = vpop.f32.mrf.mxu0
    %v2459 = vadd.f32 0.0, %v2458
    %2460 = vmatmul.f32.gmra.mxu0 %v2372
    %v2461 = vpop.f32.mrf.mxu0
    %v2462 = vadd.f32 0.0, %v2461
    %2463 = vmatmul.f32.gmra.mxu0 %v2373
    %v2464 = vpop.f32.mrf.mxu0
    %v2465 = vadd.f32 0.0, %v2464
    %2466 = vmatmul.f32.gmra.mxu0 %v2374
    %v2467 = vpop.f32.mrf.mxu0
    %v2468 = vadd.f32 0.0, %v2467
    %2469 = vmatmul.f32.gmra.mxu0 %v2375
    %v2470 = vpop.f32.mrf.mxu0
    %v2471 = vadd.f32 0.0, %v2470
    %2472 = vmatmul.f32.gmra.mxu0 %v2376
    %v2473 = vpop.f32.mrf.mxu0
    %v2474 = vadd.f32 0.0, %v2473
    %2475 = vmatmul.f32.gmra.mxu0 %v2377
    %v2476 = vpop.f32.mrf.mxu0
    %v2477 = vadd.f32 0.0, %v2476
    %2478 = vmatmul.f32.gmra.mxu0 %v2378
    %v2479 = vpop.f32.mrf.mxu0
    %v2480 = vadd.f32 0.0, %v2479
    %2481 = vmatmul.f32.gmra.mxu0 %v2379
    %v2482 = vpop.f32.mrf.mxu0
    %v2483 = vadd.f32 0.0, %v2482
    %2484 = vmatmul.f32.gmra.mxu0 %v2380
    %v2485 = vpop.f32.mrf.mxu0
    %v2486 = vadd.f32 0.0, %v2485
    %2487 = vmatmul.f32.gmra.mxu0 %v2381
    %v2488 = vpop.f32.mrf.mxu0
    %v2489 = vadd.f32 0.0, %v2488
    %2490 = vmatmul.f32.gmra.mxu0 %v2382
    %v2491 = vpop.f32.mrf.mxu0
    %v2492 = vadd.f32 0.0, %v2491
    %2493 = vmatmul.f32.gmra.mxu0 %v2383
    %v2494 = vpop.f32.mrf.mxu0
    %v2495 = vadd.f32 0.0, %v2494
    %2496 = vdwg.mxu0
    %v2497 = vmul.f32 %v1268, %v2152
    %v2498 = vmul.f32 %v1269, %v2154
    %v2499 = vmul.f32 %v1270, %v2157
    %v2500 = vmul.f32 %v1271, %v2159
    %v2501 = vmul.f32 %v1272, %v2162
    %v2502 = vmul.f32 %v1273, %v2164
    %v2503 = vmul.f32 %v1274, %v2167
    %v2504 = vmul.f32 %v1275, %v2169
    %v2505 = vmul.f32 %v1276, %v2172
    %v2506 = vmul.f32 %v1277, %v2174
    %v2507 = vmul.f32 %v1278, %v2177
    %v2508 = vmul.f32 %v1279, %v2179
    %v2509 = vmul.f32 %v1280, %v2182
    %v2510 = vmul.f32 %v1281, %v2184
    %v2511 = vmul.f32 %v1282, %v2187
    %v2512 = vmul.f32 %v1283, %v2189
    %v2513 = vmul.f32 %v1284, %v2192
    %v2514 = vmul.f32 %v1285, %v2194
    %v2515 = vmul.f32 %v1286, %v2197
    %v2516 = vmul.f32 %v1287, %v2199
    %v2517 = vmul.f32 %v1288, %v2202
    %v2518 = vmul.f32 %v1289, %v2204
    %v2519 = vmul.f32 %v1290, %v2207
    %v2520 = vmul.f32 %v1291, %v2209
    %v2521 = vmul.f32 %v1292, %v2212
    %v2522 = vmul.f32 %v1293, %v2214
    %v2523 = vmul.f32 %v1294, %v2217
    %v2524 = vmul.f32 %v1295, %v2219
    %v2525 = vmul.f32 %v1296, %v2222
    %v2526 = vmul.f32 %v1297, %v2224
    %v2527 = vmul.f32 %v1298, %v2227
    %v2528 = vmul.f32 %v1299, %v2229
    %2529 = vmatpush.msra.mxu0 %v100
    %2530 = vmatpush.msra.mxu0 %v99
    %2531 = vmatpush.msra.mxu0 %v98
    %2532 = vmatpush.msra.mxu0 %v97
    %2533 = vmatpush.msra.mxu0 %v96
    %2534 = vmatpush.msra.mxu0 %v95
    %2535 = vmatpush.msra.mxu0 %v94
    %2536 = vmatpush.msra.mxu0 %v93
    %2537 = vmatpush.msra.mxu0 %v92
    %2538 = vmatpush.msra.mxu0 %v91
    %2539 = vmatpush.msra.mxu0 %v90
    %2540 = vmatpush.msra.mxu0 %v89
    %2541 = vmatpush.msra.mxu0 %v88
    %2542 = vmatpush.msra.mxu0 %v87
    %2543 = vmatpush.msra.mxu0 %v86
    %2544 = vmatpush.msra.mxu0 %v85
    %2545 = vmatmul.f32.gmra.mxu0 %v2497
    %v2546 = vpop.f32.mrf.mxu0
    %v2547 = vadd.f32 0.0, %v2546
    %2548 = vmatmul.f32.gmra.mxu0 %v2498
    %v2549 = vpop.f32.mrf.mxu0
    %v2550 = vadd.f32 0.0, %v2549
    %2551 = vmatmul.f32.gmra.mxu0 %v2499
    %v2552 = vpop.f32.mrf.mxu0
    %v2553 = vadd.f32 0.0, %v2552
    %2554 = vmatmul.f32.gmra.mxu0 %v2500
    %v2555 = vpop.f32.mrf.mxu0
    %v2556 = vadd.f32 0.0, %v2555
    %2557 = vmatmul.f32.gmra.mxu0 %v2501
    %v2558 = vpop.f32.mrf.mxu0
    %v2559 = vadd.f32 0.0, %v2558
    %2560 = vmatmul.f32.gmra.mxu0 %v2502
    %v2561 = vpop.f32.mrf.mxu0
    %v2562 = vadd.f32 0.0, %v2561
    %2563 = vmatmul.f32.gmra.mxu0 %v2503
    %v2564 = vpop.f32.mrf.mxu0
    %v2565 = vadd.f32 0.0, %v2564
    %2566 = vmatmul.f32.gmra.mxu0 %v2504
    %v2567 = vpop.f32.mrf.mxu0
    %v2568 = vadd.f32 0.0, %v2567
    %2569 = vmatmul.f32.gmra.mxu0 %v2505
    %v2570 = vpop.f32.mrf.mxu0
    %v2571 = vadd.f32 0.0, %v2570
    %2572 = vmatmul.f32.gmra.mxu0 %v2506
    %v2573 = vpop.f32.mrf.mxu0
    %v2574 = vadd.f32 0.0, %v2573
    %2575 = vmatmul.f32.gmra.mxu0 %v2507
    %v2576 = vpop.f32.mrf.mxu0
    %v2577 = vadd.f32 0.0, %v2576
    %2578 = vmatmul.f32.gmra.mxu0 %v2508
    %v2579 = vpop.f32.mrf.mxu0
    %v2580 = vadd.f32 0.0, %v2579
    %2581 = vmatmul.f32.gmra.mxu0 %v2509
    %v2582 = vpop.f32.mrf.mxu0
    %v2583 = vadd.f32 0.0, %v2582
    %2584 = vmatmul.f32.gmra.mxu0 %v2510
    %v2585 = vpop.f32.mrf.mxu0
    %v2586 = vadd.f32 0.0, %v2585
    %2587 = vmatmul.f32.gmra.mxu0 %v2511
    %v2588 = vpop.f32.mrf.mxu0
    %v2589 = vadd.f32 0.0, %v2588
    %2590 = vmatmul.f32.gmra.mxu0 %v2512
    %v2591 = vpop.f32.mrf.mxu0
    %v2592 = vadd.f32 0.0, %v2591
    %2593 = vmatmul.f32.gmra.mxu0 %v2513
    %v2594 = vpop.f32.mrf.mxu0
    %v2595 = vadd.f32 0.0, %v2594
    %2596 = vmatmul.f32.gmra.mxu0 %v2514
    %v2597 = vpop.f32.mrf.mxu0
    %v2598 = vadd.f32 0.0, %v2597
    %2599 = vmatmul.f32.gmra.mxu0 %v2515
    %v2600 = vpop.f32.mrf.mxu0
    %v2601 = vadd.f32 0.0, %v2600
    %2602 = vmatmul.f32.gmra.mxu0 %v2516
    %v2603 = vpop.f32.mrf.mxu0
    %v2604 = vadd.f32 0.0, %v2603
    %2605 = vmatmul.f32.gmra.mxu0 %v2517
    %v2606 = vpop.f32.mrf.mxu0
    %v2607 = vadd.f32 0.0, %v2606
    %2608 = vmatmul.f32.gmra.mxu0 %v2518
    %v2609 = vpop.f32.mrf.mxu0
    %v2610 = vadd.f32 0.0, %v2609
    %2611 = vmatmul.f32.gmra.mxu0 %v2519
    %v2612 = vpop.f32.mrf.mxu0
    %v2613 = vadd.f32 0.0, %v2612
    %2614 = vmatmul.f32.gmra.mxu0 %v2520
    %v2615 = vpop.f32.mrf.mxu0
    %v2616 = vadd.f32 0.0, %v2615
    %2617 = vmatmul.f32.gmra.mxu0 %v2521
    %v2618 = vpop.f32.mrf.mxu0
    %v2619 = vadd.f32 0.0, %v2618
    %2620 = vmatmul.f32.gmra.mxu0 %v2522
    %v2621 = vpop.f32.mrf.mxu0
    %v2622 = vadd.f32 0.0, %v2621
    %2623 = vmatmul.f32.gmra.mxu0 %v2523
    %v2624 = vpop.f32.mrf.mxu0
    %v2625 = vadd.f32 0.0, %v2624
    %2626 = vmatmul.f32.gmra.mxu0 %v2524
    %v2627 = vpop.f32.mrf.mxu0
    %v2628 = vadd.f32 0.0, %v2627
    %2629 = vmatmul.f32.gmra.mxu0 %v2525
    %v2630 = vpop.f32.mrf.mxu0
    %v2631 = vadd.f32 0.0, %v2630
    %2632 = vmatmul.f32.gmra.mxu0 %v2526
    %v2633 = vpop.f32.mrf.mxu0
    %v2634 = vadd.f32 0.0, %v2633
    %2635 = vmatmul.f32.gmra.mxu0 %v2527
    %v2636 = vpop.f32.mrf.mxu0
    %v2637 = vadd.f32 0.0, %v2636
    %2638 = vmatmul.f32.gmra.mxu0 %v2528
    %v2639 = vpop.f32.mrf.mxu0
    %v2640 = vadd.f32 0.0, %v2639
    %2641 = vdwg.mxu0
    %v2642 = vmax.f32 %v2402, %v2547
    %v2643 = vmax.f32 %v2405, %v2550
    %v2644 = vmax.f32 %v2408, %v2553
    %v2645 = vmax.f32 %v2411, %v2556
    %v2646 = vmax.f32 %v2414, %v2559
    %v2647 = vmax.f32 %v2417, %v2562
    %v2648 = vmax.f32 %v2420, %v2565
    %v2649 = vmax.f32 %v2423, %v2568
    %v2650 = vmax.f32 %v2426, %v2571
    %v2651 = vmax.f32 %v2429, %v2574
    %v2652 = vmax.f32 %v2432, %v2577
    %v2653 = vmax.f32 %v2435, %v2580
    %v2654 = vmax.f32 %v2438, %v2583
    %v2655 = vmax.f32 %v2441, %v2586
    %v2656 = vmax.f32 %v2444, %v2589
    %v2657 = vmax.f32 %v2447, %v2592
    %v2658 = vmax.f32 %v2450, %v2595
    %v2659 = vmax.f32 %v2453, %v2598
    %v2660 = vmax.f32 %v2456, %v2601
    %v2661 = vmax.f32 %v2459, %v2604
    %v2662 = vmax.f32 %v2462, %v2607
    %v2663 = vmax.f32 %v2465, %v2610
    %v2664 = vmax.f32 %v2468, %v2613
    %v2665 = vmax.f32 %v2471, %v2616
    %v2666 = vmax.f32 %v2474, %v2619
    %v2667 = vmax.f32 %v2477, %v2622
    %v2668 = vmax.f32 %v2480, %v2625
    %v2669 = vmax.f32 %v2483, %v2628
    %v2670 = vmax.f32 %v2486, %v2631
    %v2671 = vmax.f32 %v2489, %v2634
    %v2672 = vmax.f32 %v2492, %v2637
    %v2673 = vmax.f32 %v2495, %v2640
    %v2674 = vsub.f32 %v2402, %v2642
    %v2675 = vsub.f32 %v2405, %v2643
    %v2676 = vsub.f32 %v2408, %v2644
    %v2677 = vsub.f32 %v2411, %v2645
    %v2678 = vsub.f32 %v2414, %v2646
    %v2679 = vsub.f32 %v2417, %v2647
    %v2680 = vsub.f32 %v2420, %v2648
    %v2681 = vsub.f32 %v2423, %v2649
    %v2682 = vsub.f32 %v2426, %v2650
    %v2683 = vsub.f32 %v2429, %v2651
    %v2684 = vsub.f32 %v2432, %v2652
    %v2685 = vsub.f32 %v2435, %v2653
    %v2686 = vsub.f32 %v2438, %v2654
    %v2687 = vsub.f32 %v2441, %v2655
    %v2688 = vsub.f32 %v2444, %v2656
    %v2689 = vsub.f32 %v2447, %v2657
    %v2690 = vsub.f32 %v2450, %v2658
    %v2691 = vsub.f32 %v2453, %v2659
    %v2692 = vsub.f32 %v2456, %v2660
    %v2693 = vsub.f32 %v2459, %v2661
    %v2694 = vsub.f32 %v2462, %v2662
    %v2695 = vsub.f32 %v2465, %v2663
    %v2696 = vsub.f32 %v2468, %v2664
    %v2697 = vsub.f32 %v2471, %v2665
    %v2698 = vsub.f32 %v2474, %v2666
    %v2699 = vsub.f32 %v2477, %v2667
    %v2700 = vsub.f32 %v2480, %v2668
    %v2701 = vsub.f32 %v2483, %v2669
    %v2702 = vsub.f32 %v2486, %v2670
    %v2703 = vsub.f32 %v2489, %v2671
    %v2704 = vsub.f32 %v2492, %v2672
    %v2705 = vsub.f32 %v2495, %v2673
    %v2706 = vmul.f32 %v2674, 1.442695
    %v2707 = vpow.pop %v2706
    %v2708 = vmul.f32 %v2675, 1.442695
    %v2709 = vpow.pop %v2708
    %v2710 = vmul.f32 %v2676, 1.442695
    %v2711 = vpow.pop %v2710
    %v2712 = vmul.f32 %v2677, 1.442695
    %v2713 = vpow.pop %v2712
    %v2714 = vmul.f32 %v2678, 1.442695
    %v2715 = vpow.pop %v2714
    %v2716 = vmul.f32 %v2679, 1.442695
    %v2717 = vpow.pop %v2716
    %v2718 = vmul.f32 %v2680, 1.442695
    %v2719 = vpow.pop %v2718
    %v2720 = vmul.f32 %v2681, 1.442695
    %v2721 = vpow.pop %v2720
    %v2722 = vmul.f32 %v2682, 1.442695
    %v2723 = vpow.pop %v2722
    %v2724 = vmul.f32 %v2683, 1.442695
    %v2725 = vpow.pop %v2724
    %v2726 = vmul.f32 %v2684, 1.442695
    %v2727 = vpow.pop %v2726
    %v2728 = vmul.f32 %v2685, 1.442695
    %v2729 = vpow.pop %v2728
    %v2730 = vmul.f32 %v2686, 1.442695
    %v2731 = vpow.pop %v2730
    %v2732 = vmul.f32 %v2687, 1.442695
    %v2733 = vpow.pop %v2732
    %v2734 = vmul.f32 %v2688, 1.442695
    %v2735 = vpow.pop %v2734
    %v2736 = vmul.f32 %v2689, 1.442695
    %v2737 = vpow.pop %v2736
    %v2738 = vmul.f32 %v2690, 1.442695
    %v2739 = vpow.pop %v2738
    %v2740 = vmul.f32 %v2691, 1.442695
    %v2741 = vpow.pop %v2740
    %v2742 = vmul.f32 %v2692, 1.442695
    %v2743 = vpow.pop %v2742
    %v2744 = vmul.f32 %v2693, 1.442695
    %v2745 = vpow.pop %v2744
    %v2746 = vmul.f32 %v2694, 1.442695
    %v2747 = vpow.pop %v2746
    %v2748 = vmul.f32 %v2695, 1.442695
    %v2749 = vpow.pop %v2748
    %v2750 = vmul.f32 %v2696, 1.442695
    %v2751 = vpow.pop %v2750
    %v2752 = vmul.f32 %v2697, 1.442695
    %v2753 = vpow.pop %v2752
    %v2754 = vmul.f32 %v2698, 1.442695
    %v2755 = vpow.pop %v2754
    %v2756 = vmul.f32 %v2699, 1.442695
    %v2757 = vpow.pop %v2756
    %v2758 = vmul.f32 %v2700, 1.442695
    %v2759 = vpow.pop %v2758
    %v2760 = vmul.f32 %v2701, 1.442695
    %v2761 = vpow.pop %v2760
    %v2762 = vmul.f32 %v2702, 1.442695
    %v2763 = vpow.pop %v2762
    %v2764 = vmul.f32 %v2703, 1.442695
    %v2765 = vpow.pop %v2764
    %v2766 = vmul.f32 %v2704, 1.442695
    %v2767 = vpow.pop %v2766
    %v2768 = vmul.f32 %v2705, 1.442695
    %v2769 = vpow.pop %v2768
    %v2770 = vsub.f32 %v2547, %v2642
    %v2771 = vsub.f32 %v2550, %v2643
    %v2772 = vsub.f32 %v2553, %v2644
    %v2773 = vsub.f32 %v2556, %v2645
    %v2774 = vsub.f32 %v2559, %v2646
    %v2775 = vsub.f32 %v2562, %v2647
    %v2776 = vsub.f32 %v2565, %v2648
    %v2777 = vsub.f32 %v2568, %v2649
    %v2778 = vsub.f32 %v2571, %v2650
    %v2779 = vsub.f32 %v2574, %v2651
    %v2780 = vsub.f32 %v2577, %v2652
    %v2781 = vsub.f32 %v2580, %v2653
    %v2782 = vsub.f32 %v2583, %v2654
    %v2783 = vsub.f32 %v2586, %v2655
    %v2784 = vsub.f32 %v2589, %v2656
    %v2785 = vsub.f32 %v2592, %v2657
    %v2786 = vsub.f32 %v2595, %v2658
    %v2787 = vsub.f32 %v2598, %v2659
    %v2788 = vsub.f32 %v2601, %v2660
    %v2789 = vsub.f32 %v2604, %v2661
    %v2790 = vsub.f32 %v2607, %v2662
    %v2791 = vsub.f32 %v2610, %v2663
    %v2792 = vsub.f32 %v2613, %v2664
    %v2793 = vsub.f32 %v2616, %v2665
    %v2794 = vsub.f32 %v2619, %v2666
    %v2795 = vsub.f32 %v2622, %v2667
    %v2796 = vsub.f32 %v2625, %v2668
    %v2797 = vsub.f32 %v2628, %v2669
    %v2798 = vsub.f32 %v2631, %v2670
    %v2799 = vsub.f32 %v2634, %v2671
    %v2800 = vsub.f32 %v2637, %v2672
    %v2801 = vsub.f32 %v2640, %v2673
    %v2802 = vmul.f32 %v2770, 1.442695
    %v2803 = vpow.pop %v2802
    %v2804 = vmul.f32 %v2771, 1.442695
    %v2805 = vpow.pop %v2804
    %v2806 = vmul.f32 %v2772, 1.442695
    %v2807 = vpow.pop %v2806
    %v2808 = vmul.f32 %v2773, 1.442695
    %v2809 = vpow.pop %v2808
    %v2810 = vmul.f32 %v2774, 1.442695
    %v2811 = vpow.pop %v2810
    %v2812 = vmul.f32 %v2775, 1.442695
    %v2813 = vpow.pop %v2812
    %v2814 = vmul.f32 %v2776, 1.442695
    %v2815 = vpow.pop %v2814
    %v2816 = vmul.f32 %v2777, 1.442695
    %v2817 = vpow.pop %v2816
    %v2818 = vmul.f32 %v2778, 1.442695
    %v2819 = vpow.pop %v2818
    %v2820 = vmul.f32 %v2779, 1.442695
    %v2821 = vpow.pop %v2820
    %v2822 = vmul.f32 %v2780, 1.442695
    %v2823 = vpow.pop %v2822
    %v2824 = vmul.f32 %v2781, 1.442695
    %v2825 = vpow.pop %v2824
    %v2826 = vmul.f32 %v2782, 1.442695
    %v2827 = vpow.pop %v2826
    %v2828 = vmul.f32 %v2783, 1.442695
    %v2829 = vpow.pop %v2828
    %v2830 = vmul.f32 %v2784, 1.442695
    %v2831 = vpow.pop %v2830
    %v2832 = vmul.f32 %v2785, 1.442695
    %v2833 = vpow.pop %v2832
    %v2834 = vmul.f32 %v2786, 1.442695
    %v2835 = vpow.pop %v2834
    %v2836 = vmul.f32 %v2787, 1.442695
    %v2837 = vpow.pop %v2836
    %v2838 = vmul.f32 %v2788, 1.442695
    %v2839 = vpow.pop %v2838
    %v2840 = vmul.f32 %v2789, 1.442695
    %v2841 = vpow.pop %v2840
    %v2842 = vmul.f32 %v2790, 1.442695
    %v2843 = vpow.pop %v2842
    %v2844 = vmul.f32 %v2791, 1.442695
    %v2845 = vpow.pop %v2844
    %v2846 = vmul.f32 %v2792, 1.442695
    %v2847 = vpow.pop %v2846
    %v2848 = vmul.f32 %v2793, 1.442695
    %v2849 = vpow.pop %v2848
    %v2850 = vmul.f32 %v2794, 1.442695
    %v2851 = vpow.pop %v2850
    %v2852 = vmul.f32 %v2795, 1.442695
    %v2853 = vpow.pop %v2852
    %v2854 = vmul.f32 %v2796, 1.442695
    %v2855 = vpow.pop %v2854
    %v2856 = vmul.f32 %v2797, 1.442695
    %v2857 = vpow.pop %v2856
    %v2858 = vmul.f32 %v2798, 1.442695
    %v2859 = vpow.pop %v2858
    %v2860 = vmul.f32 %v2799, 1.442695
    %v2861 = vpow.pop %v2860
    %v2862 = vmul.f32 %v2800, 1.442695
    %v2863 = vpow.pop %v2862
    %v2864 = vmul.f32 %v2801, 1.442695
    %v2865 = vpow.pop %v2864
    %v2866 = vadd.f32 %v2707, %v2803
    %v2867 = vadd.f32 %v2709, %v2805
    %v2868 = vadd.f32 %v2711, %v2807
    %v2869 = vadd.f32 %v2713, %v2809
    %v2870 = vadd.f32 %v2715, %v2811
    %v2871 = vadd.f32 %v2717, %v2813
    %v2872 = vadd.f32 %v2719, %v2815
    %v2873 = vadd.f32 %v2721, %v2817
    %v2874 = vadd.f32 %v2723, %v2819
    %v2875 = vadd.f32 %v2725, %v2821
    %v2876 = vadd.f32 %v2727, %v2823
    %v2877 = vadd.f32 %v2729, %v2825
    %v2878 = vadd.f32 %v2731, %v2827
    %v2879 = vadd.f32 %v2733, %v2829
    %v2880 = vadd.f32 %v2735, %v2831
    %v2881 = vadd.f32 %v2737, %v2833
    %v2882 = vadd.f32 %v2739, %v2835
    %v2883 = vadd.f32 %v2741, %v2837
    %v2884 = vadd.f32 %v2743, %v2839
    %v2885 = vadd.f32 %v2745, %v2841
    %v2886 = vadd.f32 %v2747, %v2843
    %v2887 = vadd.f32 %v2749, %v2845
    %v2888 = vadd.f32 %v2751, %v2847
    %v2889 = vadd.f32 %v2753, %v2849
    %v2890 = vadd.f32 %v2755, %v2851
    %v2891 = vadd.f32 %v2757, %v2853
    %v2892 = vadd.f32 %v2759, %v2855
    %v2893 = vadd.f32 %v2761, %v2857
    %v2894 = vadd.f32 %v2763, %v2859
    %v2895 = vadd.f32 %v2765, %v2861
    %v2896 = vadd.f32 %v2767, %v2863
    %v2897 = vadd.f32 %v2769, %v2865
    %v2898 = vrcp.pop %v2866
    %v2899 = vmul.f32 %v2866, %v2898
    %v2900 = vsub.f32 1.0, %v2899
    %v2901 = vmul.f32 %v2898, %v2900
    %v2902 = vadd.f32 %v2898, %v2901
    %vm2903 = vweird.f32 %v2866
    %vm2904 = vweird.f32 %v2898
    %vm2905 = vmor %vm2903, %vm2904
    %v2906 = vsel %vm2905, %v2898, %v2902
    %v2907 = vand.u32 2147483647, %v2866
    %vm2908 = vcmp.eq.f32.partialorder %v2907, 8.507059e+37
    %v2909 = vand.u32 %v2866, 2147483648
    %v2910 = vor.u32 1.1754944e-38, %v2909
    %v2911 = vsel %vm2908, %v2910, %v2906
    %v2912 = vmul.f32 1.0, %v2911
    %v2913 = vrcp.pop %v2867
    %v2914 = vmul.f32 %v2867, %v2913
    %v2915 = vsub.f32 1.0, %v2914
    %v2916 = vmul.f32 %v2913, %v2915
    %v2917 = vadd.f32 %v2913, %v2916
    %vm2918 = vweird.f32 %v2867
    %vm2919 = vweird.f32 %v2913
    %vm2920 = vmor %vm2918, %vm2919
    %v2921 = vsel %vm2920, %v2913, %v2917
    %v2922 = vand.u32 2147483647, %v2867
    %vm2923 = vcmp.eq.f32.partialorder %v2922, 8.507059e+37
    %v2924 = vand.u32 %v2867, 2147483648
    %v2925 = vor.u32 1.1754944e-38, %v2924
    %v2926 = vsel %vm2923, %v2925, %v2921
    %v2927 = vmul.f32 1.0, %v2926
    %v2928 = vrcp.pop %v2868
    %v2929 = vmul.f32 %v2868, %v2928
    %v2930 = vsub.f32 1.0, %v2929
    %v2931 = vmul.f32 %v2928, %v2930
    %v2932 = vadd.f32 %v2928, %v2931
    %vm2933 = vweird.f32 %v2868
    %vm2934 = vweird.f32 %v2928
    %vm2935 = vmor %vm2933, %vm2934
    %v2936 = vsel %vm2935, %v2928, %v2932
    %v2937 = vand.u32 2147483647, %v2868
    %vm2938 = vcmp.eq.f32.partialorder %v2937, 8.507059e+37
    %v2939 = vand.u32 %v2868, 2147483648
    %v2940 = vor.u32 1.1754944e-38, %v2939
    %v2941 = vsel %vm2938, %v2940, %v2936
    %v2942 = vmul.f32 1.0, %v2941
    %v2943 = vrcp.pop %v2869
    %v2944 = vmul.f32 %v2869, %v2943
    %v2945 = vsub.f32 1.0, %v2944
    %v2946 = vmul.f32 %v2943, %v2945
    %v2947 = vadd.f32 %v2943, %v2946
    %vm2948 = vweird.f32 %v2869
    %vm2949 = vweird.f32 %v2943
    %vm2950 = vmor %vm2948, %vm2949
    %v2951 = vsel %vm2950, %v2943, %v2947
    %v2952 = vand.u32 2147483647, %v2869
    %vm2953 = vcmp.eq.f32.partialorder %v2952, 8.507059e+37
    %v2954 = vand.u32 %v2869, 2147483648
    %v2955 = vor.u32 1.1754944e-38, %v2954
    %v2956 = vsel %vm2953, %v2955, %v2951
    %v2957 = vmul.f32 1.0, %v2956
    %v2958 = vrcp.pop %v2870
    %v2959 = vmul.f32 %v2870, %v2958
    %v2960 = vsub.f32 1.0, %v2959
    %v2961 = vmul.f32 %v2958, %v2960
    %v2962 = vadd.f32 %v2958, %v2961
    %vm2963 = vweird.f32 %v2870
    %vm2964 = vweird.f32 %v2958
    %vm2965 = vmor %vm2963, %vm2964
    %v2966 = vsel %vm2965, %v2958, %v2962
    %v2967 = vand.u32 2147483647, %v2870
    %vm2968 = vcmp.eq.f32.partialorder %v2967, 8.507059e+37
    %v2969 = vand.u32 %v2870, 2147483648
    %v2970 = vor.u32 1.1754944e-38, %v2969
    %v2971 = vsel %vm2968, %v2970, %v2966
    %v2972 = vmul.f32 1.0, %v2971
    %v2973 = vrcp.pop %v2871
    %v2974 = vmul.f32 %v2871, %v2973
    %v2975 = vsub.f32 1.0, %v2974
    %v2976 = vmul.f32 %v2973, %v2975
    %v2977 = vadd.f32 %v2973, %v2976
    %vm2978 = vweird.f32 %v2871
    %vm2979 = vweird.f32 %v2973
    %vm2980 = vmor %vm2978, %vm2979
    %v2981 = vsel %vm2980, %v2973, %v2977
    %v2982 = vand.u32 2147483647, %v2871
    %vm2983 = vcmp.eq.f32.partialorder %v2982, 8.507059e+37
    %v2984 = vand.u32 %v2871, 2147483648
    %v2985 = vor.u32 1.1754944e-38, %v2984
    %v2986 = vsel %vm2983, %v2985, %v2981
    %v2987 = vmul.f32 1.0, %v2986
    %v2988 = vrcp.pop %v2872
    %v2989 = vmul.f32 %v2872, %v2988
    %v2990 = vsub.f32 1.0, %v2989
    %v2991 = vmul.f32 %v2988, %v2990
    %v2992 = vadd.f32 %v2988, %v2991
    %vm2993 = vweird.f32 %v2872
    %vm2994 = vweird.f32 %v2988
    %vm2995 = vmor %vm2993, %vm2994
    %v2996 = vsel %vm2995, %v2988, %v2992
    %v2997 = vand.u32 2147483647, %v2872
    %vm2998 = vcmp.eq.f32.partialorder %v2997, 8.507059e+37
    %v2999 = vand.u32 %v2872, 2147483648
    %v3000 = vor.u32 1.1754944e-38, %v2999
    %v3001 = vsel %vm2998, %v3000, %v2996
    %v3002 = vmul.f32 1.0, %v3001
    %v3003 = vrcp.pop %v2873
    %v3004 = vmul.f32 %v2873, %v3003
    %v3005 = vsub.f32 1.0, %v3004
    %v3006 = vmul.f32 %v3003, %v3005
    %v3007 = vadd.f32 %v3003, %v3006
    %vm3008 = vweird.f32 %v2873
    %vm3009 = vweird.f32 %v3003
    %vm3010 = vmor %vm3008, %vm3009
    %v3011 = vsel %vm3010, %v3003, %v3007
    %v3012 = vand.u32 2147483647, %v2873
    %vm3013 = vcmp.eq.f32.partialorder %v3012, 8.507059e+37
    %v3014 = vand.u32 %v2873, 2147483648
    %v3015 = vor.u32 1.1754944e-38, %v3014
    %v3016 = vsel %vm3013, %v3015, %v3011
    %v3017 = vmul.f32 1.0, %v3016
    %v3018 = vrcp.pop %v2874
    %v3019 = vmul.f32 %v2874, %v3018
    %v3020 = vsub.f32 1.0, %v3019
    %v3021 = vmul.f32 %v3018, %v3020
    %v3022 = vadd.f32 %v3018, %v3021
    %vm3023 = vweird.f32 %v2874
    %vm3024 = vweird.f32 %v3018
    %vm3025 = vmor %vm3023, %vm3024
    %v3026 = vsel %vm3025, %v3018, %v3022
    %v3027 = vand.u32 2147483647, %v2874
    %vm3028 = vcmp.eq.f32.partialorder %v3027, 8.507059e+37
    %v3029 = vand.u32 %v2874, 2147483648
    %v3030 = vor.u32 1.1754944e-38, %v3029
    %v3031 = vsel %vm3028, %v3030, %v3026
    %v3032 = vmul.f32 1.0, %v3031
    %v3033 = vrcp.pop %v2875
    %v3034 = vmul.f32 %v2875, %v3033
    %v3035 = vsub.f32 1.0, %v3034
    %v3036 = vmul.f32 %v3033, %v3035
    %v3037 = vadd.f32 %v3033, %v3036
    %vm3038 = vweird.f32 %v2875
    %vm3039 = vweird.f32 %v3033
    %vm3040 = vmor %vm3038, %vm3039
    %v3041 = vsel %vm3040, %v3033, %v3037
    %v3042 = vand.u32 2147483647, %v2875
    %vm3043 = vcmp.eq.f32.partialorder %v3042, 8.507059e+37
    %v3044 = vand.u32 %v2875, 2147483648
    %v3045 = vor.u32 1.1754944e-38, %v3044
    %v3046 = vsel %vm3043, %v3045, %v3041
    %v3047 = vmul.f32 1.0, %v3046
    %v3048 = vrcp.pop %v2876
    %v3049 = vmul.f32 %v2876, %v3048
    %v3050 = vsub.f32 1.0, %v3049
    %v3051 = vmul.f32 %v3048, %v3050
    %v3052 = vadd.f32 %v3048, %v3051
    %vm3053 = vweird.f32 %v2876
    %vm3054 = vweird.f32 %v3048
    %vm3055 = vmor %vm3053, %vm3054
    %v3056 = vsel %vm3055, %v3048, %v3052
    %v3057 = vand.u32 2147483647, %v2876
    %vm3058 = vcmp.eq.f32.partialorder %v3057, 8.507059e+37
    %v3059 = vand.u32 %v2876, 2147483648
    %v3060 = vor.u32 1.1754944e-38, %v3059
    %v3061 = vsel %vm3058, %v3060, %v3056
    %v3062 = vmul.f32 1.0, %v3061
    %v3063 = vrcp.pop %v2877
    %v3064 = vmul.f32 %v2877, %v3063
    %v3065 = vsub.f32 1.0, %v3064
    %v3066 = vmul.f32 %v3063, %v3065
    %v3067 = vadd.f32 %v3063, %v3066
    %vm3068 = vweird.f32 %v2877
    %vm3069 = vweird.f32 %v3063
    %vm3070 = vmor %vm3068, %vm3069
    %v3071 = vsel %vm3070, %v3063, %v3067
    %v3072 = vand.u32 2147483647, %v2877
    %vm3073 = vcmp.eq.f32.partialorder %v3072, 8.507059e+37
    %v3074 = vand.u32 %v2877, 2147483648
    %v3075 = vor.u32 1.1754944e-38, %v3074
    %v3076 = vsel %vm3073, %v3075, %v3071
    %v3077 = vmul.f32 1.0, %v3076
    %v3078 = vrcp.pop %v2878
    %v3079 = vmul.f32 %v2878, %v3078
    %v3080 = vsub.f32 1.0, %v3079
    %v3081 = vmul.f32 %v3078, %v3080
    %v3082 = vadd.f32 %v3078, %v3081
    %vm3083 = vweird.f32 %v2878
    %vm3084 = vweird.f32 %v3078
    %vm3085 = vmor %vm3083, %vm3084
    %v3086 = vsel %vm3085, %v3078, %v3082
    %v3087 = vand.u32 2147483647, %v2878
    %vm3088 = vcmp.eq.f32.partialorder %v3087, 8.507059e+37
    %v3089 = vand.u32 %v2878, 2147483648
    %v3090 = vor.u32 1.1754944e-38, %v3089
    %v3091 = vsel %vm3088, %v3090, %v3086
    %v3092 = vmul.f32 1.0, %v3091
    %v3093 = vrcp.pop %v2879
    %v3094 = vmul.f32 %v2879, %v3093
    %v3095 = vsub.f32 1.0, %v3094
    %v3096 = vmul.f32 %v3093, %v3095
    %v3097 = vadd.f32 %v3093, %v3096
    %vm3098 = vweird.f32 %v2879
    %vm3099 = vweird.f32 %v3093
    %vm3100 = vmor %vm3098, %vm3099
    %v3101 = vsel %vm3100, %v3093, %v3097
    %v3102 = vand.u32 2147483647, %v2879
    %vm3103 = vcmp.eq.f32.partialorder %v3102, 8.507059e+37
    %v3104 = vand.u32 %v2879, 2147483648
    %v3105 = vor.u32 1.1754944e-38, %v3104
    %v3106 = vsel %vm3103, %v3105, %v3101
    %v3107 = vmul.f32 1.0, %v3106
    %v3108 = vrcp.pop %v2880
    %v3109 = vmul.f32 %v2880, %v3108
    %v3110 = vsub.f32 1.0, %v3109
    %v3111 = vmul.f32 %v3108, %v3110
    %v3112 = vadd.f32 %v3108, %v3111
    %vm3113 = vweird.f32 %v2880
    %vm3114 = vweird.f32 %v3108
    %vm3115 = vmor %vm3113, %vm3114
    %v3116 = vsel %vm3115, %v3108, %v3112
    %v3117 = vand.u32 2147483647, %v2880
    %vm3118 = vcmp.eq.f32.partialorder %v3117, 8.507059e+37
    %v3119 = vand.u32 %v2880, 2147483648
    %v3120 = vor.u32 1.1754944e-38, %v3119
    %v3121 = vsel %vm3118, %v3120, %v3116
    %v3122 = vmul.f32 1.0, %v3121
    %v3123 = vrcp.pop %v2881
    %v3124 = vmul.f32 %v2881, %v3123
    %v3125 = vsub.f32 1.0, %v3124
    %v3126 = vmul.f32 %v3123, %v3125
    %v3127 = vadd.f32 %v3123, %v3126
    %vm3128 = vweird.f32 %v2881
    %vm3129 = vweird.f32 %v3123
    %vm3130 = vmor %vm3128, %vm3129
    %v3131 = vsel %vm3130, %v3123, %v3127
    %v3132 = vand.u32 2147483647, %v2881
    %vm3133 = vcmp.eq.f32.partialorder %v3132, 8.507059e+37
    %v3134 = vand.u32 %v2881, 2147483648
    %v3135 = vor.u32 1.1754944e-38, %v3134
    %v3136 = vsel %vm3133, %v3135, %v3131
    %v3137 = vmul.f32 1.0, %v3136
    %v3138 = vrcp.pop %v2882
    %v3139 = vmul.f32 %v2882, %v3138
    %v3140 = vsub.f32 1.0, %v3139
    %v3141 = vmul.f32 %v3138, %v3140
    %v3142 = vadd.f32 %v3138, %v3141
    %vm3143 = vweird.f32 %v2882
    %vm3144 = vweird.f32 %v3138
    %vm3145 = vmor %vm3143, %vm3144
    %v3146 = vsel %vm3145, %v3138, %v3142
    %v3147 = vand.u32 2147483647, %v2882
    %vm3148 = vcmp.eq.f32.partialorder %v3147, 8.507059e+37
    %v3149 = vand.u32 %v2882, 2147483648
    %v3150 = vor.u32 1.1754944e-38, %v3149
    %v3151 = vsel %vm3148, %v3150, %v3146
    %v3152 = vmul.f32 1.0, %v3151
    %v3153 = vrcp.pop %v2883
    %v3154 = vmul.f32 %v2883, %v3153
    %v3155 = vsub.f32 1.0, %v3154
    %v3156 = vmul.f32 %v3153, %v3155
    %v3157 = vadd.f32 %v3153, %v3156
    %vm3158 = vweird.f32 %v2883
    %vm3159 = vweird.f32 %v3153
    %vm3160 = vmor %vm3158, %vm3159
    %v3161 = vsel %vm3160, %v3153, %v3157
    %v3162 = vand.u32 2147483647, %v2883
    %vm3163 = vcmp.eq.f32.partialorder %v3162, 8.507059e+37
    %v3164 = vand.u32 %v2883, 2147483648
    %v3165 = vor.u32 1.1754944e-38, %v3164
    %v3166 = vsel %vm3163, %v3165, %v3161
    %v3167 = vmul.f32 1.0, %v3166
    %v3168 = vrcp.pop %v2884
    %v3169 = vmul.f32 %v2884, %v3168
    %v3170 = vsub.f32 1.0, %v3169
    %v3171 = vmul.f32 %v3168, %v3170
    %v3172 = vadd.f32 %v3168, %v3171
    %vm3173 = vweird.f32 %v2884
    %vm3174 = vweird.f32 %v3168
    %vm3175 = vmor %vm3173, %vm3174
    %v3176 = vsel %vm3175, %v3168, %v3172
    %v3177 = vand.u32 2147483647, %v2884
    %vm3178 = vcmp.eq.f32.partialorder %v3177, 8.507059e+37
    %v3179 = vand.u32 %v2884, 2147483648
    %v3180 = vor.u32 1.1754944e-38, %v3179
    %v3181 = vsel %vm3178, %v3180, %v3176
    %v3182 = vmul.f32 1.0, %v3181
    %v3183 = vrcp.pop %v2885
    %v3184 = vmul.f32 %v2885, %v3183
    %v3185 = vsub.f32 1.0, %v3184
    %v3186 = vmul.f32 %v3183, %v3185
    %v3187 = vadd.f32 %v3183, %v3186
    %vm3188 = vweird.f32 %v2885
    %vm3189 = vweird.f32 %v3183
    %vm3190 = vmor %vm3188, %vm3189
    %v3191 = vsel %vm3190, %v3183, %v3187
    %v3192 = vand.u32 2147483647, %v2885
    %vm3193 = vcmp.eq.f32.partialorder %v3192, 8.507059e+37
    %v3194 = vand.u32 %v2885, 2147483648
    %v3195 = vor.u32 1.1754944e-38, %v3194
    %v3196 = vsel %vm3193, %v3195, %v3191
    %v3197 = vmul.f32 1.0, %v3196
    %v3198 = vrcp.pop %v2886
    %v3199 = vmul.f32 %v2886, %v3198
    %v3200 = vsub.f32 1.0, %v3199
    %v3201 = vmul.f32 %v3198, %v3200
    %v3202 = vadd.f32 %v3198, %v3201
    %vm3203 = vweird.f32 %v2886
    %vm3204 = vweird.f32 %v3198
    %vm3205 = vmor %vm3203, %vm3204
    %v3206 = vsel %vm3205, %v3198, %v3202
    %v3207 = vand.u32 2147483647, %v2886
    %vm3208 = vcmp.eq.f32.partialorder %v3207, 8.507059e+37
    %v3209 = vand.u32 %v2886, 2147483648
    %v3210 = vor.u32 1.1754944e-38, %v3209
    %v3211 = vsel %vm3208, %v3210, %v3206
    %v3212 = vmul.f32 1.0, %v3211
    %v3213 = vrcp.pop %v2887
    %v3214 = vmul.f32 %v2887, %v3213
    %v3215 = vsub.f32 1.0, %v3214
    %v3216 = vmul.f32 %v3213, %v3215
    %v3217 = vadd.f32 %v3213, %v3216
    %vm3218 = vweird.f32 %v2887
    %vm3219 = vweird.f32 %v3213
    %vm3220 = vmor %vm3218, %vm3219
    %v3221 = vsel %vm3220, %v3213, %v3217
    %v3222 = vand.u32 2147483647, %v2887
    %vm3223 = vcmp.eq.f32.partialorder %v3222, 8.507059e+37
    %v3224 = vand.u32 %v2887, 2147483648
    %v3225 = vor.u32 1.1754944e-38, %v3224
    %v3226 = vsel %vm3223, %v3225, %v3221
    %v3227 = vmul.f32 1.0, %v3226
    %v3228 = vrcp.pop %v2888
    %v3229 = vmul.f32 %v2888, %v3228
    %v3230 = vsub.f32 1.0, %v3229
    %v3231 = vmul.f32 %v3228, %v3230
    %v3232 = vadd.f32 %v3228, %v3231
    %vm3233 = vweird.f32 %v2888
    %vm3234 = vweird.f32 %v3228
    %vm3235 = vmor %vm3233, %vm3234
    %v3236 = vsel %vm3235, %v3228, %v3232
    %v3237 = vand.u32 2147483647, %v2888
    %vm3238 = vcmp.eq.f32.partialorder %v3237, 8.507059e+37
    %v3239 = vand.u32 %v2888, 2147483648
    %v3240 = vor.u32 1.1754944e-38, %v3239
    %v3241 = vsel %vm3238, %v3240, %v3236
    %v3242 = vmul.f32 1.0, %v3241
    %v3243 = vrcp.pop %v2889
    %v3244 = vmul.f32 %v2889, %v3243
    %v3245 = vsub.f32 1.0, %v3244
    %v3246 = vmul.f32 %v3243, %v3245
    %v3247 = vadd.f32 %v3243, %v3246
    %vm3248 = vweird.f32 %v2889
    %vm3249 = vweird.f32 %v3243
    %vm3250 = vmor %vm3248, %vm3249
    %v3251 = vsel %vm3250, %v3243, %v3247
    %v3252 = vand.u32 2147483647, %v2889
    %vm3253 = vcmp.eq.f32.partialorder %v3252, 8.507059e+37
    %v3254 = vand.u32 %v2889, 2147483648
    %v3255 = vor.u32 1.1754944e-38, %v3254
    %v3256 = vsel %vm3253, %v3255, %v3251
    %v3257 = vmul.f32 1.0, %v3256
    %v3258 = vrcp.pop %v2890
    %v3259 = vmul.f32 %v2890, %v3258
    %v3260 = vsub.f32 1.0, %v3259
    %v3261 = vmul.f32 %v3258, %v3260
    %v3262 = vadd.f32 %v3258, %v3261
    %vm3263 = vweird.f32 %v2890
    %vm3264 = vweird.f32 %v3258
    %vm3265 = vmor %vm3263, %vm3264
    %v3266 = vsel %vm3265, %v3258, %v3262
    %v3267 = vand.u32 2147483647, %v2890
    %vm3268 = vcmp.eq.f32.partialorder %v3267, 8.507059e+37
    %v3269 = vand.u32 %v2890, 2147483648
    %v3270 = vor.u32 1.1754944e-38, %v3269
    %v3271 = vsel %vm3268, %v3270, %v3266
    %v3272 = vmul.f32 1.0, %v3271
    %v3273 = vrcp.pop %v2891
    %v3274 = vmul.f32 %v2891, %v3273
    %v3275 = vsub.f32 1.0, %v3274
    %v3276 = vmul.f32 %v3273, %v3275
    %v3277 = vadd.f32 %v3273, %v3276
    %vm3278 = vweird.f32 %v2891
    %vm3279 = vweird.f32 %v3273
    %vm3280 = vmor %vm3278, %vm3279
    %v3281 = vsel %vm3280, %v3273, %v3277
    %v3282 = vand.u32 2147483647, %v2891
    %vm3283 = vcmp.eq.f32.partialorder %v3282, 8.507059e+37
    %v3284 = vand.u32 %v2891, 2147483648
    %v3285 = vor.u32 1.1754944e-38, %v3284
    %v3286 = vsel %vm3283, %v3285, %v3281
    %v3287 = vmul.f32 1.0, %v3286
    %v3288 = vrcp.pop %v2892
    %v3289 = vmul.f32 %v2892, %v3288
    %v3290 = vsub.f32 1.0, %v3289
    %v3291 = vmul.f32 %v3288, %v3290
    %v3292 = vadd.f32 %v3288, %v3291
    %vm3293 = vweird.f32 %v2892
    %vm3294 = vweird.f32 %v3288
    %vm3295 = vmor %vm3293, %vm3294
    %v3296 = vsel %vm3295, %v3288, %v3292
    %v3297 = vand.u32 2147483647, %v2892
    %vm3298 = vcmp.eq.f32.partialorder %v3297, 8.507059e+37
    %v3299 = vand.u32 %v2892, 2147483648
    %v3300 = vor.u32 1.1754944e-38, %v3299
    %v3301 = vsel %vm3298, %v3300, %v3296
    %v3302 = vmul.f32 1.0, %v3301
    %v3303 = vrcp.pop %v2893
    %v3304 = vmul.f32 %v2893, %v3303
    %v3305 = vsub.f32 1.0, %v3304
    %v3306 = vmul.f32 %v3303, %v3305
    %v3307 = vadd.f32 %v3303, %v3306
    %vm3308 = vweird.f32 %v2893
    %vm3309 = vweird.f32 %v3303
    %vm3310 = vmor %vm3308, %vm3309
    %v3311 = vsel %vm3310, %v3303, %v3307
    %v3312 = vand.u32 2147483647, %v2893
    %vm3313 = vcmp.eq.f32.partialorder %v3312, 8.507059e+37
    %v3314 = vand.u32 %v2893, 2147483648
    %v3315 = vor.u32 1.1754944e-38, %v3314
    %v3316 = vsel %vm3313, %v3315, %v3311
    %v3317 = vmul.f32 1.0, %v3316
    %v3318 = vrcp.pop %v2894
    %v3319 = vmul.f32 %v2894, %v3318
    %v3320 = vsub.f32 1.0, %v3319
    %v3321 = vmul.f32 %v3318, %v3320
    %v3322 = vadd.f32 %v3318, %v3321
    %vm3323 = vweird.f32 %v2894
    %vm3324 = vweird.f32 %v3318
    %vm3325 = vmor %vm3323, %vm3324
    %v3326 = vsel %vm3325, %v3318, %v3322
    %v3327 = vand.u32 2147483647, %v2894
    %vm3328 = vcmp.eq.f32.partialorder %v3327, 8.507059e+37
    %v3329 = vand.u32 %v2894, 2147483648
    %v3330 = vor.u32 1.1754944e-38, %v3329
    %v3331 = vsel %vm3328, %v3330, %v3326
    %v3332 = vmul.f32 1.0, %v3331
    %v3333 = vrcp.pop %v2895
    %v3334 = vmul.f32 %v2895, %v3333
    %v3335 = vsub.f32 1.0, %v3334
    %v3336 = vmul.f32 %v3333, %v3335
    %v3337 = vadd.f32 %v3333, %v3336
    %vm3338 = vweird.f32 %v2895
    %vm3339 = vweird.f32 %v3333
    %vm3340 = vmor %vm3338, %vm3339
    %v3341 = vsel %vm3340, %v3333, %v3337
    %v3342 = vand.u32 2147483647, %v2895
    %vm3343 = vcmp.eq.f32.partialorder %v3342, 8.507059e+37
    %v3344 = vand.u32 %v2895, 2147483648
    %v3345 = vor.u32 1.1754944e-38, %v3344
    %v3346 = vsel %vm3343, %v3345, %v3341
    %v3347 = vmul.f32 1.0, %v3346
    %v3348 = vrcp.pop %v2896
    %v3349 = vmul.f32 %v2896, %v3348
    %v3350 = vsub.f32 1.0, %v3349
    %v3351 = vmul.f32 %v3348, %v3350
    %v3352 = vadd.f32 %v3348, %v3351
    %vm3353 = vweird.f32 %v2896
    %vm3354 = vweird.f32 %v3348
    %vm3355 = vmor %vm3353, %vm3354
    %v3356 = vsel %vm3355, %v3348, %v3352
    %v3357 = vand.u32 2147483647, %v2896
    %vm3358 = vcmp.eq.f32.partialorder %v3357, 8.507059e+37
    %v3359 = vand.u32 %v2896, 2147483648
    %v3360 = vor.u32 1.1754944e-38, %v3359
    %v3361 = vsel %vm3358, %v3360, %v3356
    %v3362 = vmul.f32 1.0, %v3361
    %v3363 = vrcp.pop %v2897
    %v3364 = vmul.f32 %v2897, %v3363
    %v3365 = vsub.f32 1.0, %v3364
    %v3366 = vmul.f32 %v3363, %v3365
    %v3367 = vadd.f32 %v3363, %v3366
    %vm3368 = vweird.f32 %v2897
    %vm3369 = vweird.f32 %v3363
    %vm3370 = vmor %vm3368, %vm3369
    %v3371 = vsel %vm3370, %v3363, %v3367
    %v3372 = vand.u32 2147483647, %v2897
    %vm3373 = vcmp.eq.f32.partialorder %v3372, 8.507059e+37
    %v3374 = vand.u32 %v2897, 2147483648
    %v3375 = vor.u32 1.1754944e-38, %v3374
    %v3376 = vsel %vm3373, %v3375, %v3371
    %v3377 = vmul.f32 1.0, %v3376
    %v3378 = vmul.f32 %v2707, %v2912
    %v3379 = vmul.f32 %v2709, %v2927
    %v3380 = vmul.f32 %v2711, %v2942
    %v3381 = vmul.f32 %v2713, %v2957
    %v3382 = vmul.f32 %v2715, %v2972
    %v3383 = vmul.f32 %v2717, %v2987
    %v3384 = vmul.f32 %v2719, %v3002
    %v3385 = vmul.f32 %v2721, %v3017
    %v3386 = vmul.f32 %v2723, %v3032
    %v3387 = vmul.f32 %v2725, %v3047
    %v3388 = vmul.f32 %v2727, %v3062
    %v3389 = vmul.f32 %v2729, %v3077
    %v3390 = vmul.f32 %v2731, %v3092
    %v3391 = vmul.f32 %v2733, %v3107
    %v3392 = vmul.f32 %v2735, %v3122
    %v3393 = vmul.f32 %v2737, %v3137
    %v3394 = vmul.f32 %v2739, %v3152
    %v3395 = vmul.f32 %v2741, %v3167
    %v3396 = vmul.f32 %v2743, %v3182
    %v3397 = vmul.f32 %v2745, %v3197
    %v3398 = vmul.f32 %v2747, %v3212
    %v3399 = vmul.f32 %v2749, %v3227
    %v3400 = vmul.f32 %v2751, %v3242
    %v3401 = vmul.f32 %v2753, %v3257
    %v3402 = vmul.f32 %v2755, %v3272
    %v3403 = vmul.f32 %v2757, %v3287
    %v3404 = vmul.f32 %v2759, %v3302
    %v3405 = vmul.f32 %v2761, %v3317
    %v3406 = vmul.f32 %v2763, %v3332
    %v3407 = vmul.f32 %v2765, %v3347
    %v3408 = vmul.f32 %v2767, %v3362
    %v3409 = vmul.f32 %v2769, %v3377
    %v3410 = vmul.f32 %v3378, %v1189
    %v3411 = vmul.f32 %v3379, %v1191
    %v3412 = vmul.f32 %v3380, %v1194
    %v3413 = vmul.f32 %v3381, %v1196
    %v3414 = vmul.f32 %v3382, %v1199
    %v3415 = vmul.f32 %v3383, %v1201
    %v3416 = vmul.f32 %v3384, %v1204
    %v3417 = vmul.f32 %v3385, %v1206
    %v3418 = vmul.f32 %v3386, %v1209
    %v3419 = vmul.f32 %v3387, %v1211
    %v3420 = vmul.f32 %v3388, %v1214
    %v3421 = vmul.f32 %v3389, %v1216
    %v3422 = vmul.f32 %v3390, %v1219
    %v3423 = vmul.f32 %v3391, %v1221
    %v3424 = vmul.f32 %v3392, %v1224
    %v3425 = vmul.f32 %v3393, %v1226
    %v3426 = vmul.f32 %v3394, %v1229
    %v3427 = vmul.f32 %v3395, %v1231
    %v3428 = vmul.f32 %v3396, %v1234
    %v3429 = vmul.f32 %v3397, %v1236
    %v3430 = vmul.f32 %v3398, %v1239
    %v3431 = vmul.f32 %v3399, %v1241
    %v3432 = vmul.f32 %v3400, %v1244
    %v3433 = vmul.f32 %v3401, %v1246
    %v3434 = vmul.f32 %v3402, %v1249
    %v3435 = vmul.f32 %v3403, %v1251
    %v3436 = vmul.f32 %v3404, %v1254
    %v3437 = vmul.f32 %v3405, %v1256
    %v3438 = vmul.f32 %v3406, %v1259
    %v3439 = vmul.f32 %v3407, %v1261
    %v3440 = vmul.f32 %v3408, %v1264
    %v3441 = vmul.f32 %v3409, %v1266
    %v3442 = vmul.f32 %v2803, %v2912
    %v3443 = vmul.f32 %v2805, %v2927
    %v3444 = vmul.f32 %v2807, %v2942
    %v3445 = vmul.f32 %v2809, %v2957
    %v3446 = vmul.f32 %v2811, %v2972
    %v3447 = vmul.f32 %v2813, %v2987
    %v3448 = vmul.f32 %v2815, %v3002
    %v3449 = vmul.f32 %v2817, %v3017
    %v3450 = vmul.f32 %v2819, %v3032
    %v3451 = vmul.f32 %v2821, %v3047
    %v3452 = vmul.f32 %v2823, %v3062
    %v3453 = vmul.f32 %v2825, %v3077
    %v3454 = vmul.f32 %v2827, %v3092
    %v3455 = vmul.f32 %v2829, %v3107
    %v3456 = vmul.f32 %v2831, %v3122
    %v3457 = vmul.f32 %v2833, %v3137
    %v3458 = vmul.f32 %v2835, %v3152
    %v3459 = vmul.f32 %v2837, %v3167
    %v3460 = vmul.f32 %v2839, %v3182
    %v3461 = vmul.f32 %v2841, %v3197
    %v3462 = vmul.f32 %v2843, %v3212
    %v3463 = vmul.f32 %v2845, %v3227
    %v3464 = vmul.f32 %v2847, %v3242
    %v3465 = vmul.f32 %v2849, %v3257
    %v3466 = vmul.f32 %v2851, %v3272
    %v3467 = vmul.f32 %v2853, %v3287
    %v3468 = vmul.f32 %v2855, %v3302
    %v3469 = vmul.f32 %v2857, %v3317
    %v3470 = vmul.f32 %v2859, %v3332
    %v3471 = vmul.f32 %v2861, %v3347
    %v3472 = vmul.f32 %v2863, %v3362
    %v3473 = vmul.f32 %v2865, %v3377
    %v3474 = vmul.f32 %v3442, %v2241
    %v3475 = vmul.f32 %v3443, %v2243
    %v3476 = vmul.f32 %v3444, %v2246
    %v3477 = vmul.f32 %v3445, %v2248
    %v3478 = vmul.f32 %v3446, %v2251
    %v3479 = vmul.f32 %v3447, %v2253
    %v3480 = vmul.f32 %v3448, %v2256
    %v3481 = vmul.f32 %v3449, %v2258
    %v3482 = vmul.f32 %v3450, %v2261
    %v3483 = vmul.f32 %v3451, %v2263
    %v3484 = vmul.f32 %v3452, %v2266
    %v3485 = vmul.f32 %v3453, %v2268
    %v3486 = vmul.f32 %v3454, %v2271
    %v3487 = vmul.f32 %v3455, %v2273
    %v3488 = vmul.f32 %v3456, %v2276
    %v3489 = vmul.f32 %v3457, %v2278
    %v3490 = vmul.f32 %v3458, %v2281
    %v3491 = vmul.f32 %v3459, %v2283
    %v3492 = vmul.f32 %v3460, %v2286
    %v3493 = vmul.f32 %v3461, %v2288
    %v3494 = vmul.f32 %v3462, %v2291
    %v3495 = vmul.f32 %v3463, %v2293
    %v3496 = vmul.f32 %v3464, %v2296
    %v3497 = vmul.f32 %v3465, %v2298
    %v3498 = vmul.f32 %v3466, %v2301
    %v3499 = vmul.f32 %v3467, %v2303
    %v3500 = vmul.f32 %v3468, %v2306
    %v3501 = vmul.f32 %v3469, %v2308
    %v3502 = vmul.f32 %v3470, %v2311
    %v3503 = vmul.f32 %v3471, %v2313
    %v3504 = vmul.f32 %v3472, %v2316
    %v3505 = vmul.f32 %v3473, %v2318
    %v3506 = vadd.f32 %v3410, %v3474
    %v3507 = vadd.f32 %v3411, %v3475
    %v3508 = vadd.f32 %v3412, %v3476
    %v3509 = vadd.f32 %v3413, %v3477
    %v3510 = vadd.f32 %v3414, %v3478
    %v3511 = vadd.f32 %v3415, %v3479
    %v3512 = vadd.f32 %v3416, %v3480
    %v3513 = vadd.f32 %v3417, %v3481
    %v3514 = vadd.f32 %v3418, %v3482
    %v3515 = vadd.f32 %v3419, %v3483
    %v3516 = vadd.f32 %v3420, %v3484
    %v3517 = vadd.f32 %v3421, %v3485
    %v3518 = vadd.f32 %v3422, %v3486
    %v3519 = vadd.f32 %v3423, %v3487
    %v3520 = vadd.f32 %v3424, %v3488
    %v3521 = vadd.f32 %v3425, %v3489
    %v3522 = vadd.f32 %v3426, %v3490
    %v3523 = vadd.f32 %v3427, %v3491
    %v3524 = vadd.f32 %v3428, %v3492
    %v3525 = vadd.f32 %v3429, %v3493
    %v3526 = vadd.f32 %v3430, %v3494
    %v3527 = vadd.f32 %v3431, %v3495
    %v3528 = vadd.f32 %v3432, %v3496
    %v3529 = vadd.f32 %v3433, %v3497
    %v3530 = vadd.f32 %v3434, %v3498
    %v3531 = vadd.f32 %v3435, %v3499
    %v3532 = vadd.f32 %v3436, %v3500
    %v3533 = vadd.f32 %v3437, %v3501
    %v3534 = vadd.f32 %v3438, %v3502
    %v3535 = vadd.f32 %v3439, %v3503
    %v3536 = vadd.f32 %v3440, %v3504
    %v3537 = vadd.f32 %v3441, %v3505
    %v3538 = vpack.c.bf16 %v3507, %v3506
    %v3539 = vpack.c.bf16 %v3509, %v3508
    %v3540 = vpack.c.bf16 %v3511, %v3510
    %v3541 = vpack.c.bf16 %v3513, %v3512
    %v3542 = vpack.c.bf16 %v3515, %v3514
    %v3543 = vpack.c.bf16 %v3517, %v3516
    %v3544 = vpack.c.bf16 %v3519, %v3518
    %v3545 = vpack.c.bf16 %v3521, %v3520
    %v3546 = vpack.c.bf16 %v3523, %v3522
    %v3547 = vpack.c.bf16 %v3525, %v3524
    %v3548 = vpack.c.bf16 %v3527, %v3526
    %v3549 = vpack.c.bf16 %v3529, %v3528
    %v3550 = vpack.c.bf16 %v3531, %v3530
    %v3551 = vpack.c.bf16 %v3533, %v3532
    %v3552 = vpack.c.bf16 %v3535, %v3534
    %v3553 = vpack.c.bf16 %v3537, %v3536
    %v3554 = vld [vmem:[%s5] sm:$0xf]
    %v3555 = vld [vmem:[%s5 + $0x4] sm:$0xf]
    %v3556 = vld [vmem:[%s5 + $0x8] sm:$0xf]
    %v3557 = vld [vmem:[%s5 + $0xc] sm:$0xf]
    %v3558 = vld [vmem:[%s5 + $0x10] sm:$0xf]
    %v3559 = vld [vmem:[%s5 + $0x14] sm:$0xf]
    %v3560 = vld [vmem:[%s5 + $0x18] sm:$0xf]
    %v3561 = vld [vmem:[%s5 + $0x1c] sm:$0xf]
    %v3562 = vld [vmem:[%s5 + $0x20] sm:$0xf]
    %v3563 = vld [vmem:[%s5 + $0x24] sm:$0xf]
    %v3564 = vld [vmem:[%s5 + $0x28] sm:$0xf]
    %v3565 = vld [vmem:[%s5 + $0x2c] sm:$0xf]
    %v3566 = vld [vmem:[%s5 + $0x30] sm:$0xf]
    %v3567 = vld [vmem:[%s5 + $0x34] sm:$0xf]
    %v3568 = vld [vmem:[%s5 + $0x38] sm:$0xf]
    %v3569 = vld [vmem:[%s5 + $0x3c] sm:$0xf]
    %v3570 = vld [vmem:[%s6] sm:$0x1]
    %v3572 = vperm.slane %v3570, 0
    %v3590 = vunpack.c.l.b16 %v3554
    %v3591 = vunpack.c.l.b16 %v3555
    %v3592 = vunpack.c.l.b16 %v3556
    %v3593 = vunpack.c.l.b16 %v3557
    %v3594 = vunpack.c.l.b16 %v3558
    %v3595 = vunpack.c.l.b16 %v3559
    %v3596 = vunpack.c.l.b16 %v3560
    %v3597 = vunpack.c.l.b16 %v3561
    %v3598 = vunpack.c.l.b16 %v3562
    %v3599 = vunpack.c.l.b16 %v3563
    %v3600 = vunpack.c.l.b16 %v3564
    %v3601 = vunpack.c.l.b16 %v3565
    %v3602 = vunpack.c.l.b16 %v3566
    %v3603 = vunpack.c.l.b16 %v3567
    %v3604 = vunpack.c.l.b16 %v3568
    %v3605 = vunpack.c.l.b16 %v3569
    %v3606 = vpack.c.b16 %v3591, %v3590
    %v3607 = vpack.c.b16 %v3593, %v3592
    %v3608 = vpack.c.b16 %v3595, %v3594
    %v3609 = vpack.c.b16 %v3597, %v3596
    %v3610 = vpack.c.b16 %v3599, %v3598
    %v3611 = vpack.c.b16 %v3601, %v3600
    %v3612 = vpack.c.b16 %v3603, %v3602
    %v3613 = vpack.c.b16 %v3605, %v3604
    %3622 = vmatpush.bf16.msra.mxu0 %v3613
    %3623 = vmatpush.bf16.msra.mxu0 %v3612
    %3624 = vmatpush.bf16.msra.mxu0 %v3611
    %3625 = vmatpush.bf16.msra.mxu0 %v3610
    %3626 = vmatpush.bf16.msra.mxu0 %v3609
    %3627 = vmatpush.bf16.msra.mxu0 %v3608
    %3628 = vmatpush.bf16.msra.mxu0 %v3607
    %3629 = vmatpush.bf16.msra.mxu0 %v3606
    %3630 = vmatmul.bf16.gmra.mxu0 %v3538
    %v3631 = vpop.f32.mrf.mxu0
    %v3632 = vadd.f32 %v3572, %v3631
    %v3633 = vpop.f32.mrf.mxu0
    %v3634 = vadd.f32 %v3572, %v3633
    %3635 = vmatmul.bf16.gmra.mxu0 %v3539
    %v3636 = vpop.f32.mrf.mxu0
    %v3637 = vadd.f32 %v3572, %v3636
    %v3638 = vpop.f32.mrf.mxu0
    %v3639 = vadd.f32 %v3572, %v3638
    %3640 = vmatmul.bf16.gmra.mxu0 %v3540
    %v3641 = vpop.f32.mrf.mxu0
    %v3642 = vadd.f32 %v3572, %v3641
    %v3643 = vpop.f32.mrf.mxu0
    %v3644 = vadd.f32 %v3572, %v3643
    %3645 = vmatmul.bf16.gmra.mxu0 %v3541
    %v3646 = vpop.f32.mrf.mxu0
    %v3647 = vadd.f32 %v3572, %v3646
    %v3648 = vpop.f32.mrf.mxu0
    %v3649 = vadd.f32 %v3572, %v3648
    %3650 = vmatmul.bf16.gmra.mxu0 %v3542
    %v3651 = vpop.f32.mrf.mxu0
    %v3652 = vadd.f32 %v3572, %v3651
    %v3653 = vpop.f32.mrf.mxu0
    %v3654 = vadd.f32 %v3572, %v3653
    %3655 = vmatmul.bf16.gmra.mxu0 %v3543
    %v3656 = vpop.f32.mrf.mxu0
    %v3657 = vadd.f32 %v3572, %v3656
    %v3658 = vpop.f32.mrf.mxu0
    %v3659 = vadd.f32 %v3572, %v3658
    %3660 = vmatmul.bf16.gmra.mxu0 %v3544
    %v3661 = vpop.f32.mrf.mxu0
    %v3662 = vadd.f32 %v3572, %v3661
    %v3663 = vpop.f32.mrf.mxu0
    %v3664 = vadd.f32 %v3572, %v3663
    %3665 = vmatmul.bf16.gmra.mxu0 %v3545
    %v3666 = vpop.f32.mrf.mxu0
    %v3667 = vadd.f32 %v3572, %v3666
    %v3668 = vpop.f32.mrf.mxu0
    %v3669 = vadd.f32 %v3572, %v3668
    %3670 = vmatmul.bf16.gmra.mxu0 %v3546
    %v3671 = vpop.f32.mrf.mxu0
    %v3672 = vadd.f32 %v3572, %v3671
    %v3673 = vpop.f32.mrf.mxu0
    %v3674 = vadd.f32 %v3572, %v3673
    %3675 = vmatmul.bf16.gmra.mxu0 %v3547
    %v3676 = vpop.f32.mrf.mxu0
    %v3677 = vadd.f32 %v3572, %v3676
    %v3678 = vpop.f32.mrf.mxu0
    %v3679 = vadd.f32 %v3572, %v3678
    %3680 = vmatmul.bf16.gmra.mxu0 %v3548
    %v3681 = vpop.f32.mrf.mxu0
    %v3682 = vadd.f32 %v3572, %v3681
    %v3683 = vpop.f32.mrf.mxu0
    %v3684 = vadd.f32 %v3572, %v3683
    %3685 = vmatmul.bf16.gmra.mxu0 %v3549
    %v3686 = vpop.f32.mrf.mxu0
    %v3687 = vadd.f32 %v3572, %v3686
    %v3688 = vpop.f32.mrf.mxu0
    %v3689 = vadd.f32 %v3572, %v3688
    %3690 = vmatmul.bf16.gmra.mxu0 %v3550
    %v3691 = vpop.f32.mrf.mxu0
    %v3692 = vadd.f32 %v3572, %v3691
    %v3693 = vpop.f32.mrf.mxu0
    %v3694 = vadd.f32 %v3572, %v3693
    %3695 = vmatmul.bf16.gmra.mxu0 %v3551
    %v3696 = vpop.f32.mrf.mxu0
    %v3697 = vadd.f32 %v3572, %v3696
    %v3698 = vpop.f32.mrf.mxu0
    %v3699 = vadd.f32 %v3572, %v3698
    %3700 = vmatmul.bf16.gmra.mxu0 %v3552
    %v3701 = vpop.f32.mrf.mxu0
    %v3702 = vadd.f32 %v3572, %v3701
    %v3703 = vpop.f32.mrf.mxu0
    %v3704 = vadd.f32 %v3572, %v3703
    %3705 = vmatmul.bf16.gmra.mxu0 %v3553
    %v3706 = vpop.f32.mrf.mxu0
    %v3707 = vadd.f32 %v3572, %v3706
    %v3708 = vpop.f32.mrf.mxu0
    %v3709 = vadd.f32 %v3572, %v3708
    %3710 = vdwg.mxu0
    %v3711 = vadd.f32 %v3632, %v101
    %v3712 = vadd.f32 %v3634, %v102
    %v3713 = vadd.f32 %v3637, %v103
    %v3714 = vadd.f32 %v3639, %v104
    %v3715 = vadd.f32 %v3642, %v105
    %v3716 = vadd.f32 %v3644, %v106
    %v3717 = vadd.f32 %v3647, %v107
    %v3718 = vadd.f32 %v3649, %v108
    %v3719 = vadd.f32 %v3652, %v109
    %v3720 = vadd.f32 %v3654, %v110
    %v3721 = vadd.f32 %v3657, %v111
    %v3722 = vadd.f32 %v3659, %v112
    %v3723 = vadd.f32 %v3662, %v113
    %v3724 = vadd.f32 %v3664, %v114
    %v3725 = vadd.f32 %v3667, %v115
    %v3726 = vadd.f32 %v3669, %v116
    %v3727 = vadd.f32 %v3672, %v117
    %v3728 = vadd.f32 %v3674, %v118
    %v3729 = vadd.f32 %v3677, %v119
    %v3730 = vadd.f32 %v3679, %v120
    %v3731 = vadd.f32 %v3682, %v121
    %v3732 = vadd.f32 %v3684, %v122
    %v3733 = vadd.f32 %v3687, %v123
    %v3734 = vadd.f32 %v3689, %v124
    %v3735 = vadd.f32 %v3692, %v125
    %v3736 = vadd.f32 %v3694, %v126
    %v3737 = vadd.f32 %v3697, %v127
    %v3738 = vadd.f32 %v3699, %v128
    %v3739 = vadd.f32 %v3702, %v129
    %v3740 = vadd.f32 %v3704, %v130
    %v3741 = vadd.f32 %v3707, %v131
    %v3742 = vadd.f32 %v3709, %v132
    %3743 = vadd.xlane.f32.xlu0 %v3711
    %v3744 = vpop.xlane.xlu0 %3743
    %3745 = vadd.xlane.f32.xlu0 %v3712
    %v3746 = vpop.xlane.xlu0 %3745
    %3747 = vadd.xlane.f32.xlu0 %v3713
    %v3748 = vpop.xlane.xlu0 %3747
    %3749 = vadd.xlane.f32.xlu0 %v3714
    %v3750 = vpop.xlane.xlu0 %3749
    %3751 = vadd.xlane.f32.xlu0 %v3715
    %v3752 = vpop.xlane.xlu0 %3751
    %3753 = vadd.xlane.f32.xlu0 %v3716
    %v3754 = vpop.xlane.xlu0 %3753
    %3755 = vadd.xlane.f32.xlu0 %v3717
    %v3756 = vpop.xlane.xlu0 %3755
    %3757 = vadd.xlane.f32.xlu0 %v3718
    %v3758 = vpop.xlane.xlu0 %3757
    %3759 = vadd.xlane.f32.xlu0 %v3719
    %v3760 = vpop.xlane.xlu0 %3759
    %3761 = vadd.xlane.f32.xlu0 %v3720
    %v3762 = vpop.xlane.xlu0 %3761
    %3763 = vadd.xlane.f32.xlu0 %v3721
    %v3764 = vpop.xlane.xlu0 %3763
    %3765 = vadd.xlane.f32.xlu0 %v3722
    %v3766 = vpop.xlane.xlu0 %3765
    %3767 = vadd.xlane.f32.xlu0 %v3723
    %v3768 = vpop.xlane.xlu0 %3767
    %3769 = vadd.xlane.f32.xlu0 %v3724
    %v3770 = vpop.xlane.xlu0 %3769
    %3771 = vadd.xlane.f32.xlu0 %v3725
    %v3772 = vpop.xlane.xlu0 %3771
    %3773 = vadd.xlane.f32.xlu0 %v3726
    %v3774 = vpop.xlane.xlu0 %3773
    %3775 = vadd.xlane.f32.xlu0 %v3727
    %v3776 = vpop.xlane.xlu0 %3775
    %3777 = vadd.xlane.f32.xlu0 %v3728
    %v3778 = vpop.xlane.xlu0 %3777
    %3779 = vadd.xlane.f32.xlu0 %v3729
    %v3780 = vpop.xlane.xlu0 %3779
    %3781 = vadd.xlane.f32.xlu0 %v3730
    %v3782 = vpop.xlane.xlu0 %3781
    %3783 = vadd.xlane.f32.xlu0 %v3731
    %v3784 = vpop.xlane.xlu0 %3783
    %3785 = vadd.xlane.f32.xlu0 %v3732
    %v3786 = vpop.xlane.xlu0 %3785
    %3787 = vadd.xlane.f32.xlu0 %v3733
    %v3788 = vpop.xlane.xlu0 %3787
    %3789 = vadd.xlane.f32.xlu0 %v3734
    %v3790 = vpop.xlane.xlu0 %3789
    %3791 = vadd.xlane.f32.xlu0 %v3735
    %v3792 = vpop.xlane.xlu0 %3791
    %3793 = vadd.xlane.f32.xlu0 %v3736
    %v3794 = vpop.xlane.xlu0 %3793
    %3795 = vadd.xlane.f32.xlu0 %v3737
    %v3796 = vpop.xlane.xlu0 %3795
    %3797 = vadd.xlane.f32.xlu0 %v3738
    %v3798 = vpop.xlane.xlu0 %3797
    %3799 = vadd.xlane.f32.xlu0 %v3739
    %v3800 = vpop.xlane.xlu0 %3799
    %3801 = vadd.xlane.f32.xlu0 %v3740
    %v3802 = vpop.xlane.xlu0 %3801
    %3803 = vadd.xlane.f32.xlu0 %v3741
    %v3804 = vpop.xlane.xlu0 %3803
    %3805 = vadd.xlane.f32.xlu0 %v3742
    %v3806 = vpop.xlane.xlu0 %3805
    %v3807 = vmul.f32 %v3744, %v203
    %v3808 = vmul.f32 %v3746, %v203
    %v3809 = vmul.f32 %v3748, %v203
    %v3810 = vmul.f32 %v3750, %v203
    %v3811 = vmul.f32 %v3752, %v203
    %v3812 = vmul.f32 %v3754, %v203
    %v3813 = vmul.f32 %v3756, %v203
    %v3814 = vmul.f32 %v3758, %v203
    %v3815 = vmul.f32 %v3760, %v203
    %v3816 = vmul.f32 %v3762, %v203
    %v3817 = vmul.f32 %v3764, %v203
    %v3818 = vmul.f32 %v3766, %v203
    %v3819 = vmul.f32 %v3768, %v203
    %v3820 = vmul.f32 %v3770, %v203
    %v3821 = vmul.f32 %v3772, %v203
    %v3822 = vmul.f32 %v3774, %v203
    %v3823 = vmul.f32 %v3776, %v203
    %v3824 = vmul.f32 %v3778, %v203
    %v3825 = vmul.f32 %v3780, %v203
    %v3826 = vmul.f32 %v3782, %v203
    %v3827 = vmul.f32 %v3784, %v203
    %v3828 = vmul.f32 %v3786, %v203
    %v3829 = vmul.f32 %v3788, %v203
    %v3830 = vmul.f32 %v3790, %v203
    %v3831 = vmul.f32 %v3792, %v203
    %v3832 = vmul.f32 %v3794, %v203
    %v3833 = vmul.f32 %v3796, %v203
    %v3834 = vmul.f32 %v3798, %v203
    %v3835 = vmul.f32 %v3800, %v203
    %v3836 = vmul.f32 %v3802, %v203
    %v3837 = vmul.f32 %v3804, %v203
    %v3838 = vmul.f32 %v3806, %v203
    %v3839 = vsub.f32 %v3711, %v3807
    %v3840 = vsub.f32 %v3712, %v3808
    %v3841 = vsub.f32 %v3713, %v3809
    %v3842 = vsub.f32 %v3714, %v3810
    %v3843 = vsub.f32 %v3715, %v3811
    %v3844 = vsub.f32 %v3716, %v3812
    %v3845 = vsub.f32 %v3717, %v3813
    %v3846 = vsub.f32 %v3718, %v3814
    %v3847 = vsub.f32 %v3719, %v3815
    %v3848 = vsub.f32 %v3720, %v3816
    %v3849 = vsub.f32 %v3721, %v3817
    %v3850 = vsub.f32 %v3722, %v3818
    %v3851 = vsub.f32 %v3723, %v3819
    %v3852 = vsub.f32 %v3724, %v3820
    %v3853 = vsub.f32 %v3725, %v3821
    %v3854 = vsub.f32 %v3726, %v3822
    %v3855 = vsub.f32 %v3727, %v3823
    %v3856 = vsub.f32 %v3728, %v3824
    %v3857 = vsub.f32 %v3729, %v3825
    %v3858 = vsub.f32 %v3730, %v3826
    %v3859 = vsub.f32 %v3731, %v3827
    %v3860 = vsub.f32 %v3732, %v3828
    %v3861 = vsub.f32 %v3733, %v3829
    %v3862 = vsub.f32 %v3734, %v3830
    %v3863 = vsub.f32 %v3735, %v3831
    %v3864 = vsub.f32 %v3736, %v3832
    %v3865 = vsub.f32 %v3737, %v3833
    %v3866 = vsub.f32 %v3738, %v3834
    %v3867 = vsub.f32 %v3739, %v3835
    %v3868 = vsub.f32 %v3740, %v3836
    %v3869 = vsub.f32 %v3741, %v3837
    %v3870 = vsub.f32 %v3742, %v3838
    %v3871 = vmul.f32 %v3839, %v3839
    %v3872 = vmul.f32 %v3840, %v3840
    %v3873 = vmul.f32 %v3841, %v3841
    %v3874 = vmul.f32 %v3842, %v3842
    %v3875 = vmul.f32 %v3843, %v3843
    %v3876 = vmul.f32 %v3844, %v3844
    %v3877 = vmul.f32 %v3845, %v3845
    %v3878 = vmul.f32 %v3846, %v3846
    %v3879 = vmul.f32 %v3847, %v3847
    %v3880 = vmul.f32 %v3848, %v3848
    %v3881 = vmul.f32 %v3849, %v3849
    %v3882 = vmul.f32 %v3850, %v3850
    %v3883 = vmul.f32 %v3851, %v3851
    %v3884 = vmul.f32 %v3852, %v3852
    %v3885 = vmul.f32 %v3853, %v3853
    %v3886 = vmul.f32 %v3854, %v3854
    %v3887 = vmul.f32 %v3855, %v3855
    %v3888 = vmul.f32 %v3856, %v3856
    %v3889 = vmul.f32 %v3857, %v3857
    %v3890 = vmul.f32 %v3858, %v3858
    %v3891 = vmul.f32 %v3859, %v3859
    %v3892 = vmul.f32 %v3860, %v3860
    %v3893 = vmul.f32 %v3861, %v3861
    %v3894 = vmul.f32 %v3862, %v3862
    %v3895 = vmul.f32 %v3863, %v3863
    %v3896 = vmul.f32 %v3864, %v3864
    %v3897 = vmul.f32 %v3865, %v3865
    %v3898 = vmul.f32 %v3866, %v3866
    %v3899 = vmul.f32 %v3867, %v3867
    %v3900 = vmul.f32 %v3868, %v3868
    %v3901 = vmul.f32 %v3869, %v3869
    %v3902 = vmul.f32 %v3870, %v3870
    %3903 = vadd.xlane.f32.xlu0 %v3871
    %v3904 = vpop.xlane.xlu0 %3903
    %3905 = vadd.xlane.f32.xlu0 %v3872
    %v3906 = vpop.xlane.xlu0 %3905
    %3907 = vadd.xlane.f32.xlu0 %v3873
    %v3908 = vpop.xlane.xlu0 %3907
    %3909 = vadd.xlane.f32.xlu0 %v3874
    %v3910 = vpop.xlane.xlu0 %3909
    %3911 = vadd.xlane.f32.xlu0 %v3875
    %v3912 = vpop.xlane.xlu0 %3911
    %3913 = vadd.xlane.f32.xlu0 %v3876
    %v3914 = vpop.xlane.xlu0 %3913
    %3915 = vadd.xlane.f32.xlu0 %v3877
    %v3916 = vpop.xlane.xlu0 %3915
    %3917 = vadd.xlane.f32.xlu0 %v3878
    %v3918 = vpop.xlane.xlu0 %3917
    %3919 = vadd.xlane.f32.xlu0 %v3879
    %v3920 = vpop.xlane.xlu0 %3919
    %3921 = vadd.xlane.f32.xlu0 %v3880
    %v3922 = vpop.xlane.xlu0 %3921
    %3923 = vadd.xlane.f32.xlu0 %v3881
    %v3924 = vpop.xlane.xlu0 %3923
    %3925 = vadd.xlane.f32.xlu0 %v3882
    %v3926 = vpop.xlane.xlu0 %3925
    %3927 = vadd.xlane.f32.xlu0 %v3883
    %v3928 = vpop.xlane.xlu0 %3927
    %3929 = vadd.xlane.f32.xlu0 %v3884
    %v3930 = vpop.xlane.xlu0 %3929
    %3931 = vadd.xlane.f32.xlu0 %v3885
    %v3932 = vpop.xlane.xlu0 %3931
    %3933 = vadd.xlane.f32.xlu0 %v3886
    %v3934 = vpop.xlane.xlu0 %3933
    %3935 = vadd.xlane.f32.xlu0 %v3887
    %v3936 = vpop.xlane.xlu0 %3935
    %3937 = vadd.xlane.f32.xlu0 %v3888
    %v3938 = vpop.xlane.xlu0 %3937
    %3939 = vadd.xlane.f32.xlu0 %v3889
    %v3940 = vpop.xlane.xlu0 %3939
    %3941 = vadd.xlane.f32.xlu0 %v3890
    %v3942 = vpop.xlane.xlu0 %3941
    %3943 = vadd.xlane.f32.xlu0 %v3891
    %v3944 = vpop.xlane.xlu0 %3943
    %3945 = vadd.xlane.f32.xlu0 %v3892
    %v3946 = vpop.xlane.xlu0 %3945
    %3947 = vadd.xlane.f32.xlu0 %v3893
    %v3948 = vpop.xlane.xlu0 %3947
    %3949 = vadd.xlane.f32.xlu0 %v3894
    %v3950 = vpop.xlane.xlu0 %3949
    %3951 = vadd.xlane.f32.xlu0 %v3895
    %v3952 = vpop.xlane.xlu0 %3951
    %3953 = vadd.xlane.f32.xlu0 %v3896
    %v3954 = vpop.xlane.xlu0 %3953
    %3955 = vadd.xlane.f32.xlu0 %v3897
    %v3956 = vpop.xlane.xlu0 %3955
    %3957 = vadd.xlane.f32.xlu0 %v3898
    %v3958 = vpop.xlane.xlu0 %3957
    %3959 = vadd.xlane.f32.xlu0 %v3899
    %v3960 = vpop.xlane.xlu0 %3959
    %3961 = vadd.xlane.f32.xlu0 %v3900
    %v3962 = vpop.xlane.xlu0 %3961
    %3963 = vadd.xlane.f32.xlu0 %v3901
    %v3964 = vpop.xlane.xlu0 %3963
    %3965 = vadd.xlane.f32.xlu0 %v3902
    %v3966 = vpop.xlane.xlu0 %3965
    %v3967 = vmul.f32 %v3904, %v203
    %v3968 = vmul.f32 %v3906, %v203
    %v3969 = vmul.f32 %v3908, %v203
    %v3970 = vmul.f32 %v3910, %v203
    %v3971 = vmul.f32 %v3912, %v203
    %v3972 = vmul.f32 %v3914, %v203
    %v3973 = vmul.f32 %v3916, %v203
    %v3974 = vmul.f32 %v3918, %v203
    %v3975 = vmul.f32 %v3920, %v203
    %v3976 = vmul.f32 %v3922, %v203
    %v3977 = vmul.f32 %v3924, %v203
    %v3978 = vmul.f32 %v3926, %v203
    %v3979 = vmul.f32 %v3928, %v203
    %v3980 = vmul.f32 %v3930, %v203
    %v3981 = vmul.f32 %v3932, %v203
    %v3982 = vmul.f32 %v3934, %v203
    %v3983 = vmul.f32 %v3936, %v203
    %v3984 = vmul.f32 %v3938, %v203
    %v3985 = vmul.f32 %v3940, %v203
    %v3986 = vmul.f32 %v3942, %v203
    %v3987 = vmul.f32 %v3944, %v203
    %v3988 = vmul.f32 %v3946, %v203
    %v3989 = vmul.f32 %v3948, %v203
    %v3990 = vmul.f32 %v3950, %v203
    %v3991 = vmul.f32 %v3952, %v203
    %v3992 = vmul.f32 %v3954, %v203
    %v3993 = vmul.f32 %v3956, %v203
    %v3994 = vmul.f32 %v3958, %v203
    %v3995 = vmul.f32 %v3960, %v203
    %v3996 = vmul.f32 %v3962, %v203
    %v3997 = vmul.f32 %v3964, %v203
    %v3998 = vmul.f32 %v3966, %v203
    %v3999 = vadd.f32 %v3967, 1e-05
    %v4000 = vadd.f32 %v3968, 1e-05
    %v4001 = vadd.f32 %v3969, 1e-05
    %v4002 = vadd.f32 %v3970, 1e-05
    %v4003 = vadd.f32 %v3971, 1e-05
    %v4004 = vadd.f32 %v3972, 1e-05
    %v4005 = vadd.f32 %v3973, 1e-05
    %v4006 = vadd.f32 %v3974, 1e-05
    %v4007 = vadd.f32 %v3975, 1e-05
    %v4008 = vadd.f32 %v3976, 1e-05
    %v4009 = vadd.f32 %v3977, 1e-05
    %v4010 = vadd.f32 %v3978, 1e-05
    %v4011 = vadd.f32 %v3979, 1e-05
    %v4012 = vadd.f32 %v3980, 1e-05
    %v4013 = vadd.f32 %v3981, 1e-05
    %v4014 = vadd.f32 %v3982, 1e-05
    %v4015 = vadd.f32 %v3983, 1e-05
    %v4016 = vadd.f32 %v3984, 1e-05
    %v4017 = vadd.f32 %v3985, 1e-05
    %v4018 = vadd.f32 %v3986, 1e-05
    %v4019 = vadd.f32 %v3987, 1e-05
    %v4020 = vadd.f32 %v3988, 1e-05
    %v4021 = vadd.f32 %v3989, 1e-05
    %v4022 = vadd.f32 %v3990, 1e-05
    %v4023 = vadd.f32 %v3991, 1e-05
    %v4024 = vadd.f32 %v3992, 1e-05
    %v4025 = vadd.f32 %v3993, 1e-05
    %v4026 = vadd.f32 %v3994, 1e-05
    %v4027 = vadd.f32 %v3995, 1e-05
    %v4028 = vadd.f32 %v3996, 1e-05
    %v4029 = vadd.f32 %v3997, 1e-05
    %v4030 = vadd.f32 %v3998, 1e-05
    %v4031 = vrsqrt.pop %v3999
    %v4032 = vmul.f32 %v4031, %v3999
    %v4033 = vmul.f32 %v4032, %v4031
    %v4034 = vmul.f32 0.5, %v4033
    %v4035 = vsub.f32 1.5, %v4034
    %v4036 = vmul.f32 %v4031, %v4035
    %vm4037 = vweird.f32 %v3999
    %vm4038 = vweird.f32 %v4031
    %vm4039 = vmor %vm4037, %vm4038
    %v4040 = vsel %vm4039, %v4031, %v4036
    %v4041 = vrsqrt.pop %v4000
    %v4042 = vmul.f32 %v4041, %v4000
    %v4043 = vmul.f32 %v4042, %v4041
    %v4044 = vmul.f32 0.5, %v4043
    %v4045 = vsub.f32 1.5, %v4044
    %v4046 = vmul.f32 %v4041, %v4045
    %vm4047 = vweird.f32 %v4000
    %vm4048 = vweird.f32 %v4041
    %vm4049 = vmor %vm4047, %vm4048
    %v4050 = vsel %vm4049, %v4041, %v4046
    %v4051 = vrsqrt.pop %v4001
    %v4052 = vmul.f32 %v4051, %v4001
    %v4053 = vmul.f32 %v4052, %v4051
    %v4054 = vmul.f32 0.5, %v4053
    %v4055 = vsub.f32 1.5, %v4054
    %v4056 = vmul.f32 %v4051, %v4055
    %vm4057 = vweird.f32 %v4001
    %vm4058 = vweird.f32 %v4051
    %vm4059 = vmor %vm4057, %vm4058
    %v4060 = vsel %vm4059, %v4051, %v4056
    %v4061 = vrsqrt.pop %v4002
    %v4062 = vmul.f32 %v4061, %v4002
    %v4063 = vmul.f32 %v4062, %v4061
    %v4064 = vmul.f32 0.5, %v4063
    %v4065 = vsub.f32 1.5, %v4064
    %v4066 = vmul.f32 %v4061, %v4065
    %vm4067 = vweird.f32 %v4002
    %vm4068 = vweird.f32 %v4061
    %vm4069 = vmor %vm4067, %vm4068
    %v4070 = vsel %vm4069, %v4061, %v4066
    %v4071 = vrsqrt.pop %v4003
    %v4072 = vmul.f32 %v4071, %v4003
    %v4073 = vmul.f32 %v4072, %v4071
    %v4074 = vmul.f32 0.5, %v4073
    %v4075 = vsub.f32 1.5, %v4074
    %v4076 = vmul.f32 %v4071, %v4075
    %vm4077 = vweird.f32 %v4003
    %vm4078 = vweird.f32 %v4071
    %vm4079 = vmor %vm4077, %vm4078
    %v4080 = vsel %vm4079, %v4071, %v4076
    %v4081 = vrsqrt.pop %v4004
    %v4082 = vmul.f32 %v4081, %v4004
    %v4083 = vmul.f32 %v4082, %v4081
    %v4084 = vmul.f32 0.5, %v4083
    %v4085 = vsub.f32 1.5, %v4084
    %v4086 = vmul.f32 %v4081, %v4085
    %vm4087 = vweird.f32 %v4004
    %vm4088 = vweird.f32 %v4081
    %vm4089 = vmor %vm4087, %vm4088
    %v4090 = vsel %vm4089, %v4081, %v4086
    %v4091 = vrsqrt.pop %v4005
    %v4092 = vmul.f32 %v4091, %v4005
    %v4093 = vmul.f32 %v4092, %v4091
    %v4094 = vmul.f32 0.5, %v4093
    %v4095 = vsub.f32 1.5, %v4094
    %v4096 = vmul.f32 %v4091, %v4095
    %vm4097 = vweird.f32 %v4005
    %vm4098 = vweird.f32 %v4091
    %vm4099 = vmor %vm4097, %vm4098
    %v4100 = vsel %vm4099, %v4091, %v4096
    %v4101 = vrsqrt.pop %v4006
    %v4102 = vmul.f32 %v4101, %v4006
    %v4103 = vmul.f32 %v4102, %v4101
    %v4104 = vmul.f32 0.5, %v4103
    %v4105 = vsub.f32 1.5, %v4104
    %v4106 = vmul.f32 %v4101, %v4105
    %vm4107 = vweird.f32 %v4006
    %vm4108 = vweird.f32 %v4101
    %vm4109 = vmor %vm4107, %vm4108
    %v4110 = vsel %vm4109, %v4101, %v4106
    %v4111 = vrsqrt.pop %v4007
    %v4112 = vmul.f32 %v4111, %v4007
    %v4113 = vmul.f32 %v4112, %v4111
    %v4114 = vmul.f32 0.5, %v4113
    %v4115 = vsub.f32 1.5, %v4114
    %v4116 = vmul.f32 %v4111, %v4115
    %vm4117 = vweird.f32 %v4007
    %vm4118 = vweird.f32 %v4111
    %vm4119 = vmor %vm4117, %vm4118
    %v4120 = vsel %vm4119, %v4111, %v4116
    %v4121 = vrsqrt.pop %v4008
    %v4122 = vmul.f32 %v4121, %v4008
    %v4123 = vmul.f32 %v4122, %v4121
    %v4124 = vmul.f32 0.5, %v4123
    %v4125 = vsub.f32 1.5, %v4124
    %v4126 = vmul.f32 %v4121, %v4125
    %vm4127 = vweird.f32 %v4008
    %vm4128 = vweird.f32 %v4121
    %vm4129 = vmor %vm4127, %vm4128
    %v4130 = vsel %vm4129, %v4121, %v4126
    %v4131 = vrsqrt.pop %v4009
    %v4132 = vmul.f32 %v4131, %v4009
    %v4133 = vmul.f32 %v4132, %v4131
    %v4134 = vmul.f32 0.5, %v4133
    %v4135 = vsub.f32 1.5, %v4134
    %v4136 = vmul.f32 %v4131, %v4135
    %vm4137 = vweird.f32 %v4009
    %vm4138 = vweird.f32 %v4131
    %vm4139 = vmor %vm4137, %vm4138
    %v4140 = vsel %vm4139, %v4131, %v4136
    %v4141 = vrsqrt.pop %v4010
    %v4142 = vmul.f32 %v4141, %v4010
    %v4143 = vmul.f32 %v4142, %v4141
    %v4144 = vmul.f32 0.5, %v4143
    %v4145 = vsub.f32 1.5, %v4144
    %v4146 = vmul.f32 %v4141, %v4145
    %vm4147 = vweird.f32 %v4010
    %vm4148 = vweird.f32 %v4141
    %vm4149 = vmor %vm4147, %vm4148
    %v4150 = vsel %vm4149, %v4141, %v4146
    %v4151 = vrsqrt.pop %v4011
    %v4152 = vmul.f32 %v4151, %v4011
    %v4153 = vmul.f32 %v4152, %v4151
    %v4154 = vmul.f32 0.5, %v4153
    %v4155 = vsub.f32 1.5, %v4154
    %v4156 = vmul.f32 %v4151, %v4155
    %vm4157 = vweird.f32 %v4011
    %vm4158 = vweird.f32 %v4151
    %vm4159 = vmor %vm4157, %vm4158
    %v4160 = vsel %vm4159, %v4151, %v4156
    %v4161 = vrsqrt.pop %v4012
    %v4162 = vmul.f32 %v4161, %v4012
    %v4163 = vmul.f32 %v4162, %v4161
    %v4164 = vmul.f32 0.5, %v4163
    %v4165 = vsub.f32 1.5, %v4164
    %v4166 = vmul.f32 %v4161, %v4165
    %vm4167 = vweird.f32 %v4012
    %vm4168 = vweird.f32 %v4161
    %vm4169 = vmor %vm4167, %vm4168
    %v4170 = vsel %vm4169, %v4161, %v4166
    %v4171 = vrsqrt.pop %v4013
    %v4172 = vmul.f32 %v4171, %v4013
    %v4173 = vmul.f32 %v4172, %v4171
    %v4174 = vmul.f32 0.5, %v4173
    %v4175 = vsub.f32 1.5, %v4174
    %v4176 = vmul.f32 %v4171, %v4175
    %vm4177 = vweird.f32 %v4013
    %vm4178 = vweird.f32 %v4171
    %vm4179 = vmor %vm4177, %vm4178
    %v4180 = vsel %vm4179, %v4171, %v4176
    %v4181 = vrsqrt.pop %v4014
    %v4182 = vmul.f32 %v4181, %v4014
    %v4183 = vmul.f32 %v4182, %v4181
    %v4184 = vmul.f32 0.5, %v4183
    %v4185 = vsub.f32 1.5, %v4184
    %v4186 = vmul.f32 %v4181, %v4185
    %vm4187 = vweird.f32 %v4014
    %vm4188 = vweird.f32 %v4181
    %vm4189 = vmor %vm4187, %vm4188
    %v4190 = vsel %vm4189, %v4181, %v4186
    %v4191 = vrsqrt.pop %v4015
    %v4192 = vmul.f32 %v4191, %v4015
    %v4193 = vmul.f32 %v4192, %v4191
    %v4194 = vmul.f32 0.5, %v4193
    %v4195 = vsub.f32 1.5, %v4194
    %v4196 = vmul.f32 %v4191, %v4195
    %vm4197 = vweird.f32 %v4015
    %vm4198 = vweird.f32 %v4191
    %vm4199 = vmor %vm4197, %vm4198
    %v4200 = vsel %vm4199, %v4191, %v4196
    %v4201 = vrsqrt.pop %v4016
    %v4202 = vmul.f32 %v4201, %v4016
    %v4203 = vmul.f32 %v4202, %v4201
    %v4204 = vmul.f32 0.5, %v4203
    %v4205 = vsub.f32 1.5, %v4204
    %v4206 = vmul.f32 %v4201, %v4205
    %vm4207 = vweird.f32 %v4016
    %vm4208 = vweird.f32 %v4201
    %vm4209 = vmor %vm4207, %vm4208
    %v4210 = vsel %vm4209, %v4201, %v4206
    %v4211 = vrsqrt.pop %v4017
    %v4212 = vmul.f32 %v4211, %v4017
    %v4213 = vmul.f32 %v4212, %v4211
    %v4214 = vmul.f32 0.5, %v4213
    %v4215 = vsub.f32 1.5, %v4214
    %v4216 = vmul.f32 %v4211, %v4215
    %vm4217 = vweird.f32 %v4017
    %vm4218 = vweird.f32 %v4211
    %vm4219 = vmor %vm4217, %vm4218
    %v4220 = vsel %vm4219, %v4211, %v4216
    %v4221 = vrsqrt.pop %v4018
    %v4222 = vmul.f32 %v4221, %v4018
    %v4223 = vmul.f32 %v4222, %v4221
    %v4224 = vmul.f32 0.5, %v4223
    %v4225 = vsub.f32 1.5, %v4224
    %v4226 = vmul.f32 %v4221, %v4225
    %vm4227 = vweird.f32 %v4018
    %vm4228 = vweird.f32 %v4221
    %vm4229 = vmor %vm4227, %vm4228
    %v4230 = vsel %vm4229, %v4221, %v4226
    %v4231 = vrsqrt.pop %v4019
    %v4232 = vmul.f32 %v4231, %v4019
    %v4233 = vmul.f32 %v4232, %v4231
    %v4234 = vmul.f32 0.5, %v4233
    %v4235 = vsub.f32 1.5, %v4234
    %v4236 = vmul.f32 %v4231, %v4235
    %vm4237 = vweird.f32 %v4019
    %vm4238 = vweird.f32 %v4231
    %vm4239 = vmor %vm4237, %vm4238
    %v4240 = vsel %vm4239, %v4231, %v4236
    %v4241 = vrsqrt.pop %v4020
    %v4242 = vmul.f32 %v4241, %v4020
    %v4243 = vmul.f32 %v4242, %v4241
    %v4244 = vmul.f32 0.5, %v4243
    %v4245 = vsub.f32 1.5, %v4244
    %v4246 = vmul.f32 %v4241, %v4245
    %vm4247 = vweird.f32 %v4020
    %vm4248 = vweird.f32 %v4241
    %vm4249 = vmor %vm4247, %vm4248
    %v4250 = vsel %vm4249, %v4241, %v4246
    %v4251 = vrsqrt.pop %v4021
    %v4252 = vmul.f32 %v4251, %v4021
    %v4253 = vmul.f32 %v4252, %v4251
    %v4254 = vmul.f32 0.5, %v4253
    %v4255 = vsub.f32 1.5, %v4254
    %v4256 = vmul.f32 %v4251, %v4255
    %vm4257 = vweird.f32 %v4021
    %vm4258 = vweird.f32 %v4251
    %vm4259 = vmor %vm4257, %vm4258
    %v4260 = vsel %vm4259, %v4251, %v4256
    %v4261 = vrsqrt.pop %v4022
    %v4262 = vmul.f32 %v4261, %v4022
    %v4263 = vmul.f32 %v4262, %v4261
    %v4264 = vmul.f32 0.5, %v4263
    %v4265 = vsub.f32 1.5, %v4264
    %v4266 = vmul.f32 %v4261, %v4265
    %vm4267 = vweird.f32 %v4022
    %vm4268 = vweird.f32 %v4261
    %vm4269 = vmor %vm4267, %vm4268
    %v4270 = vsel %vm4269, %v4261, %v4266
    %v4271 = vrsqrt.pop %v4023
    %v4272 = vmul.f32 %v4271, %v4023
    %v4273 = vmul.f32 %v4272, %v4271
    %v4274 = vmul.f32 0.5, %v4273
    %v4275 = vsub.f32 1.5, %v4274
    %v4276 = vmul.f32 %v4271, %v4275
    %vm4277 = vweird.f32 %v4023
    %vm4278 = vweird.f32 %v4271
    %vm4279 = vmor %vm4277, %vm4278
    %v4280 = vsel %vm4279, %v4271, %v4276
    %v4281 = vrsqrt.pop %v4024
    %v4282 = vmul.f32 %v4281, %v4024
    %v4283 = vmul.f32 %v4282, %v4281
    %v4284 = vmul.f32 0.5, %v4283
    %v4285 = vsub.f32 1.5, %v4284
    %v4286 = vmul.f32 %v4281, %v4285
    %vm4287 = vweird.f32 %v4024
    %vm4288 = vweird.f32 %v4281
    %vm4289 = vmor %vm4287, %vm4288
    %v4290 = vsel %vm4289, %v4281, %v4286
    %v4291 = vrsqrt.pop %v4025
    %v4292 = vmul.f32 %v4291, %v4025
    %v4293 = vmul.f32 %v4292, %v4291
    %v4294 = vmul.f32 0.5, %v4293
    %v4295 = vsub.f32 1.5, %v4294
    %v4296 = vmul.f32 %v4291, %v4295
    %vm4297 = vweird.f32 %v4025
    %vm4298 = vweird.f32 %v4291
    %vm4299 = vmor %vm4297, %vm4298
    %v4300 = vsel %vm4299, %v4291, %v4296
    %v4301 = vrsqrt.pop %v4026
    %v4302 = vmul.f32 %v4301, %v4026
    %v4303 = vmul.f32 %v4302, %v4301
    %v4304 = vmul.f32 0.5, %v4303
    %v4305 = vsub.f32 1.5, %v4304
    %v4306 = vmul.f32 %v4301, %v4305
    %vm4307 = vweird.f32 %v4026
    %vm4308 = vweird.f32 %v4301
    %vm4309 = vmor %vm4307, %vm4308
    %v4310 = vsel %vm4309, %v4301, %v4306
    %v4311 = vrsqrt.pop %v4027
    %v4312 = vmul.f32 %v4311, %v4027
    %v4313 = vmul.f32 %v4312, %v4311
    %v4314 = vmul.f32 0.5, %v4313
    %v4315 = vsub.f32 1.5, %v4314
    %v4316 = vmul.f32 %v4311, %v4315
    %vm4317 = vweird.f32 %v4027
    %vm4318 = vweird.f32 %v4311
    %vm4319 = vmor %vm4317, %vm4318
    %v4320 = vsel %vm4319, %v4311, %v4316
    %v4321 = vrsqrt.pop %v4028
    %v4322 = vmul.f32 %v4321, %v4028
    %v4323 = vmul.f32 %v4322, %v4321
    %v4324 = vmul.f32 0.5, %v4323
    %v4325 = vsub.f32 1.5, %v4324
    %v4326 = vmul.f32 %v4321, %v4325
    %vm4327 = vweird.f32 %v4028
    %vm4328 = vweird.f32 %v4321
    %vm4329 = vmor %vm4327, %vm4328
    %v4330 = vsel %vm4329, %v4321, %v4326
    %v4331 = vrsqrt.pop %v4029
    %v4332 = vmul.f32 %v4331, %v4029
    %v4333 = vmul.f32 %v4332, %v4331
    %v4334 = vmul.f32 0.5, %v4333
    %v4335 = vsub.f32 1.5, %v4334
    %v4336 = vmul.f32 %v4331, %v4335
    %vm4337 = vweird.f32 %v4029
    %vm4338 = vweird.f32 %v4331
    %vm4339 = vmor %vm4337, %vm4338
    %v4340 = vsel %vm4339, %v4331, %v4336
    %v4341 = vrsqrt.pop %v4030
    %v4342 = vmul.f32 %v4341, %v4030
    %v4343 = vmul.f32 %v4342, %v4341
    %v4344 = vmul.f32 0.5, %v4343
    %v4345 = vsub.f32 1.5, %v4344
    %v4346 = vmul.f32 %v4341, %v4345
    %vm4347 = vweird.f32 %v4030
    %vm4348 = vweird.f32 %v4341
    %vm4349 = vmor %vm4347, %vm4348
    %v4350 = vsel %vm4349, %v4341, %v4346
    %v4351 = vmul.f32 %v3839, %v4040
    %v4352 = vmul.f32 %v3840, %v4050
    %v4353 = vmul.f32 %v3841, %v4060
    %v4354 = vmul.f32 %v3842, %v4070
    %v4355 = vmul.f32 %v3843, %v4080
    %v4356 = vmul.f32 %v3844, %v4090
    %v4357 = vmul.f32 %v3845, %v4100
    %v4358 = vmul.f32 %v3846, %v4110
    %v4359 = vmul.f32 %v3847, %v4120
    %v4360 = vmul.f32 %v3848, %v4130
    %v4361 = vmul.f32 %v3849, %v4140
    %v4362 = vmul.f32 %v3850, %v4150
    %v4363 = vmul.f32 %v3851, %v4160
    %v4364 = vmul.f32 %v3852, %v4170
    %v4365 = vmul.f32 %v3853, %v4180
    %v4366 = vmul.f32 %v3854, %v4190
    %v4367 = vmul.f32 %v3855, %v4200
    %v4368 = vmul.f32 %v3856, %v4210
    %v4369 = vmul.f32 %v3857, %v4220
    %v4370 = vmul.f32 %v3858, %v4230
    %v4371 = vmul.f32 %v3859, %v4240
    %v4372 = vmul.f32 %v3860, %v4250
    %v4373 = vmul.f32 %v3861, %v4260
    %v4374 = vmul.f32 %v3862, %v4270
    %v4375 = vmul.f32 %v3863, %v4280
    %v4376 = vmul.f32 %v3864, %v4290
    %v4377 = vmul.f32 %v3865, %v4300
    %v4378 = vmul.f32 %v3866, %v4310
    %v4379 = vmul.f32 %v3867, %v4320
    %v4380 = vmul.f32 %v3868, %v4330
    %v4381 = vmul.f32 %v3869, %v4340
    %v4382 = vmul.f32 %v3870, %v4350
    %v4384 = vperm.slane %v50, 0
    %v4386 = vmul.f32 %v4351, %v4384
    %v4387 = vmul.f32 %v4352, %v4384
    %v4388 = vmul.f32 %v4353, %v4384
    %v4389 = vmul.f32 %v4354, %v4384
    %v4390 = vmul.f32 %v4355, %v4384
    %v4391 = vmul.f32 %v4356, %v4384
    %v4392 = vmul.f32 %v4357, %v4384
    %v4393 = vmul.f32 %v4358, %v4384
    %v4394 = vmul.f32 %v4359, %v4384
    %v4395 = vmul.f32 %v4360, %v4384
    %v4396 = vmul.f32 %v4361, %v4384
    %v4397 = vmul.f32 %v4362, %v4384
    %v4398 = vmul.f32 %v4363, %v4384
    %v4399 = vmul.f32 %v4364, %v4384
    %v4400 = vmul.f32 %v4365, %v4384
    %v4401 = vmul.f32 %v4366, %v4384
    %v4402 = vmul.f32 %v4367, %v4384
    %v4403 = vmul.f32 %v4368, %v4384
    %v4404 = vmul.f32 %v4369, %v4384
    %v4405 = vmul.f32 %v4370, %v4384
    %v4406 = vmul.f32 %v4371, %v4384
    %v4407 = vmul.f32 %v4372, %v4384
    %v4408 = vmul.f32 %v4373, %v4384
    %v4409 = vmul.f32 %v4374, %v4384
    %v4410 = vmul.f32 %v4375, %v4384
    %v4411 = vmul.f32 %v4376, %v4384
    %v4412 = vmul.f32 %v4377, %v4384
    %v4413 = vmul.f32 %v4378, %v4384
    %v4414 = vmul.f32 %v4379, %v4384
    %v4415 = vmul.f32 %v4380, %v4384
    %v4416 = vmul.f32 %v4381, %v4384
    %v4417 = vmul.f32 %v4382, %v4384
    %v4419 = vperm.slane %v51, 0
    %v4421 = vadd.f32 %v4386, %v4419
    %v4422 = vadd.f32 %v4387, %v4419
    %v4423 = vadd.f32 %v4388, %v4419
    %v4424 = vadd.f32 %v4389, %v4419
    %v4425 = vadd.f32 %v4390, %v4419
    %v4426 = vadd.f32 %v4391, %v4419
    %v4427 = vadd.f32 %v4392, %v4419
    %v4428 = vadd.f32 %v4393, %v4419
    %v4429 = vadd.f32 %v4394, %v4419
    %v4430 = vadd.f32 %v4395, %v4419
    %v4431 = vadd.f32 %v4396, %v4419
    %v4432 = vadd.f32 %v4397, %v4419
    %v4433 = vadd.f32 %v4398, %v4419
    %v4434 = vadd.f32 %v4399, %v4419
    %v4435 = vadd.f32 %v4400, %v4419
    %v4436 = vadd.f32 %v4401, %v4419
    %v4437 = vadd.f32 %v4402, %v4419
    %v4438 = vadd.f32 %v4403, %v4419
    %v4439 = vadd.f32 %v4404, %v4419
    %v4440 = vadd.f32 %v4405, %v4419
    %v4441 = vadd.f32 %v4406, %v4419
    %v4442 = vadd.f32 %v4407, %v4419
    %v4443 = vadd.f32 %v4408, %v4419
    %v4444 = vadd.f32 %v4409, %v4419
    %v4445 = vadd.f32 %v4410, %v4419
    %v4446 = vadd.f32 %v4411, %v4419
    %v4447 = vadd.f32 %v4412, %v4419
    %v4448 = vadd.f32 %v4413, %v4419
    %v4449 = vadd.f32 %v4414, %v4419
    %v4450 = vadd.f32 %v4415, %v4419
    %v4451 = vadd.f32 %v4416, %v4419
    %v4452 = vadd.f32 %v4417, %v4419
    %v4453 = vpack.c.bf16 %v4422, %v4421
    %v4454 = vpack.c.bf16 %v4424, %v4423
    %v4455 = vpack.c.bf16 %v4426, %v4425
    %v4456 = vpack.c.bf16 %v4428, %v4427
    %v4457 = vpack.c.bf16 %v4430, %v4429
    %v4458 = vpack.c.bf16 %v4432, %v4431
    %v4459 = vpack.c.bf16 %v4434, %v4433
    %v4460 = vpack.c.bf16 %v4436, %v4435
    %v4461 = vpack.c.bf16 %v4438, %v4437
    %v4462 = vpack.c.bf16 %v4440, %v4439
    %v4463 = vpack.c.bf16 %v4442, %v4441
    %v4464 = vpack.c.bf16 %v4444, %v4443
    %v4465 = vpack.c.bf16 %v4446, %v4445
    %v4466 = vpack.c.bf16 %v4448, %v4447
    %v4467 = vpack.c.bf16 %v4450, %v4449
    %v4468 = vpack.c.bf16 %v4452, %v4451
    %v4469 = vld [vmem:[%s10] sm:$0xf]
    %v4470 = vld [vmem:[%s10 + $0x4] sm:$0xf]
    %v4471 = vld [vmem:[%s10 + $0x8] sm:$0xf]
    %v4472 = vld [vmem:[%s10 + $0xc] sm:$0xf]
    %v4473 = vld [vmem:[%s10 + $0x10] sm:$0xf]
    %v4474 = vld [vmem:[%s10 + $0x14] sm:$0xf]
    %v4475 = vld [vmem:[%s10 + $0x18] sm:$0xf]
    %v4476 = vld [vmem:[%s10 + $0x1c] sm:$0xf]
    %v4477 = vld [vmem:[%s10 + $0x20] sm:$0xf]
    %v4478 = vld [vmem:[%s10 + $0x24] sm:$0xf]
    %v4479 = vld [vmem:[%s10 + $0x28] sm:$0xf]
    %v4480 = vld [vmem:[%s10 + $0x2c] sm:$0xf]
    %v4481 = vld [vmem:[%s10 + $0x30] sm:$0xf]
    %v4482 = vld [vmem:[%s10 + $0x34] sm:$0xf]
    %v4483 = vld [vmem:[%s10 + $0x38] sm:$0xf]
    %v4484 = vld [vmem:[%s10 + $0x3c] sm:$0xf]
    %v4485 = vld [vmem:[%s11] sm:$0x1]
    %v4487 = vperm.slane %v4485, 0
    %v4505 = vunpack.c.l.b16 %v4469
    %v4506 = vunpack.c.l.b16 %v4470
    %v4507 = vunpack.c.l.b16 %v4471
    %v4508 = vunpack.c.l.b16 %v4472
    %v4509 = vunpack.c.l.b16 %v4473
    %v4510 = vunpack.c.l.b16 %v4474
    %v4511 = vunpack.c.l.b16 %v4475
    %v4512 = vunpack.c.l.b16 %v4476
    %v4513 = vunpack.c.l.b16 %v4477
    %v4514 = vunpack.c.l.b16 %v4478
    %v4515 = vunpack.c.l.b16 %v4479
    %v4516 = vunpack.c.l.b16 %v4480
    %v4517 = vunpack.c.l.b16 %v4481
    %v4518 = vunpack.c.l.b16 %v4482
    %v4519 = vunpack.c.l.b16 %v4483
    %v4520 = vunpack.c.l.b16 %v4484
    %v4521 = vpack.c.b16 %v4506, %v4505
    %v4522 = vpack.c.b16 %v4508, %v4507
    %v4523 = vpack.c.b16 %v4510, %v4509
    %v4524 = vpack.c.b16 %v4512, %v4511
    %v4525 = vpack.c.b16 %v4514, %v4513
    %v4526 = vpack.c.b16 %v4516, %v4515
    %v4527 = vpack.c.b16 %v4518, %v4517
    %v4528 = vpack.c.b16 %v4520, %v4519
    %4537 = vmatpush.bf16.msra.mxu0 %v4528
    %4538 = vmatpush.bf16.msra.mxu0 %v4527
    %4539 = vmatpush.bf16.msra.mxu0 %v4526
    %4540 = vmatpush.bf16.msra.mxu0 %v4525
    %4541 = vmatpush.bf16.msra.mxu0 %v4524
    %4542 = vmatpush.bf16.msra.mxu0 %v4523
    %4543 = vmatpush.bf16.msra.mxu0 %v4522
    %4544 = vmatpush.bf16.msra.mxu0 %v4521
    %4545 = vmatmul.bf16.gmra.mxu0 %v4453
    %v4546 = vpop.f32.mrf.mxu0
    %v4547 = vadd.f32 %v4487, %v4546
    %v4548 = vpop.f32.mrf.mxu0
    %v4549 = vadd.f32 %v4487, %v4548
    %4550 = vmatmul.bf16.gmra.mxu0 %v4454
    %v4551 = vpop.f32.mrf.mxu0
    %v4552 = vadd.f32 %v4487, %v4551
    %v4553 = vpop.f32.mrf.mxu0
    %v4554 = vadd.f32 %v4487, %v4553
    %4555 = vmatmul.bf16.gmra.mxu0 %v4455
    %v4556 = vpop.f32.mrf.mxu0
    %v4557 = vadd.f32 %v4487, %v4556
    %v4558 = vpop.f32.mrf.mxu0
    %v4559 = vadd.f32 %v4487, %v4558
    %4560 = vmatmul.bf16.gmra.mxu0 %v4456
    %v4561 = vpop.f32.mrf.mxu0
    %v4562 = vadd.f32 %v4487, %v4561
    %v4563 = vpop.f32.mrf.mxu0
    %v4564 = vadd.f32 %v4487, %v4563
    %4565 = vmatmul.bf16.gmra.mxu0 %v4457
    %v4566 = vpop.f32.mrf.mxu0
    %v4567 = vadd.f32 %v4487, %v4566
    %v4568 = vpop.f32.mrf.mxu0
    %v4569 = vadd.f32 %v4487, %v4568
    %4570 = vmatmul.bf16.gmra.mxu0 %v4458
    %v4571 = vpop.f32.mrf.mxu0
    %v4572 = vadd.f32 %v4487, %v4571
    %v4573 = vpop.f32.mrf.mxu0
    %v4574 = vadd.f32 %v4487, %v4573
    %4575 = vmatmul.bf16.gmra.mxu0 %v4459
    %v4576 = vpop.f32.mrf.mxu0
    %v4577 = vadd.f32 %v4487, %v4576
    %v4578 = vpop.f32.mrf.mxu0
    %v4579 = vadd.f32 %v4487, %v4578
    %4580 = vmatmul.bf16.gmra.mxu0 %v4460
    %v4581 = vpop.f32.mrf.mxu0
    %v4582 = vadd.f32 %v4487, %v4581
    %v4583 = vpop.f32.mrf.mxu0
    %v4584 = vadd.f32 %v4487, %v4583
    %4585 = vmatmul.bf16.gmra.mxu0 %v4461
    %v4586 = vpop.f32.mrf.mxu0
    %v4587 = vadd.f32 %v4487, %v4586
    %v4588 = vpop.f32.mrf.mxu0
    %v4589 = vadd.f32 %v4487, %v4588
    %4590 = vmatmul.bf16.gmra.mxu0 %v4462
    %v4591 = vpop.f32.mrf.mxu0
    %v4592 = vadd.f32 %v4487, %v4591
    %v4593 = vpop.f32.mrf.mxu0
    %v4594 = vadd.f32 %v4487, %v4593
    %4595 = vmatmul.bf16.gmra.mxu0 %v4463
    %v4596 = vpop.f32.mrf.mxu0
    %v4597 = vadd.f32 %v4487, %v4596
    %v4598 = vpop.f32.mrf.mxu0
    %v4599 = vadd.f32 %v4487, %v4598
    %4600 = vmatmul.bf16.gmra.mxu0 %v4464
    %v4601 = vpop.f32.mrf.mxu0
    %v4602 = vadd.f32 %v4487, %v4601
    %v4603 = vpop.f32.mrf.mxu0
    %v4604 = vadd.f32 %v4487, %v4603
    %4605 = vmatmul.bf16.gmra.mxu0 %v4465
    %v4606 = vpop.f32.mrf.mxu0
    %v4607 = vadd.f32 %v4487, %v4606
    %v4608 = vpop.f32.mrf.mxu0
    %v4609 = vadd.f32 %v4487, %v4608
    %4610 = vmatmul.bf16.gmra.mxu0 %v4466
    %v4611 = vpop.f32.mrf.mxu0
    %v4612 = vadd.f32 %v4487, %v4611
    %v4613 = vpop.f32.mrf.mxu0
    %v4614 = vadd.f32 %v4487, %v4613
    %4615 = vmatmul.bf16.gmra.mxu0 %v4467
    %v4616 = vpop.f32.mrf.mxu0
    %v4617 = vadd.f32 %v4487, %v4616
    %v4618 = vpop.f32.mrf.mxu0
    %v4619 = vadd.f32 %v4487, %v4618
    %4620 = vmatmul.bf16.gmra.mxu0 %v4468
    %v4621 = vpop.f32.mrf.mxu0
    %v4622 = vadd.f32 %v4487, %v4621
    %v4623 = vpop.f32.mrf.mxu0
    %v4624 = vadd.f32 %v4487, %v4623
    %4625 = vdwg.mxu0
    %v4626 = vmul.f32 %v4547, 0.5
    %v4627 = vmul.f32 %v4549, 0.5
    %v4628 = vmul.f32 %v4552, 0.5
    %v4629 = vmul.f32 %v4554, 0.5
    %v4630 = vmul.f32 %v4557, 0.5
    %v4631 = vmul.f32 %v4559, 0.5
    %v4632 = vmul.f32 %v4562, 0.5
    %v4633 = vmul.f32 %v4564, 0.5
    %v4634 = vmul.f32 %v4567, 0.5
    %v4635 = vmul.f32 %v4569, 0.5
    %v4636 = vmul.f32 %v4572, 0.5
    %v4637 = vmul.f32 %v4574, 0.5
    %v4638 = vmul.f32 %v4577, 0.5
    %v4639 = vmul.f32 %v4579, 0.5
    %v4640 = vmul.f32 %v4582, 0.5
    %v4641 = vmul.f32 %v4584, 0.5
    %v4642 = vmul.f32 %v4587, 0.5
    %v4643 = vmul.f32 %v4589, 0.5
    %v4644 = vmul.f32 %v4592, 0.5
    %v4645 = vmul.f32 %v4594, 0.5
    %v4646 = vmul.f32 %v4597, 0.5
    %v4647 = vmul.f32 %v4599, 0.5
    %v4648 = vmul.f32 %v4602, 0.5
    %v4649 = vmul.f32 %v4604, 0.5
    %v4650 = vmul.f32 %v4607, 0.5
    %v4651 = vmul.f32 %v4609, 0.5
    %v4652 = vmul.f32 %v4612, 0.5
    %v4653 = vmul.f32 %v4614, 0.5
    %v4654 = vmul.f32 %v4617, 0.5
    %v4655 = vmul.f32 %v4619, 0.5
    %v4656 = vmul.f32 %v4622, 0.5
    %v4657 = vmul.f32 %v4624, 0.5
    %v4658 = vmul.f32 %v4547, 0.70710677
    %v4659 = vmul.f32 %v4549, 0.70710677
    %v4660 = vmul.f32 %v4552, 0.70710677
    %v4661 = vmul.f32 %v4554, 0.70710677
    %v4662 = vmul.f32 %v4557, 0.70710677
    %v4663 = vmul.f32 %v4559, 0.70710677
    %v4664 = vmul.f32 %v4562, 0.70710677
    %v4665 = vmul.f32 %v4564, 0.70710677
    %v4666 = vmul.f32 %v4567, 0.70710677
    %v4667 = vmul.f32 %v4569, 0.70710677
    %v4668 = vmul.f32 %v4572, 0.70710677
    %v4669 = vmul.f32 %v4574, 0.70710677
    %v4670 = vmul.f32 %v4577, 0.70710677
    %v4671 = vmul.f32 %v4579, 0.70710677
    %v4672 = vmul.f32 %v4582, 0.70710677
    %v4673 = vmul.f32 %v4584, 0.70710677
    %v4674 = vmul.f32 %v4587, 0.70710677
    %v4675 = vmul.f32 %v4589, 0.70710677
    %v4676 = vmul.f32 %v4592, 0.70710677
    %v4677 = vmul.f32 %v4594, 0.70710677
    %v4678 = vmul.f32 %v4597, 0.70710677
    %v4679 = vmul.f32 %v4599, 0.70710677
    %v4680 = vmul.f32 %v4602, 0.70710677
    %v4681 = vmul.f32 %v4604, 0.70710677
    %v4682 = vmul.f32 %v4607, 0.70710677
    %v4683 = vmul.f32 %v4609, 0.70710677
    %v4684 = vmul.f32 %v4612, 0.70710677
    %v4685 = vmul.f32 %v4614, 0.70710677
    %v4686 = vmul.f32 %v4617, 0.70710677
    %v4687 = vmul.f32 %v4619, 0.70710677
    %v4688 = vmul.f32 %v4622, 0.70710677
    %v4689 = vmul.f32 %v4624, 0.70710677
    %v4690 = vand.u32 2147483647, %v4658
    %v4691 = vand.u32 2147483647, %v4659
    %v4692 = vand.u32 2147483647, %v4660
    %v4693 = vand.u32 2147483647, %v4661
    %v4694 = vand.u32 2147483647, %v4662
    %v4695 = vand.u32 2147483647, %v4663
    %v4696 = vand.u32 2147483647, %v4664
    %v4697 = vand.u32 2147483647, %v4665
    %v4698 = vand.u32 2147483647, %v4666
    %v4699 = vand.u32 2147483647, %v4667
    %v4700 = vand.u32 2147483647, %v4668
    %v4701 = vand.u32 2147483647, %v4669
    %v4702 = vand.u32 2147483647, %v4670
    %v4703 = vand.u32 2147483647, %v4671
    %v4704 = vand.u32 2147483647, %v4672
    %v4705 = vand.u32 2147483647, %v4673
    %v4706 = vand.u32 2147483647, %v4674
    %v4707 = vand.u32 2147483647, %v4675
    %v4708 = vand.u32 2147483647, %v4676
    %v4709 = vand.u32 2147483647, %v4677
    %v4710 = vand.u32 2147483647, %v4678
    %v4711 = vand.u32 2147483647, %v4679
    %v4712 = vand.u32 2147483647, %v4680
    %v4713 = vand.u32 2147483647, %v4681
    %v4714 = vand.u32 2147483647, %v4682
    %v4715 = vand.u32 2147483647, %v4683
    %v4716 = vand.u32 2147483647, %v4684
    %v4717 = vand.u32 2147483647, %v4685
    %v4718 = vand.u32 2147483647, %v4686
    %v4719 = vand.u32 2147483647, %v4687
    %v4720 = vand.u32 2147483647, %v4688
    %v4721 = vand.u32 2147483647, %v4689
    %v4722 = vmul.f32 %v4690, 0.3275911
    %v4723 = vmul.f32 %v4691, 0.3275911
    %v4724 = vmul.f32 %v4692, 0.3275911
    %v4725 = vmul.f32 %v4693, 0.3275911
    %v4726 = vmul.f32 %v4694, 0.3275911
    %v4727 = vmul.f32 %v4695, 0.3275911
    %v4728 = vmul.f32 %v4696, 0.3275911
    %v4729 = vmul.f32 %v4697, 0.3275911
    %v4730 = vmul.f32 %v4698, 0.3275911
    %v4731 = vmul.f32 %v4699, 0.3275911
    %v4732 = vmul.f32 %v4700, 0.3275911
    %v4733 = vmul.f32 %v4701, 0.3275911
    %v4734 = vmul.f32 %v4702, 0.3275911
    %v4735 = vmul.f32 %v4703, 0.3275911
    %v4736 = vmul.f32 %v4704, 0.3275911
    %v4737 = vmul.f32 %v4705, 0.3275911
    %v4738 = vmul.f32 %v4706, 0.3275911
    %v4739 = vmul.f32 %v4707, 0.3275911
    %v4740 = vmul.f32 %v4708, 0.3275911
    %v4741 = vmul.f32 %v4709, 0.3275911
    %v4742 = vmul.f32 %v4710, 0.3275911
    %v4743 = vmul.f32 %v4711, 0.3275911
    %v4744 = vmul.f32 %v4712, 0.3275911
    %v4745 = vmul.f32 %v4713, 0.3275911
    %v4746 = vmul.f32 %v4714, 0.3275911
    %v4747 = vmul.f32 %v4715, 0.3275911
    %v4748 = vmul.f32 %v4716, 0.3275911
    %v4749 = vmul.f32 %v4717, 0.3275911
    %v4750 = vmul.f32 %v4718, 0.3275911
    %v4751 = vmul.f32 %v4719, 0.3275911
    %v4752 = vmul.f32 %v4720, 0.3275911
    %v4753 = vmul.f32 %v4721, 0.3275911
    %v4754 = vadd.f32 %v4722, 1.0
    %v4755 = vadd.f32 %v4723, 1.0
    %v4756 = vadd.f32 %v4724, 1.0
    %v4757 = vadd.f32 %v4725, 1.0
    %v4758 = vadd.f32 %v4726, 1.0
    %v4759 = vadd.f32 %v4727, 1.0
    %v4760 = vadd.f32 %v4728, 1.0
    %v4761 = vadd.f32 %v4729, 1.0
    %v4762 = vadd.f32 %v4730, 1.0
    %v4763 = vadd.f32 %v4731, 1.0
    %v4764 = vadd.f32 %v4732, 1.0
    %v4765 = vadd.f32 %v4733, 1.0
    %v4766 = vadd.f32 %v4734, 1.0
    %v4767 = vadd.f32 %v4735, 1.0
    %v4768 = vadd.f32 %v4736, 1.0
    %v4769 = vadd.f32 %v4737, 1.0
    %v4770 = vadd.f32 %v4738, 1.0
    %v4771 = vadd.f32 %v4739, 1.0
    %v4772 = vadd.f32 %v4740, 1.0
    %v4773 = vadd.f32 %v4741, 1.0
    %v4774 = vadd.f32 %v4742, 1.0
    %v4775 = vadd.f32 %v4743, 1.0
    %v4776 = vadd.f32 %v4744, 1.0
    %v4777 = vadd.f32 %v4745, 1.0
    %v4778 = vadd.f32 %v4746, 1.0
    %v4779 = vadd.f32 %v4747, 1.0
    %v4780 = vadd.f32 %v4748, 1.0
    %v4781 = vadd.f32 %v4749, 1.0
    %v4782 = vadd.f32 %v4750, 1.0
    %v4783 = vadd.f32 %v4751, 1.0
    %v4784 = vadd.f32 %v4752, 1.0
    %v4785 = vadd.f32 %v4753, 1.0
    %v4786 = vrcp.pop %v4754
    %v4787 = vmul.f32 %v4754, %v4786
    %v4788 = vsub.f32 1.0, %v4787
    %v4789 = vmul.f32 %v4786, %v4788
    %v4790 = vadd.f32 %v4786, %v4789
    %vm4791 = vweird.f32 %v4754
    %vm4792 = vweird.f32 %v4786
    %vm4793 = vmor %vm4791, %vm4792
    %v4794 = vsel %vm4793, %v4786, %v4790
    %v4795 = vand.u32 2147483647, %v4754
    %vm4796 = vcmp.eq.f32.partialorder %v4795, 8.507059e+37
    %v4797 = vand.u32 %v4754, 2147483648
    %v4798 = vor.u32 1.1754944e-38, %v4797
    %v4799 = vsel %vm4796, %v4798, %v4794
    %v4800 = vmul.f32 1.0, %v4799
    %v4801 = vrcp.pop %v4755
    %v4802 = vmul.f32 %v4755, %v4801
    %v4803 = vsub.f32 1.0, %v4802
    %v4804 = vmul.f32 %v4801, %v4803
    %v4805 = vadd.f32 %v4801, %v4804
    %vm4806 = vweird.f32 %v4755
    %vm4807 = vweird.f32 %v4801
    %vm4808 = vmor %vm4806, %vm4807
    %v4809 = vsel %vm4808, %v4801, %v4805
    %v4810 = vand.u32 2147483647, %v4755
    %vm4811 = vcmp.eq.f32.partialorder %v4810, 8.507059e+37
    %v4812 = vand.u32 %v4755, 2147483648
    %v4813 = vor.u32 1.1754944e-38, %v4812
    %v4814 = vsel %vm4811, %v4813, %v4809
    %v4815 = vmul.f32 1.0, %v4814
    %v4816 = vrcp.pop %v4756
    %v4817 = vmul.f32 %v4756, %v4816
    %v4818 = vsub.f32 1.0, %v4817
    %v4819 = vmul.f32 %v4816, %v4818
    %v4820 = vadd.f32 %v4816, %v4819
    %vm4821 = vweird.f32 %v4756
    %vm4822 = vweird.f32 %v4816
    %vm4823 = vmor %vm4821, %vm4822
    %v4824 = vsel %vm4823, %v4816, %v4820
    %v4825 = vand.u32 2147483647, %v4756
    %vm4826 = vcmp.eq.f32.partialorder %v4825, 8.507059e+37
    %v4827 = vand.u32 %v4756, 2147483648
    %v4828 = vor.u32 1.1754944e-38, %v4827
    %v4829 = vsel %vm4826, %v4828, %v4824
    %v4830 = vmul.f32 1.0, %v4829
    %v4831 = vrcp.pop %v4757
    %v4832 = vmul.f32 %v4757, %v4831
    %v4833 = vsub.f32 1.0, %v4832
    %v4834 = vmul.f32 %v4831, %v4833
    %v4835 = vadd.f32 %v4831, %v4834
    %vm4836 = vweird.f32 %v4757
    %vm4837 = vweird.f32 %v4831
    %vm4838 = vmor %vm4836, %vm4837
    %v4839 = vsel %vm4838, %v4831, %v4835
    %v4840 = vand.u32 2147483647, %v4757
    %vm4841 = vcmp.eq.f32.partialorder %v4840, 8.507059e+37
    %v4842 = vand.u32 %v4757, 2147483648
    %v4843 = vor.u32 1.1754944e-38, %v4842
    %v4844 = vsel %vm4841, %v4843, %v4839
    %v4845 = vmul.f32 1.0, %v4844
    %v4846 = vrcp.pop %v4758
    %v4847 = vmul.f32 %v4758, %v4846
    %v4848 = vsub.f32 1.0, %v4847
    %v4849 = vmul.f32 %v4846, %v4848
    %v4850 = vadd.f32 %v4846, %v4849
    %vm4851 = vweird.f32 %v4758
    %vm4852 = vweird.f32 %v4846
    %vm4853 = vmor %vm4851, %vm4852
    %v4854 = vsel %vm4853, %v4846, %v4850
    %v4855 = vand.u32 2147483647, %v4758
    %vm4856 = vcmp.eq.f32.partialorder %v4855, 8.507059e+37
    %v4857 = vand.u32 %v4758, 2147483648
    %v4858 = vor.u32 1.1754944e-38, %v4857
    %v4859 = vsel %vm4856, %v4858, %v4854
    %v4860 = vmul.f32 1.0, %v4859
    %v4861 = vrcp.pop %v4759
    %v4862 = vmul.f32 %v4759, %v4861
    %v4863 = vsub.f32 1.0, %v4862
    %v4864 = vmul.f32 %v4861, %v4863
    %v4865 = vadd.f32 %v4861, %v4864
    %vm4866 = vweird.f32 %v4759
    %vm4867 = vweird.f32 %v4861
    %vm4868 = vmor %vm4866, %vm4867
    %v4869 = vsel %vm4868, %v4861, %v4865
    %v4870 = vand.u32 2147483647, %v4759
    %vm4871 = vcmp.eq.f32.partialorder %v4870, 8.507059e+37
    %v4872 = vand.u32 %v4759, 2147483648
    %v4873 = vor.u32 1.1754944e-38, %v4872
    %v4874 = vsel %vm4871, %v4873, %v4869
    %v4875 = vmul.f32 1.0, %v4874
    %v4876 = vrcp.pop %v4760
    %v4877 = vmul.f32 %v4760, %v4876
    %v4878 = vsub.f32 1.0, %v4877
    %v4879 = vmul.f32 %v4876, %v4878
    %v4880 = vadd.f32 %v4876, %v4879
    %vm4881 = vweird.f32 %v4760
    %vm4882 = vweird.f32 %v4876
    %vm4883 = vmor %vm4881, %vm4882
    %v4884 = vsel %vm4883, %v4876, %v4880
    %v4885 = vand.u32 2147483647, %v4760
    %vm4886 = vcmp.eq.f32.partialorder %v4885, 8.507059e+37
    %v4887 = vand.u32 %v4760, 2147483648
    %v4888 = vor.u32 1.1754944e-38, %v4887
    %v4889 = vsel %vm4886, %v4888, %v4884
    %v4890 = vmul.f32 1.0, %v4889
    %v4891 = vrcp.pop %v4761
    %v4892 = vmul.f32 %v4761, %v4891
    %v4893 = vsub.f32 1.0, %v4892
    %v4894 = vmul.f32 %v4891, %v4893
    %v4895 = vadd.f32 %v4891, %v4894
    %vm4896 = vweird.f32 %v4761
    %vm4897 = vweird.f32 %v4891
    %vm4898 = vmor %vm4896, %vm4897
    %v4899 = vsel %vm4898, %v4891, %v4895
    %v4900 = vand.u32 2147483647, %v4761
    %vm4901 = vcmp.eq.f32.partialorder %v4900, 8.507059e+37
    %v4902 = vand.u32 %v4761, 2147483648
    %v4903 = vor.u32 1.1754944e-38, %v4902
    %v4904 = vsel %vm4901, %v4903, %v4899
    %v4905 = vmul.f32 1.0, %v4904
    %v4906 = vrcp.pop %v4762
    %v4907 = vmul.f32 %v4762, %v4906
    %v4908 = vsub.f32 1.0, %v4907
    %v4909 = vmul.f32 %v4906, %v4908
    %v4910 = vadd.f32 %v4906, %v4909
    %vm4911 = vweird.f32 %v4762
    %vm4912 = vweird.f32 %v4906
    %vm4913 = vmor %vm4911, %vm4912
    %v4914 = vsel %vm4913, %v4906, %v4910
    %v4915 = vand.u32 2147483647, %v4762
    %vm4916 = vcmp.eq.f32.partialorder %v4915, 8.507059e+37
    %v4917 = vand.u32 %v4762, 2147483648
    %v4918 = vor.u32 1.1754944e-38, %v4917
    %v4919 = vsel %vm4916, %v4918, %v4914
    %v4920 = vmul.f32 1.0, %v4919
    %v4921 = vrcp.pop %v4763
    %v4922 = vmul.f32 %v4763, %v4921
    %v4923 = vsub.f32 1.0, %v4922
    %v4924 = vmul.f32 %v4921, %v4923
    %v4925 = vadd.f32 %v4921, %v4924
    %vm4926 = vweird.f32 %v4763
    %vm4927 = vweird.f32 %v4921
    %vm4928 = vmor %vm4926, %vm4927
    %v4929 = vsel %vm4928, %v4921, %v4925
    %v4930 = vand.u32 2147483647, %v4763
    %vm4931 = vcmp.eq.f32.partialorder %v4930, 8.507059e+37
    %v4932 = vand.u32 %v4763, 2147483648
    %v4933 = vor.u32 1.1754944e-38, %v4932
    %v4934 = vsel %vm4931, %v4933, %v4929
    %v4935 = vmul.f32 1.0, %v4934
    %v4936 = vrcp.pop %v4764
    %v4937 = vmul.f32 %v4764, %v4936
    %v4938 = vsub.f32 1.0, %v4937
    %v4939 = vmul.f32 %v4936, %v4938
    %v4940 = vadd.f32 %v4936, %v4939
    %vm4941 = vweird.f32 %v4764
    %vm4942 = vweird.f32 %v4936
    %vm4943 = vmor %vm4941, %vm4942
    %v4944 = vsel %vm4943, %v4936, %v4940
    %v4945 = vand.u32 2147483647, %v4764
    %vm4946 = vcmp.eq.f32.partialorder %v4945, 8.507059e+37
    %v4947 = vand.u32 %v4764, 2147483648
    %v4948 = vor.u32 1.1754944e-38, %v4947
    %v4949 = vsel %vm4946, %v4948, %v4944
    %v4950 = vmul.f32 1.0, %v4949
    %v4951 = vrcp.pop %v4765
    %v4952 = vmul.f32 %v4765, %v4951
    %v4953 = vsub.f32 1.0, %v4952
    %v4954 = vmul.f32 %v4951, %v4953
    %v4955 = vadd.f32 %v4951, %v4954
    %vm4956 = vweird.f32 %v4765
    %vm4957 = vweird.f32 %v4951
    %vm4958 = vmor %vm4956, %vm4957
    %v4959 = vsel %vm4958, %v4951, %v4955
    %v4960 = vand.u32 2147483647, %v4765
    %vm4961 = vcmp.eq.f32.partialorder %v4960, 8.507059e+37
    %v4962 = vand.u32 %v4765, 2147483648
    %v4963 = vor.u32 1.1754944e-38, %v4962
    %v4964 = vsel %vm4961, %v4963, %v4959
    %v4965 = vmul.f32 1.0, %v4964
    %v4966 = vrcp.pop %v4766
    %v4967 = vmul.f32 %v4766, %v4966
    %v4968 = vsub.f32 1.0, %v4967
    %v4969 = vmul.f32 %v4966, %v4968
    %v4970 = vadd.f32 %v4966, %v4969
    %vm4971 = vweird.f32 %v4766
    %vm4972 = vweird.f32 %v4966
    %vm4973 = vmor %vm4971, %vm4972
    %v4974 = vsel %vm4973, %v4966, %v4970
    %v4975 = vand.u32 2147483647, %v4766
    %vm4976 = vcmp.eq.f32.partialorder %v4975, 8.507059e+37
    %v4977 = vand.u32 %v4766, 2147483648
    %v4978 = vor.u32 1.1754944e-38, %v4977
    %v4979 = vsel %vm4976, %v4978, %v4974
    %v4980 = vmul.f32 1.0, %v4979
    %v4981 = vrcp.pop %v4767
    %v4982 = vmul.f32 %v4767, %v4981
    %v4983 = vsub.f32 1.0, %v4982
    %v4984 = vmul.f32 %v4981, %v4983
    %v4985 = vadd.f32 %v4981, %v4984
    %vm4986 = vweird.f32 %v4767
    %vm4987 = vweird.f32 %v4981
    %vm4988 = vmor %vm4986, %vm4987
    %v4989 = vsel %vm4988, %v4981, %v4985
    %v4990 = vand.u32 2147483647, %v4767
    %vm4991 = vcmp.eq.f32.partialorder %v4990, 8.507059e+37
    %v4992 = vand.u32 %v4767, 2147483648
    %v4993 = vor.u32 1.1754944e-38, %v4992
    %v4994 = vsel %vm4991, %v4993, %v4989
    %v4995 = vmul.f32 1.0, %v4994
    %v4996 = vrcp.pop %v4768
    %v4997 = vmul.f32 %v4768, %v4996
    %v4998 = vsub.f32 1.0, %v4997
    %v4999 = vmul.f32 %v4996, %v4998
    %v5000 = vadd.f32 %v4996, %v4999
    %vm5001 = vweird.f32 %v4768
    %vm5002 = vweird.f32 %v4996
    %vm5003 = vmor %vm5001, %vm5002
    %v5004 = vsel %vm5003, %v4996, %v5000
    %v5005 = vand.u32 2147483647, %v4768
    %vm5006 = vcmp.eq.f32.partialorder %v5005, 8.507059e+37
    %v5007 = vand.u32 %v4768, 2147483648
    %v5008 = vor.u32 1.1754944e-38, %v5007
    %v5009 = vsel %vm5006, %v5008, %v5004
    %v5010 = vmul.f32 1.0, %v5009
    %v5011 = vrcp.pop %v4769
    %v5012 = vmul.f32 %v4769, %v5011
    %v5013 = vsub.f32 1.0, %v5012
    %v5014 = vmul.f32 %v5011, %v5013
    %v5015 = vadd.f32 %v5011, %v5014
    %vm5016 = vweird.f32 %v4769
    %vm5017 = vweird.f32 %v5011
    %vm5018 = vmor %vm5016, %vm5017
    %v5019 = vsel %vm5018, %v5011, %v5015
    %v5020 = vand.u32 2147483647, %v4769
    %vm5021 = vcmp.eq.f32.partialorder %v5020, 8.507059e+37
    %v5022 = vand.u32 %v4769, 2147483648
    %v5023 = vor.u32 1.1754944e-38, %v5022
    %v5024 = vsel %vm5021, %v5023, %v5019
    %v5025 = vmul.f32 1.0, %v5024
    %v5026 = vrcp.pop %v4770
    %v5027 = vmul.f32 %v4770, %v5026
    %v5028 = vsub.f32 1.0, %v5027
    %v5029 = vmul.f32 %v5026, %v5028
    %v5030 = vadd.f32 %v5026, %v5029
    %vm5031 = vweird.f32 %v4770
    %vm5032 = vweird.f32 %v5026
    %vm5033 = vmor %vm5031, %vm5032
    %v5034 = vsel %vm5033, %v5026, %v5030
    %v5035 = vand.u32 2147483647, %v4770
    %vm5036 = vcmp.eq.f32.partialorder %v5035, 8.507059e+37
    %v5037 = vand.u32 %v4770, 2147483648
    %v5038 = vor.u32 1.1754944e-38, %v5037
    %v5039 = vsel %vm5036, %v5038, %v5034
    %v5040 = vmul.f32 1.0, %v5039
    %v5041 = vrcp.pop %v4771
    %v5042 = vmul.f32 %v4771, %v5041
    %v5043 = vsub.f32 1.0, %v5042
    %v5044 = vmul.f32 %v5041, %v5043
    %v5045 = vadd.f32 %v5041, %v5044
    %vm5046 = vweird.f32 %v4771
    %vm5047 = vweird.f32 %v5041
    %vm5048 = vmor %vm5046, %vm5047
    %v5049 = vsel %vm5048, %v5041, %v5045
    %v5050 = vand.u32 2147483647, %v4771
    %vm5051 = vcmp.eq.f32.partialorder %v5050, 8.507059e+37
    %v5052 = vand.u32 %v4771, 2147483648
    %v5053 = vor.u32 1.1754944e-38, %v5052
    %v5054 = vsel %vm5051, %v5053, %v5049
    %v5055 = vmul.f32 1.0, %v5054
    %v5056 = vrcp.pop %v4772
    %v5057 = vmul.f32 %v4772, %v5056
    %v5058 = vsub.f32 1.0, %v5057
    %v5059 = vmul.f32 %v5056, %v5058
    %v5060 = vadd.f32 %v5056, %v5059
    %vm5061 = vweird.f32 %v4772
    %vm5062 = vweird.f32 %v5056
    %vm5063 = vmor %vm5061, %vm5062
    %v5064 = vsel %vm5063, %v5056, %v5060
    %v5065 = vand.u32 2147483647, %v4772
    %vm5066 = vcmp.eq.f32.partialorder %v5065, 8.507059e+37
    %v5067 = vand.u32 %v4772, 2147483648
    %v5068 = vor.u32 1.1754944e-38, %v5067
    %v5069 = vsel %vm5066, %v5068, %v5064
    %v5070 = vmul.f32 1.0, %v5069
    %v5071 = vrcp.pop %v4773
    %v5072 = vmul.f32 %v4773, %v5071
    %v5073 = vsub.f32 1.0, %v5072
    %v5074 = vmul.f32 %v5071, %v5073
    %v5075 = vadd.f32 %v5071, %v5074
    %vm5076 = vweird.f32 %v4773
    %vm5077 = vweird.f32 %v5071
    %vm5078 = vmor %vm5076, %vm5077
    %v5079 = vsel %vm5078, %v5071, %v5075
    %v5080 = vand.u32 2147483647, %v4773
    %vm5081 = vcmp.eq.f32.partialorder %v5080, 8.507059e+37
    %v5082 = vand.u32 %v4773, 2147483648
    %v5083 = vor.u32 1.1754944e-38, %v5082
    %v5084 = vsel %vm5081, %v5083, %v5079
    %v5085 = vmul.f32 1.0, %v5084
    %v5086 = vrcp.pop %v4774
    %v5087 = vmul.f32 %v4774, %v5086
    %v5088 = vsub.f32 1.0, %v5087
    %v5089 = vmul.f32 %v5086, %v5088
    %v5090 = vadd.f32 %v5086, %v5089
    %vm5091 = vweird.f32 %v4774
    %vm5092 = vweird.f32 %v5086
    %vm5093 = vmor %vm5091, %vm5092
    %v5094 = vsel %vm5093, %v5086, %v5090
    %v5095 = vand.u32 2147483647, %v4774
    %vm5096 = vcmp.eq.f32.partialorder %v5095, 8.507059e+37
    %v5097 = vand.u32 %v4774, 2147483648
    %v5098 = vor.u32 1.1754944e-38, %v5097
    %v5099 = vsel %vm5096, %v5098, %v5094
    %v5100 = vmul.f32 1.0, %v5099
    %v5101 = vrcp.pop %v4775
    %v5102 = vmul.f32 %v4775, %v5101
    %v5103 = vsub.f32 1.0, %v5102
    %v5104 = vmul.f32 %v5101, %v5103
    %v5105 = vadd.f32 %v5101, %v5104
    %vm5106 = vweird.f32 %v4775
    %vm5107 = vweird.f32 %v5101
    %vm5108 = vmor %vm5106, %vm5107
    %v5109 = vsel %vm5108, %v5101, %v5105
    %v5110 = vand.u32 2147483647, %v4775
    %vm5111 = vcmp.eq.f32.partialorder %v5110, 8.507059e+37
    %v5112 = vand.u32 %v4775, 2147483648
    %v5113 = vor.u32 1.1754944e-38, %v5112
    %v5114 = vsel %vm5111, %v5113, %v5109
    %v5115 = vmul.f32 1.0, %v5114
    %v5116 = vrcp.pop %v4776
    %v5117 = vmul.f32 %v4776, %v5116
    %v5118 = vsub.f32 1.0, %v5117
    %v5119 = vmul.f32 %v5116, %v5118
    %v5120 = vadd.f32 %v5116, %v5119
    %vm5121 = vweird.f32 %v4776
    %vm5122 = vweird.f32 %v5116
    %vm5123 = vmor %vm5121, %vm5122
    %v5124 = vsel %vm5123, %v5116, %v5120
    %v5125 = vand.u32 2147483647, %v4776
    %vm5126 = vcmp.eq.f32.partialorder %v5125, 8.507059e+37
    %v5127 = vand.u32 %v4776, 2147483648
    %v5128 = vor.u32 1.1754944e-38, %v5127
    %v5129 = vsel %vm5126, %v5128, %v5124
    %v5130 = vmul.f32 1.0, %v5129
    %v5131 = vrcp.pop %v4777
    %v5132 = vmul.f32 %v4777, %v5131
    %v5133 = vsub.f32 1.0, %v5132
    %v5134 = vmul.f32 %v5131, %v5133
    %v5135 = vadd.f32 %v5131, %v5134
    %vm5136 = vweird.f32 %v4777
    %vm5137 = vweird.f32 %v5131
    %vm5138 = vmor %vm5136, %vm5137
    %v5139 = vsel %vm5138, %v5131, %v5135
    %v5140 = vand.u32 2147483647, %v4777
    %vm5141 = vcmp.eq.f32.partialorder %v5140, 8.507059e+37
    %v5142 = vand.u32 %v4777, 2147483648
    %v5143 = vor.u32 1.1754944e-38, %v5142
    %v5144 = vsel %vm5141, %v5143, %v5139
    %v5145 = vmul.f32 1.0, %v5144
    %v5146 = vrcp.pop %v4778
    %v5147 = vmul.f32 %v4778, %v5146
    %v5148 = vsub.f32 1.0, %v5147
    %v5149 = vmul.f32 %v5146, %v5148
    %v5150 = vadd.f32 %v5146, %v5149
    %vm5151 = vweird.f32 %v4778
    %vm5152 = vweird.f32 %v5146
    %vm5153 = vmor %vm5151, %vm5152
    %v5154 = vsel %vm5153, %v5146, %v5150
    %v5155 = vand.u32 2147483647, %v4778
    %vm5156 = vcmp.eq.f32.partialorder %v5155, 8.507059e+37
    %v5157 = vand.u32 %v4778, 2147483648
    %v5158 = vor.u32 1.1754944e-38, %v5157
    %v5159 = vsel %vm5156, %v5158, %v5154
    %v5160 = vmul.f32 1.0, %v5159
    %v5161 = vrcp.pop %v4779
    %v5162 = vmul.f32 %v4779, %v5161
    %v5163 = vsub.f32 1.0, %v5162
    %v5164 = vmul.f32 %v5161, %v5163
    %v5165 = vadd.f32 %v5161, %v5164
    %vm5166 = vweird.f32 %v4779
    %vm5167 = vweird.f32 %v5161
    %vm5168 = vmor %vm5166, %vm5167
    %v5169 = vsel %vm5168, %v5161, %v5165
    %v5170 = vand.u32 2147483647, %v4779
    %vm5171 = vcmp.eq.f32.partialorder %v5170, 8.507059e+37
    %v5172 = vand.u32 %v4779, 2147483648
    %v5173 = vor.u32 1.1754944e-38, %v5172
    %v5174 = vsel %vm5171, %v5173, %v5169
    %v5175 = vmul.f32 1.0, %v5174
    %v5176 = vrcp.pop %v4780
    %v5177 = vmul.f32 %v4780, %v5176
    %v5178 = vsub.f32 1.0, %v5177
    %v5179 = vmul.f32 %v5176, %v5178
    %v5180 = vadd.f32 %v5176, %v5179
    %vm5181 = vweird.f32 %v4780
    %vm5182 = vweird.f32 %v5176
    %vm5183 = vmor %vm5181, %vm5182
    %v5184 = vsel %vm5183, %v5176, %v5180
    %v5185 = vand.u32 2147483647, %v4780
    %vm5186 = vcmp.eq.f32.partialorder %v5185, 8.507059e+37
    %v5187 = vand.u32 %v4780, 2147483648
    %v5188 = vor.u32 1.1754944e-38, %v5187
    %v5189 = vsel %vm5186, %v5188, %v5184
    %v5190 = vmul.f32 1.0, %v5189
    %v5191 = vrcp.pop %v4781
    %v5192 = vmul.f32 %v4781, %v5191
    %v5193 = vsub.f32 1.0, %v5192
    %v5194 = vmul.f32 %v5191, %v5193
    %v5195 = vadd.f32 %v5191, %v5194
    %vm5196 = vweird.f32 %v4781
    %vm5197 = vweird.f32 %v5191
    %vm5198 = vmor %vm5196, %vm5197
    %v5199 = vsel %vm5198, %v5191, %v5195
    %v5200 = vand.u32 2147483647, %v4781
    %vm5201 = vcmp.eq.f32.partialorder %v5200, 8.507059e+37
    %v5202 = vand.u32 %v4781, 2147483648
    %v5203 = vor.u32 1.1754944e-38, %v5202
    %v5204 = vsel %vm5201, %v5203, %v5199
    %v5205 = vmul.f32 1.0, %v5204
    %v5206 = vrcp.pop %v4782
    %v5207 = vmul.f32 %v4782, %v5206
    %v5208 = vsub.f32 1.0, %v5207
    %v5209 = vmul.f32 %v5206, %v5208
    %v5210 = vadd.f32 %v5206, %v5209
    %vm5211 = vweird.f32 %v4782
    %vm5212 = vweird.f32 %v5206
    %vm5213 = vmor %vm5211, %vm5212
    %v5214 = vsel %vm5213, %v5206, %v5210
    %v5215 = vand.u32 2147483647, %v4782
    %vm5216 = vcmp.eq.f32.partialorder %v5215, 8.507059e+37
    %v5217 = vand.u32 %v4782, 2147483648
    %v5218 = vor.u32 1.1754944e-38, %v5217
    %v5219 = vsel %vm5216, %v5218, %v5214
    %v5220 = vmul.f32 1.0, %v5219
    %v5221 = vrcp.pop %v4783
    %v5222 = vmul.f32 %v4783, %v5221
    %v5223 = vsub.f32 1.0, %v5222
    %v5224 = vmul.f32 %v5221, %v5223
    %v5225 = vadd.f32 %v5221, %v5224
    %vm5226 = vweird.f32 %v4783
    %vm5227 = vweird.f32 %v5221
    %vm5228 = vmor %vm5226, %vm5227
    %v5229 = vsel %vm5228, %v5221, %v5225
    %v5230 = vand.u32 2147483647, %v4783
    %vm5231 = vcmp.eq.f32.partialorder %v5230, 8.507059e+37
    %v5232 = vand.u32 %v4783, 2147483648
    %v5233 = vor.u32 1.1754944e-38, %v5232
    %v5234 = vsel %vm5231, %v5233, %v5229
    %v5235 = vmul.f32 1.0, %v5234
    %v5236 = vrcp.pop %v4784
    %v5237 = vmul.f32 %v4784, %v5236
    %v5238 = vsub.f32 1.0, %v5237
    %v5239 = vmul.f32 %v5236, %v5238
    %v5240 = vadd.f32 %v5236, %v5239
    %vm5241 = vweird.f32 %v4784
    %vm5242 = vweird.f32 %v5236
    %vm5243 = vmor %vm5241, %vm5242
    %v5244 = vsel %vm5243, %v5236, %v5240
    %v5245 = vand.u32 2147483647, %v4784
    %vm5246 = vcmp.eq.f32.partialorder %v5245, 8.507059e+37
    %v5247 = vand.u32 %v4784, 2147483648
    %v5248 = vor.u32 1.1754944e-38, %v5247
    %v5249 = vsel %vm5246, %v5248, %v5244
    %v5250 = vmul.f32 1.0, %v5249
    %v5251 = vrcp.pop %v4785
    %v5252 = vmul.f32 %v4785, %v5251
    %v5253 = vsub.f32 1.0, %v5252
    %v5254 = vmul.f32 %v5251, %v5253
    %v5255 = vadd.f32 %v5251, %v5254
    %vm5256 = vweird.f32 %v4785
    %vm5257 = vweird.f32 %v5251
    %vm5258 = vmor %vm5256, %vm5257
    %v5259 = vsel %vm5258, %v5251, %v5255
    %v5260 = vand.u32 2147483647, %v4785
    %vm5261 = vcmp.eq.f32.partialorder %v5260, 8.507059e+37
    %v5262 = vand.u32 %v4785, 2147483648
    %v5263 = vor.u32 1.1754944e-38, %v5262
    %v5264 = vsel %vm5261, %v5263, %v5259
    %v5265 = vmul.f32 1.0, %v5264
    %v5266 = vmul.f32 %v4800, 1.0614054
    %v5267 = vmul.f32 %v4815, 1.0614054
    %v5268 = vmul.f32 %v4830, 1.0614054
    %v5269 = vmul.f32 %v4845, 1.0614054
    %v5270 = vmul.f32 %v4860, 1.0614054
    %v5271 = vmul.f32 %v4875, 1.0614054
    %v5272 = vmul.f32 %v4890, 1.0614054
    %v5273 = vmul.f32 %v4905, 1.0614054
    %v5274 = vmul.f32 %v4920, 1.0614054
    %v5275 = vmul.f32 %v4935, 1.0614054
    %v5276 = vmul.f32 %v4950, 1.0614054
    %v5277 = vmul.f32 %v4965, 1.0614054
    %v5278 = vmul.f32 %v4980, 1.0614054
    %v5279 = vmul.f32 %v4995, 1.0614054
    %v5280 = vmul.f32 %v5010, 1.0614054
    %v5281 = vmul.f32 %v5025, 1.0614054
    %v5282 = vmul.f32 %v5040, 1.0614054
    %v5283 = vmul.f32 %v5055, 1.0614054
    %v5284 = vmul.f32 %v5070, 1.0614054
    %v5285 = vmul.f32 %v5085, 1.0614054
    %v5286 = vmul.f32 %v5100, 1.0614054
    %v5287 = vmul.f32 %v5115, 1.0614054
    %v5288 = vmul.f32 %v5130, 1.0614054
    %v5289 = vmul.f32 %v5145, 1.0614054
    %v5290 = vmul.f32 %v5160, 1.0614054
    %v5291 = vmul.f32 %v5175, 1.0614054
    %v5292 = vmul.f32 %v5190, 1.0614054
    %v5293 = vmul.f32 %v5205, 1.0614054
    %v5294 = vmul.f32 %v5220, 1.0614054
    %v5295 = vmul.f32 %v5235, 1.0614054
    %v5296 = vmul.f32 %v5250, 1.0614054
    %v5297 = vmul.f32 %v5265, 1.0614054
    %v5298 = vadd.f32 %v5266, -1.4531521
    %v5299 = vadd.f32 %v5267, -1.4531521
    %v5300 = vadd.f32 %v5268, -1.4531521
    %v5301 = vadd.f32 %v5269, -1.4531521
    %v5302 = vadd.f32 %v5270, -1.4531521
    %v5303 = vadd.f32 %v5271, -1.4531521
    %v5304 = vadd.f32 %v5272, -1.4531521
    %v5305 = vadd.f32 %v5273, -1.4531521
    %v5306 = vadd.f32 %v5274, -1.4531521
    %v5307 = vadd.f32 %v5275, -1.4531521
    %v5308 = vadd.f32 %v5276, -1.4531521
    %v5309 = vadd.f32 %v5277, -1.4531521
    %v5310 = vadd.f32 %v5278, -1.4531521
    %v5311 = vadd.f32 %v5279, -1.4531521
    %v5312 = vadd.f32 %v5280, -1.4531521
    %v5313 = vadd.f32 %v5281, -1.4531521
    %v5314 = vadd.f32 %v5282, -1.4531521
    %v5315 = vadd.f32 %v5283, -1.4531521
    %v5316 = vadd.f32 %v5284, -1.4531521
    %v5317 = vadd.f32 %v5285, -1.4531521
    %v5318 = vadd.f32 %v5286, -1.4531521
    %v5319 = vadd.f32 %v5287, -1.4531521
    %v5320 = vadd.f32 %v5288, -1.4531521
    %v5321 = vadd.f32 %v5289, -1.4531521
    %v5322 = vadd.f32 %v5290, -1.4531521
    %v5323 = vadd.f32 %v5291, -1.4531521
    %v5324 = vadd.f32 %v5292, -1.4531521
    %v5325 = vadd.f32 %v5293, -1.4531521
    %v5326 = vadd.f32 %v5294, -1.4531521
    %v5327 = vadd.f32 %v5295, -1.4531521
    %v5328 = vadd.f32 %v5296, -1.4531521
    %v5329 = vadd.f32 %v5297, -1.4531521
    %v5330 = vmul.f32 %v5298, %v4800
    %v5331 = vmul.f32 %v5299, %v4815
    %v5332 = vmul.f32 %v5300, %v4830
    %v5333 = vmul.f32 %v5301, %v4845
    %v5334 = vmul.f32 %v5302, %v4860
    %v5335 = vmul.f32 %v5303, %v4875
    %v5336 = vmul.f32 %v5304, %v4890
    %v5337 = vmul.f32 %v5305, %v4905
    %v5338 = vmul.f32 %v5306, %v4920
    %v5339 = vmul.f32 %v5307, %v4935
    %v5340 = vmul.f32 %v5308, %v4950
    %v5341 = vmul.f32 %v5309, %v4965
    %v5342 = vmul.f32 %v5310, %v4980
    %v5343 = vmul.f32 %v5311, %v4995
    %v5344 = vmul.f32 %v5312, %v5010
    %v5345 = vmul.f32 %v5313, %v5025
    %v5346 = vmul.f32 %v5314, %v5040
    %v5347 = vmul.f32 %v5315, %v5055
    %v5348 = vmul.f32 %v5316, %v5070
    %v5349 = vmul.f32 %v5317, %v5085
    %v5350 = vmul.f32 %v5318, %v5100
    %v5351 = vmul.f32 %v5319, %v5115
    %v5352 = vmul.f32 %v5320, %v5130
    %v5353 = vmul.f32 %v5321, %v5145
    %v5354 = vmul.f32 %v5322, %v5160
    %v5355 = vmul.f32 %v5323, %v5175
    %v5356 = vmul.f32 %v5324, %v5190
    %v5357 = vmul.f32 %v5325, %v5205
    %v5358 = vmul.f32 %v5326, %v5220
    %v5359 = vmul.f32 %v5327, %v5235
    %v5360 = vmul.f32 %v5328, %v5250
    %v5361 = vmul.f32 %v5329, %v5265
    %v5362 = vadd.f32 %v5330, 1.4214138
    %v5363 = vadd.f32 %v5331, 1.4214138
    %v5364 = vadd.f32 %v5332, 1.4214138
    %v5365 = vadd.f32 %v5333, 1.4214138
    %v5366 = vadd.f32 %v5334, 1.4214138
    %v5367 = vadd.f32 %v5335, 1.4214138
    %v5368 = vadd.f32 %v5336, 1.4214138
    %v5369 = vadd.f32 %v5337, 1.4214138
    %v5370 = vadd.f32 %v5338, 1.4214138
    %v5371 = vadd.f32 %v5339, 1.4214138
    %v5372 = vadd.f32 %v5340, 1.4214138
    %v5373 = vadd.f32 %v5341, 1.4214138
    %v5374 = vadd.f32 %v5342, 1.4214138
    %v5375 = vadd.f32 %v5343, 1.4214138
    %v5376 = vadd.f32 %v5344, 1.4214138
    %v5377 = vadd.f32 %v5345, 1.4214138
    %v5378 = vadd.f32 %v5346, 1.4214138
    %v5379 = vadd.f32 %v5347, 1.4214138
    %v5380 = vadd.f32 %v5348, 1.4214138
    %v5381 = vadd.f32 %v5349, 1.4214138
    %v5382 = vadd.f32 %v5350, 1.4214138
    %v5383 = vadd.f32 %v5351, 1.4214138
    %v5384 = vadd.f32 %v5352, 1.4214138
    %v5385 = vadd.f32 %v5353, 1.4214138
    %v5386 = vadd.f32 %v5354, 1.4214138
    %v5387 = vadd.f32 %v5355, 1.4214138
    %v5388 = vadd.f32 %v5356, 1.4214138
    %v5389 = vadd.f32 %v5357, 1.4214138
    %v5390 = vadd.f32 %v5358, 1.4214138
    %v5391 = vadd.f32 %v5359, 1.4214138
    %v5392 = vadd.f32 %v5360, 1.4214138
    %v5393 = vadd.f32 %v5361, 1.4214138
    %v5394 = vmul.f32 %v5362, %v4800
    %v5395 = vmul.f32 %v5363, %v4815
    %v5396 = vmul.f32 %v5364, %v4830
    %v5397 = vmul.f32 %v5365, %v4845
    %v5398 = vmul.f32 %v5366, %v4860
    %v5399 = vmul.f32 %v5367, %v4875
    %v5400 = vmul.f32 %v5368, %v4890
    %v5401 = vmul.f32 %v5369, %v4905
    %v5402 = vmul.f32 %v5370, %v4920
    %v5403 = vmul.f32 %v5371, %v4935
    %v5404 = vmul.f32 %v5372, %v4950
    %v5405 = vmul.f32 %v5373, %v4965
    %v5406 = vmul.f32 %v5374, %v4980
    %v5407 = vmul.f32 %v5375, %v4995
    %v5408 = vmul.f32 %v5376, %v5010
    %v5409 = vmul.f32 %v5377, %v5025
    %v5410 = vmul.f32 %v5378, %v5040
    %v5411 = vmul.f32 %v5379, %v5055
    %v5412 = vmul.f32 %v5380, %v5070
    %v5413 = vmul.f32 %v5381, %v5085
    %v5414 = vmul.f32 %v5382, %v5100
    %v5415 = vmul.f32 %v5383, %v5115
    %v5416 = vmul.f32 %v5384, %v5130
    %v5417 = vmul.f32 %v5385, %v5145
    %v5418 = vmul.f32 %v5386, %v5160
    %v5419 = vmul.f32 %v5387, %v5175
    %v5420 = vmul.f32 %v5388, %v5190
    %v5421 = vmul.f32 %v5389, %v5205
    %v5422 = vmul.f32 %v5390, %v5220
    %v5423 = vmul.f32 %v5391, %v5235
    %v5424 = vmul.f32 %v5392, %v5250
    %v5425 = vmul.f32 %v5393, %v5265
    %v5426 = vadd.f32 %v5394, -0.28449672
    %v5427 = vadd.f32 %v5395, -0.28449672
    %v5428 = vadd.f32 %v5396, -0.28449672
    %v5429 = vadd.f32 %v5397, -0.28449672
    %v5430 = vadd.f32 %v5398, -0.28449672
    %v5431 = vadd.f32 %v5399, -0.28449672
    %v5432 = vadd.f32 %v5400, -0.28449672
    %v5433 = vadd.f32 %v5401, -0.28449672
    %v5434 = vadd.f32 %v5402, -0.28449672
    %v5435 = vadd.f32 %v5403, -0.28449672
    %v5436 = vadd.f32 %v5404, -0.28449672
    %v5437 = vadd.f32 %v5405, -0.28449672
    %v5438 = vadd.f32 %v5406, -0.28449672
    %v5439 = vadd.f32 %v5407, -0.28449672
    %v5440 = vadd.f32 %v5408, -0.28449672
    %v5441 = vadd.f32 %v5409, -0.28449672
    %v5442 = vadd.f32 %v5410, -0.28449672
    %v5443 = vadd.f32 %v5411, -0.28449672
    %v5444 = vadd.f32 %v5412, -0.28449672
    %v5445 = vadd.f32 %v5413, -0.28449672
    %v5446 = vadd.f32 %v5414, -0.28449672
    %v5447 = vadd.f32 %v5415, -0.28449672
    %v5448 = vadd.f32 %v5416, -0.28449672
    %v5449 = vadd.f32 %v5417, -0.28449672
    %v5450 = vadd.f32 %v5418, -0.28449672
    %v5451 = vadd.f32 %v5419, -0.28449672
    %v5452 = vadd.f32 %v5420, -0.28449672
    %v5453 = vadd.f32 %v5421, -0.28449672
    %v5454 = vadd.f32 %v5422, -0.28449672
    %v5455 = vadd.f32 %v5423, -0.28449672
    %v5456 = vadd.f32 %v5424, -0.28449672
    %v5457 = vadd.f32 %v5425, -0.28449672
    %v5458 = vmul.f32 %v5426, %v4800
    %v5459 = vmul.f32 %v5427, %v4815
    %v5460 = vmul.f32 %v5428, %v4830
    %v5461 = vmul.f32 %v5429, %v4845
    %v5462 = vmul.f32 %v5430, %v4860
    %v5463 = vmul.f32 %v5431, %v4875
    %v5464 = vmul.f32 %v5432, %v4890
    %v5465 = vmul.f32 %v5433, %v4905
    %v5466 = vmul.f32 %v5434, %v4920
    %v5467 = vmul.f32 %v5435, %v4935
    %v5468 = vmul.f32 %v5436, %v4950
    %v5469 = vmul.f32 %v5437, %v4965
    %v5470 = vmul.f32 %v5438, %v4980
    %v5471 = vmul.f32 %v5439, %v4995
    %v5472 = vmul.f32 %v5440, %v5010
    %v5473 = vmul.f32 %v5441, %v5025
    %v5474 = vmul.f32 %v5442, %v5040
    %v5475 = vmul.f32 %v5443, %v5055
    %v5476 = vmul.f32 %v5444, %v5070
    %v5477 = vmul.f32 %v5445, %v5085
    %v5478 = vmul.f32 %v5446, %v5100
    %v5479 = vmul.f32 %v5447, %v5115
    %v5480 = vmul.f32 %v5448, %v5130
    %v5481 = vmul.f32 %v5449, %v5145
    %v5482 = vmul.f32 %v5450, %v5160
    %v5483 = vmul.f32 %v5451, %v5175
    %v5484 = vmul.f32 %v5452, %v5190
    %v5485 = vmul.f32 %v5453, %v5205
    %v5486 = vmul.f32 %v5454, %v5220
    %v5487 = vmul.f32 %v5455, %v5235
    %v5488 = vmul.f32 %v5456, %v5250
    %v5489 = vmul.f32 %v5457, %v5265
    %v5490 = vadd.f32 %v5458, 0.2548296
    %v5491 = vadd.f32 %v5459, 0.2548296
    %v5492 = vadd.f32 %v5460, 0.2548296
    %v5493 = vadd.f32 %v5461, 0.2548296
    %v5494 = vadd.f32 %v5462, 0.2548296
    %v5495 = vadd.f32 %v5463, 0.2548296
    %v5496 = vadd.f32 %v5464, 0.2548296
    %v5497 = vadd.f32 %v5465, 0.2548296
    %v5498 = vadd.f32 %v5466, 0.2548296
    %v5499 = vadd.f32 %v5467, 0.2548296
    %v5500 = vadd.f32 %v5468, 0.2548296
    %v5501 = vadd.f32 %v5469, 0.2548296
    %v5502 = vadd.f32 %v5470, 0.2548296
    %v5503 = vadd.f32 %v5471, 0.2548296
    %v5504 = vadd.f32 %v5472, 0.2548296
    %v5505 = vadd.f32 %v5473, 0.2548296
    %v5506 = vadd.f32 %v5474, 0.2548296
    %v5507 = vadd.f32 %v5475, 0.2548296
    %v5508 = vadd.f32 %v5476, 0.2548296
    %v5509 = vadd.f32 %v5477, 0.2548296
    %v5510 = vadd.f32 %v5478, 0.2548296
    %v5511 = vadd.f32 %v5479, 0.2548296
    %v5512 = vadd.f32 %v5480, 0.2548296
    %v5513 = vadd.f32 %v5481, 0.2548296
    %v5514 = vadd.f32 %v5482, 0.2548296
    %v5515 = vadd.f32 %v5483, 0.2548296
    %v5516 = vadd.f32 %v5484, 0.2548296
    %v5517 = vadd.f32 %v5485, 0.2548296
    %v5518 = vadd.f32 %v5486, 0.2548296
    %v5519 = vadd.f32 %v5487, 0.2548296
    %v5520 = vadd.f32 %v5488, 0.2548296
    %v5521 = vadd.f32 %v5489, 0.2548296
    %v5522 = vmul.f32 %v5490, %v4800
    %v5523 = vmul.f32 %v5491, %v4815
    %v5524 = vmul.f32 %v5492, %v4830
    %v5525 = vmul.f32 %v5493, %v4845
    %v5526 = vmul.f32 %v5494, %v4860
    %v5527 = vmul.f32 %v5495, %v4875
    %v5528 = vmul.f32 %v5496, %v4890
    %v5529 = vmul.f32 %v5497, %v4905
    %v5530 = vmul.f32 %v5498, %v4920
    %v5531 = vmul.f32 %v5499, %v4935
    %v5532 = vmul.f32 %v5500, %v4950
    %v5533 = vmul.f32 %v5501, %v4965
    %v5534 = vmul.f32 %v5502, %v4980
    %v5535 = vmul.f32 %v5503, %v4995
    %v5536 = vmul.f32 %v5504, %v5010
    %v5537 = vmul.f32 %v5505, %v5025
    %v5538 = vmul.f32 %v5506, %v5040
    %v5539 = vmul.f32 %v5507, %v5055
    %v5540 = vmul.f32 %v5508, %v5070
    %v5541 = vmul.f32 %v5509, %v5085
    %v5542 = vmul.f32 %v5510, %v5100
    %v5543 = vmul.f32 %v5511, %v5115
    %v5544 = vmul.f32 %v5512, %v5130
    %v5545 = vmul.f32 %v5513, %v5145
    %v5546 = vmul.f32 %v5514, %v5160
    %v5547 = vmul.f32 %v5515, %v5175
    %v5548 = vmul.f32 %v5516, %v5190
    %v5549 = vmul.f32 %v5517, %v5205
    %v5550 = vmul.f32 %v5518, %v5220
    %v5551 = vmul.f32 %v5519, %v5235
    %v5552 = vmul.f32 %v5520, %v5250
    %v5553 = vmul.f32 %v5521, %v5265
    %v5554 = vsub.f32 0.0, %v4690
    %v5555 = vsub.f32 0.0, %v4691
    %v5556 = vsub.f32 0.0, %v4692
    %v5557 = vsub.f32 0.0, %v4693
    %v5558 = vsub.f32 0.0, %v4694
    %v5559 = vsub.f32 0.0, %v4695
    %v5560 = vsub.f32 0.0, %v4696
    %v5561 = vsub.f32 0.0, %v4697
    %v5562 = vsub.f32 0.0, %v4698
    %v5563 = vsub.f32 0.0, %v4699
    %v5564 = vsub.f32 0.0, %v4700
    %v5565 = vsub.f32 0.0, %v4701
    %v5566 = vsub.f32 0.0, %v4702
    %v5567 = vsub.f32 0.0, %v4703
    %v5568 = vsub.f32 0.0, %v4704
    %v5569 = vsub.f32 0.0, %v4705
    %v5570 = vsub.f32 0.0, %v4706
    %v5571 = vsub.f32 0.0, %v4707
    %v5572 = vsub.f32 0.0, %v4708
    %v5573 = vsub.f32 0.0, %v4709
    %v5574 = vsub.f32 0.0, %v4710
    %v5575 = vsub.f32 0.0, %v4711
    %v5576 = vsub.f32 0.0, %v4712
    %v5577 = vsub.f32 0.0, %v4713
    %v5578 = vsub.f32 0.0, %v4714
    %v5579 = vsub.f32 0.0, %v4715
    %v5580 = vsub.f32 0.0, %v4716
    %v5581 = vsub.f32 0.0, %v4717
    %v5582 = vsub.f32 0.0, %v4718
    %v5583 = vsub.f32 0.0, %v4719
    %v5584 = vsub.f32 0.0, %v4720
    %v5585 = vsub.f32 0.0, %v4721
    %v5586 = vmul.f32 %v5554, %v4690
    %v5587 = vmul.f32 %v5555, %v4691
    %v5588 = vmul.f32 %v5556, %v4692
    %v5589 = vmul.f32 %v5557, %v4693
    %v5590 = vmul.f32 %v5558, %v4694
    %v5591 = vmul.f32 %v5559, %v4695
    %v5592 = vmul.f32 %v5560, %v4696
    %v5593 = vmul.f32 %v5561, %v4697
    %v5594 = vmul.f32 %v5562, %v4698
    %v5595 = vmul.f32 %v5563, %v4699
    %v5596 = vmul.f32 %v5564, %v4700
    %v5597 = vmul.f32 %v5565, %v4701
    %v5598 = vmul.f32 %v5566, %v4702
    %v5599 = vmul.f32 %v5567, %v4703
    %v5600 = vmul.f32 %v5568, %v4704
    %v5601 = vmul.f32 %v5569, %v4705
    %v5602 = vmul.f32 %v5570, %v4706
    %v5603 = vmul.f32 %v5571, %v4707
    %v5604 = vmul.f32 %v5572, %v4708
    %v5605 = vmul.f32 %v5573, %v4709
    %v5606 = vmul.f32 %v5574, %v4710
    %v5607 = vmul.f32 %v5575, %v4711
    %v5608 = vmul.f32 %v5576, %v4712
    %v5609 = vmul.f32 %v5577, %v4713
    %v5610 = vmul.f32 %v5578, %v4714
    %v5611 = vmul.f32 %v5579, %v4715
    %v5612 = vmul.f32 %v5580, %v4716
    %v5613 = vmul.f32 %v5581, %v4717
    %v5614 = vmul.f32 %v5582, %v4718
    %v5615 = vmul.f32 %v5583, %v4719
    %v5616 = vmul.f32 %v5584, %v4720
    %v5617 = vmul.f32 %v5585, %v4721
    %v5618 = vmul.f32 %v5586, 1.442695
    %v5619 = vpow.pop %v5618
    %v5620 = vmul.f32 %v5587, 1.442695
    %v5621 = vpow.pop %v5620
    %v5622 = vmul.f32 %v5588, 1.442695
    %v5623 = vpow.pop %v5622
    %v5624 = vmul.f32 %v5589, 1.442695
    %v5625 = vpow.pop %v5624
    %v5626 = vmul.f32 %v5590, 1.442695
    %v5627 = vpow.pop %v5626
    %v5628 = vmul.f32 %v5591, 1.442695
    %v5629 = vpow.pop %v5628
    %v5630 = vmul.f32 %v5592, 1.442695
    %v5631 = vpow.pop %v5630
    %v5632 = vmul.f32 %v5593, 1.442695
    %v5633 = vpow.pop %v5632
    %v5634 = vmul.f32 %v5594, 1.442695
    %v5635 = vpow.pop %v5634
    %v5636 = vmul.f32 %v5595, 1.442695
    %v5637 = vpow.pop %v5636
    %v5638 = vmul.f32 %v5596, 1.442695
    %v5639 = vpow.pop %v5638
    %v5640 = vmul.f32 %v5597, 1.442695
    %v5641 = vpow.pop %v5640
    %v5642 = vmul.f32 %v5598, 1.442695
    %v5643 = vpow.pop %v5642
    %v5644 = vmul.f32 %v5599, 1.442695
    %v5645 = vpow.pop %v5644
    %v5646 = vmul.f32 %v5600, 1.442695
    %v5647 = vpow.pop %v5646
    %v5648 = vmul.f32 %v5601, 1.442695
    %v5649 = vpow.pop %v5648
    %v5650 = vmul.f32 %v5602, 1.442695
    %v5651 = vpow.pop %v5650
    %v5652 = vmul.f32 %v5603, 1.442695
    %v5653 = vpow.pop %v5652
    %v5654 = vmul.f32 %v5604, 1.442695
    %v5655 = vpow.pop %v5654
    %v5656 = vmul.f32 %v5605, 1.442695
    %v5657 = vpow.pop %v5656
    %v5658 = vmul.f32 %v5606, 1.442695
    %v5659 = vpow.pop %v5658
    %v5660 = vmul.f32 %v5607, 1.442695
    %v5661 = vpow.pop %v5660
    %v5662 = vmul.f32 %v5608, 1.442695
    %v5663 = vpow.pop %v5662
    %v5664 = vmul.f32 %v5609, 1.442695
    %v5665 = vpow.pop %v5664
    %v5666 = vmul.f32 %v5610, 1.442695
    %v5667 = vpow.pop %v5666
    %v5668 = vmul.f32 %v5611, 1.442695
    %v5669 = vpow.pop %v5668
    %v5670 = vmul.f32 %v5612, 1.442695
    %v5671 = vpow.pop %v5670
    %v5672 = vmul.f32 %v5613, 1.442695
    %v5673 = vpow.pop %v5672
    %v5674 = vmul.f32 %v5614, 1.442695
    %v5675 = vpow.pop %v5674
    %v5676 = vmul.f32 %v5615, 1.442695
    %v5677 = vpow.pop %v5676
    %v5678 = vmul.f32 %v5616, 1.442695
    %v5679 = vpow.pop %v5678
    %v5680 = vmul.f32 %v5617, 1.442695
    %v5681 = vpow.pop %v5680
    %v5682 = vmul.f32 %v5522, %v5619
    %v5683 = vmul.f32 %v5523, %v5621
    %v5684 = vmul.f32 %v5524, %v5623
    %v5685 = vmul.f32 %v5525, %v5625
    %v5686 = vmul.f32 %v5526, %v5627
    %v5687 = vmul.f32 %v5527, %v5629
    %v5688 = vmul.f32 %v5528, %v5631
    %v5689 = vmul.f32 %v5529, %v5633
    %v5690 = vmul.f32 %v5530, %v5635
    %v5691 = vmul.f32 %v5531, %v5637
    %v5692 = vmul.f32 %v5532, %v5639
    %v5693 = vmul.f32 %v5533, %v5641
    %v5694 = vmul.f32 %v5534, %v5643
    %v5695 = vmul.f32 %v5535, %v5645
    %v5696 = vmul.f32 %v5536, %v5647
    %v5697 = vmul.f32 %v5537, %v5649
    %v5698 = vmul.f32 %v5538, %v5651
    %v5699 = vmul.f32 %v5539, %v5653
    %v5700 = vmul.f32 %v5540, %v5655
    %v5701 = vmul.f32 %v5541, %v5657
    %v5702 = vmul.f32 %v5542, %v5659
    %v5703 = vmul.f32 %v5543, %v5661
    %v5704 = vmul.f32 %v5544, %v5663
    %v5705 = vmul.f32 %v5545, %v5665
    %v5706 = vmul.f32 %v5546, %v5667
    %v5707 = vmul.f32 %v5547, %v5669
    %v5708 = vmul.f32 %v5548, %v5671
    %v5709 = vmul.f32 %v5549, %v5673
    %v5710 = vmul.f32 %v5550, %v5675
    %v5711 = vmul.f32 %v5551, %v5677
    %v5712 = vmul.f32 %v5552, %v5679
    %v5713 = vmul.f32 %v5553, %v5681
    %v5714 = vsub.f32 1.0, %v5682
    %v5715 = vsub.f32 1.0, %v5683
    %v5716 = vsub.f32 1.0, %v5684
    %v5717 = vsub.f32 1.0, %v5685
    %v5718 = vsub.f32 1.0, %v5686
    %v5719 = vsub.f32 1.0, %v5687
    %v5720 = vsub.f32 1.0, %v5688
    %v5721 = vsub.f32 1.0, %v5689
    %v5722 = vsub.f32 1.0, %v5690
    %v5723 = vsub.f32 1.0, %v5691
    %v5724 = vsub.f32 1.0, %v5692
    %v5725 = vsub.f32 1.0, %v5693
    %v5726 = vsub.f32 1.0, %v5694
    %v5727 = vsub.f32 1.0, %v5695
    %v5728 = vsub.f32 1.0, %v5696
    %v5729 = vsub.f32 1.0, %v5697
    %v5730 = vsub.f32 1.0, %v5698
    %v5731 = vsub.f32 1.0, %v5699
    %v5732 = vsub.f32 1.0, %v5700
    %v5733 = vsub.f32 1.0, %v5701
    %v5734 = vsub.f32 1.0, %v5702
    %v5735 = vsub.f32 1.0, %v5703
    %v5736 = vsub.f32 1.0, %v5704
    %v5737 = vsub.f32 1.0, %v5705
    %v5738 = vsub.f32 1.0, %v5706
    %v5739 = vsub.f32 1.0, %v5707
    %v5740 = vsub.f32 1.0, %v5708
    %v5741 = vsub.f32 1.0, %v5709
    %v5742 = vsub.f32 1.0, %v5710
    %v5743 = vsub.f32 1.0, %v5711
    %v5744 = vsub.f32 1.0, %v5712
    %v5745 = vsub.f32 1.0, %v5713
    %vm5746 = vcmp.lt.f32.partialorder %v4658, 0.0
    %vm5747 = vcmp.lt.f32.partialorder %v4659, 0.0
    %vm5748 = vcmp.lt.f32.partialorder %v4660, 0.0
    %vm5749 = vcmp.lt.f32.partialorder %v4661, 0.0
    %vm5750 = vcmp.lt.f32.partialorder %v4662, 0.0
    %vm5751 = vcmp.lt.f32.partialorder %v4663, 0.0
    %vm5752 = vcmp.lt.f32.partialorder %v4664, 0.0
    %vm5753 = vcmp.lt.f32.partialorder %v4665, 0.0
    %vm5754 = vcmp.lt.f32.partialorder %v4666, 0.0
    %vm5755 = vcmp.lt.f32.partialorder %v4667, 0.0
    %vm5756 = vcmp.lt.f32.partialorder %v4668, 0.0
    %vm5757 = vcmp.lt.f32.partialorder %v4669, 0.0
    %vm5758 = vcmp.lt.f32.partialorder %v4670, 0.0
    %vm5759 = vcmp.lt.f32.partialorder %v4671, 0.0
    %vm5760 = vcmp.lt.f32.partialorder %v4672, 0.0
    %vm5761 = vcmp.lt.f32.partialorder %v4673, 0.0
    %vm5762 = vcmp.lt.f32.partialorder %v4674, 0.0
    %vm5763 = vcmp.lt.f32.partialorder %v4675, 0.0
    %vm5764 = vcmp.lt.f32.partialorder %v4676, 0.0
    %vm5765 = vcmp.lt.f32.partialorder %v4677, 0.0
    %vm5766 = vcmp.lt.f32.partialorder %v4678, 0.0
    %vm5767 = vcmp.lt.f32.partialorder %v4679, 0.0
    %vm5768 = vcmp.lt.f32.partialorder %v4680, 0.0
    %vm5769 = vcmp.lt.f32.partialorder %v4681, 0.0
    %vm5770 = vcmp.lt.f32.partialorder %v4682, 0.0
    %vm5771 = vcmp.lt.f32.partialorder %v4683, 0.0
    %vm5772 = vcmp.lt.f32.partialorder %v4684, 0.0
    %vm5773 = vcmp.lt.f32.partialorder %v4685, 0.0
    %vm5774 = vcmp.lt.f32.partialorder %v4686, 0.0
    %vm5775 = vcmp.lt.f32.partialorder %v4687, 0.0
    %vm5776 = vcmp.lt.f32.partialorder %v4688, 0.0
    %vm5777 = vcmp.lt.f32.partialorder %v4689, 0.0
    %v5778 = vsub.f32 0.0, %v5714
    %v5779 = vsub.f32 0.0, %v5715
    %v5780 = vsub.f32 0.0, %v5716
    %v5781 = vsub.f32 0.0, %v5717
    %v5782 = vsub.f32 0.0, %v5718
    %v5783 = vsub.f32 0.0, %v5719
    %v5784 = vsub.f32 0.0, %v5720
    %v5785 = vsub.f32 0.0, %v5721
    %v5786 = vsub.f32 0.0, %v5722
    %v5787 = vsub.f32 0.0, %v5723
    %v5788 = vsub.f32 0.0, %v5724
    %v5789 = vsub.f32 0.0, %v5725
    %v5790 = vsub.f32 0.0, %v5726
    %v5791 = vsub.f32 0.0, %v5727
    %v5792 = vsub.f32 0.0, %v5728
    %v5793 = vsub.f32 0.0, %v5729
    %v5794 = vsub.f32 0.0, %v5730
    %v5795 = vsub.f32 0.0, %v5731
    %v5796 = vsub.f32 0.0, %v5732
    %v5797 = vsub.f32 0.0, %v5733
    %v5798 = vsub.f32 0.0, %v5734
    %v5799 = vsub.f32 0.0, %v5735
    %v5800 = vsub.f32 0.0, %v5736
    %v5801 = vsub.f32 0.0, %v5737
    %v5802 = vsub.f32 0.0, %v5738
    %v5803 = vsub.f32 0.0, %v5739
    %v5804 = vsub.f32 0.0, %v5740
    %v5805 = vsub.f32 0.0, %v5741
    %v5806 = vsub.f32 0.0, %v5742
    %v5807 = vsub.f32 0.0, %v5743
    %v5808 = vsub.f32 0.0, %v5744
    %v5809 = vsub.f32 0.0, %v5745
    %v5810 = vsel %vm5746, %v5778, %v5714
    %v5811 = vsel %vm5747, %v5779, %v5715
    %v5812 = vsel %vm5748, %v5780, %v5716
    %v5813 = vsel %vm5749, %v5781, %v5717
    %v5814 = vsel %vm5750, %v5782, %v5718
    %v5815 = vsel %vm5751, %v5783, %v5719
    %v5816 = vsel %vm5752, %v5784, %v5720
    %v5817 = vsel %vm5753, %v5785, %v5721
    %v5818 = vsel %vm5754, %v5786, %v5722
    %v5819 = vsel %vm5755, %v5787, %v5723
    %v5820 = vsel %vm5756, %v5788, %v5724
    %v5821 = vsel %vm5757, %v5789, %v5725
    %v5822 = vsel %vm5758, %v5790, %v5726
    %v5823 = vsel %vm5759, %v5791, %v5727
    %v5824 = vsel %vm5760, %v5792, %v5728
    %v5825 = vsel %vm5761, %v5793, %v5729
    %v5826 = vsel %vm5762, %v5794, %v5730
    %v5827 = vsel %vm5763, %v5795, %v5731
    %v5828 = vsel %vm5764, %v5796, %v5732
    %v5829 = vsel %vm5765, %v5797, %v5733
    %v5830 = vsel %vm5766, %v5798, %v5734
    %v5831 = vsel %vm5767, %v5799, %v5735
    %v5832 = vsel %vm5768, %v5800, %v5736
    %v5833 = vsel %vm5769, %v5801, %v5737
    %v5834 = vsel %vm5770, %v5802, %v5738
    %v5835 = vsel %vm5771, %v5803, %v5739
    %v5836 = vsel %vm5772, %v5804, %v5740
    %v5837 = vsel %vm5773, %v5805, %v5741
    %v5838 = vsel %vm5774, %v5806, %v5742
    %v5839 = vsel %vm5775, %v5807, %v5743
    %v5840 = vsel %vm5776, %v5808, %v5744
    %v5841 = vsel %vm5777, %v5809, %v5745
    %v5842 = vadd.f32 %v5810, 1.0
    %v5843 = vadd.f32 %v5811, 1.0
    %v5844 = vadd.f32 %v5812, 1.0
    %v5845 = vadd.f32 %v5813, 1.0
    %v5846 = vadd.f32 %v5814, 1.0
    %v5847 = vadd.f32 %v5815, 1.0
    %v5848 = vadd.f32 %v5816, 1.0
    %v5849 = vadd.f32 %v5817, 1.0
    %v5850 = vadd.f32 %v5818, 1.0
    %v5851 = vadd.f32 %v5819, 1.0
    %v5852 = vadd.f32 %v5820, 1.0
    %v5853 = vadd.f32 %v5821, 1.0
    %v5854 = vadd.f32 %v5822, 1.0
    %v5855 = vadd.f32 %v5823, 1.0
    %v5856 = vadd.f32 %v5824, 1.0
    %v5857 = vadd.f32 %v5825, 1.0
    %v5858 = vadd.f32 %v5826, 1.0
    %v5859 = vadd.f32 %v5827, 1.0
    %v5860 = vadd.f32 %v5828, 1.0
    %v5861 = vadd.f32 %v5829, 1.0
    %v5862 = vadd.f32 %v5830, 1.0
    %v5863 = vadd.f32 %v5831, 1.0
    %v5864 = vadd.f32 %v5832, 1.0
    %v5865 = vadd.f32 %v5833, 1.0
    %v5866 = vadd.f32 %v5834, 1.0
    %v5867 = vadd.f32 %v5835, 1.0
    %v5868 = vadd.f32 %v5836, 1.0
    %v5869 = vadd.f32 %v5837, 1.0
    %v5870 = vadd.f32 %v5838, 1.0
    %v5871 = vadd.f32 %v5839, 1.0
    %v5872 = vadd.f32 %v5840, 1.0
    %v5873 = vadd.f32 %v5841, 1.0
    %v5874 = vmul.f32 %v4626, %v5842
    %v5875 = vmul.f32 %v4627, %v5843
    %v5876 = vmul.f32 %v4628, %v5844
    %v5877 = vmul.f32 %v4629, %v5845
    %v5878 = vmul.f32 %v4630, %v5846
    %v5879 = vmul.f32 %v4631, %v5847
    %v5880 = vmul.f32 %v4632, %v5848
    %v5881 = vmul.f32 %v4633, %v5849
    %v5882 = vmul.f32 %v4634, %v5850
    %v5883 = vmul.f32 %v4635, %v5851
    %v5884 = vmul.f32 %v4636, %v5852
    %v5885 = vmul.f32 %v4637, %v5853
    %v5886 = vmul.f32 %v4638, %v5854
    %v5887 = vmul.f32 %v4639, %v5855
    %v5888 = vmul.f32 %v4640, %v5856
    %v5889 = vmul.f32 %v4641, %v5857
    %v5890 = vmul.f32 %v4642, %v5858
    %v5891 = vmul.f32 %v4643, %v5859
    %v5892 = vmul.f32 %v4644, %v5860
    %v5893 = vmul.f32 %v4645, %v5861
    %v5894 = vmul.f32 %v4646, %v5862
    %v5895 = vmul.f32 %v4647, %v5863
    %v5896 = vmul.f32 %v4648, %v5864
    %v5897 = vmul.f32 %v4649, %v5865
    %v5898 = vmul.f32 %v4650, %v5866
    %v5899 = vmul.f32 %v4651, %v5867
    %v5900 = vmul.f32 %v4652, %v5868
    %v5901 = vmul.f32 %v4653, %v5869
    %v5902 = vmul.f32 %v4654, %v5870
    %v5903 = vmul.f32 %v4655, %v5871
    %v5904 = vmul.f32 %v4656, %v5872
    %v5905 = vmul.f32 %v4657, %v5873
    %v5906 = vpack.c.bf16 %v5875, %v5874
    %v5907 = vpack.c.bf16 %v5877, %v5876
    %v5908 = vpack.c.bf16 %v5879, %v5878
    %v5909 = vpack.c.bf16 %v5881, %v5880
    %v5910 = vpack.c.bf16 %v5883, %v5882
    %v5911 = vpack.c.bf16 %v5885, %v5884
    %v5912 = vpack.c.bf16 %v5887, %v5886
    %v5913 = vpack.c.bf16 %v5889, %v5888
    %v5914 = vpack.c.bf16 %v5891, %v5890
    %v5915 = vpack.c.bf16 %v5893, %v5892
    %v5916 = vpack.c.bf16 %v5895, %v5894
    %v5917 = vpack.c.bf16 %v5897, %v5896
    %v5918 = vpack.c.bf16 %v5899, %v5898
    %v5919 = vpack.c.bf16 %v5901, %v5900
    %v5920 = vpack.c.bf16 %v5903, %v5902
    %v5921 = vpack.c.bf16 %v5905, %v5904
    %v5922 = vld [vmem:[%s12] sm:$0xf]
    %v5923 = vld [vmem:[%s12 + $0x4] sm:$0xf]
    %v5924 = vld [vmem:[%s12 + $0x8] sm:$0xf]
    %v5925 = vld [vmem:[%s12 + $0xc] sm:$0xf]
    %v5926 = vld [vmem:[%s12 + $0x10] sm:$0xf]
    %v5927 = vld [vmem:[%s12 + $0x14] sm:$0xf]
    %v5928 = vld [vmem:[%s12 + $0x18] sm:$0xf]
    %v5929 = vld [vmem:[%s12 + $0x1c] sm:$0xf]
    %v5930 = vld [vmem:[%s12 + $0x20] sm:$0xf]
    %v5931 = vld [vmem:[%s12 + $0x24] sm:$0xf]
    %v5932 = vld [vmem:[%s12 + $0x28] sm:$0xf]
    %v5933 = vld [vmem:[%s12 + $0x2c] sm:$0xf]
    %v5934 = vld [vmem:[%s12 + $0x30] sm:$0xf]
    %v5935 = vld [vmem:[%s12 + $0x34] sm:$0xf]
    %v5936 = vld [vmem:[%s12 + $0x38] sm:$0xf]
    %v5937 = vld [vmem:[%s12 + $0x3c] sm:$0xf]
    %v5938 = vld [vmem:[%s13] sm:$0x1]
    %v5940 = vperm.slane %v5938, 0
    %v5958 = vunpack.c.l.b16 %v5922
    %v5959 = vunpack.c.l.b16 %v5923
    %v5960 = vunpack.c.l.b16 %v5924
    %v5961 = vunpack.c.l.b16 %v5925
    %v5962 = vunpack.c.l.b16 %v5926
    %v5963 = vunpack.c.l.b16 %v5927
    %v5964 = vunpack.c.l.b16 %v5928
    %v5965 = vunpack.c.l.b16 %v5929
    %v5966 = vunpack.c.l.b16 %v5930
    %v5967 = vunpack.c.l.b16 %v5931
    %v5968 = vunpack.c.l.b16 %v5932
    %v5969 = vunpack.c.l.b16 %v5933
    %v5970 = vunpack.c.l.b16 %v5934
    %v5971 = vunpack.c.l.b16 %v5935
    %v5972 = vunpack.c.l.b16 %v5936
    %v5973 = vunpack.c.l.b16 %v5937
    %v5974 = vpack.c.b16 %v5959, %v5958
    %v5975 = vpack.c.b16 %v5961, %v5960
    %v5976 = vpack.c.b16 %v5963, %v5962
    %v5977 = vpack.c.b16 %v5965, %v5964
    %v5978 = vpack.c.b16 %v5967, %v5966
    %v5979 = vpack.c.b16 %v5969, %v5968
    %v5980 = vpack.c.b16 %v5971, %v5970
    %v5981 = vpack.c.b16 %v5973, %v5972
    %5990 = vmatpush.bf16.msra.mxu0 %v5981
    %5991 = vmatpush.bf16.msra.mxu0 %v5980
    %5992 = vmatpush.bf16.msra.mxu0 %v5979
    %5993 = vmatpush.bf16.msra.mxu0 %v5978
    %5994 = vmatpush.bf16.msra.mxu0 %v5977
    %5995 = vmatpush.bf16.msra.mxu0 %v5976
    %5996 = vmatpush.bf16.msra.mxu0 %v5975
    %5997 = vmatpush.bf16.msra.mxu0 %v5974
    %5998 = vmatmul.bf16.gmra.mxu0 %v5906
    %v5999 = vpop.f32.mrf.mxu0
    %v6000 = vadd.f32 %v5940, %v5999
    %v6001 = vpop.f32.mrf.mxu0
    %v6002 = vadd.f32 %v5940, %v6001
    %6003 = vmatmul.bf16.gmra.mxu0 %v5907
    %v6004 = vpop.f32.mrf.mxu0
    %v6005 = vadd.f32 %v5940, %v6004
    %v6006 = vpop.f32.mrf.mxu0
    %v6007 = vadd.f32 %v5940, %v6006
    %6008 = vmatmul.bf16.gmra.mxu0 %v5908
    %v6009 = vpop.f32.mrf.mxu0
    %v6010 = vadd.f32 %v5940, %v6009
    %v6011 = vpop.f32.mrf.mxu0
    %v6012 = vadd.f32 %v5940, %v6011
    %6013 = vmatmul.bf16.gmra.mxu0 %v5909
    %v6014 = vpop.f32.mrf.mxu0
    %v6015 = vadd.f32 %v5940, %v6014
    %v6016 = vpop.f32.mrf.mxu0
    %v6017 = vadd.f32 %v5940, %v6016
    %6018 = vmatmul.bf16.gmra.mxu0 %v5910
    %v6019 = vpop.f32.mrf.mxu0
    %v6020 = vadd.f32 %v5940, %v6019
    %v6021 = vpop.f32.mrf.mxu0
    %v6022 = vadd.f32 %v5940, %v6021
    %6023 = vmatmul.bf16.gmra.mxu0 %v5911
    %v6024 = vpop.f32.mrf.mxu0
    %v6025 = vadd.f32 %v5940, %v6024
    %v6026 = vpop.f32.mrf.mxu0
    %v6027 = vadd.f32 %v5940, %v6026
    %6028 = vmatmul.bf16.gmra.mxu0 %v5912
    %v6029 = vpop.f32.mrf.mxu0
    %v6030 = vadd.f32 %v5940, %v6029
    %v6031 = vpop.f32.mrf.mxu0
    %v6032 = vadd.f32 %v5940, %v6031
    %6033 = vmatmul.bf16.gmra.mxu0 %v5913
    %v6034 = vpop.f32.mrf.mxu0
    %v6035 = vadd.f32 %v5940, %v6034
    %v6036 = vpop.f32.mrf.mxu0
    %v6037 = vadd.f32 %v5940, %v6036
    %6038 = vmatmul.bf16.gmra.mxu0 %v5914
    %v6039 = vpop.f32.mrf.mxu0
    %v6040 = vadd.f32 %v5940, %v6039
    %v6041 = vpop.f32.mrf.mxu0
    %v6042 = vadd.f32 %v5940, %v6041
    %6043 = vmatmul.bf16.gmra.mxu0 %v5915
    %v6044 = vpop.f32.mrf.mxu0
    %v6045 = vadd.f32 %v5940, %v6044
    %v6046 = vpop.f32.mrf.mxu0
    %v6047 = vadd.f32 %v5940, %v6046
    %6048 = vmatmul.bf16.gmra.mxu0 %v5916
    %v6049 = vpop.f32.mrf.mxu0
    %v6050 = vadd.f32 %v5940, %v6049
    %v6051 = vpop.f32.mrf.mxu0
    %v6052 = vadd.f32 %v5940, %v6051
    %6053 = vmatmul.bf16.gmra.mxu0 %v5917
    %v6054 = vpop.f32.mrf.mxu0
    %v6055 = vadd.f32 %v5940, %v6054
    %v6056 = vpop.f32.mrf.mxu0
    %v6057 = vadd.f32 %v5940, %v6056
    %6058 = vmatmul.bf16.gmra.mxu0 %v5918
    %v6059 = vpop.f32.mrf.mxu0
    %v6060 = vadd.f32 %v5940, %v6059
    %v6061 = vpop.f32.mrf.mxu0
    %v6062 = vadd.f32 %v5940, %v6061
    %6063 = vmatmul.bf16.gmra.mxu0 %v5919
    %v6064 = vpop.f32.mrf.mxu0
    %v6065 = vadd.f32 %v5940, %v6064
    %v6066 = vpop.f32.mrf.mxu0
    %v6067 = vadd.f32 %v5940, %v6066
    %6068 = vmatmul.bf16.gmra.mxu0 %v5920
    %v6069 = vpop.f32.mrf.mxu0
    %v6070 = vadd.f32 %v5940, %v6069
    %v6071 = vpop.f32.mrf.mxu0
    %v6072 = vadd.f32 %v5940, %v6071
    %6073 = vmatmul.bf16.gmra.mxu0 %v5921
    %v6074 = vpop.f32.mrf.mxu0
    %v6075 = vadd.f32 %v5940, %v6074
    %v6076 = vpop.f32.mrf.mxu0
    %v6077 = vadd.f32 %v5940, %v6076
    %6078 = vdwg.mxu0
    %v6079 = vadd.f32 %v6000, %v3711
    %v6080 = vadd.f32 %v6002, %v3712
    %v6081 = vadd.f32 %v6005, %v3713
    %v6082 = vadd.f32 %v6007, %v3714
    %v6083 = vadd.f32 %v6010, %v3715
    %v6084 = vadd.f32 %v6012, %v3716
    %v6085 = vadd.f32 %v6015, %v3717
    %v6086 = vadd.f32 %v6017, %v3718
    %v6087 = vadd.f32 %v6020, %v3719
    %v6088 = vadd.f32 %v6022, %v3720
    %v6089 = vadd.f32 %v6025, %v3721
    %v6090 = vadd.f32 %v6027, %v3722
    %v6091 = vadd.f32 %v6030, %v3723
    %v6092 = vadd.f32 %v6032, %v3724
    %v6093 = vadd.f32 %v6035, %v3725
    %v6094 = vadd.f32 %v6037, %v3726
    %v6095 = vadd.f32 %v6040, %v3727
    %v6096 = vadd.f32 %v6042, %v3728
    %v6097 = vadd.f32 %v6045, %v3729
    %v6098 = vadd.f32 %v6047, %v3730
    %v6099 = vadd.f32 %v6050, %v3731
    %v6100 = vadd.f32 %v6052, %v3732
    %v6101 = vadd.f32 %v6055, %v3733
    %v6102 = vadd.f32 %v6057, %v3734
    %v6103 = vadd.f32 %v6060, %v3735
    %v6104 = vadd.f32 %v6062, %v3736
    %v6105 = vadd.f32 %v6065, %v3737
    %v6106 = vadd.f32 %v6067, %v3738
    %v6107 = vadd.f32 %v6070, %v3739
    %v6108 = vadd.f32 %v6072, %v3740
    %v6109 = vadd.f32 %v6075, %v3741
    %v6110 = vadd.f32 %v6077, %v3742
    %6111 = vst [vmem:[#allocation2] sm:$0xff] %v6079
    %6112 = vst [vmem:[#allocation2 + $0x8] sm:$0xff] %v6080
    %6113 = vst [vmem:[#allocation2 + $0x10] sm:$0xff] %v6081
    %6114 = vst [vmem:[#allocation2 + $0x18] sm:$0xff] %v6082
    %6115 = vst [vmem:[#allocation2 + $0x20] sm:$0xff] %v6083
    %6116 = vst [vmem:[#allocation2 + $0x28] sm:$0xff] %v6084
    %6117 = vst [vmem:[#allocation2 + $0x30] sm:$0xff] %v6085
    %6118 = vst [vmem:[#allocation2 + $0x38] sm:$0xff] %v6086
    %6119 = vst [vmem:[#allocation2 + $0x40] sm:$0xff] %v6087
    %6120 = vst [vmem:[#allocation2 + $0x48] sm:$0xff] %v6088
    %6121 = vst [vmem:[#allocation2 + $0x50] sm:$0xff] %v6089
    %6122 = vst [vmem:[#allocation2 + $0x58] sm:$0xff] %v6090
    %6123 = vst [vmem:[#allocation2 + $0x60] sm:$0xff] %v6091
    %6124 = vst [vmem:[#allocation2 + $0x68] sm:$0xff] %v6092
    %6125 = vst [vmem:[#allocation2 + $0x70] sm:$0xff] %v6093
    %6126 = vst [vmem:[#allocation2 + $0x78] sm:$0xff] %v6094
    %6127 = vst [vmem:[#allocation2 + $0x80] sm:$0xff] %v6095
    %6128 = vst [vmem:[#allocation2 + $0x88] sm:$0xff] %v6096
    %6129 = vst [vmem:[#allocation2 + $0x90] sm:$0xff] %v6097
    %6130 = vst [vmem:[#allocation2 + $0x98] sm:$0xff] %v6098
    %6131 = vst [vmem:[#allocation2 + $0xa0] sm:$0xff] %v6099
    %6132 = vst [vmem:[#allocation2 + $0xa8] sm:$0xff] %v6100
    %6133 = vst [vmem:[#allocation2 + $0xb0] sm:$0xff] %v6101
    %6134 = vst [vmem:[#allocation2 + $0xb8] sm:$0xff] %v6102
    %6135 = vst [vmem:[#allocation2 + $0xc0] sm:$0xff] %v6103
    %6136 = vst [vmem:[#allocation2 + $0xc8] sm:$0xff] %v6104
    %6137 = vst [vmem:[#allocation2 + $0xd0] sm:$0xff] %v6105
    %6138 = vst [vmem:[#allocation2 + $0xd8] sm:$0xff] %v6106
    %6139 = vst [vmem:[#allocation2 + $0xe0] sm:$0xff] %v6107
    %6140 = vst [vmem:[#allocation2 + $0xe8] sm:$0xff] %v6108
    %6141 = vst [vmem:[#allocation2 + $0xf0] sm:$0xff] %v6109
    %6142 = vst [vmem:[#allocation2 + $0xf8] sm:$0xff] %v6110
    %v6143 = vmul.f32 %v2320, %v1100
    %v6144 = vmul.f32 %v2321, %v1102
    %v6145 = vmul.f32 %v2322, %v1105
    %v6146 = vmul.f32 %v2323, %v1107
    %v6147 = vmul.f32 %v2324, %v1110
    %v6148 = vmul.f32 %v2325, %v1112
    %v6149 = vmul.f32 %v2326, %v1115
    %v6150 = vmul.f32 %v2327, %v1117
    %v6151 = vmul.f32 %v2328, %v1120
    %v6152 = vmul.f32 %v2329, %v1122
    %v6153 = vmul.f32 %v2330, %v1125
    %v6154 = vmul.f32 %v2331, %v1127
    %v6155 = vmul.f32 %v2332, %v1130
    %v6156 = vmul.f32 %v2333, %v1132
    %v6157 = vmul.f32 %v2334, %v1135
    %v6158 = vmul.f32 %v2335, %v1137
    %v6159 = vmul.f32 %v2336, %v1140
    %v6160 = vmul.f32 %v2337, %v1142
    %v6161 = vmul.f32 %v2338, %v1145
    %v6162 = vmul.f32 %v2339, %v1147
    %v6163 = vmul.f32 %v2340, %v1150
    %v6164 = vmul.f32 %v2341, %v1152
    %v6165 = vmul.f32 %v2342, %v1155
    %v6166 = vmul.f32 %v2343, %v1157
    %v6167 = vmul.f32 %v2344, %v1160
    %v6168 = vmul.f32 %v2345, %v1162
    %v6169 = vmul.f32 %v2346, %v1165
    %v6170 = vmul.f32 %v2347, %v1167
    %v6171 = vmul.f32 %v2348, %v1170
    %v6172 = vmul.f32 %v2349, %v1172
    %v6173 = vmul.f32 %v2350, %v1175
    %v6174 = vmul.f32 %v2351, %v1177
    %6175 = vmatpush.msra.mxu0 %v100
    %6176 = vmatpush.msra.mxu0 %v99
    %6177 = vmatpush.msra.mxu0 %v98
    %6178 = vmatpush.msra.mxu0 %v97
    %6179 = vmatpush.msra.mxu0 %v96
    %6180 = vmatpush.msra.mxu0 %v95
    %6181 = vmatpush.msra.mxu0 %v94
    %6182 = vmatpush.msra.mxu0 %v93
    %6183 = vmatpush.msra.mxu0 %v92
    %6184 = vmatpush.msra.mxu0 %v91
    %6185 = vmatpush.msra.mxu0 %v90
    %6186 = vmatpush.msra.mxu0 %v89
    %6187 = vmatpush.msra.mxu0 %v88
    %6188 = vmatpush.msra.mxu0 %v87
    %6189 = vmatpush.msra.mxu0 %v86
    %6190 = vmatpush.msra.mxu0 %v85
    %6191 = vmatmul.f32.gmra.mxu0 %v6143
    %v6192 = vpop.f32.mrf.mxu0
    %v6193 = vadd.f32 0.0, %v6192
    %6194 = vmatmul.f32.gmra.mxu0 %v6144
    %v6195 = vpop.f32.mrf.mxu0
    %v6196 = vadd.f32 0.0, %v6195
    %6197 = vmatmul.f32.gmra.mxu0 %v6145
    %v6198 = vpop.f32.mrf.mxu0
    %v6199 = vadd.f32 0.0, %v6198
    %6200 = vmatmul.f32.gmra.mxu0 %v6146
    %v6201 = vpop.f32.mrf.mxu0
    %v6202 = vadd.f32 0.0, %v6201
    %6203 = vmatmul.f32.gmra.mxu0 %v6147
    %v6204 = vpop.f32.mrf.mxu0
    %v6205 = vadd.f32 0.0, %v6204
    %6206 = vmatmul.f32.gmra.mxu0 %v6148
    %v6207 = vpop.f32.mrf.mxu0
    %v6208 = vadd.f32 0.0, %v6207
    %6209 = vmatmul.f32.gmra.mxu0 %v6149
    %v6210 = vpop.f32.mrf.mxu0
    %v6211 = vadd.f32 0.0, %v6210
    %6212 = vmatmul.f32.gmra.mxu0 %v6150
    %v6213 = vpop.f32.mrf.mxu0
    %v6214 = vadd.f32 0.0, %v6213
    %6215 = vmatmul.f32.gmra.mxu0 %v6151
    %v6216 = vpop.f32.mrf.mxu0
    %v6217 = vadd.f32 0.0, %v6216
    %6218 = vmatmul.f32.gmra.mxu0 %v6152
    %v6219 = vpop.f32.mrf.mxu0
    %v6220 = vadd.f32 0.0, %v6219
    %6221 = vmatmul.f32.gmra.mxu0 %v6153
    %v6222 = vpop.f32.mrf.mxu0
    %v6223 = vadd.f32 0.0, %v6222
    %6224 = vmatmul.f32.gmra.mxu0 %v6154
    %v6225 = vpop.f32.mrf.mxu0
    %v6226 = vadd.f32 0.0, %v6225
    %6227 = vmatmul.f32.gmra.mxu0 %v6155
    %v6228 = vpop.f32.mrf.mxu0
    %v6229 = vadd.f32 0.0, %v6228
    %6230 = vmatmul.f32.gmra.mxu0 %v6156
    %v6231 = vpop.f32.mrf.mxu0
    %v6232 = vadd.f32 0.0, %v6231
    %6233 = vmatmul.f32.gmra.mxu0 %v6157
    %v6234 = vpop.f32.mrf.mxu0
    %v6235 = vadd.f32 0.0, %v6234
    %6236 = vmatmul.f32.gmra.mxu0 %v6158
    %v6237 = vpop.f32.mrf.mxu0
    %v6238 = vadd.f32 0.0, %v6237
    %6239 = vmatmul.f32.gmra.mxu0 %v6159
    %v6240 = vpop.f32.mrf.mxu0
    %v6241 = vadd.f32 0.0, %v6240
    %6242 = vmatmul.f32.gmra.mxu0 %v6160
    %v6243 = vpop.f32.mrf.mxu0
    %v6244 = vadd.f32 0.0, %v6243
    %6245 = vmatmul.f32.gmra.mxu0 %v6161
    %v6246 = vpop.f32.mrf.mxu0
    %v6247 = vadd.f32 0.0, %v6246
    %6248 = vmatmul.f32.gmra.mxu0 %v6162
    %v6249 = vpop.f32.mrf.mxu0
    %v6250 = vadd.f32 0.0, %v6249
    %6251 = vmatmul.f32.gmra.mxu0 %v6163
    %v6252 = vpop.f32.mrf.mxu0
    %v6253 = vadd.f32 0.0, %v6252
    %6254 = vmatmul.f32.gmra.mxu0 %v6164
    %v6255 = vpop.f32.mrf.mxu0
    %v6256 = vadd.f32 0.0, %v6255
    %6257 = vmatmul.f32.gmra.mxu0 %v6165
    %v6258 = vpop.f32.mrf.mxu0
    %v6259 = vadd.f32 0.0, %v6258
    %6260 = vmatmul.f32.gmra.mxu0 %v6166
    %v6261 = vpop.f32.mrf.mxu0
    %v6262 = vadd.f32 0.0, %v6261
    %6263 = vmatmul.f32.gmra.mxu0 %v6167
    %v6264 = vpop.f32.mrf.mxu0
    %v6265 = vadd.f32 0.0, %v6264
    %6266 = vmatmul.f32.gmra.mxu0 %v6168
    %v6267 = vpop.f32.mrf.mxu0
    %v6268 = vadd.f32 0.0, %v6267
    %6269 = vmatmul.f32.gmra.mxu0 %v6169
    %v6270 = vpop.f32.mrf.mxu0
    %v6271 = vadd.f32 0.0, %v6270
    %6272 = vmatmul.f32.gmra.mxu0 %v6170
    %v6273 = vpop.f32.mrf.mxu0
    %v6274 = vadd.f32 0.0, %v6273
    %6275 = vmatmul.f32.gmra.mxu0 %v6171
    %v6276 = vpop.f32.mrf.mxu0
    %v6277 = vadd.f32 0.0, %v6276
    %6278 = vmatmul.f32.gmra.mxu0 %v6172
    %v6279 = vpop.f32.mrf.mxu0
    %v6280 = vadd.f32 0.0, %v6279
    %6281 = vmatmul.f32.gmra.mxu0 %v6173
    %v6282 = vpop.f32.mrf.mxu0
    %v6283 = vadd.f32 0.0, %v6282
    %6284 = vmatmul.f32.gmra.mxu0 %v6174
    %v6285 = vpop.f32.mrf.mxu0
    %v6286 = vadd.f32 0.0, %v6285
    %6287 = vdwg.mxu0
    %v6288 = vmul.f32 %v2320, %v2152
    %v6289 = vmul.f32 %v2321, %v2154
    %v6290 = vmul.f32 %v2322, %v2157
    %v6291 = vmul.f32 %v2323, %v2159
    %v6292 = vmul.f32 %v2324, %v2162
    %v6293 = vmul.f32 %v2325, %v2164
    %v6294 = vmul.f32 %v2326, %v2167
    %v6295 = vmul.f32 %v2327, %v2169
    %v6296 = vmul.f32 %v2328, %v2172
    %v6297 = vmul.f32 %v2329, %v2174
    %v6298 = vmul.f32 %v2330, %v2177
    %v6299 = vmul.f32 %v2331, %v2179
    %v6300 = vmul.f32 %v2332, %v2182
    %v6301 = vmul.f32 %v2333, %v2184
    %v6302 = vmul.f32 %v2334, %v2187
    %v6303 = vmul.f32 %v2335, %v2189
    %v6304 = vmul.f32 %v2336, %v2192
    %v6305 = vmul.f32 %v2337, %v2194
    %v6306 = vmul.f32 %v2338, %v2197
    %v6307 = vmul.f32 %v2339, %v2199
    %v6308 = vmul.f32 %v2340, %v2202
    %v6309 = vmul.f32 %v2341, %v2204
    %v6310 = vmul.f32 %v2342, %v2207
    %v6311 = vmul.f32 %v2343, %v2209
    %v6312 = vmul.f32 %v2344, %v2212
    %v6313 = vmul.f32 %v2345, %v2214
    %v6314 = vmul.f32 %v2346, %v2217
    %v6315 = vmul.f32 %v2347, %v2219
    %v6316 = vmul.f32 %v2348, %v2222
    %v6317 = vmul.f32 %v2349, %v2224
    %v6318 = vmul.f32 %v2350, %v2227
    %v6319 = vmul.f32 %v2351, %v2229
    %6320 = vmatpush.msra.mxu0 %v100
    %6321 = vmatpush.msra.mxu0 %v99
    %6322 = vmatpush.msra.mxu0 %v98
    %6323 = vmatpush.msra.mxu0 %v97
    %6324 = vmatpush.msra.mxu0 %v96
    %6325 = vmatpush.msra.mxu0 %v95
    %6326 = vmatpush.msra.mxu0 %v94
    %6327 = vmatpush.msra.mxu0 %v93
    %6328 = vmatpush.msra.mxu0 %v92
    %6329 = vmatpush.msra.mxu0 %v91
    %6330 = vmatpush.msra.mxu0 %v90
    %6331 = vmatpush.msra.mxu0 %v89
    %6332 = vmatpush.msra.mxu0 %v88
    %6333 = vmatpush.msra.mxu0 %v87
    %6334 = vmatpush.msra.mxu0 %v86
    %6335 = vmatpush.msra.mxu0 %v85
    %6336 = vmatmul.f32.gmra.mxu0 %v6288
    %v6337 = vpop.f32.mrf.mxu0
    %v6338 = vadd.f32 0.0, %v6337
    %6339 = vmatmul.f32.gmra.mxu0 %v6289
    %v6340 = vpop.f32.mrf.mxu0
    %v6341 = vadd.f32 0.0, %v6340
    %6342 = vmatmul.f32.gmra.mxu0 %v6290
    %v6343 = vpop.f32.mrf.mxu0
    %v6344 = vadd.f32 0.0, %v6343
    %6345 = vmatmul.f32.gmra.mxu0 %v6291
    %v6346 = vpop.f32.mrf.mxu0
    %v6347 = vadd.f32 0.0, %v6346
    %6348 = vmatmul.f32.gmra.mxu0 %v6292
    %v6349 = vpop.f32.mrf.mxu0
    %v6350 = vadd.f32 0.0, %v6349
    %6351 = vmatmul.f32.gmra.mxu0 %v6293
    %v6352 = vpop.f32.mrf.mxu0
    %v6353 = vadd.f32 0.0, %v6352
    %6354 = vmatmul.f32.gmra.mxu0 %v6294
    %v6355 = vpop.f32.mrf.mxu0
    %v6356 = vadd.f32 0.0, %v6355
    %6357 = vmatmul.f32.gmra.mxu0 %v6295
    %v6358 = vpop.f32.mrf.mxu0
    %v6359 = vadd.f32 0.0, %v6358
    %6360 = vmatmul.f32.gmra.mxu0 %v6296
    %v6361 = vpop.f32.mrf.mxu0
    %v6362 = vadd.f32 0.0, %v6361
    %6363 = vmatmul.f32.gmra.mxu0 %v6297
    %v6364 = vpop.f32.mrf.mxu0
    %v6365 = vadd.f32 0.0, %v6364
    %6366 = vmatmul.f32.gmra.mxu0 %v6298
    %v6367 = vpop.f32.mrf.mxu0
    %v6368 = vadd.f32 0.0, %v6367
    %6369 = vmatmul.f32.gmra.mxu0 %v6299
    %v6370 = vpop.f32.mrf.mxu0
    %v6371 = vadd.f32 0.0, %v6370
    %6372 = vmatmul.f32.gmra.mxu0 %v6300
    %v6373 = vpop.f32.mrf.mxu0
    %v6374 = vadd.f32 0.0, %v6373
    %6375 = vmatmul.f32.gmra.mxu0 %v6301
    %v6376 = vpop.f32.mrf.mxu0
    %v6377 = vadd.f32 0.0, %v6376
    %6378 = vmatmul.f32.gmra.mxu0 %v6302
    %v6379 = vpop.f32.mrf.mxu0
    %v6380 = vadd.f32 0.0, %v6379
    %6381 = vmatmul.f32.gmra.mxu0 %v6303
    %v6382 = vpop.f32.mrf.mxu0
    %v6383 = vadd.f32 0.0, %v6382
    %6384 = vmatmul.f32.gmra.mxu0 %v6304
    %v6385 = vpop.f32.mrf.mxu0
    %v6386 = vadd.f32 0.0, %v6385
    %6387 = vmatmul.f32.gmra.mxu0 %v6305
    %v6388 = vpop.f32.mrf.mxu0
    %v6389 = vadd.f32 0.0, %v6388
    %6390 = vmatmul.f32.gmra.mxu0 %v6306
    %v6391 = vpop.f32.mrf.mxu0
    %v6392 = vadd.f32 0.0, %v6391
    %6393 = vmatmul.f32.gmra.mxu0 %v6307
    %v6394 = vpop.f32.mrf.mxu0
    %v6395 = vadd.f32 0.0, %v6394
    %6396 = vmatmul.f32.gmra.mxu0 %v6308
    %v6397 = vpop.f32.mrf.mxu0
    %v6398 = vadd.f32 0.0, %v6397
    %6399 = vmatmul.f32.gmra.mxu0 %v6309
    %v6400 = vpop.f32.mrf.mxu0
    %v6401 = vadd.f32 0.0, %v6400
    %6402 = vmatmul.f32.gmra.mxu0 %v6310
    %v6403 = vpop.f32.mrf.mxu0
    %v6404 = vadd.f32 0.0, %v6403
    %6405 = vmatmul.f32.gmra.mxu0 %v6311
    %v6406 = vpop.f32.mrf.mxu0
    %v6407 = vadd.f32 0.0, %v6406
    %6408 = vmatmul.f32.gmra.mxu0 %v6312
    %v6409 = vpop.f32.mrf.mxu0
    %v6410 = vadd.f32 0.0, %v6409
    %6411 = vmatmul.f32.gmra.mxu0 %v6313
    %v6412 = vpop.f32.mrf.mxu0
    %v6413 = vadd.f32 0.0, %v6412
    %6414 = vmatmul.f32.gmra.mxu0 %v6314
    %v6415 = vpop.f32.mrf.mxu0
    %v6416 = vadd.f32 0.0, %v6415
    %6417 = vmatmul.f32.gmra.mxu0 %v6315
    %v6418 = vpop.f32.mrf.mxu0
    %v6419 = vadd.f32 0.0, %v6418
    %6420 = vmatmul.f32.gmra.mxu0 %v6316
    %v6421 = vpop.f32.mrf.mxu0
    %v6422 = vadd.f32 0.0, %v6421
    %6423 = vmatmul.f32.gmra.mxu0 %v6317
    %v6424 = vpop.f32.mrf.mxu0
    %v6425 = vadd.f32 0.0, %v6424
    %6426 = vmatmul.f32.gmra.mxu0 %v6318
    %v6427 = vpop.f32.mrf.mxu0
    %v6428 = vadd.f32 0.0, %v6427
    %6429 = vmatmul.f32.gmra.mxu0 %v6319
    %v6430 = vpop.f32.mrf.mxu0
    %v6431 = vadd.f32 0.0, %v6430
    %6432 = vdwg.mxu0
    %v6433 = vmax.f32 %v6193, %v6338
    %v6434 = vmax.f32 %v6196, %v6341
    %v6435 = vmax.f32 %v6199, %v6344
    %v6436 = vmax.f32 %v6202, %v6347
    %v6437 = vmax.f32 %v6205, %v6350
    %v6438 = vmax.f32 %v6208, %v6353
    %v6439 = vmax.f32 %v6211, %v6356
    %v6440 = vmax.f32 %v6214, %v6359
    %v6441 = vmax.f32 %v6217, %v6362
    %v6442 = vmax.f32 %v6220, %v6365
    %v6443 = vmax.f32 %v6223, %v6368
    %v6444 = vmax.f32 %v6226, %v6371
    %v6445 = vmax.f32 %v6229, %v6374
    %v6446 = vmax.f32 %v6232, %v6377
    %v6447 = vmax.f32 %v6235, %v6380
    %v6448 = vmax.f32 %v6238, %v6383
    %v6449 = vmax.f32 %v6241, %v6386
    %v6450 = vmax.f32 %v6244, %v6389
    %v6451 = vmax.f32 %v6247, %v6392
    %v6452 = vmax.f32 %v6250, %v6395
    %v6453 = vmax.f32 %v6253, %v6398
    %v6454 = vmax.f32 %v6256, %v6401
    %v6455 = vmax.f32 %v6259, %v6404
    %v6456 = vmax.f32 %v6262, %v6407
    %v6457 = vmax.f32 %v6265, %v6410
    %v6458 = vmax.f32 %v6268, %v6413
    %v6459 = vmax.f32 %v6271, %v6416
    %v6460 = vmax.f32 %v6274, %v6419
    %v6461 = vmax.f32 %v6277, %v6422
    %v6462 = vmax.f32 %v6280, %v6425
    %v6463 = vmax.f32 %v6283, %v6428
    %v6464 = vmax.f32 %v6286, %v6431
    %v6465 = vsub.f32 %v6193, %v6433
    %v6466 = vsub.f32 %v6196, %v6434
    %v6467 = vsub.f32 %v6199, %v6435
    %v6468 = vsub.f32 %v6202, %v6436
    %v6469 = vsub.f32 %v6205, %v6437
    %v6470 = vsub.f32 %v6208, %v6438
    %v6471 = vsub.f32 %v6211, %v6439
    %v6472 = vsub.f32 %v6214, %v6440
    %v6473 = vsub.f32 %v6217, %v6441
    %v6474 = vsub.f32 %v6220, %v6442
    %v6475 = vsub.f32 %v6223, %v6443
    %v6476 = vsub.f32 %v6226, %v6444
    %v6477 = vsub.f32 %v6229, %v6445
    %v6478 = vsub.f32 %v6232, %v6446
    %v6479 = vsub.f32 %v6235, %v6447
    %v6480 = vsub.f32 %v6238, %v6448
    %v6481 = vsub.f32 %v6241, %v6449
    %v6482 = vsub.f32 %v6244, %v6450
    %v6483 = vsub.f32 %v6247, %v6451
    %v6484 = vsub.f32 %v6250, %v6452
    %v6485 = vsub.f32 %v6253, %v6453
    %v6486 = vsub.f32 %v6256, %v6454
    %v6487 = vsub.f32 %v6259, %v6455
    %v6488 = vsub.f32 %v6262, %v6456
    %v6489 = vsub.f32 %v6265, %v6457
    %v6490 = vsub.f32 %v6268, %v6458
    %v6491 = vsub.f32 %v6271, %v6459
    %v6492 = vsub.f32 %v6274, %v6460
    %v6493 = vsub.f32 %v6277, %v6461
    %v6494 = vsub.f32 %v6280, %v6462
    %v6495 = vsub.f32 %v6283, %v6463
    %v6496 = vsub.f32 %v6286, %v6464
    %v6497 = vmul.f32 %v6465, 1.442695
    %v6498 = vpow.pop %v6497
    %v6499 = vmul.f32 %v6466, 1.442695
    %v6500 = vpow.pop %v6499
    %v6501 = vmul.f32 %v6467, 1.442695
    %v6502 = vpow.pop %v6501
    %v6503 = vmul.f32 %v6468, 1.442695
    %v6504 = vpow.pop %v6503
    %v6505 = vmul.f32 %v6469, 1.442695
    %v6506 = vpow.pop %v6505
    %v6507 = vmul.f32 %v6470, 1.442695
    %v6508 = vpow.pop %v6507
    %v6509 = vmul.f32 %v6471, 1.442695
    %v6510 = vpow.pop %v6509
    %v6511 = vmul.f32 %v6472, 1.442695
    %v6512 = vpow.pop %v6511
    %v6513 = vmul.f32 %v6473, 1.442695
    %v6514 = vpow.pop %v6513
    %v6515 = vmul.f32 %v6474, 1.442695
    %v6516 = vpow.pop %v6515
    %v6517 = vmul.f32 %v6475, 1.442695
    %v6518 = vpow.pop %v6517
    %v6519 = vmul.f32 %v6476, 1.442695
    %v6520 = vpow.pop %v6519
    %v6521 = vmul.f32 %v6477, 1.442695
    %v6522 = vpow.pop %v6521
    %v6523 = vmul.f32 %v6478, 1.442695
    %v6524 = vpow.pop %v6523
    %v6525 = vmul.f32 %v6479, 1.442695
    %v6526 = vpow.pop %v6525
    %v6527 = vmul.f32 %v6480, 1.442695
    %v6528 = vpow.pop %v6527
    %v6529 = vmul.f32 %v6481, 1.442695
    %v6530 = vpow.pop %v6529
    %v6531 = vmul.f32 %v6482, 1.442695
    %v6532 = vpow.pop %v6531
    %v6533 = vmul.f32 %v6483, 1.442695
    %v6534 = vpow.pop %v6533
    %v6535 = vmul.f32 %v6484, 1.442695
    %v6536 = vpow.pop %v6535
    %v6537 = vmul.f32 %v6485, 1.442695
    %v6538 = vpow.pop %v6537
    %v6539 = vmul.f32 %v6486, 1.442695
    %v6540 = vpow.pop %v6539
    %v6541 = vmul.f32 %v6487, 1.442695
    %v6542 = vpow.pop %v6541
    %v6543 = vmul.f32 %v6488, 1.442695
    %v6544 = vpow.pop %v6543
    %v6545 = vmul.f32 %v6489, 1.442695
    %v6546 = vpow.pop %v6545
    %v6547 = vmul.f32 %v6490, 1.442695
    %v6548 = vpow.pop %v6547
    %v6549 = vmul.f32 %v6491, 1.442695
    %v6550 = vpow.pop %v6549
    %v6551 = vmul.f32 %v6492, 1.442695
    %v6552 = vpow.pop %v6551
    %v6553 = vmul.f32 %v6493, 1.442695
    %v6554 = vpow.pop %v6553
    %v6555 = vmul.f32 %v6494, 1.442695
    %v6556 = vpow.pop %v6555
    %v6557 = vmul.f32 %v6495, 1.442695
    %v6558 = vpow.pop %v6557
    %v6559 = vmul.f32 %v6496, 1.442695
    %v6560 = vpow.pop %v6559
    %v6561 = vsub.f32 %v6338, %v6433
    %v6562 = vsub.f32 %v6341, %v6434
    %v6563 = vsub.f32 %v6344, %v6435
    %v6564 = vsub.f32 %v6347, %v6436
    %v6565 = vsub.f32 %v6350, %v6437
    %v6566 = vsub.f32 %v6353, %v6438
    %v6567 = vsub.f32 %v6356, %v6439
    %v6568 = vsub.f32 %v6359, %v6440
    %v6569 = vsub.f32 %v6362, %v6441
    %v6570 = vsub.f32 %v6365, %v6442
    %v6571 = vsub.f32 %v6368, %v6443
    %v6572 = vsub.f32 %v6371, %v6444
    %v6573 = vsub.f32 %v6374, %v6445
    %v6574 = vsub.f32 %v6377, %v6446
    %v6575 = vsub.f32 %v6380, %v6447
    %v6576 = vsub.f32 %v6383, %v6448
    %v6577 = vsub.f32 %v6386, %v6449
    %v6578 = vsub.f32 %v6389, %v6450
    %v6579 = vsub.f32 %v6392, %v6451
    %v6580 = vsub.f32 %v6395, %v6452
    %v6581 = vsub.f32 %v6398, %v6453
    %v6582 = vsub.f32 %v6401, %v6454
    %v6583 = vsub.f32 %v6404, %v6455
    %v6584 = vsub.f32 %v6407, %v6456
    %v6585 = vsub.f32 %v6410, %v6457
    %v6586 = vsub.f32 %v6413, %v6458
    %v6587 = vsub.f32 %v6416, %v6459
    %v6588 = vsub.f32 %v6419, %v6460
    %v6589 = vsub.f32 %v6422, %v6461
    %v6590 = vsub.f32 %v6425, %v6462
    %v6591 = vsub.f32 %v6428, %v6463
    %v6592 = vsub.f32 %v6431, %v6464
    %v6593 = vmul.f32 %v6561, 1.442695
    %v6594 = vpow.pop %v6593
    %v6595 = vmul.f32 %v6562, 1.442695
    %v6596 = vpow.pop %v6595
    %v6597 = vmul.f32 %v6563, 1.442695
    %v6598 = vpow.pop %v6597
    %v6599 = vmul.f32 %v6564, 1.442695
    %v6600 = vpow.pop %v6599
    %v6601 = vmul.f32 %v6565, 1.442695
    %v6602 = vpow.pop %v6601
    %v6603 = vmul.f32 %v6566, 1.442695
    %v6604 = vpow.pop %v6603
    %v6605 = vmul.f32 %v6567, 1.442695
    %v6606 = vpow.pop %v6605
    %v6607 = vmul.f32 %v6568, 1.442695
    %v6608 = vpow.pop %v6607
    %v6609 = vmul.f32 %v6569, 1.442695
    %v6610 = vpow.pop %v6609
    %v6611 = vmul.f32 %v6570, 1.442695
    %v6612 = vpow.pop %v6611
    %v6613 = vmul.f32 %v6571, 1.442695
    %v6614 = vpow.pop %v6613
    %v6615 = vmul.f32 %v6572, 1.442695
    %v6616 = vpow.pop %v6615
    %v6617 = vmul.f32 %v6573, 1.442695
    %v6618 = vpow.pop %v6617
    %v6619 = vmul.f32 %v6574, 1.442695
    %v6620 = vpow.pop %v6619
    %v6621 = vmul.f32 %v6575, 1.442695
    %v6622 = vpow.pop %v6621
    %v6623 = vmul.f32 %v6576, 1.442695
    %v6624 = vpow.pop %v6623
    %v6625 = vmul.f32 %v6577, 1.442695
    %v6626 = vpow.pop %v6625
    %v6627 = vmul.f32 %v6578, 1.442695
    %v6628 = vpow.pop %v6627
    %v6629 = vmul.f32 %v6579, 1.442695
    %v6630 = vpow.pop %v6629
    %v6631 = vmul.f32 %v6580, 1.442695
    %v6632 = vpow.pop %v6631
    %v6633 = vmul.f32 %v6581, 1.442695
    %v6634 = vpow.pop %v6633
    %v6635 = vmul.f32 %v6582, 1.442695
    %v6636 = vpow.pop %v6635
    %v6637 = vmul.f32 %v6583, 1.442695
    %v6638 = vpow.pop %v6637
    %v6639 = vmul.f32 %v6584, 1.442695
    %v6640 = vpow.pop %v6639
    %v6641 = vmul.f32 %v6585, 1.442695
    %v6642 = vpow.pop %v6641
    %v6643 = vmul.f32 %v6586, 1.442695
    %v6644 = vpow.pop %v6643
    %v6645 = vmul.f32 %v6587, 1.442695
    %v6646 = vpow.pop %v6645
    %v6647 = vmul.f32 %v6588, 1.442695
    %v6648 = vpow.pop %v6647
    %v6649 = vmul.f32 %v6589, 1.442695
    %v6650 = vpow.pop %v6649
    %v6651 = vmul.f32 %v6590, 1.442695
    %v6652 = vpow.pop %v6651
    %v6653 = vmul.f32 %v6591, 1.442695
    %v6654 = vpow.pop %v6653
    %v6655 = vmul.f32 %v6592, 1.442695
    %v6656 = vpow.pop %v6655
    %v6657 = vadd.f32 %v6498, %v6594
    %v6658 = vadd.f32 %v6500, %v6596
    %v6659 = vadd.f32 %v6502, %v6598
    %v6660 = vadd.f32 %v6504, %v6600
    %v6661 = vadd.f32 %v6506, %v6602
    %v6662 = vadd.f32 %v6508, %v6604
    %v6663 = vadd.f32 %v6510, %v6606
    %v6664 = vadd.f32 %v6512, %v6608
    %v6665 = vadd.f32 %v6514, %v6610
    %v6666 = vadd.f32 %v6516, %v6612
    %v6667 = vadd.f32 %v6518, %v6614
    %v6668 = vadd.f32 %v6520, %v6616
    %v6669 = vadd.f32 %v6522, %v6618
    %v6670 = vadd.f32 %v6524, %v6620
    %v6671 = vadd.f32 %v6526, %v6622
    %v6672 = vadd.f32 %v6528, %v6624
    %v6673 = vadd.f32 %v6530, %v6626
    %v6674 = vadd.f32 %v6532, %v6628
    %v6675 = vadd.f32 %v6534, %v6630
    %v6676 = vadd.f32 %v6536, %v6632
    %v6677 = vadd.f32 %v6538, %v6634
    %v6678 = vadd.f32 %v6540, %v6636
    %v6679 = vadd.f32 %v6542, %v6638
    %v6680 = vadd.f32 %v6544, %v6640
    %v6681 = vadd.f32 %v6546, %v6642
    %v6682 = vadd.f32 %v6548, %v6644
    %v6683 = vadd.f32 %v6550, %v6646
    %v6684 = vadd.f32 %v6552, %v6648
    %v6685 = vadd.f32 %v6554, %v6650
    %v6686 = vadd.f32 %v6556, %v6652
    %v6687 = vadd.f32 %v6558, %v6654
    %v6688 = vadd.f32 %v6560, %v6656
    %v6689 = vrcp.pop %v6657
    %v6690 = vmul.f32 %v6657, %v6689
    %v6691 = vsub.f32 1.0, %v6690
    %v6692 = vmul.f32 %v6689, %v6691
    %v6693 = vadd.f32 %v6689, %v6692
    %vm6694 = vweird.f32 %v6657
    %vm6695 = vweird.f32 %v6689
    %vm6696 = vmor %vm6694, %vm6695
    %v6697 = vsel %vm6696, %v6689, %v6693
    %v6698 = vand.u32 2147483647, %v6657
    %vm6699 = vcmp.eq.f32.partialorder %v6698, 8.507059e+37
    %v6700 = vand.u32 %v6657, 2147483648
    %v6701 = vor.u32 1.1754944e-38, %v6700
    %v6702 = vsel %vm6699, %v6701, %v6697
    %v6703 = vmul.f32 1.0, %v6702
    %v6704 = vrcp.pop %v6658
    %v6705 = vmul.f32 %v6658, %v6704
    %v6706 = vsub.f32 1.0, %v6705
    %v6707 = vmul.f32 %v6704, %v6706
    %v6708 = vadd.f32 %v6704, %v6707
    %vm6709 = vweird.f32 %v6658
    %vm6710 = vweird.f32 %v6704
    %vm6711 = vmor %vm6709, %vm6710
    %v6712 = vsel %vm6711, %v6704, %v6708
    %v6713 = vand.u32 2147483647, %v6658
    %vm6714 = vcmp.eq.f32.partialorder %v6713, 8.507059e+37
    %v6715 = vand.u32 %v6658, 2147483648
    %v6716 = vor.u32 1.1754944e-38, %v6715
    %v6717 = vsel %vm6714, %v6716, %v6712
    %v6718 = vmul.f32 1.0, %v6717
    %v6719 = vrcp.pop %v6659
    %v6720 = vmul.f32 %v6659, %v6719
    %v6721 = vsub.f32 1.0, %v6720
    %v6722 = vmul.f32 %v6719, %v6721
    %v6723 = vadd.f32 %v6719, %v6722
    %vm6724 = vweird.f32 %v6659
    %vm6725 = vweird.f32 %v6719
    %vm6726 = vmor %vm6724, %vm6725
    %v6727 = vsel %vm6726, %v6719, %v6723
    %v6728 = vand.u32 2147483647, %v6659
    %vm6729 = vcmp.eq.f32.partialorder %v6728, 8.507059e+37
    %v6730 = vand.u32 %v6659, 2147483648
    %v6731 = vor.u32 1.1754944e-38, %v6730
    %v6732 = vsel %vm6729, %v6731, %v6727
    %v6733 = vmul.f32 1.0, %v6732
    %v6734 = vrcp.pop %v6660
    %v6735 = vmul.f32 %v6660, %v6734
    %v6736 = vsub.f32 1.0, %v6735
    %v6737 = vmul.f32 %v6734, %v6736
    %v6738 = vadd.f32 %v6734, %v6737
    %vm6739 = vweird.f32 %v6660
    %vm6740 = vweird.f32 %v6734
    %vm6741 = vmor %vm6739, %vm6740
    %v6742 = vsel %vm6741, %v6734, %v6738
    %v6743 = vand.u32 2147483647, %v6660
    %vm6744 = vcmp.eq.f32.partialorder %v6743, 8.507059e+37
    %v6745 = vand.u32 %v6660, 2147483648
    %v6746 = vor.u32 1.1754944e-38, %v6745
    %v6747 = vsel %vm6744, %v6746, %v6742
    %v6748 = vmul.f32 1.0, %v6747
    %v6749 = vrcp.pop %v6661
    %v6750 = vmul.f32 %v6661, %v6749
    %v6751 = vsub.f32 1.0, %v6750
    %v6752 = vmul.f32 %v6749, %v6751
    %v6753 = vadd.f32 %v6749, %v6752
    %vm6754 = vweird.f32 %v6661
    %vm6755 = vweird.f32 %v6749
    %vm6756 = vmor %vm6754, %vm6755
    %v6757 = vsel %vm6756, %v6749, %v6753
    %v6758 = vand.u32 2147483647, %v6661
    %vm6759 = vcmp.eq.f32.partialorder %v6758, 8.507059e+37
    %v6760 = vand.u32 %v6661, 2147483648
    %v6761 = vor.u32 1.1754944e-38, %v6760
    %v6762 = vsel %vm6759, %v6761, %v6757
    %v6763 = vmul.f32 1.0, %v6762
    %v6764 = vrcp.pop %v6662
    %v6765 = vmul.f32 %v6662, %v6764
    %v6766 = vsub.f32 1.0, %v6765
    %v6767 = vmul.f32 %v6764, %v6766
    %v6768 = vadd.f32 %v6764, %v6767
    %vm6769 = vweird.f32 %v6662
    %vm6770 = vweird.f32 %v6764
    %vm6771 = vmor %vm6769, %vm6770
    %v6772 = vsel %vm6771, %v6764, %v6768
    %v6773 = vand.u32 2147483647, %v6662
    %vm6774 = vcmp.eq.f32.partialorder %v6773, 8.507059e+37
    %v6775 = vand.u32 %v6662, 2147483648
    %v6776 = vor.u32 1.1754944e-38, %v6775
    %v6777 = vsel %vm6774, %v6776, %v6772
    %v6778 = vmul.f32 1.0, %v6777
    %v6779 = vrcp.pop %v6663
    %v6780 = vmul.f32 %v6663, %v6779
    %v6781 = vsub.f32 1.0, %v6780
    %v6782 = vmul.f32 %v6779, %v6781
    %v6783 = vadd.f32 %v6779, %v6782
    %vm6784 = vweird.f32 %v6663
    %vm6785 = vweird.f32 %v6779
    %vm6786 = vmor %vm6784, %vm6785
    %v6787 = vsel %vm6786, %v6779, %v6783
    %v6788 = vand.u32 2147483647, %v6663
    %vm6789 = vcmp.eq.f32.partialorder %v6788, 8.507059e+37
    %v6790 = vand.u32 %v6663, 2147483648
    %v6791 = vor.u32 1.1754944e-38, %v6790
    %v6792 = vsel %vm6789, %v6791, %v6787
    %v6793 = vmul.f32 1.0, %v6792
    %v6794 = vrcp.pop %v6664
    %v6795 = vmul.f32 %v6664, %v6794
    %v6796 = vsub.f32 1.0, %v6795
    %v6797 = vmul.f32 %v6794, %v6796
    %v6798 = vadd.f32 %v6794, %v6797
    %vm6799 = vweird.f32 %v6664
    %vm6800 = vweird.f32 %v6794
    %vm6801 = vmor %vm6799, %vm6800
    %v6802 = vsel %vm6801, %v6794, %v6798
    %v6803 = vand.u32 2147483647, %v6664
    %vm6804 = vcmp.eq.f32.partialorder %v6803, 8.507059e+37
    %v6805 = vand.u32 %v6664, 2147483648
    %v6806 = vor.u32 1.1754944e-38, %v6805
    %v6807 = vsel %vm6804, %v6806, %v6802
    %v6808 = vmul.f32 1.0, %v6807
    %v6809 = vrcp.pop %v6665
    %v6810 = vmul.f32 %v6665, %v6809
    %v6811 = vsub.f32 1.0, %v6810
    %v6812 = vmul.f32 %v6809, %v6811
    %v6813 = vadd.f32 %v6809, %v6812
    %vm6814 = vweird.f32 %v6665
    %vm6815 = vweird.f32 %v6809
    %vm6816 = vmor %vm6814, %vm6815
    %v6817 = vsel %vm6816, %v6809, %v6813
    %v6818 = vand.u32 2147483647, %v6665
    %vm6819 = vcmp.eq.f32.partialorder %v6818, 8.507059e+37
    %v6820 = vand.u32 %v6665, 2147483648
    %v6821 = vor.u32 1.1754944e-38, %v6820
    %v6822 = vsel %vm6819, %v6821, %v6817
    %v6823 = vmul.f32 1.0, %v6822
    %v6824 = vrcp.pop %v6666
    %v6825 = vmul.f32 %v6666, %v6824
    %v6826 = vsub.f32 1.0, %v6825
    %v6827 = vmul.f32 %v6824, %v6826
    %v6828 = vadd.f32 %v6824, %v6827
    %vm6829 = vweird.f32 %v6666
    %vm6830 = vweird.f32 %v6824
    %vm6831 = vmor %vm6829, %vm6830
    %v6832 = vsel %vm6831, %v6824, %v6828
    %v6833 = vand.u32 2147483647, %v6666
    %vm6834 = vcmp.eq.f32.partialorder %v6833, 8.507059e+37
    %v6835 = vand.u32 %v6666, 2147483648
    %v6836 = vor.u32 1.1754944e-38, %v6835
    %v6837 = vsel %vm6834, %v6836, %v6832
    %v6838 = vmul.f32 1.0, %v6837
    %v6839 = vrcp.pop %v6667
    %v6840 = vmul.f32 %v6667, %v6839
    %v6841 = vsub.f32 1.0, %v6840
    %v6842 = vmul.f32 %v6839, %v6841
    %v6843 = vadd.f32 %v6839, %v6842
    %vm6844 = vweird.f32 %v6667
    %vm6845 = vweird.f32 %v6839
    %vm6846 = vmor %vm6844, %vm6845
    %v6847 = vsel %vm6846, %v6839, %v6843
    %v6848 = vand.u32 2147483647, %v6667
    %vm6849 = vcmp.eq.f32.partialorder %v6848, 8.507059e+37
    %v6850 = vand.u32 %v6667, 2147483648
    %v6851 = vor.u32 1.1754944e-38, %v6850
    %v6852 = vsel %vm6849, %v6851, %v6847
    %v6853 = vmul.f32 1.0, %v6852
    %v6854 = vrcp.pop %v6668
    %v6855 = vmul.f32 %v6668, %v6854
    %v6856 = vsub.f32 1.0, %v6855
    %v6857 = vmul.f32 %v6854, %v6856
    %v6858 = vadd.f32 %v6854, %v6857
    %vm6859 = vweird.f32 %v6668
    %vm6860 = vweird.f32 %v6854
    %vm6861 = vmor %vm6859, %vm6860
    %v6862 = vsel %vm6861, %v6854, %v6858
    %v6863 = vand.u32 2147483647, %v6668
    %vm6864 = vcmp.eq.f32.partialorder %v6863, 8.507059e+37
    %v6865 = vand.u32 %v6668, 2147483648
    %v6866 = vor.u32 1.1754944e-38, %v6865
    %v6867 = vsel %vm6864, %v6866, %v6862
    %v6868 = vmul.f32 1.0, %v6867
    %v6869 = vrcp.pop %v6669
    %v6870 = vmul.f32 %v6669, %v6869
    %v6871 = vsub.f32 1.0, %v6870
    %v6872 = vmul.f32 %v6869, %v6871
    %v6873 = vadd.f32 %v6869, %v6872
    %vm6874 = vweird.f32 %v6669
    %vm6875 = vweird.f32 %v6869
    %vm6876 = vmor %vm6874, %vm6875
    %v6877 = vsel %vm6876, %v6869, %v6873
    %v6878 = vand.u32 2147483647, %v6669
    %vm6879 = vcmp.eq.f32.partialorder %v6878, 8.507059e+37
    %v6880 = vand.u32 %v6669, 2147483648
    %v6881 = vor.u32 1.1754944e-38, %v6880
    %v6882 = vsel %vm6879, %v6881, %v6877
    %v6883 = vmul.f32 1.0, %v6882
    %v6884 = vrcp.pop %v6670
    %v6885 = vmul.f32 %v6670, %v6884
    %v6886 = vsub.f32 1.0, %v6885
    %v6887 = vmul.f32 %v6884, %v6886
    %v6888 = vadd.f32 %v6884, %v6887
    %vm6889 = vweird.f32 %v6670
    %vm6890 = vweird.f32 %v6884
    %vm6891 = vmor %vm6889, %vm6890
    %v6892 = vsel %vm6891, %v6884, %v6888
    %v6893 = vand.u32 2147483647, %v6670
    %vm6894 = vcmp.eq.f32.partialorder %v6893, 8.507059e+37
    %v6895 = vand.u32 %v6670, 2147483648
    %v6896 = vor.u32 1.1754944e-38, %v6895
    %v6897 = vsel %vm6894, %v6896, %v6892
    %v6898 = vmul.f32 1.0, %v6897
    %v6899 = vrcp.pop %v6671
    %v6900 = vmul.f32 %v6671, %v6899
    %v6901 = vsub.f32 1.0, %v6900
    %v6902 = vmul.f32 %v6899, %v6901
    %v6903 = vadd.f32 %v6899, %v6902
    %vm6904 = vweird.f32 %v6671
    %vm6905 = vweird.f32 %v6899
    %vm6906 = vmor %vm6904, %vm6905
    %v6907 = vsel %vm6906, %v6899, %v6903
    %v6908 = vand.u32 2147483647, %v6671
    %vm6909 = vcmp.eq.f32.partialorder %v6908, 8.507059e+37
    %v6910 = vand.u32 %v6671, 2147483648
    %v6911 = vor.u32 1.1754944e-38, %v6910
    %v6912 = vsel %vm6909, %v6911, %v6907
    %v6913 = vmul.f32 1.0, %v6912
    %v6914 = vrcp.pop %v6672
    %v6915 = vmul.f32 %v6672, %v6914
    %v6916 = vsub.f32 1.0, %v6915
    %v6917 = vmul.f32 %v6914, %v6916
    %v6918 = vadd.f32 %v6914, %v6917
    %vm6919 = vweird.f32 %v6672
    %vm6920 = vweird.f32 %v6914
    %vm6921 = vmor %vm6919, %vm6920
    %v6922 = vsel %vm6921, %v6914, %v6918
    %v6923 = vand.u32 2147483647, %v6672
    %vm6924 = vcmp.eq.f32.partialorder %v6923, 8.507059e+37
    %v6925 = vand.u32 %v6672, 2147483648
    %v6926 = vor.u32 1.1754944e-38, %v6925
    %v6927 = vsel %vm6924, %v6926, %v6922
    %v6928 = vmul.f32 1.0, %v6927
    %v6929 = vrcp.pop %v6673
    %v6930 = vmul.f32 %v6673, %v6929
    %v6931 = vsub.f32 1.0, %v6930
    %v6932 = vmul.f32 %v6929, %v6931
    %v6933 = vadd.f32 %v6929, %v6932
    %vm6934 = vweird.f32 %v6673
    %vm6935 = vweird.f32 %v6929
    %vm6936 = vmor %vm6934, %vm6935
    %v6937 = vsel %vm6936, %v6929, %v6933
    %v6938 = vand.u32 2147483647, %v6673
    %vm6939 = vcmp.eq.f32.partialorder %v6938, 8.507059e+37
    %v6940 = vand.u32 %v6673, 2147483648
    %v6941 = vor.u32 1.1754944e-38, %v6940
    %v6942 = vsel %vm6939, %v6941, %v6937
    %v6943 = vmul.f32 1.0, %v6942
    %v6944 = vrcp.pop %v6674
    %v6945 = vmul.f32 %v6674, %v6944
    %v6946 = vsub.f32 1.0, %v6945
    %v6947 = vmul.f32 %v6944, %v6946
    %v6948 = vadd.f32 %v6944, %v6947
    %vm6949 = vweird.f32 %v6674
    %vm6950 = vweird.f32 %v6944
    %vm6951 = vmor %vm6949, %vm6950
    %v6952 = vsel %vm6951, %v6944, %v6948
    %v6953 = vand.u32 2147483647, %v6674
    %vm6954 = vcmp.eq.f32.partialorder %v6953, 8.507059e+37
    %v6955 = vand.u32 %v6674, 2147483648
    %v6956 = vor.u32 1.1754944e-38, %v6955
    %v6957 = vsel %vm6954, %v6956, %v6952
    %v6958 = vmul.f32 1.0, %v6957
    %v6959 = vrcp.pop %v6675
    %v6960 = vmul.f32 %v6675, %v6959
    %v6961 = vsub.f32 1.0, %v6960
    %v6962 = vmul.f32 %v6959, %v6961
    %v6963 = vadd.f32 %v6959, %v6962
    %vm6964 = vweird.f32 %v6675
    %vm6965 = vweird.f32 %v6959
    %vm6966 = vmor %vm6964, %vm6965
    %v6967 = vsel %vm6966, %v6959, %v6963
    %v6968 = vand.u32 2147483647, %v6675
    %vm6969 = vcmp.eq.f32.partialorder %v6968, 8.507059e+37
    %v6970 = vand.u32 %v6675, 2147483648
    %v6971 = vor.u32 1.1754944e-38, %v6970
    %v6972 = vsel %vm6969, %v6971, %v6967
    %v6973 = vmul.f32 1.0, %v6972
    %v6974 = vrcp.pop %v6676
    %v6975 = vmul.f32 %v6676, %v6974
    %v6976 = vsub.f32 1.0, %v6975
    %v6977 = vmul.f32 %v6974, %v6976
    %v6978 = vadd.f32 %v6974, %v6977
    %vm6979 = vweird.f32 %v6676
    %vm6980 = vweird.f32 %v6974
    %vm6981 = vmor %vm6979, %vm6980
    %v6982 = vsel %vm6981, %v6974, %v6978
    %v6983 = vand.u32 2147483647, %v6676
    %vm6984 = vcmp.eq.f32.partialorder %v6983, 8.507059e+37
    %v6985 = vand.u32 %v6676, 2147483648
    %v6986 = vor.u32 1.1754944e-38, %v6985
    %v6987 = vsel %vm6984, %v6986, %v6982
    %v6988 = vmul.f32 1.0, %v6987
    %v6989 = vrcp.pop %v6677
    %v6990 = vmul.f32 %v6677, %v6989
    %v6991 = vsub.f32 1.0, %v6990
    %v6992 = vmul.f32 %v6989, %v6991
    %v6993 = vadd.f32 %v6989, %v6992
    %vm6994 = vweird.f32 %v6677
    %vm6995 = vweird.f32 %v6989
    %vm6996 = vmor %vm6994, %vm6995
    %v6997 = vsel %vm6996, %v6989, %v6993
    %v6998 = vand.u32 2147483647, %v6677
    %vm6999 = vcmp.eq.f32.partialorder %v6998, 8.507059e+37
    %v7000 = vand.u32 %v6677, 2147483648
    %v7001 = vor.u32 1.1754944e-38, %v7000
    %v7002 = vsel %vm6999, %v7001, %v6997
    %v7003 = vmul.f32 1.0, %v7002
    %v7004 = vrcp.pop %v6678
    %v7005 = vmul.f32 %v6678, %v7004
    %v7006 = vsub.f32 1.0, %v7005
    %v7007 = vmul.f32 %v7004, %v7006
    %v7008 = vadd.f32 %v7004, %v7007
    %vm7009 = vweird.f32 %v6678
    %vm7010 = vweird.f32 %v7004
    %vm7011 = vmor %vm7009, %vm7010
    %v7012 = vsel %vm7011, %v7004, %v7008
    %v7013 = vand.u32 2147483647, %v6678
    %vm7014 = vcmp.eq.f32.partialorder %v7013, 8.507059e+37
    %v7015 = vand.u32 %v6678, 2147483648
    %v7016 = vor.u32 1.1754944e-38, %v7015
    %v7017 = vsel %vm7014, %v7016, %v7012
    %v7018 = vmul.f32 1.0, %v7017
    %v7019 = vrcp.pop %v6679
    %v7020 = vmul.f32 %v6679, %v7019
    %v7021 = vsub.f32 1.0, %v7020
    %v7022 = vmul.f32 %v7019, %v7021
    %v7023 = vadd.f32 %v7019, %v7022
    %vm7024 = vweird.f32 %v6679
    %vm7025 = vweird.f32 %v7019
    %vm7026 = vmor %vm7024, %vm7025
    %v7027 = vsel %vm7026, %v7019, %v7023
    %v7028 = vand.u32 2147483647, %v6679
    %vm7029 = vcmp.eq.f32.partialorder %v7028, 8.507059e+37
    %v7030 = vand.u32 %v6679, 2147483648
    %v7031 = vor.u32 1.1754944e-38, %v7030
    %v7032 = vsel %vm7029, %v7031, %v7027
    %v7033 = vmul.f32 1.0, %v7032
    %v7034 = vrcp.pop %v6680
    %v7035 = vmul.f32 %v6680, %v7034
    %v7036 = vsub.f32 1.0, %v7035
    %v7037 = vmul.f32 %v7034, %v7036
    %v7038 = vadd.f32 %v7034, %v7037
    %vm7039 = vweird.f32 %v6680
    %vm7040 = vweird.f32 %v7034
    %vm7041 = vmor %vm7039, %vm7040
    %v7042 = vsel %vm7041, %v7034, %v7038
    %v7043 = vand.u32 2147483647, %v6680
    %vm7044 = vcmp.eq.f32.partialorder %v7043, 8.507059e+37
    %v7045 = vand.u32 %v6680, 2147483648
    %v7046 = vor.u32 1.1754944e-38, %v7045
    %v7047 = vsel %vm7044, %v7046, %v7042
    %v7048 = vmul.f32 1.0, %v7047
    %v7049 = vrcp.pop %v6681
    %v7050 = vmul.f32 %v6681, %v7049
    %v7051 = vsub.f32 1.0, %v7050
    %v7052 = vmul.f32 %v7049, %v7051
    %v7053 = vadd.f32 %v7049, %v7052
    %vm7054 = vweird.f32 %v6681
    %vm7055 = vweird.f32 %v7049
    %vm7056 = vmor %vm7054, %vm7055
    %v7057 = vsel %vm7056, %v7049, %v7053
    %v7058 = vand.u32 2147483647, %v6681
    %vm7059 = vcmp.eq.f32.partialorder %v7058, 8.507059e+37
    %v7060 = vand.u32 %v6681, 2147483648
    %v7061 = vor.u32 1.1754944e-38, %v7060
    %v7062 = vsel %vm7059, %v7061, %v7057
    %v7063 = vmul.f32 1.0, %v7062
    %v7064 = vrcp.pop %v6682
    %v7065 = vmul.f32 %v6682, %v7064
    %v7066 = vsub.f32 1.0, %v7065
    %v7067 = vmul.f32 %v7064, %v7066
    %v7068 = vadd.f32 %v7064, %v7067
    %vm7069 = vweird.f32 %v6682
    %vm7070 = vweird.f32 %v7064
    %vm7071 = vmor %vm7069, %vm7070
    %v7072 = vsel %vm7071, %v7064, %v7068
    %v7073 = vand.u32 2147483647, %v6682
    %vm7074 = vcmp.eq.f32.partialorder %v7073, 8.507059e+37
    %v7075 = vand.u32 %v6682, 2147483648
    %v7076 = vor.u32 1.1754944e-38, %v7075
    %v7077 = vsel %vm7074, %v7076, %v7072
    %v7078 = vmul.f32 1.0, %v7077
    %v7079 = vrcp.pop %v6683
    %v7080 = vmul.f32 %v6683, %v7079
    %v7081 = vsub.f32 1.0, %v7080
    %v7082 = vmul.f32 %v7079, %v7081
    %v7083 = vadd.f32 %v7079, %v7082
    %vm7084 = vweird.f32 %v6683
    %vm7085 = vweird.f32 %v7079
    %vm7086 = vmor %vm7084, %vm7085
    %v7087 = vsel %vm7086, %v7079, %v7083
    %v7088 = vand.u32 2147483647, %v6683
    %vm7089 = vcmp.eq.f32.partialorder %v7088, 8.507059e+37
    %v7090 = vand.u32 %v6683, 2147483648
    %v7091 = vor.u32 1.1754944e-38, %v7090
    %v7092 = vsel %vm7089, %v7091, %v7087
    %v7093 = vmul.f32 1.0, %v7092
    %v7094 = vrcp.pop %v6684
    %v7095 = vmul.f32 %v6684, %v7094
    %v7096 = vsub.f32 1.0, %v7095
    %v7097 = vmul.f32 %v7094, %v7096
    %v7098 = vadd.f32 %v7094, %v7097
    %vm7099 = vweird.f32 %v6684
    %vm7100 = vweird.f32 %v7094
    %vm7101 = vmor %vm7099, %vm7100
    %v7102 = vsel %vm7101, %v7094, %v7098
    %v7103 = vand.u32 2147483647, %v6684
    %vm7104 = vcmp.eq.f32.partialorder %v7103, 8.507059e+37
    %v7105 = vand.u32 %v6684, 2147483648
    %v7106 = vor.u32 1.1754944e-38, %v7105
    %v7107 = vsel %vm7104, %v7106, %v7102
    %v7108 = vmul.f32 1.0, %v7107
    %v7109 = vrcp.pop %v6685
    %v7110 = vmul.f32 %v6685, %v7109
    %v7111 = vsub.f32 1.0, %v7110
    %v7112 = vmul.f32 %v7109, %v7111
    %v7113 = vadd.f32 %v7109, %v7112
    %vm7114 = vweird.f32 %v6685
    %vm7115 = vweird.f32 %v7109
    %vm7116 = vmor %vm7114, %vm7115
    %v7117 = vsel %vm7116, %v7109, %v7113
    %v7118 = vand.u32 2147483647, %v6685
    %vm7119 = vcmp.eq.f32.partialorder %v7118, 8.507059e+37
    %v7120 = vand.u32 %v6685, 2147483648
    %v7121 = vor.u32 1.1754944e-38, %v7120
    %v7122 = vsel %vm7119, %v7121, %v7117
    %v7123 = vmul.f32 1.0, %v7122
    %v7124 = vrcp.pop %v6686
    %v7125 = vmul.f32 %v6686, %v7124
    %v7126 = vsub.f32 1.0, %v7125
    %v7127 = vmul.f32 %v7124, %v7126
    %v7128 = vadd.f32 %v7124, %v7127
    %vm7129 = vweird.f32 %v6686
    %vm7130 = vweird.f32 %v7124
    %vm7131 = vmor %vm7129, %vm7130
    %v7132 = vsel %vm7131, %v7124, %v7128
    %v7133 = vand.u32 2147483647, %v6686
    %vm7134 = vcmp.eq.f32.partialorder %v7133, 8.507059e+37
    %v7135 = vand.u32 %v6686, 2147483648
    %v7136 = vor.u32 1.1754944e-38, %v7135
    %v7137 = vsel %vm7134, %v7136, %v7132
    %v7138 = vmul.f32 1.0, %v7137
    %v7139 = vrcp.pop %v6687
    %v7140 = vmul.f32 %v6687, %v7139
    %v7141 = vsub.f32 1.0, %v7140
    %v7142 = vmul.f32 %v7139, %v7141
    %v7143 = vadd.f32 %v7139, %v7142
    %vm7144 = vweird.f32 %v6687
    %vm7145 = vweird.f32 %v7139
    %vm7146 = vmor %vm7144, %vm7145
    %v7147 = vsel %vm7146, %v7139, %v7143
    %v7148 = vand.u32 2147483647, %v6687
    %vm7149 = vcmp.eq.f32.partialorder %v7148, 8.507059e+37
    %v7150 = vand.u32 %v6687, 2147483648
    %v7151 = vor.u32 1.1754944e-38, %v7150
    %v7152 = vsel %vm7149, %v7151, %v7147
    %v7153 = vmul.f32 1.0, %v7152
    %v7154 = vrcp.pop %v6688
    %v7155 = vmul.f32 %v6688, %v7154
    %v7156 = vsub.f32 1.0, %v7155
    %v7157 = vmul.f32 %v7154, %v7156
    %v7158 = vadd.f32 %v7154, %v7157
    %vm7159 = vweird.f32 %v6688
    %vm7160 = vweird.f32 %v7154
    %vm7161 = vmor %vm7159, %vm7160
    %v7162 = vsel %vm7161, %v7154, %v7158
    %v7163 = vand.u32 2147483647, %v6688
    %vm7164 = vcmp.eq.f32.partialorder %v7163, 8.507059e+37
    %v7165 = vand.u32 %v6688, 2147483648
    %v7166 = vor.u32 1.1754944e-38, %v7165
    %v7167 = vsel %vm7164, %v7166, %v7162
    %v7168 = vmul.f32 1.0, %v7167
    %v7169 = vmul.f32 %v6498, %v6703
    %v7170 = vmul.f32 %v6500, %v6718
    %v7171 = vmul.f32 %v6502, %v6733
    %v7172 = vmul.f32 %v6504, %v6748
    %v7173 = vmul.f32 %v6506, %v6763
    %v7174 = vmul.f32 %v6508, %v6778
    %v7175 = vmul.f32 %v6510, %v6793
    %v7176 = vmul.f32 %v6512, %v6808
    %v7177 = vmul.f32 %v6514, %v6823
    %v7178 = vmul.f32 %v6516, %v6838
    %v7179 = vmul.f32 %v6518, %v6853
    %v7180 = vmul.f32 %v6520, %v6868
    %v7181 = vmul.f32 %v6522, %v6883
    %v7182 = vmul.f32 %v6524, %v6898
    %v7183 = vmul.f32 %v6526, %v6913
    %v7184 = vmul.f32 %v6528, %v6928
    %v7185 = vmul.f32 %v6530, %v6943
    %v7186 = vmul.f32 %v6532, %v6958
    %v7187 = vmul.f32 %v6534, %v6973
    %v7188 = vmul.f32 %v6536, %v6988
    %v7189 = vmul.f32 %v6538, %v7003
    %v7190 = vmul.f32 %v6540, %v7018
    %v7191 = vmul.f32 %v6542, %v7033
    %v7192 = vmul.f32 %v6544, %v7048
    %v7193 = vmul.f32 %v6546, %v7063
    %v7194 = vmul.f32 %v6548, %v7078
    %v7195 = vmul.f32 %v6550, %v7093
    %v7196 = vmul.f32 %v6552, %v7108
    %v7197 = vmul.f32 %v6554, %v7123
    %v7198 = vmul.f32 %v6556, %v7138
    %v7199 = vmul.f32 %v6558, %v7153
    %v7200 = vmul.f32 %v6560, %v7168
    %v7201 = vmul.f32 %v7169, %v1189
    %v7202 = vmul.f32 %v7170, %v1191
    %v7203 = vmul.f32 %v7171, %v1194
    %v7204 = vmul.f32 %v7172, %v1196
    %v7205 = vmul.f32 %v7173, %v1199
    %v7206 = vmul.f32 %v7174, %v1201
    %v7207 = vmul.f32 %v7175, %v1204
    %v7208 = vmul.f32 %v7176, %v1206
    %v7209 = vmul.f32 %v7177, %v1209
    %v7210 = vmul.f32 %v7178, %v1211
    %v7211 = vmul.f32 %v7179, %v1214
    %v7212 = vmul.f32 %v7180, %v1216
    %v7213 = vmul.f32 %v7181, %v1219
    %v7214 = vmul.f32 %v7182, %v1221
    %v7215 = vmul.f32 %v7183, %v1224
    %v7216 = vmul.f32 %v7184, %v1226
    %v7217 = vmul.f32 %v7185, %v1229
    %v7218 = vmul.f32 %v7186, %v1231
    %v7219 = vmul.f32 %v7187, %v1234
    %v7220 = vmul.f32 %v7188, %v1236
    %v7221 = vmul.f32 %v7189, %v1239
    %v7222 = vmul.f32 %v7190, %v1241
    %v7223 = vmul.f32 %v7191, %v1244
    %v7224 = vmul.f32 %v7192, %v1246
    %v7225 = vmul.f32 %v7193, %v1249
    %v7226 = vmul.f32 %v7194, %v1251
    %v7227 = vmul.f32 %v7195, %v1254
    %v7228 = vmul.f32 %v7196, %v1256
    %v7229 = vmul.f32 %v7197, %v1259
    %v7230 = vmul.f32 %v7198, %v1261
    %v7231 = vmul.f32 %v7199, %v1264
    %v7232 = vmul.f32 %v7200, %v1266
    %v7233 = vmul.f32 %v6594, %v6703
    %v7234 = vmul.f32 %v6596, %v6718
    %v7235 = vmul.f32 %v6598, %v6733
    %v7236 = vmul.f32 %v6600, %v6748
    %v7237 = vmul.f32 %v6602, %v6763
    %v7238 = vmul.f32 %v6604, %v6778
    %v7239 = vmul.f32 %v6606, %v6793
    %v7240 = vmul.f32 %v6608, %v6808
    %v7241 = vmul.f32 %v6610, %v6823
    %v7242 = vmul.f32 %v6612, %v6838
    %v7243 = vmul.f32 %v6614, %v6853
    %v7244 = vmul.f32 %v6616, %v6868
    %v7245 = vmul.f32 %v6618, %v6883
    %v7246 = vmul.f32 %v6620, %v6898
    %v7247 = vmul.f32 %v6622, %v6913
    %v7248 = vmul.f32 %v6624, %v6928
    %v7249 = vmul.f32 %v6626, %v6943
    %v7250 = vmul.f32 %v6628, %v6958
    %v7251 = vmul.f32 %v6630, %v6973
    %v7252 = vmul.f32 %v6632, %v6988
    %v7253 = vmul.f32 %v6634, %v7003
    %v7254 = vmul.f32 %v6636, %v7018
    %v7255 = vmul.f32 %v6638, %v7033
    %v7256 = vmul.f32 %v6640, %v7048
    %v7257 = vmul.f32 %v6642, %v7063
    %v7258 = vmul.f32 %v6644, %v7078
    %v7259 = vmul.f32 %v6646, %v7093
    %v7260 = vmul.f32 %v6648, %v7108
    %v7261 = vmul.f32 %v6650, %v7123
    %v7262 = vmul.f32 %v6652, %v7138
    %v7263 = vmul.f32 %v6654, %v7153
    %v7264 = vmul.f32 %v6656, %v7168
    %v7265 = vmul.f32 %v7233, %v2241
    %v7266 = vmul.f32 %v7234, %v2243
    %v7267 = vmul.f32 %v7235, %v2246
    %v7268 = vmul.f32 %v7236, %v2248
    %v7269 = vmul.f32 %v7237, %v2251
    %v7270 = vmul.f32 %v7238, %v2253
    %v7271 = vmul.f32 %v7239, %v2256
    %v7272 = vmul.f32 %v7240, %v2258
    %v7273 = vmul.f32 %v7241, %v2261
    %v7274 = vmul.f32 %v7242, %v2263
    %v7275 = vmul.f32 %v7243, %v2266
    %v7276 = vmul.f32 %v7244, %v2268
    %v7277 = vmul.f32 %v7245, %v2271
    %v7278 = vmul.f32 %v7246, %v2273
    %v7279 = vmul.f32 %v7247, %v2276
    %v7280 = vmul.f32 %v7248, %v2278
    %v7281 = vmul.f32 %v7249, %v2281
    %v7282 = vmul.f32 %v7250, %v2283
    %v7283 = vmul.f32 %v7251, %v2286
    %v7284 = vmul.f32 %v7252, %v2288
    %v7285 = vmul.f32 %v7253, %v2291
    %v7286 = vmul.f32 %v7254, %v2293
    %v7287 = vmul.f32 %v7255, %v2296
    %v7288 = vmul.f32 %v7256, %v2298
    %v7289 = vmul.f32 %v7257, %v2301
    %v7290 = vmul.f32 %v7258, %v2303
    %v7291 = vmul.f32 %v7259, %v2306
    %v7292 = vmul.f32 %v7260, %v2308
    %v7293 = vmul.f32 %v7261, %v2311
    %v7294 = vmul.f32 %v7262, %v2313
    %v7295 = vmul.f32 %v7263, %v2316
    %v7296 = vmul.f32 %v7264, %v2318
    %v7297 = vadd.f32 %v7201, %v7265
    %v7298 = vadd.f32 %v7202, %v7266
    %v7299 = vadd.f32 %v7203, %v7267
    %v7300 = vadd.f32 %v7204, %v7268
    %v7301 = vadd.f32 %v7205, %v7269
    %v7302 = vadd.f32 %v7206, %v7270
    %v7303 = vadd.f32 %v7207, %v7271
    %v7304 = vadd.f32 %v7208, %v7272
    %v7305 = vadd.f32 %v7209, %v7273
    %v7306 = vadd.f32 %v7210, %v7274
    %v7307 = vadd.f32 %v7211, %v7275
    %v7308 = vadd.f32 %v7212, %v7276
    %v7309 = vadd.f32 %v7213, %v7277
    %v7310 = vadd.f32 %v7214, %v7278
    %v7311 = vadd.f32 %v7215, %v7279
    %v7312 = vadd.f32 %v7216, %v7280
    %v7313 = vadd.f32 %v7217, %v7281
    %v7314 = vadd.f32 %v7218, %v7282
    %v7315 = vadd.f32 %v7219, %v7283
    %v7316 = vadd.f32 %v7220, %v7284
    %v7317 = vadd.f32 %v7221, %v7285
    %v7318 = vadd.f32 %v7222, %v7286
    %v7319 = vadd.f32 %v7223, %v7287
    %v7320 = vadd.f32 %v7224, %v7288
    %v7321 = vadd.f32 %v7225, %v7289
    %v7322 = vadd.f32 %v7226, %v7290
    %v7323 = vadd.f32 %v7227, %v7291
    %v7324 = vadd.f32 %v7228, %v7292
    %v7325 = vadd.f32 %v7229, %v7293
    %v7326 = vadd.f32 %v7230, %v7294
    %v7327 = vadd.f32 %v7231, %v7295
    %v7328 = vadd.f32 %v7232, %v7296
    %v7329 = vpack.c.bf16 %v7298, %v7297
    %v7330 = vpack.c.bf16 %v7300, %v7299
    %v7331 = vpack.c.bf16 %v7302, %v7301
    %v7332 = vpack.c.bf16 %v7304, %v7303
    %v7333 = vpack.c.bf16 %v7306, %v7305
    %v7334 = vpack.c.bf16 %v7308, %v7307
    %v7335 = vpack.c.bf16 %v7310, %v7309
    %v7336 = vpack.c.bf16 %v7312, %v7311
    %v7337 = vpack.c.bf16 %v7314, %v7313
    %v7338 = vpack.c.bf16 %v7316, %v7315
    %v7339 = vpack.c.bf16 %v7318, %v7317
    %v7340 = vpack.c.bf16 %v7320, %v7319
    %v7341 = vpack.c.bf16 %v7322, %v7321
    %v7342 = vpack.c.bf16 %v7324, %v7323
    %v7343 = vpack.c.bf16 %v7326, %v7325
    %v7344 = vpack.c.bf16 %v7328, %v7327
    %v7345 = vld [vmem:[%s5] sm:$0xf]
    %v7346 = vld [vmem:[%s5 + $0x4] sm:$0xf]
    %v7347 = vld [vmem:[%s5 + $0x8] sm:$0xf]
    %v7348 = vld [vmem:[%s5 + $0xc] sm:$0xf]
    %v7349 = vld [vmem:[%s5 + $0x10] sm:$0xf]
    %v7350 = vld [vmem:[%s5 + $0x14] sm:$0xf]
    %v7351 = vld [vmem:[%s5 + $0x18] sm:$0xf]
    %v7352 = vld [vmem:[%s5 + $0x1c] sm:$0xf]
    %v7353 = vld [vmem:[%s5 + $0x20] sm:$0xf]
    %v7354 = vld [vmem:[%s5 + $0x24] sm:$0xf]
    %v7355 = vld [vmem:[%s5 + $0x28] sm:$0xf]
    %v7356 = vld [vmem:[%s5 + $0x2c] sm:$0xf]
    %v7357 = vld [vmem:[%s5 + $0x30] sm:$0xf]
    %v7358 = vld [vmem:[%s5 + $0x34] sm:$0xf]
    %v7359 = vld [vmem:[%s5 + $0x38] sm:$0xf]
    %v7360 = vld [vmem:[%s5 + $0x3c] sm:$0xf]
    %v7361 = vld [vmem:[%s6] sm:$0x1]
    %v7363 = vperm.slane %v7361, 0
    %v7381 = vunpack.c.l.b16 %v7345
    %v7382 = vunpack.c.l.b16 %v7346
    %v7383 = vunpack.c.l.b16 %v7347
    %v7384 = vunpack.c.l.b16 %v7348
    %v7385 = vunpack.c.l.b16 %v7349
    %v7386 = vunpack.c.l.b16 %v7350
    %v7387 = vunpack.c.l.b16 %v7351
    %v7388 = vunpack.c.l.b16 %v7352
    %v7389 = vunpack.c.l.b16 %v7353
    %v7390 = vunpack.c.l.b16 %v7354
    %v7391 = vunpack.c.l.b16 %v7355
    %v7392 = vunpack.c.l.b16 %v7356
    %v7393 = vunpack.c.l.b16 %v7357
    %v7394 = vunpack.c.l.b16 %v7358
    %v7395 = vunpack.c.l.b16 %v7359
    %v7396 = vunpack.c.l.b16 %v7360
    %v7397 = vpack.c.b16 %v7382, %v7381
    %v7398 = vpack.c.b16 %v7384, %v7383
    %v7399 = vpack.c.b16 %v7386, %v7385
    %v7400 = vpack.c.b16 %v7388, %v7387
    %v7401 = vpack.c.b16 %v7390, %v7389
    %v7402 = vpack.c.b16 %v7392, %v7391
    %v7403 = vpack.c.b16 %v7394, %v7393
    %v7404 = vpack.c.b16 %v7396, %v7395
    %7413 = vmatpush.bf16.msra.mxu0 %v7404
    %7414 = vmatpush.bf16.msra.mxu0 %v7403
    %7415 = vmatpush.bf16.msra.mxu0 %v7402
    %7416 = vmatpush.bf16.msra.mxu0 %v7401
    %7417 = vmatpush.bf16.msra.mxu0 %v7400
    %7418 = vmatpush.bf16.msra.mxu0 %v7399
    %7419 = vmatpush.bf16.msra.mxu0 %v7398
    %7420 = vmatpush.bf16.msra.mxu0 %v7397
    %7421 = vmatmul.bf16.gmra.mxu0 %v7329
    %v7422 = vpop.f32.mrf.mxu0
    %v7423 = vadd.f32 %v7363, %v7422
    %v7424 = vpop.f32.mrf.mxu0
    %v7425 = vadd.f32 %v7363, %v7424
    %7426 = vmatmul.bf16.gmra.mxu0 %v7330
    %v7427 = vpop.f32.mrf.mxu0
    %v7428 = vadd.f32 %v7363, %v7427
    %v7429 = vpop.f32.mrf.mxu0
    %v7430 = vadd.f32 %v7363, %v7429
    %7431 = vmatmul.bf16.gmra.mxu0 %v7331
    %v7432 = vpop.f32.mrf.mxu0
    %v7433 = vadd.f32 %v7363, %v7432
    %v7434 = vpop.f32.mrf.mxu0
    %v7435 = vadd.f32 %v7363, %v7434
    %7436 = vmatmul.bf16.gmra.mxu0 %v7332
    %v7437 = vpop.f32.mrf.mxu0
    %v7438 = vadd.f32 %v7363, %v7437
    %v7439 = vpop.f32.mrf.mxu0
    %v7440 = vadd.f32 %v7363, %v7439
    %7441 = vmatmul.bf16.gmra.mxu0 %v7333
    %v7442 = vpop.f32.mrf.mxu0
    %v7443 = vadd.f32 %v7363, %v7442
    %v7444 = vpop.f32.mrf.mxu0
    %v7445 = vadd.f32 %v7363, %v7444
    %7446 = vmatmul.bf16.gmra.mxu0 %v7334
    %v7447 = vpop.f32.mrf.mxu0
    %v7448 = vadd.f32 %v7363, %v7447
    %v7449 = vpop.f32.mrf.mxu0
    %v7450 = vadd.f32 %v7363, %v7449
    %7451 = vmatmul.bf16.gmra.mxu0 %v7335
    %v7452 = vpop.f32.mrf.mxu0
    %v7453 = vadd.f32 %v7363, %v7452
    %v7454 = vpop.f32.mrf.mxu0
    %v7455 = vadd.f32 %v7363, %v7454
    %7456 = vmatmul.bf16.gmra.mxu0 %v7336
    %v7457 = vpop.f32.mrf.mxu0
    %v7458 = vadd.f32 %v7363, %v7457
    %v7459 = vpop.f32.mrf.mxu0
    %v7460 = vadd.f32 %v7363, %v7459
    %7461 = vmatmul.bf16.gmra.mxu0 %v7337
    %v7462 = vpop.f32.mrf.mxu0
    %v7463 = vadd.f32 %v7363, %v7462
    %v7464 = vpop.f32.mrf.mxu0
    %v7465 = vadd.f32 %v7363, %v7464
    %7466 = vmatmul.bf16.gmra.mxu0 %v7338
    %v7467 = vpop.f32.mrf.mxu0
    %v7468 = vadd.f32 %v7363, %v7467
    %v7469 = vpop.f32.mrf.mxu0
    %v7470 = vadd.f32 %v7363, %v7469
    %7471 = vmatmul.bf16.gmra.mxu0 %v7339
    %v7472 = vpop.f32.mrf.mxu0
    %v7473 = vadd.f32 %v7363, %v7472
    %v7474 = vpop.f32.mrf.mxu0
    %v7475 = vadd.f32 %v7363, %v7474
    %7476 = vmatmul.bf16.gmra.mxu0 %v7340
    %v7477 = vpop.f32.mrf.mxu0
    %v7478 = vadd.f32 %v7363, %v7477
    %v7479 = vpop.f32.mrf.mxu0
    %v7480 = vadd.f32 %v7363, %v7479
    %7481 = vmatmul.bf16.gmra.mxu0 %v7341
    %v7482 = vpop.f32.mrf.mxu0
    %v7483 = vadd.f32 %v7363, %v7482
    %v7484 = vpop.f32.mrf.mxu0
    %v7485 = vadd.f32 %v7363, %v7484
    %7486 = vmatmul.bf16.gmra.mxu0 %v7342
    %v7487 = vpop.f32.mrf.mxu0
    %v7488 = vadd.f32 %v7363, %v7487
    %v7489 = vpop.f32.mrf.mxu0
    %v7490 = vadd.f32 %v7363, %v7489
    %7491 = vmatmul.bf16.gmra.mxu0 %v7343
    %v7492 = vpop.f32.mrf.mxu0
    %v7493 = vadd.f32 %v7363, %v7492
    %v7494 = vpop.f32.mrf.mxu0
    %v7495 = vadd.f32 %v7363, %v7494
    %7496 = vmatmul.bf16.gmra.mxu0 %v7344
    %v7497 = vpop.f32.mrf.mxu0
    %v7498 = vadd.f32 %v7363, %v7497
    %v7499 = vpop.f32.mrf.mxu0
    %v7500 = vadd.f32 %v7363, %v7499
    %7501 = vdwg.mxu0
    %v7502 = vadd.f32 %v7423, %v1301
    %v7503 = vadd.f32 %v7425, %v1302
    %v7504 = vadd.f32 %v7428, %v1303
    %v7505 = vadd.f32 %v7430, %v1304
    %v7506 = vadd.f32 %v7433, %v1305
    %v7507 = vadd.f32 %v7435, %v1306
    %v7508 = vadd.f32 %v7438, %v1307
    %v7509 = vadd.f32 %v7440, %v1308
    %v7510 = vadd.f32 %v7443, %v1309
    %v7511 = vadd.f32 %v7445, %v1310
    %v7512 = vadd.f32 %v7448, %v1311
    %v7513 = vadd.f32 %v7450, %v1312
    %v7514 = vadd.f32 %v7453, %v1313
    %v7515 = vadd.f32 %v7455, %v1314
    %v7516 = vadd.f32 %v7458, %v1315
    %v7517 = vadd.f32 %v7460, %v1316
    %v7518 = vadd.f32 %v7463, %v1317
    %v7519 = vadd.f32 %v7465, %v1318
    %v7520 = vadd.f32 %v7468, %v1319
    %v7521 = vadd.f32 %v7470, %v1320
    %v7522 = vadd.f32 %v7473, %v1321
    %v7523 = vadd.f32 %v7475, %v1322
    %v7524 = vadd.f32 %v7478, %v1323
    %v7525 = vadd.f32 %v7480, %v1324
    %v7526 = vadd.f32 %v7483, %v1325
    %v7527 = vadd.f32 %v7485, %v1326
    %v7528 = vadd.f32 %v7488, %v1327
    %v7529 = vadd.f32 %v7490, %v1328
    %v7530 = vadd.f32 %v7493, %v1329
    %v7531 = vadd.f32 %v7495, %v1330
    %v7532 = vadd.f32 %v7498, %v1331
    %v7533 = vadd.f32 %v7500, %v1332
    %7534 = vadd.xlane.f32.xlu0 %v7502
    %v7535 = vpop.xlane.xlu0 %7534
    %7536 = vadd.xlane.f32.xlu0 %v7503
    %v7537 = vpop.xlane.xlu0 %7536
    %7538 = vadd.xlane.f32.xlu0 %v7504
    %v7539 = vpop.xlane.xlu0 %7538
    %7540 = vadd.xlane.f32.xlu0 %v7505
    %v7541 = vpop.xlane.xlu0 %7540
    %7542 = vadd.xlane.f32.xlu0 %v7506
    %v7543 = vpop.xlane.xlu0 %7542
    %7544 = vadd.xlane.f32.xlu0 %v7507
    %v7545 = vpop.xlane.xlu0 %7544
    %7546 = vadd.xlane.f32.xlu0 %v7508
    %v7547 = vpop.xlane.xlu0 %7546
    %7548 = vadd.xlane.f32.xlu0 %v7509
    %v7549 = vpop.xlane.xlu0 %7548
    %7550 = vadd.xlane.f32.xlu0 %v7510
    %v7551 = vpop.xlane.xlu0 %7550
    %7552 = vadd.xlane.f32.xlu0 %v7511
    %v7553 = vpop.xlane.xlu0 %7552
    %7554 = vadd.xlane.f32.xlu0 %v7512
    %v7555 = vpop.xlane.xlu0 %7554
    %7556 = vadd.xlane.f32.xlu0 %v7513
    %v7557 = vpop.xlane.xlu0 %7556
    %7558 = vadd.xlane.f32.xlu0 %v7514
    %v7559 = vpop.xlane.xlu0 %7558
    %7560 = vadd.xlane.f32.xlu0 %v7515
    %v7561 = vpop.xlane.xlu0 %7560
    %7562 = vadd.xlane.f32.xlu0 %v7516
    %v7563 = vpop.xlane.xlu0 %7562
    %7564 = vadd.xlane.f32.xlu0 %v7517
    %v7565 = vpop.xlane.xlu0 %7564
    %7566 = vadd.xlane.f32.xlu0 %v7518
    %v7567 = vpop.xlane.xlu0 %7566
    %7568 = vadd.xlane.f32.xlu0 %v7519
    %v7569 = vpop.xlane.xlu0 %7568
    %7570 = vadd.xlane.f32.xlu0 %v7520
    %v7571 = vpop.xlane.xlu0 %7570
    %7572 = vadd.xlane.f32.xlu0 %v7521
    %v7573 = vpop.xlane.xlu0 %7572
    %7574 = vadd.xlane.f32.xlu0 %v7522
    %v7575 = vpop.xlane.xlu0 %7574
    %7576 = vadd.xlane.f32.xlu0 %v7523
    %v7577 = vpop.xlane.xlu0 %7576
    %7578 = vadd.xlane.f32.xlu0 %v7524
    %v7579 = vpop.xlane.xlu0 %7578
    %7580 = vadd.xlane.f32.xlu0 %v7525
    %v7581 = vpop.xlane.xlu0 %7580
    %7582 = vadd.xlane.f32.xlu0 %v7526
    %v7583 = vpop.xlane.xlu0 %7582
    %7584 = vadd.xlane.f32.xlu0 %v7527
    %v7585 = vpop.xlane.xlu0 %7584
    %7586 = vadd.xlane.f32.xlu0 %v7528
    %v7587 = vpop.xlane.xlu0 %7586
    %7588 = vadd.xlane.f32.xlu0 %v7529
    %v7589 = vpop.xlane.xlu0 %7588
    %7590 = vadd.xlane.f32.xlu0 %v7530
    %v7591 = vpop.xlane.xlu0 %7590
    %7592 = vadd.xlane.f32.xlu0 %v7531
    %v7593 = vpop.xlane.xlu0 %7592
    %7594 = vadd.xlane.f32.xlu0 %v7532
    %v7595 = vpop.xlane.xlu0 %7594
    %7596 = vadd.xlane.f32.xlu0 %v7533
    %v7597 = vpop.xlane.xlu0 %7596
    %v7598 = vmul.f32 %v7535, %v203
    %v7599 = vmul.f32 %v7537, %v203
    %v7600 = vmul.f32 %v7539, %v203
    %v7601 = vmul.f32 %v7541, %v203
    %v7602 = vmul.f32 %v7543, %v203
    %v7603 = vmul.f32 %v7545, %v203
    %v7604 = vmul.f32 %v7547, %v203
    %v7605 = vmul.f32 %v7549, %v203
    %v7606 = vmul.f32 %v7551, %v203
    %v7607 = vmul.f32 %v7553, %v203
    %v7608 = vmul.f32 %v7555, %v203
    %v7609 = vmul.f32 %v7557, %v203
    %v7610 = vmul.f32 %v7559, %v203
    %v7611 = vmul.f32 %v7561, %v203
    %v7612 = vmul.f32 %v7563, %v203
    %v7613 = vmul.f32 %v7565, %v203
    %v7614 = vmul.f32 %v7567, %v203
    %v7615 = vmul.f32 %v7569, %v203
    %v7616 = vmul.f32 %v7571, %v203
    %v7617 = vmul.f32 %v7573, %v203
    %v7618 = vmul.f32 %v7575, %v203
    %v7619 = vmul.f32 %v7577, %v203
    %v7620 = vmul.f32 %v7579, %v203
    %v7621 = vmul.f32 %v7581, %v203
    %v7622 = vmul.f32 %v7583, %v203
    %v7623 = vmul.f32 %v7585, %v203
    %v7624 = vmul.f32 %v7587, %v203
    %v7625 = vmul.f32 %v7589, %v203
    %v7626 = vmul.f32 %v7591, %v203
    %v7627 = vmul.f32 %v7593, %v203
    %v7628 = vmul.f32 %v7595, %v203
    %v7629 = vmul.f32 %v7597, %v203
    %v7630 = vsub.f32 %v7502, %v7598
    %v7631 = vsub.f32 %v7503, %v7599
    %v7632 = vsub.f32 %v7504, %v7600
    %v7633 = vsub.f32 %v7505, %v7601
    %v7634 = vsub.f32 %v7506, %v7602
    %v7635 = vsub.f32 %v7507, %v7603
    %v7636 = vsub.f32 %v7508, %v7604
    %v7637 = vsub.f32 %v7509, %v7605
    %v7638 = vsub.f32 %v7510, %v7606
    %v7639 = vsub.f32 %v7511, %v7607
    %v7640 = vsub.f32 %v7512, %v7608
    %v7641 = vsub.f32 %v7513, %v7609
    %v7642 = vsub.f32 %v7514, %v7610
    %v7643 = vsub.f32 %v7515, %v7611
    %v7644 = vsub.f32 %v7516, %v7612
    %v7645 = vsub.f32 %v7517, %v7613
    %v7646 = vsub.f32 %v7518, %v7614
    %v7647 = vsub.f32 %v7519, %v7615
    %v7648 = vsub.f32 %v7520, %v7616
    %v7649 = vsub.f32 %v7521, %v7617
    %v7650 = vsub.f32 %v7522, %v7618
    %v7651 = vsub.f32 %v7523, %v7619
    %v7652 = vsub.f32 %v7524, %v7620
    %v7653 = vsub.f32 %v7525, %v7621
    %v7654 = vsub.f32 %v7526, %v7622
    %v7655 = vsub.f32 %v7527, %v7623
    %v7656 = vsub.f32 %v7528, %v7624
    %v7657 = vsub.f32 %v7529, %v7625
    %v7658 = vsub.f32 %v7530, %v7626
    %v7659 = vsub.f32 %v7531, %v7627
    %v7660 = vsub.f32 %v7532, %v7628
    %v7661 = vsub.f32 %v7533, %v7629
    %v7662 = vmul.f32 %v7630, %v7630
    %v7663 = vmul.f32 %v7631, %v7631
    %v7664 = vmul.f32 %v7632, %v7632
    %v7665 = vmul.f32 %v7633, %v7633
    %v7666 = vmul.f32 %v7634, %v7634
    %v7667 = vmul.f32 %v7635, %v7635
    %v7668 = vmul.f32 %v7636, %v7636
    %v7669 = vmul.f32 %v7637, %v7637
    %v7670 = vmul.f32 %v7638, %v7638
    %v7671 = vmul.f32 %v7639, %v7639
    %v7672 = vmul.f32 %v7640, %v7640
    %v7673 = vmul.f32 %v7641, %v7641
    %v7674 = vmul.f32 %v7642, %v7642
    %v7675 = vmul.f32 %v7643, %v7643
    %v7676 = vmul.f32 %v7644, %v7644
    %v7677 = vmul.f32 %v7645, %v7645
    %v7678 = vmul.f32 %v7646, %v7646
    %v7679 = vmul.f32 %v7647, %v7647
    %v7680 = vmul.f32 %v7648, %v7648
    %v7681 = vmul.f32 %v7649, %v7649
    %v7682 = vmul.f32 %v7650, %v7650
    %v7683 = vmul.f32 %v7651, %v7651
    %v7684 = vmul.f32 %v7652, %v7652
    %v7685 = vmul.f32 %v7653, %v7653
    %v7686 = vmul.f32 %v7654, %v7654
    %v7687 = vmul.f32 %v7655, %v7655
    %v7688 = vmul.f32 %v7656, %v7656
    %v7689 = vmul.f32 %v7657, %v7657
    %v7690 = vmul.f32 %v7658, %v7658
    %v7691 = vmul.f32 %v7659, %v7659
    %v7692 = vmul.f32 %v7660, %v7660
    %v7693 = vmul.f32 %v7661, %v7661
    %7694 = vadd.xlane.f32.xlu0 %v7662
    %v7695 = vpop.xlane.xlu0 %7694
    %7696 = vadd.xlane.f32.xlu0 %v7663
    %v7697 = vpop.xlane.xlu0 %7696
    %7698 = vadd.xlane.f32.xlu0 %v7664
    %v7699 = vpop.xlane.xlu0 %7698
    %7700 = vadd.xlane.f32.xlu0 %v7665
    %v7701 = vpop.xlane.xlu0 %7700
    %7702 = vadd.xlane.f32.xlu0 %v7666
    %v7703 = vpop.xlane.xlu0 %7702
    %7704 = vadd.xlane.f32.xlu0 %v7667
    %v7705 = vpop.xlane.xlu0 %7704
    %7706 = vadd.xlane.f32.xlu0 %v7668
    %v7707 = vpop.xlane.xlu0 %7706
    %7708 = vadd.xlane.f32.xlu0 %v7669
    %v7709 = vpop.xlane.xlu0 %7708
    %7710 = vadd.xlane.f32.xlu0 %v7670
    %v7711 = vpop.xlane.xlu0 %7710
    %7712 = vadd.xlane.f32.xlu0 %v7671
    %v7713 = vpop.xlane.xlu0 %7712
    %7714 = vadd.xlane.f32.xlu0 %v7672
    %v7715 = vpop.xlane.xlu0 %7714
    %7716 = vadd.xlane.f32.xlu0 %v7673
    %v7717 = vpop.xlane.xlu0 %7716
    %7718 = vadd.xlane.f32.xlu0 %v7674
    %v7719 = vpop.xlane.xlu0 %7718
    %7720 = vadd.xlane.f32.xlu0 %v7675
    %v7721 = vpop.xlane.xlu0 %7720
    %7722 = vadd.xlane.f32.xlu0 %v7676
    %v7723 = vpop.xlane.xlu0 %7722
    %7724 = vadd.xlane.f32.xlu0 %v7677
    %v7725 = vpop.xlane.xlu0 %7724
    %7726 = vadd.xlane.f32.xlu0 %v7678
    %v7727 = vpop.xlane.xlu0 %7726
    %7728 = vadd.xlane.f32.xlu0 %v7679
    %v7729 = vpop.xlane.xlu0 %7728
    %7730 = vadd.xlane.f32.xlu0 %v7680
    %v7731 = vpop.xlane.xlu0 %7730
    %7732 = vadd.xlane.f32.xlu0 %v7681
    %v7733 = vpop.xlane.xlu0 %7732
    %7734 = vadd.xlane.f32.xlu0 %v7682
    %v7735 = vpop.xlane.xlu0 %7734
    %7736 = vadd.xlane.f32.xlu0 %v7683
    %v7737 = vpop.xlane.xlu0 %7736
    %7738 = vadd.xlane.f32.xlu0 %v7684
    %v7739 = vpop.xlane.xlu0 %7738
    %7740 = vadd.xlane.f32.xlu0 %v7685
    %v7741 = vpop.xlane.xlu0 %7740
    %7742 = vadd.xlane.f32.xlu0 %v7686
    %v7743 = vpop.xlane.xlu0 %7742
    %7744 = vadd.xlane.f32.xlu0 %v7687
    %v7745 = vpop.xlane.xlu0 %7744
    %7746 = vadd.xlane.f32.xlu0 %v7688
    %v7747 = vpop.xlane.xlu0 %7746
    %7748 = vadd.xlane.f32.xlu0 %v7689
    %v7749 = vpop.xlane.xlu0 %7748
    %7750 = vadd.xlane.f32.xlu0 %v7690
    %v7751 = vpop.xlane.xlu0 %7750
    %7752 = vadd.xlane.f32.xlu0 %v7691
    %v7753 = vpop.xlane.xlu0 %7752
    %7754 = vadd.xlane.f32.xlu0 %v7692
    %v7755 = vpop.xlane.xlu0 %7754
    %7756 = vadd.xlane.f32.xlu0 %v7693
    %v7757 = vpop.xlane.xlu0 %7756
    %v7758 = vmul.f32 %v7695, %v203
    %v7759 = vmul.f32 %v7697, %v203
    %v7760 = vmul.f32 %v7699, %v203
    %v7761 = vmul.f32 %v7701, %v203
    %v7762 = vmul.f32 %v7703, %v203
    %v7763 = vmul.f32 %v7705, %v203
    %v7764 = vmul.f32 %v7707, %v203
    %v7765 = vmul.f32 %v7709, %v203
    %v7766 = vmul.f32 %v7711, %v203
    %v7767 = vmul.f32 %v7713, %v203
    %v7768 = vmul.f32 %v7715, %v203
    %v7769 = vmul.f32 %v7717, %v203
    %v7770 = vmul.f32 %v7719, %v203
    %v7771 = vmul.f32 %v7721, %v203
    %v7772 = vmul.f32 %v7723, %v203
    %v7773 = vmul.f32 %v7725, %v203
    %v7774 = vmul.f32 %v7727, %v203
    %v7775 = vmul.f32 %v7729, %v203
    %v7776 = vmul.f32 %v7731, %v203
    %v7777 = vmul.f32 %v7733, %v203
    %v7778 = vmul.f32 %v7735, %v203
    %v7779 = vmul.f32 %v7737, %v203
    %v7780 = vmul.f32 %v7739, %v203
    %v7781 = vmul.f32 %v7741, %v203
    %v7782 = vmul.f32 %v7743, %v203
    %v7783 = vmul.f32 %v7745, %v203
    %v7784 = vmul.f32 %v7747, %v203
    %v7785 = vmul.f32 %v7749, %v203
    %v7786 = vmul.f32 %v7751, %v203
    %v7787 = vmul.f32 %v7753, %v203
    %v7788 = vmul.f32 %v7755, %v203
    %v7789 = vmul.f32 %v7757, %v203
    %v7790 = vadd.f32 %v7758, 1e-05
    %v7791 = vadd.f32 %v7759, 1e-05
    %v7792 = vadd.f32 %v7760, 1e-05
    %v7793 = vadd.f32 %v7761, 1e-05
    %v7794 = vadd.f32 %v7762, 1e-05
    %v7795 = vadd.f32 %v7763, 1e-05
    %v7796 = vadd.f32 %v7764, 1e-05
    %v7797 = vadd.f32 %v7765, 1e-05
    %v7798 = vadd.f32 %v7766, 1e-05
    %v7799 = vadd.f32 %v7767, 1e-05
    %v7800 = vadd.f32 %v7768, 1e-05
    %v7801 = vadd.f32 %v7769, 1e-05
    %v7802 = vadd.f32 %v7770, 1e-05
    %v7803 = vadd.f32 %v7771, 1e-05
    %v7804 = vadd.f32 %v7772, 1e-05
    %v7805 = vadd.f32 %v7773, 1e-05
    %v7806 = vadd.f32 %v7774, 1e-05
    %v7807 = vadd.f32 %v7775, 1e-05
    %v7808 = vadd.f32 %v7776, 1e-05
    %v7809 = vadd.f32 %v7777, 1e-05
    %v7810 = vadd.f32 %v7778, 1e-05
    %v7811 = vadd.f32 %v7779, 1e-05
    %v7812 = vadd.f32 %v7780, 1e-05
    %v7813 = vadd.f32 %v7781, 1e-05
    %v7814 = vadd.f32 %v7782, 1e-05
    %v7815 = vadd.f32 %v7783, 1e-05
    %v7816 = vadd.f32 %v7784, 1e-05
    %v7817 = vadd.f32 %v7785, 1e-05
    %v7818 = vadd.f32 %v7786, 1e-05
    %v7819 = vadd.f32 %v7787, 1e-05
    %v7820 = vadd.f32 %v7788, 1e-05
    %v7821 = vadd.f32 %v7789, 1e-05
    %v7822 = vrsqrt.pop %v7790
    %v7823 = vmul.f32 %v7822, %v7790
    %v7824 = vmul.f32 %v7823, %v7822
    %v7825 = vmul.f32 0.5, %v7824
    %v7826 = vsub.f32 1.5, %v7825
    %v7827 = vmul.f32 %v7822, %v7826
    %vm7828 = vweird.f32 %v7790
    %vm7829 = vweird.f32 %v7822
    %vm7830 = vmor %vm7828, %vm7829
    %v7831 = vsel %vm7830, %v7822, %v7827
    %v7832 = vrsqrt.pop %v7791
    %v7833 = vmul.f32 %v7832, %v7791
    %v7834 = vmul.f32 %v7833, %v7832
    %v7835 = vmul.f32 0.5, %v7834
    %v7836 = vsub.f32 1.5, %v7835
    %v7837 = vmul.f32 %v7832, %v7836
    %vm7838 = vweird.f32 %v7791
    %vm7839 = vweird.f32 %v7832
    %vm7840 = vmor %vm7838, %vm7839
    %v7841 = vsel %vm7840, %v7832, %v7837
    %v7842 = vrsqrt.pop %v7792
    %v7843 = vmul.f32 %v7842, %v7792
    %v7844 = vmul.f32 %v7843, %v7842
    %v7845 = vmul.f32 0.5, %v7844
    %v7846 = vsub.f32 1.5, %v7845
    %v7847 = vmul.f32 %v7842, %v7846
    %vm7848 = vweird.f32 %v7792
    %vm7849 = vweird.f32 %v7842
    %vm7850 = vmor %vm7848, %vm7849
    %v7851 = vsel %vm7850, %v7842, %v7847
    %v7852 = vrsqrt.pop %v7793
    %v7853 = vmul.f32 %v7852, %v7793
    %v7854 = vmul.f32 %v7853, %v7852
    %v7855 = vmul.f32 0.5, %v7854
    %v7856 = vsub.f32 1.5, %v7855
    %v7857 = vmul.f32 %v7852, %v7856
    %vm7858 = vweird.f32 %v7793
    %vm7859 = vweird.f32 %v7852
    %vm7860 = vmor %vm7858, %vm7859
    %v7861 = vsel %vm7860, %v7852, %v7857
    %v7862 = vrsqrt.pop %v7794
    %v7863 = vmul.f32 %v7862, %v7794
    %v7864 = vmul.f32 %v7863, %v7862
    %v7865 = vmul.f32 0.5, %v7864
    %v7866 = vsub.f32 1.5, %v7865
    %v7867 = vmul.f32 %v7862, %v7866
    %vm7868 = vweird.f32 %v7794
    %vm7869 = vweird.f32 %v7862
    %vm7870 = vmor %vm7868, %vm7869
    %v7871 = vsel %vm7870, %v7862, %v7867
    %v7872 = vrsqrt.pop %v7795
    %v7873 = vmul.f32 %v7872, %v7795
    %v7874 = vmul.f32 %v7873, %v7872
    %v7875 = vmul.f32 0.5, %v7874
    %v7876 = vsub.f32 1.5, %v7875
    %v7877 = vmul.f32 %v7872, %v7876
    %vm7878 = vweird.f32 %v7795
    %vm7879 = vweird.f32 %v7872
    %vm7880 = vmor %vm7878, %vm7879
    %v7881 = vsel %vm7880, %v7872, %v7877
    %v7882 = vrsqrt.pop %v7796
    %v7883 = vmul.f32 %v7882, %v7796
    %v7884 = vmul.f32 %v7883, %v7882
    %v7885 = vmul.f32 0.5, %v7884
    %v7886 = vsub.f32 1.5, %v7885
    %v7887 = vmul.f32 %v7882, %v7886
    %vm7888 = vweird.f32 %v7796
    %vm7889 = vweird.f32 %v7882
    %vm7890 = vmor %vm7888, %vm7889
    %v7891 = vsel %vm7890, %v7882, %v7887
    %v7892 = vrsqrt.pop %v7797
    %v7893 = vmul.f32 %v7892, %v7797
    %v7894 = vmul.f32 %v7893, %v7892
    %v7895 = vmul.f32 0.5, %v7894
    %v7896 = vsub.f32 1.5, %v7895
    %v7897 = vmul.f32 %v7892, %v7896
    %vm7898 = vweird.f32 %v7797
    %vm7899 = vweird.f32 %v7892
    %vm7900 = vmor %vm7898, %vm7899
    %v7901 = vsel %vm7900, %v7892, %v7897
    %v7902 = vrsqrt.pop %v7798
    %v7903 = vmul.f32 %v7902, %v7798
    %v7904 = vmul.f32 %v7903, %v7902
    %v7905 = vmul.f32 0.5, %v7904
    %v7906 = vsub.f32 1.5, %v7905
    %v7907 = vmul.f32 %v7902, %v7906
    %vm7908 = vweird.f32 %v7798
    %vm7909 = vweird.f32 %v7902
    %vm7910 = vmor %vm7908, %vm7909
    %v7911 = vsel %vm7910, %v7902, %v7907
    %v7912 = vrsqrt.pop %v7799
    %v7913 = vmul.f32 %v7912, %v7799
    %v7914 = vmul.f32 %v7913, %v7912
    %v7915 = vmul.f32 0.5, %v7914
    %v7916 = vsub.f32 1.5, %v7915
    %v7917 = vmul.f32 %v7912, %v7916
    %vm7918 = vweird.f32 %v7799
    %vm7919 = vweird.f32 %v7912
    %vm7920 = vmor %vm7918, %vm7919
    %v7921 = vsel %vm7920, %v7912, %v7917
    %v7922 = vrsqrt.pop %v7800
    %v7923 = vmul.f32 %v7922, %v7800
    %v7924 = vmul.f32 %v7923, %v7922
    %v7925 = vmul.f32 0.5, %v7924
    %v7926 = vsub.f32 1.5, %v7925
    %v7927 = vmul.f32 %v7922, %v7926
    %vm7928 = vweird.f32 %v7800
    %vm7929 = vweird.f32 %v7922
    %vm7930 = vmor %vm7928, %vm7929
    %v7931 = vsel %vm7930, %v7922, %v7927
    %v7932 = vrsqrt.pop %v7801
    %v7933 = vmul.f32 %v7932, %v7801
    %v7934 = vmul.f32 %v7933, %v7932
    %v7935 = vmul.f32 0.5, %v7934
    %v7936 = vsub.f32 1.5, %v7935
    %v7937 = vmul.f32 %v7932, %v7936
    %vm7938 = vweird.f32 %v7801
    %vm7939 = vweird.f32 %v7932
    %vm7940 = vmor %vm7938, %vm7939
    %v7941 = vsel %vm7940, %v7932, %v7937
    %v7942 = vrsqrt.pop %v7802
    %v7943 = vmul.f32 %v7942, %v7802
    %v7944 = vmul.f32 %v7943, %v7942
    %v7945 = vmul.f32 0.5, %v7944
    %v7946 = vsub.f32 1.5, %v7945
    %v7947 = vmul.f32 %v7942, %v7946
    %vm7948 = vweird.f32 %v7802
    %vm7949 = vweird.f32 %v7942
    %vm7950 = vmor %vm7948, %vm7949
    %v7951 = vsel %vm7950, %v7942, %v7947
    %v7952 = vrsqrt.pop %v7803
    %v7953 = vmul.f32 %v7952, %v7803
    %v7954 = vmul.f32 %v7953, %v7952
    %v7955 = vmul.f32 0.5, %v7954
    %v7956 = vsub.f32 1.5, %v7955
    %v7957 = vmul.f32 %v7952, %v7956
    %vm7958 = vweird.f32 %v7803
    %vm7959 = vweird.f32 %v7952
    %vm7960 = vmor %vm7958, %vm7959
    %v7961 = vsel %vm7960, %v7952, %v7957
    %v7962 = vrsqrt.pop %v7804
    %v7963 = vmul.f32 %v7962, %v7804
    %v7964 = vmul.f32 %v7963, %v7962
    %v7965 = vmul.f32 0.5, %v7964
    %v7966 = vsub.f32 1.5, %v7965
    %v7967 = vmul.f32 %v7962, %v7966
    %vm7968 = vweird.f32 %v7804
    %vm7969 = vweird.f32 %v7962
    %vm7970 = vmor %vm7968, %vm7969
    %v7971 = vsel %vm7970, %v7962, %v7967
    %v7972 = vrsqrt.pop %v7805
    %v7973 = vmul.f32 %v7972, %v7805
    %v7974 = vmul.f32 %v7973, %v7972
    %v7975 = vmul.f32 0.5, %v7974
    %v7976 = vsub.f32 1.5, %v7975
    %v7977 = vmul.f32 %v7972, %v7976
    %vm7978 = vweird.f32 %v7805
    %vm7979 = vweird.f32 %v7972
    %vm7980 = vmor %vm7978, %vm7979
    %v7981 = vsel %vm7980, %v7972, %v7977
    %v7982 = vrsqrt.pop %v7806
    %v7983 = vmul.f32 %v7982, %v7806
    %v7984 = vmul.f32 %v7983, %v7982
    %v7985 = vmul.f32 0.5, %v7984
    %v7986 = vsub.f32 1.5, %v7985
    %v7987 = vmul.f32 %v7982, %v7986
    %vm7988 = vweird.f32 %v7806
    %vm7989 = vweird.f32 %v7982
    %vm7990 = vmor %vm7988, %vm7989
    %v7991 = vsel %vm7990, %v7982, %v7987
    %v7992 = vrsqrt.pop %v7807
    %v7993 = vmul.f32 %v7992, %v7807
    %v7994 = vmul.f32 %v7993, %v7992
    %v7995 = vmul.f32 0.5, %v7994
    %v7996 = vsub.f32 1.5, %v7995
    %v7997 = vmul.f32 %v7992, %v7996
    %vm7998 = vweird.f32 %v7807
    %vm7999 = vweird.f32 %v7992
    %vm8000 = vmor %vm7998, %vm7999
    %v8001 = vsel %vm8000, %v7992, %v7997
    %v8002 = vrsqrt.pop %v7808
    %v8003 = vmul.f32 %v8002, %v7808
    %v8004 = vmul.f32 %v8003, %v8002
    %v8005 = vmul.f32 0.5, %v8004
    %v8006 = vsub.f32 1.5, %v8005
    %v8007 = vmul.f32 %v8002, %v8006
    %vm8008 = vweird.f32 %v7808
    %vm8009 = vweird.f32 %v8002
    %vm8010 = vmor %vm8008, %vm8009
    %v8011 = vsel %vm8010, %v8002, %v8007
    %v8012 = vrsqrt.pop %v7809
    %v8013 = vmul.f32 %v8012, %v7809
    %v8014 = vmul.f32 %v8013, %v8012
    %v8015 = vmul.f32 0.5, %v8014
    %v8016 = vsub.f32 1.5, %v8015
    %v8017 = vmul.f32 %v8012, %v8016
    %vm8018 = vweird.f32 %v7809
    %vm8019 = vweird.f32 %v8012
    %vm8020 = vmor %vm8018, %vm8019
    %v8021 = vsel %vm8020, %v8012, %v8017
    %v8022 = vrsqrt.pop %v7810
    %v8023 = vmul.f32 %v8022, %v7810
    %v8024 = vmul.f32 %v8023, %v8022
    %v8025 = vmul.f32 0.5, %v8024
    %v8026 = vsub.f32 1.5, %v8025
    %v8027 = vmul.f32 %v8022, %v8026
    %vm8028 = vweird.f32 %v7810
    %vm8029 = vweird.f32 %v8022
    %vm8030 = vmor %vm8028, %vm8029
    %v8031 = vsel %vm8030, %v8022, %v8027
    %v8032 = vrsqrt.pop %v7811
    %v8033 = vmul.f32 %v8032, %v7811
    %v8034 = vmul.f32 %v8033, %v8032
    %v8035 = vmul.f32 0.5, %v8034
    %v8036 = vsub.f32 1.5, %v8035
    %v8037 = vmul.f32 %v8032, %v8036
    %vm8038 = vweird.f32 %v7811
    %vm8039 = vweird.f32 %v8032
    %vm8040 = vmor %vm8038, %vm8039
    %v8041 = vsel %vm8040, %v8032, %v8037
    %v8042 = vrsqrt.pop %v7812
    %v8043 = vmul.f32 %v8042, %v7812
    %v8044 = vmul.f32 %v8043, %v8042
    %v8045 = vmul.f32 0.5, %v8044
    %v8046 = vsub.f32 1.5, %v8045
    %v8047 = vmul.f32 %v8042, %v8046
    %vm8048 = vweird.f32 %v7812
    %vm8049 = vweird.f32 %v8042
    %vm8050 = vmor %vm8048, %vm8049
    %v8051 = vsel %vm8050, %v8042, %v8047
    %v8052 = vrsqrt.pop %v7813
    %v8053 = vmul.f32 %v8052, %v7813
    %v8054 = vmul.f32 %v8053, %v8052
    %v8055 = vmul.f32 0.5, %v8054
    %v8056 = vsub.f32 1.5, %v8055
    %v8057 = vmul.f32 %v8052, %v8056
    %vm8058 = vweird.f32 %v7813
    %vm8059 = vweird.f32 %v8052
    %vm8060 = vmor %vm8058, %vm8059
    %v8061 = vsel %vm8060, %v8052, %v8057
    %v8062 = vrsqrt.pop %v7814
    %v8063 = vmul.f32 %v8062, %v7814
    %v8064 = vmul.f32 %v8063, %v8062
    %v8065 = vmul.f32 0.5, %v8064
    %v8066 = vsub.f32 1.5, %v8065
    %v8067 = vmul.f32 %v8062, %v8066
    %vm8068 = vweird.f32 %v7814
    %vm8069 = vweird.f32 %v8062
    %vm8070 = vmor %vm8068, %vm8069
    %v8071 = vsel %vm8070, %v8062, %v8067
    %v8072 = vrsqrt.pop %v7815
    %v8073 = vmul.f32 %v8072, %v7815
    %v8074 = vmul.f32 %v8073, %v8072
    %v8075 = vmul.f32 0.5, %v8074
    %v8076 = vsub.f32 1.5, %v8075
    %v8077 = vmul.f32 %v8072, %v8076
    %vm8078 = vweird.f32 %v7815
    %vm8079 = vweird.f32 %v8072
    %vm8080 = vmor %vm8078, %vm8079
    %v8081 = vsel %vm8080, %v8072, %v8077
    %v8082 = vrsqrt.pop %v7816
    %v8083 = vmul.f32 %v8082, %v7816
    %v8084 = vmul.f32 %v8083, %v8082
    %v8085 = vmul.f32 0.5, %v8084
    %v8086 = vsub.f32 1.5, %v8085
    %v8087 = vmul.f32 %v8082, %v8086
    %vm8088 = vweird.f32 %v7816
    %vm8089 = vweird.f32 %v8082
    %vm8090 = vmor %vm8088, %vm8089
    %v8091 = vsel %vm8090, %v8082, %v8087
    %v8092 = vrsqrt.pop %v7817
    %v8093 = vmul.f32 %v8092, %v7817
    %v8094 = vmul.f32 %v8093, %v8092
    %v8095 = vmul.f32 0.5, %v8094
    %v8096 = vsub.f32 1.5, %v8095
    %v8097 = vmul.f32 %v8092, %v8096
    %vm8098 = vweird.f32 %v7817
    %vm8099 = vweird.f32 %v8092
    %vm8100 = vmor %vm8098, %vm8099
    %v8101 = vsel %vm8100, %v8092, %v8097
    %v8102 = vrsqrt.pop %v7818
    %v8103 = vmul.f32 %v8102, %v7818
    %v8104 = vmul.f32 %v8103, %v8102
    %v8105 = vmul.f32 0.5, %v8104
    %v8106 = vsub.f32 1.5, %v8105
    %v8107 = vmul.f32 %v8102, %v8106
    %vm8108 = vweird.f32 %v7818
    %vm8109 = vweird.f32 %v8102
    %vm8110 = vmor %vm8108, %vm8109
    %v8111 = vsel %vm8110, %v8102, %v8107
    %v8112 = vrsqrt.pop %v7819
    %v8113 = vmul.f32 %v8112, %v7819
    %v8114 = vmul.f32 %v8113, %v8112
    %v8115 = vmul.f32 0.5, %v8114
    %v8116 = vsub.f32 1.5, %v8115
    %v8117 = vmul.f32 %v8112, %v8116
    %vm8118 = vweird.f32 %v7819
    %vm8119 = vweird.f32 %v8112
    %vm8120 = vmor %vm8118, %vm8119
    %v8121 = vsel %vm8120, %v8112, %v8117
    %v8122 = vrsqrt.pop %v7820
    %v8123 = vmul.f32 %v8122, %v7820
    %v8124 = vmul.f32 %v8123, %v8122
    %v8125 = vmul.f32 0.5, %v8124
    %v8126 = vsub.f32 1.5, %v8125
    %v8127 = vmul.f32 %v8122, %v8126
    %vm8128 = vweird.f32 %v7820
    %vm8129 = vweird.f32 %v8122
    %vm8130 = vmor %vm8128, %vm8129
    %v8131 = vsel %vm8130, %v8122, %v8127
    %v8132 = vrsqrt.pop %v7821
    %v8133 = vmul.f32 %v8132, %v7821
    %v8134 = vmul.f32 %v8133, %v8132
    %v8135 = vmul.f32 0.5, %v8134
    %v8136 = vsub.f32 1.5, %v8135
    %v8137 = vmul.f32 %v8132, %v8136
    %vm8138 = vweird.f32 %v7821
    %vm8139 = vweird.f32 %v8132
    %vm8140 = vmor %vm8138, %vm8139
    %v8141 = vsel %vm8140, %v8132, %v8137
    %v8142 = vmul.f32 %v7630, %v7831
    %v8143 = vmul.f32 %v7631, %v7841
    %v8144 = vmul.f32 %v7632, %v7851
    %v8145 = vmul.f32 %v7633, %v7861
    %v8146 = vmul.f32 %v7634, %v7871
    %v8147 = vmul.f32 %v7635, %v7881
    %v8148 = vmul.f32 %v7636, %v7891
    %v8149 = vmul.f32 %v7637, %v7901
    %v8150 = vmul.f32 %v7638, %v7911
    %v8151 = vmul.f32 %v7639, %v7921
    %v8152 = vmul.f32 %v7640, %v7931
    %v8153 = vmul.f32 %v7641, %v7941
    %v8154 = vmul.f32 %v7642, %v7951
    %v8155 = vmul.f32 %v7643, %v7961
    %v8156 = vmul.f32 %v7644, %v7971
    %v8157 = vmul.f32 %v7645, %v7981
    %v8158 = vmul.f32 %v7646, %v7991
    %v8159 = vmul.f32 %v7647, %v8001
    %v8160 = vmul.f32 %v7648, %v8011
    %v8161 = vmul.f32 %v7649, %v8021
    %v8162 = vmul.f32 %v7650, %v8031
    %v8163 = vmul.f32 %v7651, %v8041
    %v8164 = vmul.f32 %v7652, %v8051
    %v8165 = vmul.f32 %v7653, %v8061
    %v8166 = vmul.f32 %v7654, %v8071
    %v8167 = vmul.f32 %v7655, %v8081
    %v8168 = vmul.f32 %v7656, %v8091
    %v8169 = vmul.f32 %v7657, %v8101
    %v8170 = vmul.f32 %v7658, %v8111
    %v8171 = vmul.f32 %v7659, %v8121
    %v8172 = vmul.f32 %v7660, %v8131
    %v8173 = vmul.f32 %v7661, %v8141
    %v8174 = vmul.f32 %v8142, %v4384
    %v8175 = vmul.f32 %v8143, %v4384
    %v8176 = vmul.f32 %v8144, %v4384
    %v8177 = vmul.f32 %v8145, %v4384
    %v8178 = vmul.f32 %v8146, %v4384
    %v8179 = vmul.f32 %v8147, %v4384
    %v8180 = vmul.f32 %v8148, %v4384
    %v8181 = vmul.f32 %v8149, %v4384
    %v8182 = vmul.f32 %v8150, %v4384
    %v8183 = vmul.f32 %v8151, %v4384
    %v8184 = vmul.f32 %v8152, %v4384
    %v8185 = vmul.f32 %v8153, %v4384
    %v8186 = vmul.f32 %v8154, %v4384
    %v8187 = vmul.f32 %v8155, %v4384
    %v8188 = vmul.f32 %v8156, %v4384
    %v8189 = vmul.f32 %v8157, %v4384
    %v8190 = vmul.f32 %v8158, %v4384
    %v8191 = vmul.f32 %v8159, %v4384
    %v8192 = vmul.f32 %v8160, %v4384
    %v8193 = vmul.f32 %v8161, %v4384
    %v8194 = vmul.f32 %v8162, %v4384
    %v8195 = vmul.f32 %v8163, %v4384
    %v8196 = vmul.f32 %v8164, %v4384
    %v8197 = vmul.f32 %v8165, %v4384
    %v8198 = vmul.f32 %v8166, %v4384
    %v8199 = vmul.f32 %v8167, %v4384
    %v8200 = vmul.f32 %v8168, %v4384
    %v8201 = vmul.f32 %v8169, %v4384
    %v8202 = vmul.f32 %v8170, %v4384
    %v8203 = vmul.f32 %v8171, %v4384
    %v8204 = vmul.f32 %v8172, %v4384
    %v8205 = vmul.f32 %v8173, %v4384
    %v8206 = vadd.f32 %v8174, %v4419
    %v8207 = vadd.f32 %v8175, %v4419
    %v8208 = vadd.f32 %v8176, %v4419
    %v8209 = vadd.f32 %v8177, %v4419
    %v8210 = vadd.f32 %v8178, %v4419
    %v8211 = vadd.f32 %v8179, %v4419
    %v8212 = vadd.f32 %v8180, %v4419
    %v8213 = vadd.f32 %v8181, %v4419
    %v8214 = vadd.f32 %v8182, %v4419
    %v8215 = vadd.f32 %v8183, %v4419
    %v8216 = vadd.f32 %v8184, %v4419
    %v8217 = vadd.f32 %v8185, %v4419
    %v8218 = vadd.f32 %v8186, %v4419
    %v8219 = vadd.f32 %v8187, %v4419
    %v8220 = vadd.f32 %v8188, %v4419
    %v8221 = vadd.f32 %v8189, %v4419
    %v8222 = vadd.f32 %v8190, %v4419
    %v8223 = vadd.f32 %v8191, %v4419
    %v8224 = vadd.f32 %v8192, %v4419
    %v8225 = vadd.f32 %v8193, %v4419
    %v8226 = vadd.f32 %v8194, %v4419
    %v8227 = vadd.f32 %v8195, %v4419
    %v8228 = vadd.f32 %v8196, %v4419
    %v8229 = vadd.f32 %v8197, %v4419
    %v8230 = vadd.f32 %v8198, %v4419
    %v8231 = vadd.f32 %v8199, %v4419
    %v8232 = vadd.f32 %v8200, %v4419
    %v8233 = vadd.f32 %v8201, %v4419
    %v8234 = vadd.f32 %v8202, %v4419
    %v8235 = vadd.f32 %v8203, %v4419
    %v8236 = vadd.f32 %v8204, %v4419
    %v8237 = vadd.f32 %v8205, %v4419
    %v8238 = vpack.c.bf16 %v8207, %v8206
    %v8239 = vpack.c.bf16 %v8209, %v8208
    %v8240 = vpack.c.bf16 %v8211, %v8210
    %v8241 = vpack.c.bf16 %v8213, %v8212
    %v8242 = vpack.c.bf16 %v8215, %v8214
    %v8243 = vpack.c.bf16 %v8217, %v8216
    %v8244 = vpack.c.bf16 %v8219, %v8218
    %v8245 = vpack.c.bf16 %v8221, %v8220
    %v8246 = vpack.c.bf16 %v8223, %v8222
    %v8247 = vpack.c.bf16 %v8225, %v8224
    %v8248 = vpack.c.bf16 %v8227, %v8226
    %v8249 = vpack.c.bf16 %v8229, %v8228
    %v8250 = vpack.c.bf16 %v8231, %v8230
    %v8251 = vpack.c.bf16 %v8233, %v8232
    %v8252 = vpack.c.bf16 %v8235, %v8234
    %v8253 = vpack.c.bf16 %v8237, %v8236
    %v8254 = vld [vmem:[%s10] sm:$0xf]
    %v8255 = vld [vmem:[%s10 + $0x4] sm:$0xf]
    %v8256 = vld [vmem:[%s10 + $0x8] sm:$0xf]
    %v8257 = vld [vmem:[%s10 + $0xc] sm:$0xf]
    %v8258 = vld [vmem:[%s10 + $0x10] sm:$0xf]
    %v8259 = vld [vmem:[%s10 + $0x14] sm:$0xf]
    %v8260 = vld [vmem:[%s10 + $0x18] sm:$0xf]
    %v8261 = vld [vmem:[%s10 + $0x1c] sm:$0xf]
    %v8262 = vld [vmem:[%s10 + $0x20] sm:$0xf]
    %v8263 = vld [vmem:[%s10 + $0x24] sm:$0xf]
    %v8264 = vld [vmem:[%s10 + $0x28] sm:$0xf]
    %v8265 = vld [vmem:[%s10 + $0x2c] sm:$0xf]
    %v8266 = vld [vmem:[%s10 + $0x30] sm:$0xf]
    %v8267 = vld [vmem:[%s10 + $0x34] sm:$0xf]
    %v8268 = vld [vmem:[%s10 + $0x38] sm:$0xf]
    %v8269 = vld [vmem:[%s10 + $0x3c] sm:$0xf]
    %v8270 = vld [vmem:[%s11] sm:$0x1]
    %v8272 = vperm.slane %v8270, 0
    %v8290 = vunpack.c.l.b16 %v8254
    %v8291 = vunpack.c.l.b16 %v8255
    %v8292 = vunpack.c.l.b16 %v8256
    %v8293 = vunpack.c.l.b16 %v8257
    %v8294 = vunpack.c.l.b16 %v8258
    %v8295 = vunpack.c.l.b16 %v8259
    %v8296 = vunpack.c.l.b16 %v8260
    %v8297 = vunpack.c.l.b16 %v8261
    %v8298 = vunpack.c.l.b16 %v8262
    %v8299 = vunpack.c.l.b16 %v8263
    %v8300 = vunpack.c.l.b16 %v8264
    %v8301 = vunpack.c.l.b16 %v8265
    %v8302 = vunpack.c.l.b16 %v8266
    %v8303 = vunpack.c.l.b16 %v8267
    %v8304 = vunpack.c.l.b16 %v8268
    %v8305 = vunpack.c.l.b16 %v8269
    %v8306 = vpack.c.b16 %v8291, %v8290
    %v8307 = vpack.c.b16 %v8293, %v8292
    %v8308 = vpack.c.b16 %v8295, %v8294
    %v8309 = vpack.c.b16 %v8297, %v8296
    %v8310 = vpack.c.b16 %v8299, %v8298
    %v8311 = vpack.c.b16 %v8301, %v8300
    %v8312 = vpack.c.b16 %v8303, %v8302
    %v8313 = vpack.c.b16 %v8305, %v8304
    %8322 = vmatpush.bf16.msra.mxu0 %v8313
    %8323 = vmatpush.bf16.msra.mxu0 %v8312
    %8324 = vmatpush.bf16.msra.mxu0 %v8311
    %8325 = vmatpush.bf16.msra.mxu0 %v8310
    %8326 = vmatpush.bf16.msra.mxu0 %v8309
    %8327 = vmatpush.bf16.msra.mxu0 %v8308
    %8328 = vmatpush.bf16.msra.mxu0 %v8307
    %8329 = vmatpush.bf16.msra.mxu0 %v8306
    %8330 = vmatmul.bf16.gmra.mxu0 %v8238
    %v8331 = vpop.f32.mrf.mxu0
    %v8332 = vadd.f32 %v8272, %v8331
    %v8333 = vpop.f32.mrf.mxu0
    %v8334 = vadd.f32 %v8272, %v8333
    %8335 = vmatmul.bf16.gmra.mxu0 %v8239
    %v8336 = vpop.f32.mrf.mxu0
    %v8337 = vadd.f32 %v8272, %v8336
    %v8338 = vpop.f32.mrf.mxu0
    %v8339 = vadd.f32 %v8272, %v8338
    %8340 = vmatmul.bf16.gmra.mxu0 %v8240
    %v8341 = vpop.f32.mrf.mxu0
    %v8342 = vadd.f32 %v8272, %v8341
    %v8343 = vpop.f32.mrf.mxu0
    %v8344 = vadd.f32 %v8272, %v8343
    %8345 = vmatmul.bf16.gmra.mxu0 %v8241
    %v8346 = vpop.f32.mrf.mxu0
    %v8347 = vadd.f32 %v8272, %v8346
    %v8348 = vpop.f32.mrf.mxu0
    %v8349 = vadd.f32 %v8272, %v8348
    %8350 = vmatmul.bf16.gmra.mxu0 %v8242
    %v8351 = vpop.f32.mrf.mxu0
    %v8352 = vadd.f32 %v8272, %v8351
    %v8353 = vpop.f32.mrf.mxu0
    %v8354 = vadd.f32 %v8272, %v8353
    %8355 = vmatmul.bf16.gmra.mxu0 %v8243
    %v8356 = vpop.f32.mrf.mxu0
    %v8357 = vadd.f32 %v8272, %v8356
    %v8358 = vpop.f32.mrf.mxu0
    %v8359 = vadd.f32 %v8272, %v8358
    %8360 = vmatmul.bf16.gmra.mxu0 %v8244
    %v8361 = vpop.f32.mrf.mxu0
    %v8362 = vadd.f32 %v8272, %v8361
    %v8363 = vpop.f32.mrf.mxu0
    %v8364 = vadd.f32 %v8272, %v8363
    %8365 = vmatmul.bf16.gmra.mxu0 %v8245
    %v8366 = vpop.f32.mrf.mxu0
    %v8367 = vadd.f32 %v8272, %v8366
    %v8368 = vpop.f32.mrf.mxu0
    %v8369 = vadd.f32 %v8272, %v8368
    %8370 = vmatmul.bf16.gmra.mxu0 %v8246
    %v8371 = vpop.f32.mrf.mxu0
    %v8372 = vadd.f32 %v8272, %v8371
    %v8373 = vpop.f32.mrf.mxu0
    %v8374 = vadd.f32 %v8272, %v8373
    %8375 = vmatmul.bf16.gmra.mxu0 %v8247
    %v8376 = vpop.f32.mrf.mxu0
    %v8377 = vadd.f32 %v8272, %v8376
    %v8378 = vpop.f32.mrf.mxu0
    %v8379 = vadd.f32 %v8272, %v8378
    %8380 = vmatmul.bf16.gmra.mxu0 %v8248
    %v8381 = vpop.f32.mrf.mxu0
    %v8382 = vadd.f32 %v8272, %v8381
    %v8383 = vpop.f32.mrf.mxu0
    %v8384 = vadd.f32 %v8272, %v8383
    %8385 = vmatmul.bf16.gmra.mxu0 %v8249
    %v8386 = vpop.f32.mrf.mxu0
    %v8387 = vadd.f32 %v8272, %v8386
    %v8388 = vpop.f32.mrf.mxu0
    %v8389 = vadd.f32 %v8272, %v8388
    %8390 = vmatmul.bf16.gmra.mxu0 %v8250
    %v8391 = vpop.f32.mrf.mxu0
    %v8392 = vadd.f32 %v8272, %v8391
    %v8393 = vpop.f32.mrf.mxu0
    %v8394 = vadd.f32 %v8272, %v8393
    %8395 = vmatmul.bf16.gmra.mxu0 %v8251
    %v8396 = vpop.f32.mrf.mxu0
    %v8397 = vadd.f32 %v8272, %v8396
    %v8398 = vpop.f32.mrf.mxu0
    %v8399 = vadd.f32 %v8272, %v8398
    %8400 = vmatmul.bf16.gmra.mxu0 %v8252
    %v8401 = vpop.f32.mrf.mxu0
    %v8402 = vadd.f32 %v8272, %v8401
    %v8403 = vpop.f32.mrf.mxu0
    %v8404 = vadd.f32 %v8272, %v8403
    %8405 = vmatmul.bf16.gmra.mxu0 %v8253
    %v8406 = vpop.f32.mrf.mxu0
    %v8407 = vadd.f32 %v8272, %v8406
    %v8408 = vpop.f32.mrf.mxu0
    %v8409 = vadd.f32 %v8272, %v8408
    %8410 = vdwg.mxu0
    %v8411 = vmul.f32 %v8332, 0.5
    %v8412 = vmul.f32 %v8334, 0.5
    %v8413 = vmul.f32 %v8337, 0.5
    %v8414 = vmul.f32 %v8339, 0.5
    %v8415 = vmul.f32 %v8342, 0.5
    %v8416 = vmul.f32 %v8344, 0.5
    %v8417 = vmul.f32 %v8347, 0.5
    %v8418 = vmul.f32 %v8349, 0.5
    %v8419 = vmul.f32 %v8352, 0.5
    %v8420 = vmul.f32 %v8354, 0.5
    %v8421 = vmul.f32 %v8357, 0.5
    %v8422 = vmul.f32 %v8359, 0.5
    %v8423 = vmul.f32 %v8362, 0.5
    %v8424 = vmul.f32 %v8364, 0.5
    %v8425 = vmul.f32 %v8367, 0.5
    %v8426 = vmul.f32 %v8369, 0.5
    %v8427 = vmul.f32 %v8372, 0.5
    %v8428 = vmul.f32 %v8374, 0.5
    %v8429 = vmul.f32 %v8377, 0.5
    %v8430 = vmul.f32 %v8379, 0.5
    %v8431 = vmul.f32 %v8382, 0.5
    %v8432 = vmul.f32 %v8384, 0.5
    %v8433 = vmul.f32 %v8387, 0.5
    %v8434 = vmul.f32 %v8389, 0.5
    %v8435 = vmul.f32 %v8392, 0.5
    %v8436 = vmul.f32 %v8394, 0.5
    %v8437 = vmul.f32 %v8397, 0.5
    %v8438 = vmul.f32 %v8399, 0.5
    %v8439 = vmul.f32 %v8402, 0.5
    %v8440 = vmul.f32 %v8404, 0.5
    %v8441 = vmul.f32 %v8407, 0.5
    %v8442 = vmul.f32 %v8409, 0.5
    %v8443 = vmul.f32 %v8332, 0.70710677
    %v8444 = vmul.f32 %v8334, 0.70710677
    %v8445 = vmul.f32 %v8337, 0.70710677
    %v8446 = vmul.f32 %v8339, 0.70710677
    %v8447 = vmul.f32 %v8342, 0.70710677
    %v8448 = vmul.f32 %v8344, 0.70710677
    %v8449 = vmul.f32 %v8347, 0.70710677
    %v8450 = vmul.f32 %v8349, 0.70710677
    %v8451 = vmul.f32 %v8352, 0.70710677
    %v8452 = vmul.f32 %v8354, 0.70710677
    %v8453 = vmul.f32 %v8357, 0.70710677
    %v8454 = vmul.f32 %v8359, 0.70710677
    %v8455 = vmul.f32 %v8362, 0.70710677
    %v8456 = vmul.f32 %v8364, 0.70710677
    %v8457 = vmul.f32 %v8367, 0.70710677
    %v8458 = vmul.f32 %v8369, 0.70710677
    %v8459 = vmul.f32 %v8372, 0.70710677
    %v8460 = vmul.f32 %v8374, 0.70710677
    %v8461 = vmul.f32 %v8377, 0.70710677
    %v8462 = vmul.f32 %v8379, 0.70710677
    %v8463 = vmul.f32 %v8382, 0.70710677
    %v8464 = vmul.f32 %v8384, 0.70710677
    %v8465 = vmul.f32 %v8387, 0.70710677
    %v8466 = vmul.f32 %v8389, 0.70710677
    %v8467 = vmul.f32 %v8392, 0.70710677
    %v8468 = vmul.f32 %v8394, 0.70710677
    %v8469 = vmul.f32 %v8397, 0.70710677
    %v8470 = vmul.f32 %v8399, 0.70710677
    %v8471 = vmul.f32 %v8402, 0.70710677
    %v8472 = vmul.f32 %v8404, 0.70710677
    %v8473 = vmul.f32 %v8407, 0.70710677
    %v8474 = vmul.f32 %v8409, 0.70710677
    %v8475 = vand.u32 2147483647, %v8443
    %v8476 = vand.u32 2147483647, %v8444
    %v8477 = vand.u32 2147483647, %v8445
    %v8478 = vand.u32 2147483647, %v8446
    %v8479 = vand.u32 2147483647, %v8447
    %v8480 = vand.u32 2147483647, %v8448
    %v8481 = vand.u32 2147483647, %v8449
    %v8482 = vand.u32 2147483647, %v8450
    %v8483 = vand.u32 2147483647, %v8451
    %v8484 = vand.u32 2147483647, %v8452
    %v8485 = vand.u32 2147483647, %v8453
    %v8486 = vand.u32 2147483647, %v8454
    %v8487 = vand.u32 2147483647, %v8455
    %v8488 = vand.u32 2147483647, %v8456
    %v8489 = vand.u32 2147483647, %v8457
    %v8490 = vand.u32 2147483647, %v8458
    %v8491 = vand.u32 2147483647, %v8459
    %v8492 = vand.u32 2147483647, %v8460
    %v8493 = vand.u32 2147483647, %v8461
    %v8494 = vand.u32 2147483647, %v8462
    %v8495 = vand.u32 2147483647, %v8463
    %v8496 = vand.u32 2147483647, %v8464
    %v8497 = vand.u32 2147483647, %v8465
    %v8498 = vand.u32 2147483647, %v8466
    %v8499 = vand.u32 2147483647, %v8467
    %v8500 = vand.u32 2147483647, %v8468
    %v8501 = vand.u32 2147483647, %v8469
    %v8502 = vand.u32 2147483647, %v8470
    %v8503 = vand.u32 2147483647, %v8471
    %v8504 = vand.u32 2147483647, %v8472
    %v8505 = vand.u32 2147483647, %v8473
    %v8506 = vand.u32 2147483647, %v8474
    %v8507 = vmul.f32 %v8475, 0.3275911
    %v8508 = vmul.f32 %v8476, 0.3275911
    %v8509 = vmul.f32 %v8477, 0.3275911
    %v8510 = vmul.f32 %v8478, 0.3275911
    %v8511 = vmul.f32 %v8479, 0.3275911
    %v8512 = vmul.f32 %v8480, 0.3275911
    %v8513 = vmul.f32 %v8481, 0.3275911
    %v8514 = vmul.f32 %v8482, 0.3275911
    %v8515 = vmul.f32 %v8483, 0.3275911
    %v8516 = vmul.f32 %v8484, 0.3275911
    %v8517 = vmul.f32 %v8485, 0.3275911
    %v8518 = vmul.f32 %v8486, 0.3275911
    %v8519 = vmul.f32 %v8487, 0.3275911
    %v8520 = vmul.f32 %v8488, 0.3275911
    %v8521 = vmul.f32 %v8489, 0.3275911
    %v8522 = vmul.f32 %v8490, 0.3275911
    %v8523 = vmul.f32 %v8491, 0.3275911
    %v8524 = vmul.f32 %v8492, 0.3275911
    %v8525 = vmul.f32 %v8493, 0.3275911
    %v8526 = vmul.f32 %v8494, 0.3275911
    %v8527 = vmul.f32 %v8495, 0.3275911
    %v8528 = vmul.f32 %v8496, 0.3275911
    %v8529 = vmul.f32 %v8497, 0.3275911
    %v8530 = vmul.f32 %v8498, 0.3275911
    %v8531 = vmul.f32 %v8499, 0.3275911
    %v8532 = vmul.f32 %v8500, 0.3275911
    %v8533 = vmul.f32 %v8501, 0.3275911
    %v8534 = vmul.f32 %v8502, 0.3275911
    %v8535 = vmul.f32 %v8503, 0.3275911
    %v8536 = vmul.f32 %v8504, 0.3275911
    %v8537 = vmul.f32 %v8505, 0.3275911
    %v8538 = vmul.f32 %v8506, 0.3275911
    %v8539 = vadd.f32 %v8507, 1.0
    %v8540 = vadd.f32 %v8508, 1.0
    %v8541 = vadd.f32 %v8509, 1.0
    %v8542 = vadd.f32 %v8510, 1.0
    %v8543 = vadd.f32 %v8511, 1.0
    %v8544 = vadd.f32 %v8512, 1.0
    %v8545 = vadd.f32 %v8513, 1.0
    %v8546 = vadd.f32 %v8514, 1.0
    %v8547 = vadd.f32 %v8515, 1.0
    %v8548 = vadd.f32 %v8516, 1.0
    %v8549 = vadd.f32 %v8517, 1.0
    %v8550 = vadd.f32 %v8518, 1.0
    %v8551 = vadd.f32 %v8519, 1.0
    %v8552 = vadd.f32 %v8520, 1.0
    %v8553 = vadd.f32 %v8521, 1.0
    %v8554 = vadd.f32 %v8522, 1.0
    %v8555 = vadd.f32 %v8523, 1.0
    %v8556 = vadd.f32 %v8524, 1.0
    %v8557 = vadd.f32 %v8525, 1.0
    %v8558 = vadd.f32 %v8526, 1.0
    %v8559 = vadd.f32 %v8527, 1.0
    %v8560 = vadd.f32 %v8528, 1.0
    %v8561 = vadd.f32 %v8529, 1.0
    %v8562 = vadd.f32 %v8530, 1.0
    %v8563 = vadd.f32 %v8531, 1.0
    %v8564 = vadd.f32 %v8532, 1.0
    %v8565 = vadd.f32 %v8533, 1.0
    %v8566 = vadd.f32 %v8534, 1.0
    %v8567 = vadd.f32 %v8535, 1.0
    %v8568 = vadd.f32 %v8536, 1.0
    %v8569 = vadd.f32 %v8537, 1.0
    %v8570 = vadd.f32 %v8538, 1.0
    %v8571 = vrcp.pop %v8539
    %v8572 = vmul.f32 %v8539, %v8571
    %v8573 = vsub.f32 1.0, %v8572
    %v8574 = vmul.f32 %v8571, %v8573
    %v8575 = vadd.f32 %v8571, %v8574
    %vm8576 = vweird.f32 %v8539
    %vm8577 = vweird.f32 %v8571
    %vm8578 = vmor %vm8576, %vm8577
    %v8579 = vsel %vm8578, %v8571, %v8575
    %v8580 = vand.u32 2147483647, %v8539
    %vm8581 = vcmp.eq.f32.partialorder %v8580, 8.507059e+37
    %v8582 = vand.u32 %v8539, 2147483648
    %v8583 = vor.u32 1.1754944e-38, %v8582
    %v8584 = vsel %vm8581, %v8583, %v8579
    %v8585 = vmul.f32 1.0, %v8584
    %v8586 = vrcp.pop %v8540
    %v8587 = vmul.f32 %v8540, %v8586
    %v8588 = vsub.f32 1.0, %v8587
    %v8589 = vmul.f32 %v8586, %v8588
    %v8590 = vadd.f32 %v8586, %v8589
    %vm8591 = vweird.f32 %v8540
    %vm8592 = vweird.f32 %v8586
    %vm8593 = vmor %vm8591, %vm8592
    %v8594 = vsel %vm8593, %v8586, %v8590
    %v8595 = vand.u32 2147483647, %v8540
    %vm8596 = vcmp.eq.f32.partialorder %v8595, 8.507059e+37
    %v8597 = vand.u32 %v8540, 2147483648
    %v8598 = vor.u32 1.1754944e-38, %v8597
    %v8599 = vsel %vm8596, %v8598, %v8594
    %v8600 = vmul.f32 1.0, %v8599
    %v8601 = vrcp.pop %v8541
    %v8602 = vmul.f32 %v8541, %v8601
    %v8603 = vsub.f32 1.0, %v8602
    %v8604 = vmul.f32 %v8601, %v8603
    %v8605 = vadd.f32 %v8601, %v8604
    %vm8606 = vweird.f32 %v8541
    %vm8607 = vweird.f32 %v8601
    %vm8608 = vmor %vm8606, %vm8607
    %v8609 = vsel %vm8608, %v8601, %v8605
    %v8610 = vand.u32 2147483647, %v8541
    %vm8611 = vcmp.eq.f32.partialorder %v8610, 8.507059e+37
    %v8612 = vand.u32 %v8541, 2147483648
    %v8613 = vor.u32 1.1754944e-38, %v8612
    %v8614 = vsel %vm8611, %v8613, %v8609
    %v8615 = vmul.f32 1.0, %v8614
    %v8616 = vrcp.pop %v8542
    %v8617 = vmul.f32 %v8542, %v8616
    %v8618 = vsub.f32 1.0, %v8617
    %v8619 = vmul.f32 %v8616, %v8618
    %v8620 = vadd.f32 %v8616, %v8619
    %vm8621 = vweird.f32 %v8542
    %vm8622 = vweird.f32 %v8616
    %vm8623 = vmor %vm8621, %vm8622
    %v8624 = vsel %vm8623, %v8616, %v8620
    %v8625 = vand.u32 2147483647, %v8542
    %vm8626 = vcmp.eq.f32.partialorder %v8625, 8.507059e+37
    %v8627 = vand.u32 %v8542, 2147483648
    %v8628 = vor.u32 1.1754944e-38, %v8627
    %v8629 = vsel %vm8626, %v8628, %v8624
    %v8630 = vmul.f32 1.0, %v8629
    %v8631 = vrcp.pop %v8543
    %v8632 = vmul.f32 %v8543, %v8631
    %v8633 = vsub.f32 1.0, %v8632
    %v8634 = vmul.f32 %v8631, %v8633
    %v8635 = vadd.f32 %v8631, %v8634
    %vm8636 = vweird.f32 %v8543
    %vm8637 = vweird.f32 %v8631
    %vm8638 = vmor %vm8636, %vm8637
    %v8639 = vsel %vm8638, %v8631, %v8635
    %v8640 = vand.u32 2147483647, %v8543
    %vm8641 = vcmp.eq.f32.partialorder %v8640, 8.507059e+37
    %v8642 = vand.u32 %v8543, 2147483648
    %v8643 = vor.u32 1.1754944e-38, %v8642
    %v8644 = vsel %vm8641, %v8643, %v8639
    %v8645 = vmul.f32 1.0, %v8644
    %v8646 = vrcp.pop %v8544
    %v8647 = vmul.f32 %v8544, %v8646
    %v8648 = vsub.f32 1.0, %v8647
    %v8649 = vmul.f32 %v8646, %v8648
    %v8650 = vadd.f32 %v8646, %v8649
    %vm8651 = vweird.f32 %v8544
    %vm8652 = vweird.f32 %v8646
    %vm8653 = vmor %vm8651, %vm8652
    %v8654 = vsel %vm8653, %v8646, %v8650
    %v8655 = vand.u32 2147483647, %v8544
    %vm8656 = vcmp.eq.f32.partialorder %v8655, 8.507059e+37
    %v8657 = vand.u32 %v8544, 2147483648
    %v8658 = vor.u32 1.1754944e-38, %v8657
    %v8659 = vsel %vm8656, %v8658, %v8654
    %v8660 = vmul.f32 1.0, %v8659
    %v8661 = vrcp.pop %v8545
    %v8662 = vmul.f32 %v8545, %v8661
    %v8663 = vsub.f32 1.0, %v8662
    %v8664 = vmul.f32 %v8661, %v8663
    %v8665 = vadd.f32 %v8661, %v8664
    %vm8666 = vweird.f32 %v8545
    %vm8667 = vweird.f32 %v8661
    %vm8668 = vmor %vm8666, %vm8667
    %v8669 = vsel %vm8668, %v8661, %v8665
    %v8670 = vand.u32 2147483647, %v8545
    %vm8671 = vcmp.eq.f32.partialorder %v8670, 8.507059e+37
    %v8672 = vand.u32 %v8545, 2147483648
    %v8673 = vor.u32 1.1754944e-38, %v8672
    %v8674 = vsel %vm8671, %v8673, %v8669
    %v8675 = vmul.f32 1.0, %v8674
    %v8676 = vrcp.pop %v8546
    %v8677 = vmul.f32 %v8546, %v8676
    %v8678 = vsub.f32 1.0, %v8677
    %v8679 = vmul.f32 %v8676, %v8678
    %v8680 = vadd.f32 %v8676, %v8679
    %vm8681 = vweird.f32 %v8546
    %vm8682 = vweird.f32 %v8676
    %vm8683 = vmor %vm8681, %vm8682
    %v8684 = vsel %vm8683, %v8676, %v8680
    %v8685 = vand.u32 2147483647, %v8546
    %vm8686 = vcmp.eq.f32.partialorder %v8685, 8.507059e+37
    %v8687 = vand.u32 %v8546, 2147483648
    %v8688 = vor.u32 1.1754944e-38, %v8687
    %v8689 = vsel %vm8686, %v8688, %v8684
    %v8690 = vmul.f32 1.0, %v8689
    %v8691 = vrcp.pop %v8547
    %v8692 = vmul.f32 %v8547, %v8691
    %v8693 = vsub.f32 1.0, %v8692
    %v8694 = vmul.f32 %v8691, %v8693
    %v8695 = vadd.f32 %v8691, %v8694
    %vm8696 = vweird.f32 %v8547
    %vm8697 = vweird.f32 %v8691
    %vm8698 = vmor %vm8696, %vm8697
    %v8699 = vsel %vm8698, %v8691, %v8695
    %v8700 = vand.u32 2147483647, %v8547
    %vm8701 = vcmp.eq.f32.partialorder %v8700, 8.507059e+37
    %v8702 = vand.u32 %v8547, 2147483648
    %v8703 = vor.u32 1.1754944e-38, %v8702
    %v8704 = vsel %vm8701, %v8703, %v8699
    %v8705 = vmul.f32 1.0, %v8704
    %v8706 = vrcp.pop %v8548
    %v8707 = vmul.f32 %v8548, %v8706
    %v8708 = vsub.f32 1.0, %v8707
    %v8709 = vmul.f32 %v8706, %v8708
    %v8710 = vadd.f32 %v8706, %v8709
    %vm8711 = vweird.f32 %v8548
    %vm8712 = vweird.f32 %v8706
    %vm8713 = vmor %vm8711, %vm8712
    %v8714 = vsel %vm8713, %v8706, %v8710
    %v8715 = vand.u32 2147483647, %v8548
    %vm8716 = vcmp.eq.f32.partialorder %v8715, 8.507059e+37
    %v8717 = vand.u32 %v8548, 2147483648
    %v8718 = vor.u32 1.1754944e-38, %v8717
    %v8719 = vsel %vm8716, %v8718, %v8714
    %v8720 = vmul.f32 1.0, %v8719
    %v8721 = vrcp.pop %v8549
    %v8722 = vmul.f32 %v8549, %v8721
    %v8723 = vsub.f32 1.0, %v8722
    %v8724 = vmul.f32 %v8721, %v8723
    %v8725 = vadd.f32 %v8721, %v8724
    %vm8726 = vweird.f32 %v8549
    %vm8727 = vweird.f32 %v8721
    %vm8728 = vmor %vm8726, %vm8727
    %v8729 = vsel %vm8728, %v8721, %v8725
    %v8730 = vand.u32 2147483647, %v8549
    %vm8731 = vcmp.eq.f32.partialorder %v8730, 8.507059e+37
    %v8732 = vand.u32 %v8549, 2147483648
    %v8733 = vor.u32 1.1754944e-38, %v8732
    %v8734 = vsel %vm8731, %v8733, %v8729
    %v8735 = vmul.f32 1.0, %v8734
    %v8736 = vrcp.pop %v8550
    %v8737 = vmul.f32 %v8550, %v8736
    %v8738 = vsub.f32 1.0, %v8737
    %v8739 = vmul.f32 %v8736, %v8738
    %v8740 = vadd.f32 %v8736, %v8739
    %vm8741 = vweird.f32 %v8550
    %vm8742 = vweird.f32 %v8736
    %vm8743 = vmor %vm8741, %vm8742
    %v8744 = vsel %vm8743, %v8736, %v8740
    %v8745 = vand.u32 2147483647, %v8550
    %vm8746 = vcmp.eq.f32.partialorder %v8745, 8.507059e+37
    %v8747 = vand.u32 %v8550, 2147483648
    %v8748 = vor.u32 1.1754944e-38, %v8747
    %v8749 = vsel %vm8746, %v8748, %v8744
    %v8750 = vmul.f32 1.0, %v8749
    %v8751 = vrcp.pop %v8551
    %v8752 = vmul.f32 %v8551, %v8751
    %v8753 = vsub.f32 1.0, %v8752
    %v8754 = vmul.f32 %v8751, %v8753
    %v8755 = vadd.f32 %v8751, %v8754
    %vm8756 = vweird.f32 %v8551
    %vm8757 = vweird.f32 %v8751
    %vm8758 = vmor %vm8756, %vm8757
    %v8759 = vsel %vm8758, %v8751, %v8755
    %v8760 = vand.u32 2147483647, %v8551
    %vm8761 = vcmp.eq.f32.partialorder %v8760, 8.507059e+37
    %v8762 = vand.u32 %v8551, 2147483648
    %v8763 = vor.u32 1.1754944e-38, %v8762
    %v8764 = vsel %vm8761, %v8763, %v8759
    %v8765 = vmul.f32 1.0, %v8764
    %v8766 = vrcp.pop %v8552
    %v8767 = vmul.f32 %v8552, %v8766
    %v8768 = vsub.f32 1.0, %v8767
    %v8769 = vmul.f32 %v8766, %v8768
    %v8770 = vadd.f32 %v8766, %v8769
    %vm8771 = vweird.f32 %v8552
    %vm8772 = vweird.f32 %v8766
    %vm8773 = vmor %vm8771, %vm8772
    %v8774 = vsel %vm8773, %v8766, %v8770
    %v8775 = vand.u32 2147483647, %v8552
    %vm8776 = vcmp.eq.f32.partialorder %v8775, 8.507059e+37
    %v8777 = vand.u32 %v8552, 2147483648
    %v8778 = vor.u32 1.1754944e-38, %v8777
    %v8779 = vsel %vm8776, %v8778, %v8774
    %v8780 = vmul.f32 1.0, %v8779
    %v8781 = vrcp.pop %v8553
    %v8782 = vmul.f32 %v8553, %v8781
    %v8783 = vsub.f32 1.0, %v8782
    %v8784 = vmul.f32 %v8781, %v8783
    %v8785 = vadd.f32 %v8781, %v8784
    %vm8786 = vweird.f32 %v8553
    %vm8787 = vweird.f32 %v8781
    %vm8788 = vmor %vm8786, %vm8787
    %v8789 = vsel %vm8788, %v8781, %v8785
    %v8790 = vand.u32 2147483647, %v8553
    %vm8791 = vcmp.eq.f32.partialorder %v8790, 8.507059e+37
    %v8792 = vand.u32 %v8553, 2147483648
    %v8793 = vor.u32 1.1754944e-38, %v8792
    %v8794 = vsel %vm8791, %v8793, %v8789
    %v8795 = vmul.f32 1.0, %v8794
    %v8796 = vrcp.pop %v8554
    %v8797 = vmul.f32 %v8554, %v8796
    %v8798 = vsub.f32 1.0, %v8797
    %v8799 = vmul.f32 %v8796, %v8798
    %v8800 = vadd.f32 %v8796, %v8799
    %vm8801 = vweird.f32 %v8554
    %vm8802 = vweird.f32 %v8796
    %vm8803 = vmor %vm8801, %vm8802
    %v8804 = vsel %vm8803, %v8796, %v8800
    %v8805 = vand.u32 2147483647, %v8554
    %vm8806 = vcmp.eq.f32.partialorder %v8805, 8.507059e+37
    %v8807 = vand.u32 %v8554, 2147483648
    %v8808 = vor.u32 1.1754944e-38, %v8807
    %v8809 = vsel %vm8806, %v8808, %v8804
    %v8810 = vmul.f32 1.0, %v8809
    %v8811 = vrcp.pop %v8555
    %v8812 = vmul.f32 %v8555, %v8811
    %v8813 = vsub.f32 1.0, %v8812
    %v8814 = vmul.f32 %v8811, %v8813
    %v8815 = vadd.f32 %v8811, %v8814
    %vm8816 = vweird.f32 %v8555
    %vm8817 = vweird.f32 %v8811
    %vm8818 = vmor %vm8816, %vm8817
    %v8819 = vsel %vm8818, %v8811, %v8815
    %v8820 = vand.u32 2147483647, %v8555
    %vm8821 = vcmp.eq.f32.partialorder %v8820, 8.507059e+37
    %v8822 = vand.u32 %v8555, 2147483648
    %v8823 = vor.u32 1.1754944e-38, %v8822
    %v8824 = vsel %vm8821, %v8823, %v8819
    %v8825 = vmul.f32 1.0, %v8824
    %v8826 = vrcp.pop %v8556
    %v8827 = vmul.f32 %v8556, %v8826
    %v8828 = vsub.f32 1.0, %v8827
    %v8829 = vmul.f32 %v8826, %v8828
    %v8830 = vadd.f32 %v8826, %v8829
    %vm8831 = vweird.f32 %v8556
    %vm8832 = vweird.f32 %v8826
    %vm8833 = vmor %vm8831, %vm8832
    %v8834 = vsel %vm8833, %v8826, %v8830
    %v8835 = vand.u32 2147483647, %v8556
    %vm8836 = vcmp.eq.f32.partialorder %v8835, 8.507059e+37
    %v8837 = vand.u32 %v8556, 2147483648
    %v8838 = vor.u32 1.1754944e-38, %v8837
    %v8839 = vsel %vm8836, %v8838, %v8834
    %v8840 = vmul.f32 1.0, %v8839
    %v8841 = vrcp.pop %v8557
    %v8842 = vmul.f32 %v8557, %v8841
    %v8843 = vsub.f32 1.0, %v8842
    %v8844 = vmul.f32 %v8841, %v8843
    %v8845 = vadd.f32 %v8841, %v8844
    %vm8846 = vweird.f32 %v8557
    %vm8847 = vweird.f32 %v8841
    %vm8848 = vmor %vm8846, %vm8847
    %v8849 = vsel %vm8848, %v8841, %v8845
    %v8850 = vand.u32 2147483647, %v8557
    %vm8851 = vcmp.eq.f32.partialorder %v8850, 8.507059e+37
    %v8852 = vand.u32 %v8557, 2147483648
    %v8853 = vor.u32 1.1754944e-38, %v8852
    %v8854 = vsel %vm8851, %v8853, %v8849
    %v8855 = vmul.f32 1.0, %v8854
    %v8856 = vrcp.pop %v8558
    %v8857 = vmul.f32 %v8558, %v8856
    %v8858 = vsub.f32 1.0, %v8857
    %v8859 = vmul.f32 %v8856, %v8858
    %v8860 = vadd.f32 %v8856, %v8859
    %vm8861 = vweird.f32 %v8558
    %vm8862 = vweird.f32 %v8856
    %vm8863 = vmor %vm8861, %vm8862
    %v8864 = vsel %vm8863, %v8856, %v8860
    %v8865 = vand.u32 2147483647, %v8558
    %vm8866 = vcmp.eq.f32.partialorder %v8865, 8.507059e+37
    %v8867 = vand.u32 %v8558, 2147483648
    %v8868 = vor.u32 1.1754944e-38, %v8867
    %v8869 = vsel %vm8866, %v8868, %v8864
    %v8870 = vmul.f32 1.0, %v8869
    %v8871 = vrcp.pop %v8559
    %v8872 = vmul.f32 %v8559, %v8871
    %v8873 = vsub.f32 1.0, %v8872
    %v8874 = vmul.f32 %v8871, %v8873
    %v8875 = vadd.f32 %v8871, %v8874
    %vm8876 = vweird.f32 %v8559
    %vm8877 = vweird.f32 %v8871
    %vm8878 = vmor %vm8876, %vm8877
    %v8879 = vsel %vm8878, %v8871, %v8875
    %v8880 = vand.u32 2147483647, %v8559
    %vm8881 = vcmp.eq.f32.partialorder %v8880, 8.507059e+37
    %v8882 = vand.u32 %v8559, 2147483648
    %v8883 = vor.u32 1.1754944e-38, %v8882
    %v8884 = vsel %vm8881, %v8883, %v8879
    %v8885 = vmul.f32 1.0, %v8884
    %v8886 = vrcp.pop %v8560
    %v8887 = vmul.f32 %v8560, %v8886
    %v8888 = vsub.f32 1.0, %v8887
    %v8889 = vmul.f32 %v8886, %v8888
    %v8890 = vadd.f32 %v8886, %v8889
    %vm8891 = vweird.f32 %v8560
    %vm8892 = vweird.f32 %v8886
    %vm8893 = vmor %vm8891, %vm8892
    %v8894 = vsel %vm8893, %v8886, %v8890
    %v8895 = vand.u32 2147483647, %v8560
    %vm8896 = vcmp.eq.f32.partialorder %v8895, 8.507059e+37
    %v8897 = vand.u32 %v8560, 2147483648
    %v8898 = vor.u32 1.1754944e-38, %v8897
    %v8899 = vsel %vm8896, %v8898, %v8894
    %v8900 = vmul.f32 1.0, %v8899
    %v8901 = vrcp.pop %v8561
    %v8902 = vmul.f32 %v8561, %v8901
    %v8903 = vsub.f32 1.0, %v8902
    %v8904 = vmul.f32 %v8901, %v8903
    %v8905 = vadd.f32 %v8901, %v8904
    %vm8906 = vweird.f32 %v8561
    %vm8907 = vweird.f32 %v8901
    %vm8908 = vmor %vm8906, %vm8907
    %v8909 = vsel %vm8908, %v8901, %v8905
    %v8910 = vand.u32 2147483647, %v8561
    %vm8911 = vcmp.eq.f32.partialorder %v8910, 8.507059e+37
    %v8912 = vand.u32 %v8561, 2147483648
    %v8913 = vor.u32 1.1754944e-38, %v8912
    %v8914 = vsel %vm8911, %v8913, %v8909
    %v8915 = vmul.f32 1.0, %v8914
    %v8916 = vrcp.pop %v8562
    %v8917 = vmul.f32 %v8562, %v8916
    %v8918 = vsub.f32 1.0, %v8917
    %v8919 = vmul.f32 %v8916, %v8918
    %v8920 = vadd.f32 %v8916, %v8919
    %vm8921 = vweird.f32 %v8562
    %vm8922 = vweird.f32 %v8916
    %vm8923 = vmor %vm8921, %vm8922
    %v8924 = vsel %vm8923, %v8916, %v8920
    %v8925 = vand.u32 2147483647, %v8562
    %vm8926 = vcmp.eq.f32.partialorder %v8925, 8.507059e+37
    %v8927 = vand.u32 %v8562, 2147483648
    %v8928 = vor.u32 1.1754944e-38, %v8927
    %v8929 = vsel %vm8926, %v8928, %v8924
    %v8930 = vmul.f32 1.0, %v8929
    %v8931 = vrcp.pop %v8563
    %v8932 = vmul.f32 %v8563, %v8931
    %v8933 = vsub.f32 1.0, %v8932
    %v8934 = vmul.f32 %v8931, %v8933
    %v8935 = vadd.f32 %v8931, %v8934
    %vm8936 = vweird.f32 %v8563
    %vm8937 = vweird.f32 %v8931
    %vm8938 = vmor %vm8936, %vm8937
    %v8939 = vsel %vm8938, %v8931, %v8935
    %v8940 = vand.u32 2147483647, %v8563
    %vm8941 = vcmp.eq.f32.partialorder %v8940, 8.507059e+37
    %v8942 = vand.u32 %v8563, 2147483648
    %v8943 = vor.u32 1.1754944e-38, %v8942
    %v8944 = vsel %vm8941, %v8943, %v8939
    %v8945 = vmul.f32 1.0, %v8944
    %v8946 = vrcp.pop %v8564
    %v8947 = vmul.f32 %v8564, %v8946
    %v8948 = vsub.f32 1.0, %v8947
    %v8949 = vmul.f32 %v8946, %v8948
    %v8950 = vadd.f32 %v8946, %v8949
    %vm8951 = vweird.f32 %v8564
    %vm8952 = vweird.f32 %v8946
    %vm8953 = vmor %vm8951, %vm8952
    %v8954 = vsel %vm8953, %v8946, %v8950
    %v8955 = vand.u32 2147483647, %v8564
    %vm8956 = vcmp.eq.f32.partialorder %v8955, 8.507059e+37
    %v8957 = vand.u32 %v8564, 2147483648
    %v8958 = vor.u32 1.1754944e-38, %v8957
    %v8959 = vsel %vm8956, %v8958, %v8954
    %v8960 = vmul.f32 1.0, %v8959
    %v8961 = vrcp.pop %v8565
    %v8962 = vmul.f32 %v8565, %v8961
    %v8963 = vsub.f32 1.0, %v8962
    %v8964 = vmul.f32 %v8961, %v8963
    %v8965 = vadd.f32 %v8961, %v8964
    %vm8966 = vweird.f32 %v8565
    %vm8967 = vweird.f32 %v8961
    %vm8968 = vmor %vm8966, %vm8967
    %v8969 = vsel %vm8968, %v8961, %v8965
    %v8970 = vand.u32 2147483647, %v8565
    %vm8971 = vcmp.eq.f32.partialorder %v8970, 8.507059e+37
    %v8972 = vand.u32 %v8565, 2147483648
    %v8973 = vor.u32 1.1754944e-38, %v8972
    %v8974 = vsel %vm8971, %v8973, %v8969
    %v8975 = vmul.f32 1.0, %v8974
    %v8976 = vrcp.pop %v8566
    %v8977 = vmul.f32 %v8566, %v8976
    %v8978 = vsub.f32 1.0, %v8977
    %v8979 = vmul.f32 %v8976, %v8978
    %v8980 = vadd.f32 %v8976, %v8979
    %vm8981 = vweird.f32 %v8566
    %vm8982 = vweird.f32 %v8976
    %vm8983 = vmor %vm8981, %vm8982
    %v8984 = vsel %vm8983, %v8976, %v8980
    %v8985 = vand.u32 2147483647, %v8566
    %vm8986 = vcmp.eq.f32.partialorder %v8985, 8.507059e+37
    %v8987 = vand.u32 %v8566, 2147483648
    %v8988 = vor.u32 1.1754944e-38, %v8987
    %v8989 = vsel %vm8986, %v8988, %v8984
    %v8990 = vmul.f32 1.0, %v8989
    %v8991 = vrcp.pop %v8567
    %v8992 = vmul.f32 %v8567, %v8991
    %v8993 = vsub.f32 1.0, %v8992
    %v8994 = vmul.f32 %v8991, %v8993
    %v8995 = vadd.f32 %v8991, %v8994
    %vm8996 = vweird.f32 %v8567
    %vm8997 = vweird.f32 %v8991
    %vm8998 = vmor %vm8996, %vm8997
    %v8999 = vsel %vm8998, %v8991, %v8995
    %v9000 = vand.u32 2147483647, %v8567
    %vm9001 = vcmp.eq.f32.partialorder %v9000, 8.507059e+37
    %v9002 = vand.u32 %v8567, 2147483648
    %v9003 = vor.u32 1.1754944e-38, %v9002
    %v9004 = vsel %vm9001, %v9003, %v8999
    %v9005 = vmul.f32 1.0, %v9004
    %v9006 = vrcp.pop %v8568
    %v9007 = vmul.f32 %v8568, %v9006
    %v9008 = vsub.f32 1.0, %v9007
    %v9009 = vmul.f32 %v9006, %v9008
    %v9010 = vadd.f32 %v9006, %v9009
    %vm9011 = vweird.f32 %v8568
    %vm9012 = vweird.f32 %v9006
    %vm9013 = vmor %vm9011, %vm9012
    %v9014 = vsel %vm9013, %v9006, %v9010
    %v9015 = vand.u32 2147483647, %v8568
    %vm9016 = vcmp.eq.f32.partialorder %v9015, 8.507059e+37
    %v9017 = vand.u32 %v8568, 2147483648
    %v9018 = vor.u32 1.1754944e-38, %v9017
    %v9019 = vsel %vm9016, %v9018, %v9014
    %v9020 = vmul.f32 1.0, %v9019
    %v9021 = vrcp.pop %v8569
    %v9022 = vmul.f32 %v8569, %v9021
    %v9023 = vsub.f32 1.0, %v9022
    %v9024 = vmul.f32 %v9021, %v9023
    %v9025 = vadd.f32 %v9021, %v9024
    %vm9026 = vweird.f32 %v8569
    %vm9027 = vweird.f32 %v9021
    %vm9028 = vmor %vm9026, %vm9027
    %v9029 = vsel %vm9028, %v9021, %v9025
    %v9030 = vand.u32 2147483647, %v8569
    %vm9031 = vcmp.eq.f32.partialorder %v9030, 8.507059e+37
    %v9032 = vand.u32 %v8569, 2147483648
    %v9033 = vor.u32 1.1754944e-38, %v9032
    %v9034 = vsel %vm9031, %v9033, %v9029
    %v9035 = vmul.f32 1.0, %v9034
    %v9036 = vrcp.pop %v8570
    %v9037 = vmul.f32 %v8570, %v9036
    %v9038 = vsub.f32 1.0, %v9037
    %v9039 = vmul.f32 %v9036, %v9038
    %v9040 = vadd.f32 %v9036, %v9039
    %vm9041 = vweird.f32 %v8570
    %vm9042 = vweird.f32 %v9036
    %vm9043 = vmor %vm9041, %vm9042
    %v9044 = vsel %vm9043, %v9036, %v9040
    %v9045 = vand.u32 2147483647, %v8570
    %vm9046 = vcmp.eq.f32.partialorder %v9045, 8.507059e+37
    %v9047 = vand.u32 %v8570, 2147483648
    %v9048 = vor.u32 1.1754944e-38, %v9047
    %v9049 = vsel %vm9046, %v9048, %v9044
    %v9050 = vmul.f32 1.0, %v9049
    %v9051 = vmul.f32 %v8585, 1.0614054
    %v9052 = vmul.f32 %v8600, 1.0614054
    %v9053 = vmul.f32 %v8615, 1.0614054
    %v9054 = vmul.f32 %v8630, 1.0614054
    %v9055 = vmul.f32 %v8645, 1.0614054
    %v9056 = vmul.f32 %v8660, 1.0614054
    %v9057 = vmul.f32 %v8675, 1.0614054
    %v9058 = vmul.f32 %v8690, 1.0614054
    %v9059 = vmul.f32 %v8705, 1.0614054
    %v9060 = vmul.f32 %v8720, 1.0614054
    %v9061 = vmul.f32 %v8735, 1.0614054
    %v9062 = vmul.f32 %v8750, 1.0614054
    %v9063 = vmul.f32 %v8765, 1.0614054
    %v9064 = vmul.f32 %v8780, 1.0614054
    %v9065 = vmul.f32 %v8795, 1.0614054
    %v9066 = vmul.f32 %v8810, 1.0614054
    %v9067 = vmul.f32 %v8825, 1.0614054
    %v9068 = vmul.f32 %v8840, 1.0614054
    %v9069 = vmul.f32 %v8855, 1.0614054
    %v9070 = vmul.f32 %v8870, 1.0614054
    %v9071 = vmul.f32 %v8885, 1.0614054
    %v9072 = vmul.f32 %v8900, 1.0614054
    %v9073 = vmul.f32 %v8915, 1.0614054
    %v9074 = vmul.f32 %v8930, 1.0614054
    %v9075 = vmul.f32 %v8945, 1.0614054
    %v9076 = vmul.f32 %v8960, 1.0614054
    %v9077 = vmul.f32 %v8975, 1.0614054
    %v9078 = vmul.f32 %v8990, 1.0614054
    %v9079 = vmul.f32 %v9005, 1.0614054
    %v9080 = vmul.f32 %v9020, 1.0614054
    %v9081 = vmul.f32 %v9035, 1.0614054
    %v9082 = vmul.f32 %v9050, 1.0614054
    %v9083 = vadd.f32 %v9051, -1.4531521
    %v9084 = vadd.f32 %v9052, -1.4531521
    %v9085 = vadd.f32 %v9053, -1.4531521
    %v9086 = vadd.f32 %v9054, -1.4531521
    %v9087 = vadd.f32 %v9055, -1.4531521
    %v9088 = vadd.f32 %v9056, -1.4531521
    %v9089 = vadd.f32 %v9057, -1.4531521
    %v9090 = vadd.f32 %v9058, -1.4531521
    %v9091 = vadd.f32 %v9059, -1.4531521
    %v9092 = vadd.f32 %v9060, -1.4531521
    %v9093 = vadd.f32 %v9061, -1.4531521
    %v9094 = vadd.f32 %v9062, -1.4531521
    %v9095 = vadd.f32 %v9063, -1.4531521
    %v9096 = vadd.f32 %v9064, -1.4531521
    %v9097 = vadd.f32 %v9065, -1.4531521
    %v9098 = vadd.f32 %v9066, -1.4531521
    %v9099 = vadd.f32 %v9067, -1.4531521
    %v9100 = vadd.f32 %v9068, -1.4531521
    %v9101 = vadd.f32 %v9069, -1.4531521
    %v9102 = vadd.f32 %v9070, -1.4531521
    %v9103 = vadd.f32 %v9071, -1.4531521
    %v9104 = vadd.f32 %v9072, -1.4531521
    %v9105 = vadd.f32 %v9073, -1.4531521
    %v9106 = vadd.f32 %v9074, -1.4531521
    %v9107 = vadd.f32 %v9075, -1.4531521
    %v9108 = vadd.f32 %v9076, -1.4531521
    %v9109 = vadd.f32 %v9077, -1.4531521
    %v9110 = vadd.f32 %v9078, -1.4531521
    %v9111 = vadd.f32 %v9079, -1.4531521
    %v9112 = vadd.f32 %v9080, -1.4531521
    %v9113 = vadd.f32 %v9081, -1.4531521
    %v9114 = vadd.f32 %v9082, -1.4531521
    %v9115 = vmul.f32 %v9083, %v8585
    %v9116 = vmul.f32 %v9084, %v8600
    %v9117 = vmul.f32 %v9085, %v8615
    %v9118 = vmul.f32 %v9086, %v8630
    %v9119 = vmul.f32 %v9087, %v8645
    %v9120 = vmul.f32 %v9088, %v8660
    %v9121 = vmul.f32 %v9089, %v8675
    %v9122 = vmul.f32 %v9090, %v8690
    %v9123 = vmul.f32 %v9091, %v8705
    %v9124 = vmul.f32 %v9092, %v8720
    %v9125 = vmul.f32 %v9093, %v8735
    %v9126 = vmul.f32 %v9094, %v8750
    %v9127 = vmul.f32 %v9095, %v8765
    %v9128 = vmul.f32 %v9096, %v8780
    %v9129 = vmul.f32 %v9097, %v8795
    %v9130 = vmul.f32 %v9098, %v8810
    %v9131 = vmul.f32 %v9099, %v8825
    %v9132 = vmul.f32 %v9100, %v8840
    %v9133 = vmul.f32 %v9101, %v8855
    %v9134 = vmul.f32 %v9102, %v8870
    %v9135 = vmul.f32 %v9103, %v8885
    %v9136 = vmul.f32 %v9104, %v8900
    %v9137 = vmul.f32 %v9105, %v8915
    %v9138 = vmul.f32 %v9106, %v8930
    %v9139 = vmul.f32 %v9107, %v8945
    %v9140 = vmul.f32 %v9108, %v8960
    %v9141 = vmul.f32 %v9109, %v8975
    %v9142 = vmul.f32 %v9110, %v8990
    %v9143 = vmul.f32 %v9111, %v9005
    %v9144 = vmul.f32 %v9112, %v9020
    %v9145 = vmul.f32 %v9113, %v9035
    %v9146 = vmul.f32 %v9114, %v9050
    %v9147 = vadd.f32 %v9115, 1.4214138
    %v9148 = vadd.f32 %v9116, 1.4214138
    %v9149 = vadd.f32 %v9117, 1.4214138
    %v9150 = vadd.f32 %v9118, 1.4214138
    %v9151 = vadd.f32 %v9119, 1.4214138
    %v9152 = vadd.f32 %v9120, 1.4214138
    %v9153 = vadd.f32 %v9121, 1.4214138
    %v9154 = vadd.f32 %v9122, 1.4214138
    %v9155 = vadd.f32 %v9123, 1.4214138
    %v9156 = vadd.f32 %v9124, 1.4214138
    %v9157 = vadd.f32 %v9125, 1.4214138
    %v9158 = vadd.f32 %v9126, 1.4214138
    %v9159 = vadd.f32 %v9127, 1.4214138
    %v9160 = vadd.f32 %v9128, 1.4214138
    %v9161 = vadd.f32 %v9129, 1.4214138
    %v9162 = vadd.f32 %v9130, 1.4214138
    %v9163 = vadd.f32 %v9131, 1.4214138
    %v9164 = vadd.f32 %v9132, 1.4214138
    %v9165 = vadd.f32 %v9133, 1.4214138
    %v9166 = vadd.f32 %v9134, 1.4214138
    %v9167 = vadd.f32 %v9135, 1.4214138
    %v9168 = vadd.f32 %v9136, 1.4214138
    %v9169 = vadd.f32 %v9137, 1.4214138
    %v9170 = vadd.f32 %v9138, 1.4214138
    %v9171 = vadd.f32 %v9139, 1.4214138
    %v9172 = vadd.f32 %v9140, 1.4214138
    %v9173 = vadd.f32 %v9141, 1.4214138
    %v9174 = vadd.f32 %v9142, 1.4214138
    %v9175 = vadd.f32 %v9143, 1.4214138
    %v9176 = vadd.f32 %v9144, 1.4214138
    %v9177 = vadd.f32 %v9145, 1.4214138
    %v9178 = vadd.f32 %v9146, 1.4214138
    %v9179 = vmul.f32 %v9147, %v8585
    %v9180 = vmul.f32 %v9148, %v8600
    %v9181 = vmul.f32 %v9149, %v8615
    %v9182 = vmul.f32 %v9150, %v8630
    %v9183 = vmul.f32 %v9151, %v8645
    %v9184 = vmul.f32 %v9152, %v8660
    %v9185 = vmul.f32 %v9153, %v8675
    %v9186 = vmul.f32 %v9154, %v8690
    %v9187 = vmul.f32 %v9155, %v8705
    %v9188 = vmul.f32 %v9156, %v8720
    %v9189 = vmul.f32 %v9157, %v8735
    %v9190 = vmul.f32 %v9158, %v8750
    %v9191 = vmul.f32 %v9159, %v8765
    %v9192 = vmul.f32 %v9160, %v8780
    %v9193 = vmul.f32 %v9161, %v8795
    %v9194 = vmul.f32 %v9162, %v8810
    %v9195 = vmul.f32 %v9163, %v8825
    %v9196 = vmul.f32 %v9164, %v8840
    %v9197 = vmul.f32 %v9165, %v8855
    %v9198 = vmul.f32 %v9166, %v8870
    %v9199 = vmul.f32 %v9167, %v8885
    %v9200 = vmul.f32 %v9168, %v8900
    %v9201 = vmul.f32 %v9169, %v8915
    %v9202 = vmul.f32 %v9170, %v8930
    %v9203 = vmul.f32 %v9171, %v8945
    %v9204 = vmul.f32 %v9172, %v8960
    %v9205 = vmul.f32 %v9173, %v8975
    %v9206 = vmul.f32 %v9174, %v8990
    %v9207 = vmul.f32 %v9175, %v9005
    %v9208 = vmul.f32 %v9176, %v9020
    %v9209 = vmul.f32 %v9177, %v9035
    %v9210 = vmul.f32 %v9178, %v9050
    %v9211 = vadd.f32 %v9179, -0.28449672
    %v9212 = vadd.f32 %v9180, -0.28449672
    %v9213 = vadd.f32 %v9181, -0.28449672
    %v9214 = vadd.f32 %v9182, -0.28449672
    %v9215 = vadd.f32 %v9183, -0.28449672
    %v9216 = vadd.f32 %v9184, -0.28449672
    %v9217 = vadd.f32 %v9185, -0.28449672
    %v9218 = vadd.f32 %v9186, -0.28449672
    %v9219 = vadd.f32 %v9187, -0.28449672
    %v9220 = vadd.f32 %v9188, -0.28449672
    %v9221 = vadd.f32 %v9189, -0.28449672
    %v9222 = vadd.f32 %v9190, -0.28449672
    %v9223 = vadd.f32 %v9191, -0.28449672
    %v9224 = vadd.f32 %v9192, -0.28449672
    %v9225 = vadd.f32 %v9193, -0.28449672
    %v9226 = vadd.f32 %v9194, -0.28449672
    %v9227 = vadd.f32 %v9195, -0.28449672
    %v9228 = vadd.f32 %v9196, -0.28449672
    %v9229 = vadd.f32 %v9197, -0.28449672
    %v9230 = vadd.f32 %v9198, -0.28449672
    %v9231 = vadd.f32 %v9199, -0.28449672
    %v9232 = vadd.f32 %v9200, -0.28449672
    %v9233 = vadd.f32 %v9201, -0.28449672
    %v9234 = vadd.f32 %v9202, -0.28449672
    %v9235 = vadd.f32 %v9203, -0.28449672
    %v9236 = vadd.f32 %v9204, -0.28449672
    %v9237 = vadd.f32 %v9205, -0.28449672
    %v9238 = vadd.f32 %v9206, -0.28449672
    %v9239 = vadd.f32 %v9207, -0.28449672
    %v9240 = vadd.f32 %v9208, -0.28449672
    %v9241 = vadd.f32 %v9209, -0.28449672
    %v9242 = vadd.f32 %v9210, -0.28449672
    %v9243 = vmul.f32 %v9211, %v8585
    %v9244 = vmul.f32 %v9212, %v8600
    %v9245 = vmul.f32 %v9213, %v8615
    %v9246 = vmul.f32 %v9214, %v8630
    %v9247 = vmul.f32 %v9215, %v8645
    %v9248 = vmul.f32 %v9216, %v8660
    %v9249 = vmul.f32 %v9217, %v8675
    %v9250 = vmul.f32 %v9218, %v8690
    %v9251 = vmul.f32 %v9219, %v8705
    %v9252 = vmul.f32 %v9220, %v8720
    %v9253 = vmul.f32 %v9221, %v8735
    %v9254 = vmul.f32 %v9222, %v8750
    %v9255 = vmul.f32 %v9223, %v8765
    %v9256 = vmul.f32 %v9224, %v8780
    %v9257 = vmul.f32 %v9225, %v8795
    %v9258 = vmul.f32 %v9226, %v8810
    %v9259 = vmul.f32 %v9227, %v8825
    %v9260 = vmul.f32 %v9228, %v8840
    %v9261 = vmul.f32 %v9229, %v8855
    %v9262 = vmul.f32 %v9230, %v8870
    %v9263 = vmul.f32 %v9231, %v8885
    %v9264 = vmul.f32 %v9232, %v8900
    %v9265 = vmul.f32 %v9233, %v8915
    %v9266 = vmul.f32 %v9234, %v8930
    %v9267 = vmul.f32 %v9235, %v8945
    %v9268 = vmul.f32 %v9236, %v8960
    %v9269 = vmul.f32 %v9237, %v8975
    %v9270 = vmul.f32 %v9238, %v8990
    %v9271 = vmul.f32 %v9239, %v9005
    %v9272 = vmul.f32 %v9240, %v9020
    %v9273 = vmul.f32 %v9241, %v9035
    %v9274 = vmul.f32 %v9242, %v9050
    %v9275 = vadd.f32 %v9243, 0.2548296
    %v9276 = vadd.f32 %v9244, 0.2548296
    %v9277 = vadd.f32 %v9245, 0.2548296
    %v9278 = vadd.f32 %v9246, 0.2548296
    %v9279 = vadd.f32 %v9247, 0.2548296
    %v9280 = vadd.f32 %v9248, 0.2548296
    %v9281 = vadd.f32 %v9249, 0.2548296
    %v9282 = vadd.f32 %v9250, 0.2548296
    %v9283 = vadd.f32 %v9251, 0.2548296
    %v9284 = vadd.f32 %v9252, 0.2548296
    %v9285 = vadd.f32 %v9253, 0.2548296
    %v9286 = vadd.f32 %v9254, 0.2548296
    %v9287 = vadd.f32 %v9255, 0.2548296
    %v9288 = vadd.f32 %v9256, 0.2548296
    %v9289 = vadd.f32 %v9257, 0.2548296
    %v9290 = vadd.f32 %v9258, 0.2548296
    %v9291 = vadd.f32 %v9259, 0.2548296
    %v9292 = vadd.f32 %v9260, 0.2548296
    %v9293 = vadd.f32 %v9261, 0.2548296
    %v9294 = vadd.f32 %v9262, 0.2548296
    %v9295 = vadd.f32 %v9263, 0.2548296
    %v9296 = vadd.f32 %v9264, 0.2548296
    %v9297 = vadd.f32 %v9265, 0.2548296
    %v9298 = vadd.f32 %v9266, 0.2548296
    %v9299 = vadd.f32 %v9267, 0.2548296
    %v9300 = vadd.f32 %v9268, 0.2548296
    %v9301 = vadd.f32 %v9269, 0.2548296
    %v9302 = vadd.f32 %v9270, 0.2548296
    %v9303 = vadd.f32 %v9271, 0.2548296
    %v9304 = vadd.f32 %v9272, 0.2548296
    %v9305 = vadd.f32 %v9273, 0.2548296
    %v9306 = vadd.f32 %v9274, 0.2548296
    %v9307 = vmul.f32 %v9275, %v8585
    %v9308 = vmul.f32 %v9276, %v8600
    %v9309 = vmul.f32 %v9277, %v8615
    %v9310 = vmul.f32 %v9278, %v8630
    %v9311 = vmul.f32 %v9279, %v8645
    %v9312 = vmul.f32 %v9280, %v8660
    %v9313 = vmul.f32 %v9281, %v8675
    %v9314 = vmul.f32 %v9282, %v8690
    %v9315 = vmul.f32 %v9283, %v8705
    %v9316 = vmul.f32 %v9284, %v8720
    %v9317 = vmul.f32 %v9285, %v8735
    %v9318 = vmul.f32 %v9286, %v8750
    %v9319 = vmul.f32 %v9287, %v8765
    %v9320 = vmul.f32 %v9288, %v8780
    %v9321 = vmul.f32 %v9289, %v8795
    %v9322 = vmul.f32 %v9290, %v8810
    %v9323 = vmul.f32 %v9291, %v8825
    %v9324 = vmul.f32 %v9292, %v8840
    %v9325 = vmul.f32 %v9293, %v8855
    %v9326 = vmul.f32 %v9294, %v8870
    %v9327 = vmul.f32 %v9295, %v8885
    %v9328 = vmul.f32 %v9296, %v8900
    %v9329 = vmul.f32 %v9297, %v8915
    %v9330 = vmul.f32 %v9298, %v8930
    %v9331 = vmul.f32 %v9299, %v8945
    %v9332 = vmul.f32 %v9300, %v8960
    %v9333 = vmul.f32 %v9301, %v8975
    %v9334 = vmul.f32 %v9302, %v8990
    %v9335 = vmul.f32 %v9303, %v9005
    %v9336 = vmul.f32 %v9304, %v9020
    %v9337 = vmul.f32 %v9305, %v9035
    %v9338 = vmul.f32 %v9306, %v9050
    %v9339 = vsub.f32 0.0, %v8475
    %v9340 = vsub.f32 0.0, %v8476
    %v9341 = vsub.f32 0.0, %v8477
    %v9342 = vsub.f32 0.0, %v8478
    %v9343 = vsub.f32 0.0, %v8479
    %v9344 = vsub.f32 0.0, %v8480
    %v9345 = vsub.f32 0.0, %v8481
    %v9346 = vsub.f32 0.0, %v8482
    %v9347 = vsub.f32 0.0, %v8483
    %v9348 = vsub.f32 0.0, %v8484
    %v9349 = vsub.f32 0.0, %v8485
    %v9350 = vsub.f32 0.0, %v8486
    %v9351 = vsub.f32 0.0, %v8487
    %v9352 = vsub.f32 0.0, %v8488
    %v9353 = vsub.f32 0.0, %v8489
    %v9354 = vsub.f32 0.0, %v8490
    %v9355 = vsub.f32 0.0, %v8491
    %v9356 = vsub.f32 0.0, %v8492
    %v9357 = vsub.f32 0.0, %v8493
    %v9358 = vsub.f32 0.0, %v8494
    %v9359 = vsub.f32 0.0, %v8495
    %v9360 = vsub.f32 0.0, %v8496
    %v9361 = vsub.f32 0.0, %v8497
    %v9362 = vsub.f32 0.0, %v8498
    %v9363 = vsub.f32 0.0, %v8499
    %v9364 = vsub.f32 0.0, %v8500
    %v9365 = vsub.f32 0.0, %v8501
    %v9366 = vsub.f32 0.0, %v8502
    %v9367 = vsub.f32 0.0, %v8503
    %v9368 = vsub.f32 0.0, %v8504
    %v9369 = vsub.f32 0.0, %v8505
    %v9370 = vsub.f32 0.0, %v8506
    %v9371 = vmul.f32 %v9339, %v8475
    %v9372 = vmul.f32 %v9340, %v8476
    %v9373 = vmul.f32 %v9341, %v8477
    %v9374 = vmul.f32 %v9342, %v8478
    %v9375 = vmul.f32 %v9343, %v8479
    %v9376 = vmul.f32 %v9344, %v8480
    %v9377 = vmul.f32 %v9345, %v8481
    %v9378 = vmul.f32 %v9346, %v8482
    %v9379 = vmul.f32 %v9347, %v8483
    %v9380 = vmul.f32 %v9348, %v8484
    %v9381 = vmul.f32 %v9349, %v8485
    %v9382 = vmul.f32 %v9350, %v8486
    %v9383 = vmul.f32 %v9351, %v8487
    %v9384 = vmul.f32 %v9352, %v8488
    %v9385 = vmul.f32 %v9353, %v8489
    %v9386 = vmul.f32 %v9354, %v8490
    %v9387 = vmul.f32 %v9355, %v8491
    %v9388 = vmul.f32 %v9356, %v8492
    %v9389 = vmul.f32 %v9357, %v8493
    %v9390 = vmul.f32 %v9358, %v8494
    %v9391 = vmul.f32 %v9359, %v8495
    %v9392 = vmul.f32 %v9360, %v8496
    %v9393 = vmul.f32 %v9361, %v8497
    %v9394 = vmul.f32 %v9362, %v8498
    %v9395 = vmul.f32 %v9363, %v8499
    %v9396 = vmul.f32 %v9364, %v8500
    %v9397 = vmul.f32 %v9365, %v8501
    %v9398 = vmul.f32 %v9366, %v8502
    %v9399 = vmul.f32 %v9367, %v8503
    %v9400 = vmul.f32 %v9368, %v8504
    %v9401 = vmul.f32 %v9369, %v8505
    %v9402 = vmul.f32 %v9370, %v8506
    %v9403 = vmul.f32 %v9371, 1.442695
    %v9404 = vpow.pop %v9403
    %v9405 = vmul.f32 %v9372, 1.442695
    %v9406 = vpow.pop %v9405
    %v9407 = vmul.f32 %v9373, 1.442695
    %v9408 = vpow.pop %v9407
    %v9409 = vmul.f32 %v9374, 1.442695
    %v9410 = vpow.pop %v9409
    %v9411 = vmul.f32 %v9375, 1.442695
    %v9412 = vpow.pop %v9411
    %v9413 = vmul.f32 %v9376, 1.442695
    %v9414 = vpow.pop %v9413
    %v9415 = vmul.f32 %v9377, 1.442695
    %v9416 = vpow.pop %v9415
    %v9417 = vmul.f32 %v9378, 1.442695
    %v9418 = vpow.pop %v9417
    %v9419 = vmul.f32 %v9379, 1.442695
    %v9420 = vpow.pop %v9419
    %v9421 = vmul.f32 %v9380, 1.442695
    %v9422 = vpow.pop %v9421
    %v9423 = vmul.f32 %v9381, 1.442695
    %v9424 = vpow.pop %v9423
    %v9425 = vmul.f32 %v9382, 1.442695
    %v9426 = vpow.pop %v9425
    %v9427 = vmul.f32 %v9383, 1.442695
    %v9428 = vpow.pop %v9427
    %v9429 = vmul.f32 %v9384, 1.442695
    %v9430 = vpow.pop %v9429
    %v9431 = vmul.f32 %v9385, 1.442695
    %v9432 = vpow.pop %v9431
    %v9433 = vmul.f32 %v9386, 1.442695
    %v9434 = vpow.pop %v9433
    %v9435 = vmul.f32 %v9387, 1.442695
    %v9436 = vpow.pop %v9435
    %v9437 = vmul.f32 %v9388, 1.442695
    %v9438 = vpow.pop %v9437
    %v9439 = vmul.f32 %v9389, 1.442695
    %v9440 = vpow.pop %v9439
    %v9441 = vmul.f32 %v9390, 1.442695
    %v9442 = vpow.pop %v9441
    %v9443 = vmul.f32 %v9391, 1.442695
    %v9444 = vpow.pop %v9443
    %v9445 = vmul.f32 %v9392, 1.442695
    %v9446 = vpow.pop %v9445
    %v9447 = vmul.f32 %v9393, 1.442695
    %v9448 = vpow.pop %v9447
    %v9449 = vmul.f32 %v9394, 1.442695
    %v9450 = vpow.pop %v9449
    %v9451 = vmul.f32 %v9395, 1.442695
    %v9452 = vpow.pop %v9451
    %v9453 = vmul.f32 %v9396, 1.442695
    %v9454 = vpow.pop %v9453
    %v9455 = vmul.f32 %v9397, 1.442695
    %v9456 = vpow.pop %v9455
    %v9457 = vmul.f32 %v9398, 1.442695
    %v9458 = vpow.pop %v9457
    %v9459 = vmul.f32 %v9399, 1.442695
    %v9460 = vpow.pop %v9459
    %v9461 = vmul.f32 %v9400, 1.442695
    %v9462 = vpow.pop %v9461
    %v9463 = vmul.f32 %v9401, 1.442695
    %v9464 = vpow.pop %v9463
    %v9465 = vmul.f32 %v9402, 1.442695
    %v9466 = vpow.pop %v9465
    %v9467 = vmul.f32 %v9307, %v9404
    %v9468 = vmul.f32 %v9308, %v9406
    %v9469 = vmul.f32 %v9309, %v9408
    %v9470 = vmul.f32 %v9310, %v9410
    %v9471 = vmul.f32 %v9311, %v9412
    %v9472 = vmul.f32 %v9312, %v9414
    %v9473 = vmul.f32 %v9313, %v9416
    %v9474 = vmul.f32 %v9314, %v9418
    %v9475 = vmul.f32 %v9315, %v9420
    %v9476 = vmul.f32 %v9316, %v9422
    %v9477 = vmul.f32 %v9317, %v9424
    %v9478 = vmul.f32 %v9318, %v9426
    %v9479 = vmul.f32 %v9319, %v9428
    %v9480 = vmul.f32 %v9320, %v9430
    %v9481 = vmul.f32 %v9321, %v9432
    %v9482 = vmul.f32 %v9322, %v9434
    %v9483 = vmul.f32 %v9323, %v9436
    %v9484 = vmul.f32 %v9324, %v9438
    %v9485 = vmul.f32 %v9325, %v9440
    %v9486 = vmul.f32 %v9326, %v9442
    %v9487 = vmul.f32 %v9327, %v9444
    %v9488 = vmul.f32 %v9328, %v9446
    %v9489 = vmul.f32 %v9329, %v9448
    %v9490 = vmul.f32 %v9330, %v9450
    %v9491 = vmul.f32 %v9331, %v9452
    %v9492 = vmul.f32 %v9332, %v9454
    %v9493 = vmul.f32 %v9333, %v9456
    %v9494 = vmul.f32 %v9334, %v9458
    %v9495 = vmul.f32 %v9335, %v9460
    %v9496 = vmul.f32 %v9336, %v9462
    %v9497 = vmul.f32 %v9337, %v9464
    %v9498 = vmul.f32 %v9338, %v9466
    %v9499 = vsub.f32 1.0, %v9467
    %v9500 = vsub.f32 1.0, %v9468
    %v9501 = vsub.f32 1.0, %v9469
    %v9502 = vsub.f32 1.0, %v9470
    %v9503 = vsub.f32 1.0, %v9471
    %v9504 = vsub.f32 1.0, %v9472
    %v9505 = vsub.f32 1.0, %v9473
    %v9506 = vsub.f32 1.0, %v9474
    %v9507 = vsub.f32 1.0, %v9475
    %v9508 = vsub.f32 1.0, %v9476
    %v9509 = vsub.f32 1.0, %v9477
    %v9510 = vsub.f32 1.0, %v9478
    %v9511 = vsub.f32 1.0, %v9479
    %v9512 = vsub.f32 1.0, %v9480
    %v9513 = vsub.f32 1.0, %v9481
    %v9514 = vsub.f32 1.0, %v9482
    %v9515 = vsub.f32 1.0, %v9483
    %v9516 = vsub.f32 1.0, %v9484
    %v9517 = vsub.f32 1.0, %v9485
    %v9518 = vsub.f32 1.0, %v9486
    %v9519 = vsub.f32 1.0, %v9487
    %v9520 = vsub.f32 1.0, %v9488
    %v9521 = vsub.f32 1.0, %v9489
    %v9522 = vsub.f32 1.0, %v9490
    %v9523 = vsub.f32 1.0, %v9491
    %v9524 = vsub.f32 1.0, %v9492
    %v9525 = vsub.f32 1.0, %v9493
    %v9526 = vsub.f32 1.0, %v9494
    %v9527 = vsub.f32 1.0, %v9495
    %v9528 = vsub.f32 1.0, %v9496
    %v9529 = vsub.f32 1.0, %v9497
    %v9530 = vsub.f32 1.0, %v9498
    %vm9531 = vcmp.lt.f32.partialorder %v8443, 0.0
    %vm9532 = vcmp.lt.f32.partialorder %v8444, 0.0
    %vm9533 = vcmp.lt.f32.partialorder %v8445, 0.0
    %vm9534 = vcmp.lt.f32.partialorder %v8446, 0.0
    %vm9535 = vcmp.lt.f32.partialorder %v8447, 0.0
    %vm9536 = vcmp.lt.f32.partialorder %v8448, 0.0
    %vm9537 = vcmp.lt.f32.partialorder %v8449, 0.0
    %vm9538 = vcmp.lt.f32.partialorder %v8450, 0.0
    %vm9539 = vcmp.lt.f32.partialorder %v8451, 0.0
    %vm9540 = vcmp.lt.f32.partialorder %v8452, 0.0
    %vm9541 = vcmp.lt.f32.partialorder %v8453, 0.0
    %vm9542 = vcmp.lt.f32.partialorder %v8454, 0.0
    %vm9543 = vcmp.lt.f32.partialorder %v8455, 0.0
    %vm9544 = vcmp.lt.f32.partialorder %v8456, 0.0
    %vm9545 = vcmp.lt.f32.partialorder %v8457, 0.0
    %vm9546 = vcmp.lt.f32.partialorder %v8458, 0.0
    %vm9547 = vcmp.lt.f32.partialorder %v8459, 0.0
    %vm9548 = vcmp.lt.f32.partialorder %v8460, 0.0
    %vm9549 = vcmp.lt.f32.partialorder %v8461, 0.0
    %vm9550 = vcmp.lt.f32.partialorder %v8462, 0.0
    %vm9551 = vcmp.lt.f32.partialorder %v8463, 0.0
    %vm9552 = vcmp.lt.f32.partialorder %v8464, 0.0
    %vm9553 = vcmp.lt.f32.partialorder %v8465, 0.0
    %vm9554 = vcmp.lt.f32.partialorder %v8466, 0.0
    %vm9555 = vcmp.lt.f32.partialorder %v8467, 0.0
    %vm9556 = vcmp.lt.f32.partialorder %v8468, 0.0
    %vm9557 = vcmp.lt.f32.partialorder %v8469, 0.0
    %vm9558 = vcmp.lt.f32.partialorder %v8470, 0.0
    %vm9559 = vcmp.lt.f32.partialorder %v8471, 0.0
    %vm9560 = vcmp.lt.f32.partialorder %v8472, 0.0
    %vm9561 = vcmp.lt.f32.partialorder %v8473, 0.0
    %vm9562 = vcmp.lt.f32.partialorder %v8474, 0.0
    %v9563 = vsub.f32 0.0, %v9499
    %v9564 = vsub.f32 0.0, %v9500
    %v9565 = vsub.f32 0.0, %v9501
    %v9566 = vsub.f32 0.0, %v9502
    %v9567 = vsub.f32 0.0, %v9503
    %v9568 = vsub.f32 0.0, %v9504
    %v9569 = vsub.f32 0.0, %v9505
    %v9570 = vsub.f32 0.0, %v9506
    %v9571 = vsub.f32 0.0, %v9507
    %v9572 = vsub.f32 0.0, %v9508
    %v9573 = vsub.f32 0.0, %v9509
    %v9574 = vsub.f32 0.0, %v9510
    %v9575 = vsub.f32 0.0, %v9511
    %v9576 = vsub.f32 0.0, %v9512
    %v9577 = vsub.f32 0.0, %v9513
    %v9578 = vsub.f32 0.0, %v9514
    %v9579 = vsub.f32 0.0, %v9515
    %v9580 = vsub.f32 0.0, %v9516
    %v9581 = vsub.f32 0.0, %v9517
    %v9582 = vsub.f32 0.0, %v9518
    %v9583 = vsub.f32 0.0, %v9519
    %v9584 = vsub.f32 0.0, %v9520
    %v9585 = vsub.f32 0.0, %v9521
    %v9586 = vsub.f32 0.0, %v9522
    %v9587 = vsub.f32 0.0, %v9523
    %v9588 = vsub.f32 0.0, %v9524
    %v9589 = vsub.f32 0.0, %v9525
    %v9590 = vsub.f32 0.0, %v9526
    %v9591 = vsub.f32 0.0, %v9527
    %v9592 = vsub.f32 0.0, %v9528
    %v9593 = vsub.f32 0.0, %v9529
    %v9594 = vsub.f32 0.0, %v9530
    %v9595 = vsel %vm9531, %v9563, %v9499
    %v9596 = vsel %vm9532, %v9564, %v9500
    %v9597 = vsel %vm9533, %v9565, %v9501
    %v9598 = vsel %vm9534, %v9566, %v9502
    %v9599 = vsel %vm9535, %v9567, %v9503
    %v9600 = vsel %vm9536, %v9568, %v9504
    %v9601 = vsel %vm9537, %v9569, %v9505
    %v9602 = vsel %vm9538, %v9570, %v9506
    %v9603 = vsel %vm9539, %v9571, %v9507
    %v9604 = vsel %vm9540, %v9572, %v9508
    %v9605 = vsel %vm9541, %v9573, %v9509
    %v9606 = vsel %vm9542, %v9574, %v9510
    %v9607 = vsel %vm9543, %v9575, %v9511
    %v9608 = vsel %vm9544, %v9576, %v9512
    %v9609 = vsel %vm9545, %v9577, %v9513
    %v9610 = vsel %vm9546, %v9578, %v9514
    %v9611 = vsel %vm9547, %v9579, %v9515
    %v9612 = vsel %vm9548, %v9580, %v9516
    %v9613 = vsel %vm9549, %v9581, %v9517
    %v9614 = vsel %vm9550, %v9582, %v9518
    %v9615 = vsel %vm9551, %v9583, %v9519
    %v9616 = vsel %vm9552, %v9584, %v9520
    %v9617 = vsel %vm9553, %v9585, %v9521
    %v9618 = vsel %vm9554, %v9586, %v9522
    %v9619 = vsel %vm9555, %v9587, %v9523
    %v9620 = vsel %vm9556, %v9588, %v9524
    %v9621 = vsel %vm9557, %v9589, %v9525
    %v9622 = vsel %vm9558, %v9590, %v9526
    %v9623 = vsel %vm9559, %v9591, %v9527
    %v9624 = vsel %vm9560, %v9592, %v9528
    %v9625 = vsel %vm9561, %v9593, %v9529
    %v9626 = vsel %vm9562, %v9594, %v9530
    %v9627 = vadd.f32 %v9595, 1.0
    %v9628 = vadd.f32 %v9596, 1.0
    %v9629 = vadd.f32 %v9597, 1.0
    %v9630 = vadd.f32 %v9598, 1.0
    %v9631 = vadd.f32 %v9599, 1.0
    %v9632 = vadd.f32 %v9600, 1.0
    %v9633 = vadd.f32 %v9601, 1.0
    %v9634 = vadd.f32 %v9602, 1.0
    %v9635 = vadd.f32 %v9603, 1.0
    %v9636 = vadd.f32 %v9604, 1.0
    %v9637 = vadd.f32 %v9605, 1.0
    %v9638 = vadd.f32 %v9606, 1.0
    %v9639 = vadd.f32 %v9607, 1.0
    %v9640 = vadd.f32 %v9608, 1.0
    %v9641 = vadd.f32 %v9609, 1.0
    %v9642 = vadd.f32 %v9610, 1.0
    %v9643 = vadd.f32 %v9611, 1.0
    %v9644 = vadd.f32 %v9612, 1.0
    %v9645 = vadd.f32 %v9613, 1.0
    %v9646 = vadd.f32 %v9614, 1.0
    %v9647 = vadd.f32 %v9615, 1.0
    %v9648 = vadd.f32 %v9616, 1.0
    %v9649 = vadd.f32 %v9617, 1.0
    %v9650 = vadd.f32 %v9618, 1.0
    %v9651 = vadd.f32 %v9619, 1.0
    %v9652 = vadd.f32 %v9620, 1.0
    %v9653 = vadd.f32 %v9621, 1.0
    %v9654 = vadd.f32 %v9622, 1.0
    %v9655 = vadd.f32 %v9623, 1.0
    %v9656 = vadd.f32 %v9624, 1.0
    %v9657 = vadd.f32 %v9625, 1.0
    %v9658 = vadd.f32 %v9626, 1.0
    %v9659 = vmul.f32 %v8411, %v9627
    %v9660 = vmul.f32 %v8412, %v9628
    %v9661 = vmul.f32 %v8413, %v9629
    %v9662 = vmul.f32 %v8414, %v9630
    %v9663 = vmul.f32 %v8415, %v9631
    %v9664 = vmul.f32 %v8416, %v9632
    %v9665 = vmul.f32 %v8417, %v9633
    %v9666 = vmul.f32 %v8418, %v9634
    %v9667 = vmul.f32 %v8419, %v9635
    %v9668 = vmul.f32 %v8420, %v9636
    %v9669 = vmul.f32 %v8421, %v9637
    %v9670 = vmul.f32 %v8422, %v9638
    %v9671 = vmul.f32 %v8423, %v9639
    %v9672 = vmul.f32 %v8424, %v9640
    %v9673 = vmul.f32 %v8425, %v9641
    %v9674 = vmul.f32 %v8426, %v9642
    %v9675 = vmul.f32 %v8427, %v9643
    %v9676 = vmul.f32 %v8428, %v9644
    %v9677 = vmul.f32 %v8429, %v9645
    %v9678 = vmul.f32 %v8430, %v9646
    %v9679 = vmul.f32 %v8431, %v9647
    %v9680 = vmul.f32 %v8432, %v9648
    %v9681 = vmul.f32 %v8433, %v9649
    %v9682 = vmul.f32 %v8434, %v9650
    %v9683 = vmul.f32 %v8435, %v9651
    %v9684 = vmul.f32 %v8436, %v9652
    %v9685 = vmul.f32 %v8437, %v9653
    %v9686 = vmul.f32 %v8438, %v9654
    %v9687 = vmul.f32 %v8439, %v9655
    %v9688 = vmul.f32 %v8440, %v9656
    %v9689 = vmul.f32 %v8441, %v9657
    %v9690 = vmul.f32 %v8442, %v9658
    %v9691 = vpack.c.bf16 %v9660, %v9659
    %v9692 = vpack.c.bf16 %v9662, %v9661
    %v9693 = vpack.c.bf16 %v9664, %v9663
    %v9694 = vpack.c.bf16 %v9666, %v9665
    %v9695 = vpack.c.bf16 %v9668, %v9667
    %v9696 = vpack.c.bf16 %v9670, %v9669
    %v9697 = vpack.c.bf16 %v9672, %v9671
    %v9698 = vpack.c.bf16 %v9674, %v9673
    %v9699 = vpack.c.bf16 %v9676, %v9675
    %v9700 = vpack.c.bf16 %v9678, %v9677
    %v9701 = vpack.c.bf16 %v9680, %v9679
    %v9702 = vpack.c.bf16 %v9682, %v9681
    %v9703 = vpack.c.bf16 %v9684, %v9683
    %v9704 = vpack.c.bf16 %v9686, %v9685
    %v9705 = vpack.c.bf16 %v9688, %v9687
    %v9706 = vpack.c.bf16 %v9690, %v9689
    %v9707 = vld [vmem:[%s12] sm:$0xf]
    %v9708 = vld [vmem:[%s12 + $0x4] sm:$0xf]
    %v9709 = vld [vmem:[%s12 + $0x8] sm:$0xf]
    %v9710 = vld [vmem:[%s12 + $0xc] sm:$0xf]
    %v9711 = vld [vmem:[%s12 + $0x10] sm:$0xf]
    %v9712 = vld [vmem:[%s12 + $0x14] sm:$0xf]
    %v9713 = vld [vmem:[%s12 + $0x18] sm:$0xf]
    %v9714 = vld [vmem:[%s12 + $0x1c] sm:$0xf]
    %v9715 = vld [vmem:[%s12 + $0x20] sm:$0xf]
    %v9716 = vld [vmem:[%s12 + $0x24] sm:$0xf]
    %v9717 = vld [vmem:[%s12 + $0x28] sm:$0xf]
    %v9718 = vld [vmem:[%s12 + $0x2c] sm:$0xf]
    %v9719 = vld [vmem:[%s12 + $0x30] sm:$0xf]
    %v9720 = vld [vmem:[%s12 + $0x34] sm:$0xf]
    %v9721 = vld [vmem:[%s12 + $0x38] sm:$0xf]
    %v9722 = vld [vmem:[%s12 + $0x3c] sm:$0xf]
    %v9723 = vld [vmem:[%s13] sm:$0x1]
    %v9725 = vperm.slane %v9723, 0
    %v9743 = vunpack.c.l.b16 %v9707
    %v9744 = vunpack.c.l.b16 %v9708
    %v9745 = vunpack.c.l.b16 %v9709
    %v9746 = vunpack.c.l.b16 %v9710
    %v9747 = vunpack.c.l.b16 %v9711
    %v9748 = vunpack.c.l.b16 %v9712
    %v9749 = vunpack.c.l.b16 %v9713
    %v9750 = vunpack.c.l.b16 %v9714
    %v9751 = vunpack.c.l.b16 %v9715
    %v9752 = vunpack.c.l.b16 %v9716
    %v9753 = vunpack.c.l.b16 %v9717
    %v9754 = vunpack.c.l.b16 %v9718
    %v9755 = vunpack.c.l.b16 %v9719
    %v9756 = vunpack.c.l.b16 %v9720
    %v9757 = vunpack.c.l.b16 %v9721
    %v9758 = vunpack.c.l.b16 %v9722
    %v9759 = vpack.c.b16 %v9744, %v9743
    %v9760 = vpack.c.b16 %v9746, %v9745
    %v9761 = vpack.c.b16 %v9748, %v9747
    %v9762 = vpack.c.b16 %v9750, %v9749
    %v9763 = vpack.c.b16 %v9752, %v9751
    %v9764 = vpack.c.b16 %v9754, %v9753
    %v9765 = vpack.c.b16 %v9756, %v9755
    %v9766 = vpack.c.b16 %v9758, %v9757
    %9775 = vmatpush.bf16.msra.mxu0 %v9766
    %9776 = vmatpush.bf16.msra.mxu0 %v9765
    %9777 = vmatpush.bf16.msra.mxu0 %v9764
    %9778 = vmatpush.bf16.msra.mxu0 %v9763
    %9779 = vmatpush.bf16.msra.mxu0 %v9762
    %9780 = vmatpush.bf16.msra.mxu0 %v9761
    %9781 = vmatpush.bf16.msra.mxu0 %v9760
    %9782 = vmatpush.bf16.msra.mxu0 %v9759
    %9783 = vmatmul.bf16.gmra.mxu0 %v9691
    %v9784 = vpop.f32.mrf.mxu0
    %v9785 = vadd.f32 %v9725, %v9784
    %v9786 = vpop.f32.mrf.mxu0
    %v9787 = vadd.f32 %v9725, %v9786
    %9788 = vmatmul.bf16.gmra.mxu0 %v9692
    %v9789 = vpop.f32.mrf.mxu0
    %v9790 = vadd.f32 %v9725, %v9789
    %v9791 = vpop.f32.mrf.mxu0
    %v9792 = vadd.f32 %v9725, %v9791
    %9793 = vmatmul.bf16.gmra.mxu0 %v9693
    %v9794 = vpop.f32.mrf.mxu0
    %v9795 = vadd.f32 %v9725, %v9794
    %v9796 = vpop.f32.mrf.mxu0
    %v9797 = vadd.f32 %v9725, %v9796
    %9798 = vmatmul.bf16.gmra.mxu0 %v9694
    %v9799 = vpop.f32.mrf.mxu0
    %v9800 = vadd.f32 %v9725, %v9799
    %v9801 = vpop.f32.mrf.mxu0
    %v9802 = vadd.f32 %v9725, %v9801
    %9803 = vmatmul.bf16.gmra.mxu0 %v9695
    %v9804 = vpop.f32.mrf.mxu0
    %v9805 = vadd.f32 %v9725, %v9804
    %v9806 = vpop.f32.mrf.mxu0
    %v9807 = vadd.f32 %v9725, %v9806
    %9808 = vmatmul.bf16.gmra.mxu0 %v9696
    %v9809 = vpop.f32.mrf.mxu0
    %v9810 = vadd.f32 %v9725, %v9809
    %v9811 = vpop.f32.mrf.mxu0
    %v9812 = vadd.f32 %v9725, %v9811
    %9813 = vmatmul.bf16.gmra.mxu0 %v9697
    %v9814 = vpop.f32.mrf.mxu0
    %v9815 = vadd.f32 %v9725, %v9814
    %v9816 = vpop.f32.mrf.mxu0
    %v9817 = vadd.f32 %v9725, %v9816
    %9818 = vmatmul.bf16.gmra.mxu0 %v9698
    %v9819 = vpop.f32.mrf.mxu0
    %v9820 = vadd.f32 %v9725, %v9819
    %v9821 = vpop.f32.mrf.mxu0
    %v9822 = vadd.f32 %v9725, %v9821
    %9823 = vmatmul.bf16.gmra.mxu0 %v9699
    %v9824 = vpop.f32.mrf.mxu0
    %v9825 = vadd.f32 %v9725, %v9824
    %v9826 = vpop.f32.mrf.mxu0
    %v9827 = vadd.f32 %v9725, %v9826
    %9828 = vmatmul.bf16.gmra.mxu0 %v9700
    %v9829 = vpop.f32.mrf.mxu0
    %v9830 = vadd.f32 %v9725, %v9829
    %v9831 = vpop.f32.mrf.mxu0
    %v9832 = vadd.f32 %v9725, %v9831
    %9833 = vmatmul.bf16.gmra.mxu0 %v9701
    %v9834 = vpop.f32.mrf.mxu0
    %v9835 = vadd.f32 %v9725, %v9834
    %v9836 = vpop.f32.mrf.mxu0
    %v9837 = vadd.f32 %v9725, %v9836
    %9838 = vmatmul.bf16.gmra.mxu0 %v9702
    %v9839 = vpop.f32.mrf.mxu0
    %v9840 = vadd.f32 %v9725, %v9839
    %v9841 = vpop.f32.mrf.mxu0
    %v9842 = vadd.f32 %v9725, %v9841
    %9843 = vmatmul.bf16.gmra.mxu0 %v9703
    %v9844 = vpop.f32.mrf.mxu0
    %v9845 = vadd.f32 %v9725, %v9844
    %v9846 = vpop.f32.mrf.mxu0
    %v9847 = vadd.f32 %v9725, %v9846
    %9848 = vmatmul.bf16.gmra.mxu0 %v9704
    %v9849 = vpop.f32.mrf.mxu0
    %v9850 = vadd.f32 %v9725, %v9849
    %v9851 = vpop.f32.mrf.mxu0
    %v9852 = vadd.f32 %v9725, %v9851
    %9853 = vmatmul.bf16.gmra.mxu0 %v9705
    %v9854 = vpop.f32.mrf.mxu0
    %v9855 = vadd.f32 %v9725, %v9854
    %v9856 = vpop.f32.mrf.mxu0
    %v9857 = vadd.f32 %v9725, %v9856
    %9858 = vmatmul.bf16.gmra.mxu0 %v9706
    %v9859 = vpop.f32.mrf.mxu0
    %v9860 = vadd.f32 %v9725, %v9859
    %v9861 = vpop.f32.mrf.mxu0
    %v9862 = vadd.f32 %v9725, %v9861
    %9863 = vdwg.mxu0
    %v9864 = vadd.f32 %v9785, %v7502
    %v9865 = vadd.f32 %v9787, %v7503
    %v9866 = vadd.f32 %v9790, %v7504
    %v9867 = vadd.f32 %v9792, %v7505
    %v9868 = vadd.f32 %v9795, %v7506
    %v9869 = vadd.f32 %v9797, %v7507
    %v9870 = vadd.f32 %v9800, %v7508
    %v9871 = vadd.f32 %v9802, %v7509
    %v9872 = vadd.f32 %v9805, %v7510
    %v9873 = vadd.f32 %v9807, %v7511
    %v9874 = vadd.f32 %v9810, %v7512
    %v9875 = vadd.f32 %v9812, %v7513
    %v9876 = vadd.f32 %v9815, %v7514
    %v9877 = vadd.f32 %v9817, %v7515
    %v9878 = vadd.f32 %v9820, %v7516
    %v9879 = vadd.f32 %v9822, %v7517
    %v9880 = vadd.f32 %v9825, %v7518
    %v9881 = vadd.f32 %v9827, %v7519
    %v9882 = vadd.f32 %v9830, %v7520
    %v9883 = vadd.f32 %v9832, %v7521
    %v9884 = vadd.f32 %v9835, %v7522
    %v9885 = vadd.f32 %v9837, %v7523
    %v9886 = vadd.f32 %v9840, %v7524
    %v9887 = vadd.f32 %v9842, %v7525
    %v9888 = vadd.f32 %v9845, %v7526
    %v9889 = vadd.f32 %v9847, %v7527
    %v9890 = vadd.f32 %v9850, %v7528
    %v9891 = vadd.f32 %v9852, %v7529
    %v9892 = vadd.f32 %v9855, %v7530
    %v9893 = vadd.f32 %v9857, %v7531
    %v9894 = vadd.f32 %v9860, %v7532
    %v9895 = vadd.f32 %v9862, %v7533
    %s9896 = scalar_lea.vmem [#allocation2], 256
    %9897 = vst [vmem:[%s9896] sm:$0xff] %v9864
    %9898 = vst [vmem:[%s9896 + $0x8] sm:$0xff] %v9865
    %9899 = vst [vmem:[%s9896 + $0x10] sm:$0xff] %v9866
    %9900 = vst [vmem:[%s9896 + $0x18] sm:$0xff] %v9867
    %9901 = vst [vmem:[%s9896 + $0x20] sm:$0xff] %v9868
    %9902 = vst [vmem:[%s9896 + $0x28] sm:$0xff] %v9869
    %9903 = vst [vmem:[%s9896 + $0x30] sm:$0xff] %v9870
    %9904 = vst [vmem:[%s9896 + $0x38] sm:$0xff] %v9871
    %9905 = vst [vmem:[%s9896 + $0x40] sm:$0xff] %v9872
    %9906 = vst [vmem:[%s9896 + $0x48] sm:$0xff] %v9873
    %9907 = vst [vmem:[%s9896 + $0x50] sm:$0xff] %v9874
    %9908 = vst [vmem:[%s9896 + $0x58] sm:$0xff] %v9875
    %9909 = vst [vmem:[%s9896 + $0x60] sm:$0xff] %v9876
    %9910 = vst [vmem:[%s9896 + $0x68] sm:$0xff] %v9877
    %9911 = vst [vmem:[%s9896 + $0x70] sm:$0xff] %v9878
    %9912 = vst [vmem:[%s9896 + $0x78] sm:$0xff] %v9879
    %9913 = vst [vmem:[%s9896 + $0x80] sm:$0xff] %v9880
    %9914 = vst [vmem:[%s9896 + $0x88] sm:$0xff] %v9881
    %9915 = vst [vmem:[%s9896 + $0x90] sm:$0xff] %v9882
    %9916 = vst [vmem:[%s9896 + $0x98] sm:$0xff] %v9883
    %9917 = vst [vmem:[%s9896 + $0xa0] sm:$0xff] %v9884
    %9918 = vst [vmem:[%s9896 + $0xa8] sm:$0xff] %v9885
    %9919 = vst [vmem:[%s9896 + $0xb0] sm:$0xff] %v9886
    %9920 = vst [vmem:[%s9896 + $0xb8] sm:$0xff] %v9887
    %9921 = vst [vmem:[%s9896 + $0xc0] sm:$0xff] %v9888
    %9922 = vst [vmem:[%s9896 + $0xc8] sm:$0xff] %v9889
    %9923 = vst [vmem:[%s9896 + $0xd0] sm:$0xff] %v9890
    %9924 = vst [vmem:[%s9896 + $0xd8] sm:$0xff] %v9891
    %9925 = vst [vmem:[%s9896 + $0xe0] sm:$0xff] %v9892
    %9926 = vst [vmem:[%s9896 + $0xe8] sm:$0xff] %v9893
    %9927 = vst [vmem:[%s9896 + $0xf0] sm:$0xff] %v9894
    %9928 = vst [vmem:[%s9896 + $0xf8] sm:$0xff] %v9895
    // Predicated region
    $region58: #{self_attention_forward.1} parent=1 // pred_check
      _
    $region59: #{self_attention_forward.1} parent=1 // pred_check_branch
      %9930 = sbr.rel (0) target = $region61
    $region60: #{self_attention_forward.1} parent=1 // pred_region
      %9932 = vsyncadd [#allocation3], 0
      %s9933 = sshll.u32 [#allocation2], 4
      %s9934 = int_to_ptr.vmem [resolvable:$true] %s9933
      %s9935 = sshll.u32 %s14, 4
      %s9936 = int_to_ptr.hbm [resolvable:$true] %s9935
      %9941 = dma.vmem_to_hbm [thread:$0]  %s9934, 8192, %s9936, [#allocation3], 128, 128, 8
    $region61: #{self_attention_forward.1} parent=1 // pred_fallthru
      _
    // Predicated region
    $region62: #{self_attention_forward.1} parent=1 // pred_check
      _
    $region63: #{self_attention_forward.1} parent=1 // pred_check_branch
      %9943 = sbr.rel (0) target = $region65
    $region64: #{self_attention_forward.1} parent=1 // pred_region
      %9945 = dma.done [#allocation3], 8192
    $region65: #{self_attention_forward.1} parent=1 // pred_fallthru
      _
    %9946 = vsyncpa [#allocation3], 1

</llo_original>
